<compile_context>
chip_gen: v7x
topology: tpu7x:2x2x1
jax: 0.10.0
libtpu: 0.0.40
codegen_flags: <defaults>
</compile_context>

<pallas_src>
import numpy as np
import jax
import jax.numpy as jnp
from jax.experimental import pallas as pl
from jax.experimental.pallas import tpu as pltpu

BN_EPS = 1e-5


# ----------------------------------------------------------------------
# Hierarchical ("octree") row order for conv1's output locations.
# Row r = tap1*64 + tap2*8 + tap3, where tapN = 4*dt + 2*dh + dw is the
# location's offset inside its level-N parent patch.  With this ordering,
# reshaping a layer's (M, C) output to (8, M/8, C) yields exactly the next
# layer's 8 input taps — as a free leading-dim split.
# ----------------------------------------------------------------------
def _hier_row_perm():
    r = np.arange(512)
    tap1, rest = r // 64, r % 64
    tap2, tap3 = rest // 8, rest % 8
    bits = lambda v: ((v >> 2) & 1, (v >> 1) & 1, v & 1)
    ct, ch, cw = bits(tap1)
    bt, bh, bw = bits(tap2)
    at, ah, aw = bits(tap3)
    t = 4 * at + 2 * bt + ct
    h = 4 * ah + 2 * bh + ch
    w = 4 * aw + 2 * bw + cw
    return (t * 64 + h * 8 + w).astype(np.int32)   # natural index for hier row r


_O1_PERM = _hier_row_perm()


# ----------------------------------------------------------------------
# The single fused kernel.
# ----------------------------------------------------------------------
def _twostream_fused_kernel(x_ref, w1_ref, sh1_ref, w2_ref, sh2_ref,
                            w3_ref, sh3_ref, wc_ref, shc_ref,
                            wf1_ref, wf2_ref, o_ref):
    bf16 = jnp.bfloat16
    acc_c = shc_ref[...]                            # (1,256) f32, combo1 shift pre-loaded
    for s in range(2):                              # s=0: rgb stream, s=1: optical flow
        # conv1 + BN + ReLU : one (512, 8*Cin) @ (8*Cin, 16) matmul.
        y = jnp.dot(x_ref[s], w1_ref[s], preferred_element_type=jnp.float32)
        y = jnp.maximum(y + sh1_ref[s], 0.0)        # (512,16), rows in hierarchical order

        # conv2 + BN + ReLU : 8-tap accumulation (no patchify — reshape is free).
        a = y.reshape(8, 64, 16)
        acc = jnp.zeros((64, 32), jnp.float32)
        for t in range(8):
            acc = acc + jnp.dot(a[t].astype(bf16), w2_ref[s, t],
                                preferred_element_type=jnp.float32)
        y = jnp.maximum(acc + sh2_ref[s], 0.0)      # (64,32)

        # conv3 + BN + ReLU.
        a = y.reshape(8, 8, 32)
        acc = jnp.zeros((8, 64), jnp.float32)
        for t in range(8):
            acc = acc + jnp.dot(a[t].astype(bf16), w3_ref[s, t],
                                preferred_element_type=jnp.float32)
        y3 = jnp.maximum(acc + sh3_ref[s], 0.0)     # (8,64), rows = conv3 (t,h,w)

        # conv_combo1 contribution of this stream (its half of the channel concat).
        for t in range(8):
            acc_c = acc_c + jnp.dot(y3[t:t + 1, :].astype(bf16), wc_ref[s, t],
                                    preferred_element_type=jnp.float32)

    h = jnp.maximum(acc_c, 0.0)                     # combo1 BN + ReLU      (1,256)
    h = jnp.maximum(jnp.dot(h.astype(bf16), wf1_ref[...],
                            preferred_element_type=jnp.float32), 0.0)   # fc_combo1+ReLU
    out = jnp.dot(h.astype(bf16), wf2_ref[...],
                  preferred_element_type=jnp.float32)                    # fc_combo2
    o_ref[...] = out.astype(o_ref.dtype)


# ----------------------------------------------------------------------
# Parameter initialization (deterministic, synthetic) — torch layouts.
# ----------------------------------------------------------------------
def _conv_bn_params(key, cin, cout):
    k = jax.random.split(key, 6)
    return dict(
        w=0.05 * jax.random.normal(k[0], (cout, cin, 2, 2, 2), jnp.float32),
        b=0.05 * jax.random.normal(k[1], (cout,), jnp.float32),
        gamma=1.0 + 0.1 * jax.random.normal(k[2], (cout,), jnp.float32),
        beta=0.05 * jax.random.normal(k[3], (cout,), jnp.float32),
        rmean=0.05 * jax.random.normal(k[4], (cout,), jnp.float32),
        rvar=0.5 + jax.random.uniform(k[5], (cout,), jnp.float32),
    )


def init_params(key, in_channels, in_features, fc1_out=512, out_features=2):
    ks = jax.random.split(key, 10)
    ch1, ch2, ch3, ch5 = 16, 32, 64, 256
    del ch5
    return dict(
        conv1=_conv_bn_params(ks[0], in_channels, ch1),
        conv2=_conv_bn_params(ks[1], ch1, ch2),
        conv3=_conv_bn_params(ks[2], ch2, ch3),
        opt1=_conv_bn_params(ks[3], in_channels, ch1),
        opt2=_conv_bn_params(ks[4], ch1, ch2),
        opt3=_conv_bn_params(ks[5], ch2, ch3),
        combo1=_conv_bn_params(ks[6], 128, 256),
        # nn.Linear weight layout is (out, in); bias=False in the module.
        fc1_w=0.05 * jax.random.normal(ks[7], (fc1_out, in_features), jnp.float32),
        fc2_w=0.05 * jax.random.normal(ks[8], (out_features, fc1_out), jnp.float32),
    )


# ----------------------------------------------------------------------
# One-time parameter preparation (off the hot path): fold BN scale into the
# conv weights, keep only per-channel shifts, repack to the kernel layouts,
# split combo1 into rgb/flow halves, and cast MXU operands to bf16.
# ----------------------------------------------------------------------
def _fold_conv_bn(p):
    scale = p["gamma"] / jnp.sqrt(p["rvar"] + BN_EPS)            # (Co,)
    shift = p["beta"] - p["rmean"] * scale + p["b"] * scale      # (Co,)
    w = p["w"] * scale[:, None, None, None, None]                # (Co,Ci,2,2,2)
    return w, shift


def _pack_full(w):
    """(Co,Ci,2,2,2) -> (8*Ci, Co), K ordered (kt,kh,kw,ci)."""
    Co, Ci = w.shape[:2]
    return jnp.transpose(w, (2, 3, 4, 1, 0)).reshape(8 * Ci, Co)


def _pack_taps(w):
    """(Co,Ci,2,2,2) -> (8, Ci, Co), tap = 4*kt + 2*kh + kw."""
    Co, Ci = w.shape[:2]
    return jnp.transpose(w, (2, 3, 4, 1, 0)).reshape(8, Ci, Co)


def prepare_params(params):
    prep = {}
    for name, pack, (rgb, flow) in (("l1", _pack_full, ("conv1", "opt1")),
                                    ("l2", _pack_taps, ("conv2", "opt2")),
                                    ("l3", _pack_taps, ("conv3", "opt3"))):
        wa, sha = _fold_conv_bn(params[rgb])
        wb, shb = _fold_conv_bn(params[flow])
        prep[name + "_w"] = jnp.stack([pack(wa), pack(wb)]).astype(jnp.bfloat16)
        prep[name + "_sh"] = jnp.stack([sha, shb])[:, None, :]          # (2,1,Co) f32
    wc, shc = _fold_conv_bn(params["combo1"])
    wct = _pack_taps(wc)                                                # (8,128,256)
    # torch.cat([cnn3d, optical], dim=1): channels 0..63 = rgb, 64..127 = flow.
    prep["wc"] = jnp.stack([wct[:, :64, :], wct[:, 64:, :]]).astype(jnp.bfloat16)
    prep["shc"] = shc[None, :]                                          # (1,256) f32
    prep["fc1_w"] = params["fc1_w"].T.astype(jnp.bfloat16)              # (256,512)
    prep["fc2_w"] = params["fc2_w"].T.astype(jnp.bfloat16)              # (512,2)
    return prep


# ----------------------------------------------------------------------
# Full TwoStream forward (num_frames < 32 path, so no conv_combo2).
# ----------------------------------------------------------------------
def two_stream_forward(x6d, prep):
    # __resize for 6-D input: (B,S,T,C,H,W) -> (B,S,C,T,H,W); only batch 0,
    # streams 0/1 are used.  Go channel-last: (S, T, H, W, C).
    x = jnp.transpose(x6d[0], (0, 1, 3, 4, 2))
    S, T, H, W, C = x.shape
    assert (S, T, H, W) == (2, 16, 16, 16), "fused kernel assumes 16x16x16, 2 streams"

    # Build conv1's input patch matrix ONCE (the only XLA glue on the hot path):
    # natural 2x2x2 patchify, then reorder rows into the hierarchical order.
    xp = x.reshape(S, 8, 2, 8, 2, 8, 2, C)
    xp = jnp.transpose(xp, (0, 1, 3, 5, 2, 4, 6, 7))         # (S,t,h,w,kt,kh,kw,C)
    xp = xp.reshape(S, 512, 8 * C)                           # natural row order
    x1 = xp[:, _O1_PERM, :].astype(jnp.bfloat16)             # hierarchical row order

    vmem = pl.BlockSpec(memory_space=pltpu.MemorySpace.VMEM)
    n_out = prep["fc2_w"].shape[1]
    return pl.pallas_call(
        _twostream_fused_kernel,
        out_shape=jax.ShapeDtypeStruct((1, n_out), jnp.float32),
        in_specs=[vmem] * 11,
        out_specs=vmem,
    )(x1, prep["l1_w"], prep["l1_sh"], prep["l2_w"], prep["l2_sh"],
      prep["l3_w"], prep["l3_sh"], prep["wc"], prep["shc"],
      prep["fc1_w"], prep["fc2_w"])


# ----------------------------------------------------------------------
# Pure-JAX f32 reference (natural ordering) for a correctness cross-check.
# ----------------------------------------------------------------------
def _ref_conv_relu(x, w, shift):
    T, H, W, Ci = x.shape
    Co = w.shape[0]
    xp = x.reshape(T // 2, 2, H // 2, 2, W // 2, 2, Ci)
    xp = jnp.transpose(xp, (0, 2, 4, 1, 3, 5, 6)).reshape(-1, 8 * Ci)
    wm = jnp.transpose(w, (2, 3, 4, 1, 0)).reshape(8 * Ci, Co)
    y = jnp.maximum(xp @ wm + shift[None, :], 0.0)
    return y.reshape(T // 2, H // 2, W // 2, Co)


def reference_forward(x6d, params):
    x = jnp.transpose(x6d[0], (0, 1, 3, 4, 2))               # (2,T,H,W,C)
    outs = []
    for s, names in enumerate((("conv1", "conv2", "conv3"),
                               ("opt1", "opt2", "opt3"))):
        h = x[s]
        for n in names:
            w, sh = _fold_conv_bn(params[n])
            h = _ref_conv_relu(h, w, sh)
        outs.append(h)
    comb = jnp.concatenate(outs, axis=-1)                    # (2,2,2,128)
    wc, shc = _fold_conv_bn(params["combo1"])
    y = _ref_conv_relu(comb, wc, shc)                        # (1,1,1,256)
    flat = y.reshape(1, 256)                                 # == torch .view(1,-1)
    h = jnp.maximum(flat @ params["fc1_w"].T, 0.0)
    return h @ params["fc2_w"].T


if __name__ == "__main__":
    # width = height = 16, num_frames = 16, in_channels = 3, 2 streams.
    # conv1..3 + combo1 each halve (T,H,W): 16->8->4->2->1, channels -> 256.
    WIDTH = HEIGHT = 16
    NUM_FRAMES = 16
    IN_CHANNELS = 3
    OUT_FEATURES = 2
    IN_FEATURES = 256 * 1 * 1 * 1

    key = jax.random.PRNGKey(0)
    k_in, k_p = jax.random.split(key)
    # 6-D input layout (B, streams, T, C, H, W); forward only uses batch 0.
    x = jax.random.normal(
        k_in, (1, 2, NUM_FRAMES, IN_CHANNELS, HEIGHT, WIDTH), jnp.float32)
    params = init_params(k_p, IN_CHANNELS, IN_FEATURES,
                         fc1_out=512, out_features=OUT_FEATURES)
    prep = prepare_params(params)       # one-time BN fold / weight repack / bf16 cast

    fwd = jax.jit(two_stream_forward)
    out = jax.block_until_ready(fwd(x, prep))
    assert out.shape == (1, OUT_FEATURES), out.shape
    assert bool(jnp.all(jnp.isfinite(out)))

    # Cross-check against the f32 natural-order reference (loose tol for bf16 MXU).
    ref = reference_forward(x, params)
    err = float(jnp.max(jnp.abs(out - ref)))
    assert err < 5e-2, f"mismatch vs f32 reference: {err}"

    # TODO(synk): num_frames >= 32 path (conv_combo2, spatial > 1 flatten) not
    # implemented; Dropout/Dropout3d are identity (eval mode).
    print("KERNEL_OK")
</pallas_src>

<mosaic_0001>
module attributes {stable_mosaic.version = 11 : i64} {
  func.func @_twostream_fused_kernel(%arg0: memref<2x512x24xbf16, #tpu.memory_space<vmem>>, %arg1: memref<2x24x16xbf16, #tpu.memory_space<vmem>>, %arg2: memref<2x1x16xf32, #tpu.memory_space<vmem>>, %arg3: memref<2x8x16x32xbf16, #tpu.memory_space<vmem>>, %arg4: memref<2x1x32xf32, #tpu.memory_space<vmem>>, %arg5: memref<2x8x32x64xbf16, #tpu.memory_space<vmem>>, %arg6: memref<2x1x64xf32, #tpu.memory_space<vmem>>, %arg7: memref<2x8x64x256xbf16, #tpu.memory_space<vmem>>, %arg8: memref<1x256xf32, #tpu.memory_space<vmem>>, %arg9: memref<256x512xbf16, #tpu.memory_space<vmem>>, %arg10: memref<512x2xbf16, #tpu.memory_space<vmem>>, %arg11: memref<1x2xf32, #tpu.memory_space<vmem>>) attributes {dimension_semantics = [], scalar_prefetch = 0 : i64, scratch_operands = 0 : i64, tpu.core_type = #tpu.core_type<tc>} {
    %c0 = arith.constant 0 : index
    %c0_0 = arith.constant 0 : index
    %0 = vector.load %arg8[%c0, %c0_0] : memref<1x256xf32, #tpu.memory_space<vmem>>, vector<1x256xf32>
    %c0_1 = arith.constant 0 : index
    %c0_2 = arith.constant 0 : index
    %c0_3 = arith.constant 0 : index
    %1 = vector.load %arg0[%c0_1, %c0_2, %c0_3] : memref<2x512x24xbf16, #tpu.memory_space<vmem>>, vector<1x512x24xbf16>
    %2 = vector.shape_cast %1 : vector<1x512x24xbf16> to vector<512x24xbf16>
    %c0_4 = arith.constant 0 : index
    %c0_5 = arith.constant 0 : index
    %c0_6 = arith.constant 0 : index
    %3 = vector.load %arg1[%c0_4, %c0_5, %c0_6] : memref<2x24x16xbf16, #tpu.memory_space<vmem>>, vector<1x24x16xbf16>
    %4 = vector.shape_cast %3 : vector<1x24x16xbf16> to vector<24x16xbf16>
    %cst = arith.constant dense<0.000000e+00> : vector<512x16xf32>
    %5 = tpu.matmul %2, %4, %cst {dimension_numbers = #tpu.dot_dimension_numbers<[1], [0], [0], [1], [0, 0, 1, 1], [], []>} : vector<512x24xbf16>, vector<24x16xbf16>, vector<512x16xf32> -> vector<512x16xf32>
    %c0_7 = arith.constant 0 : index
    %c0_8 = arith.constant 0 : index
    %c0_9 = arith.constant 0 : index
    %6 = vector.load %arg2[%c0_7, %c0_8, %c0_9] : memref<2x1x16xf32, #tpu.memory_space<vmem>>, vector<1x1x16xf32>
    %7 = vector.shape_cast %6 : vector<1x1x16xf32> to vector<1x16xf32>
    %8 = vector.broadcast %7 : vector<1x16xf32> to vector<512x16xf32>
    %9 = arith.addf %5, %8 : vector<512x16xf32>
    %cst_10 = arith.constant 0.000000e+00 : f32
    %10 = vector.broadcast %cst_10 : f32 to vector<512x16xf32>
    %11 = arith.maximumf %9, %10 : vector<512x16xf32>
    %12 = vector.shape_cast %11 : vector<512x16xf32> to vector<8x64x16xf32>
    %cst_11 = arith.constant 0.000000e+00 : f32
    %13 = vector.broadcast %cst_11 : f32 to vector<64x32xf32>
    %14 = vector.extract_strided_slice %12 {offsets = [0, 0, 0], sizes = [1, 64, 16], strides = [1, 1, 1]} : vector<8x64x16xf32> to vector<1x64x16xf32>
    %15 = vector.shape_cast %14 : vector<1x64x16xf32> to vector<64x16xf32>
    %16 = arith.truncf %15 : vector<64x16xf32> to vector<64x16xbf16>
    %c0_12 = arith.constant 0 : index
    %c0_13 = arith.constant 0 : index
    %c0_14 = arith.constant 0 : index
    %c0_15 = arith.constant 0 : index
    %17 = vector.load %arg3[%c0_12, %c0_13, %c0_14, %c0_15] : memref<2x8x16x32xbf16, #tpu.memory_space<vmem>>, vector<1x1x16x32xbf16>
    %18 = vector.shape_cast %17 : vector<1x1x16x32xbf16> to vector<16x32xbf16>
    %cst_16 = arith.constant dense<0.000000e+00> : vector<64x32xf32>
    %19 = tpu.matmul %16, %18, %cst_16 {dimension_numbers = #tpu.dot_dimension_numbers<[1], [0], [0], [1], [0, 0, 1, 1], [], []>} : vector<64x16xbf16>, vector<16x32xbf16>, vector<64x32xf32> -> vector<64x32xf32>
    %20 = arith.addf %13, %19 : vector<64x32xf32>
    %21 = vector.extract_strided_slice %12 {offsets = [1, 0, 0], sizes = [1, 64, 16], strides = [1, 1, 1]} : vector<8x64x16xf32> to vector<1x64x16xf32>
    %22 = vector.shape_cast %21 : vector<1x64x16xf32> to vector<64x16xf32>
    %23 = arith.truncf %22 : vector<64x16xf32> to vector<64x16xbf16>
    %c0_17 = arith.constant 0 : index
    %c1 = arith.constant 1 : index
    %c0_18 = arith.constant 0 : index
    %c0_19 = arith.constant 0 : index
    %24 = vector.load %arg3[%c0_17, %c1, %c0_18, %c0_19] : memref<2x8x16x32xbf16, #tpu.memory_space<vmem>>, vector<1x1x16x32xbf16>
    %25 = vector.shape_cast %24 : vector<1x1x16x32xbf16> to vector<16x32xbf16>
    %cst_20 = arith.constant dense<0.000000e+00> : vector<64x32xf32>
    %26 = tpu.matmul %23, %25, %cst_20 {dimension_numbers = #tpu.dot_dimension_numbers<[1], [0], [0], [1], [0, 0, 1, 1], [], []>} : vector<64x16xbf16>, vector<16x32xbf16>, vector<64x32xf32> -> vector<64x32xf32>
    %27 = arith.addf %20, %26 : vector<64x32xf32>
    %28 = vector.extract_strided_slice %12 {offsets = [2, 0, 0], sizes = [1, 64, 16], strides = [1, 1, 1]} : vector<8x64x16xf32> to vector<1x64x16xf32>
    %29 = vector.shape_cast %28 : vector<1x64x16xf32> to vector<64x16xf32>
    %30 = arith.truncf %29 : vector<64x16xf32> to vector<64x16xbf16>
    %c0_21 = arith.constant 0 : index
    %c2 = arith.constant 2 : index
    %c0_22 = arith.constant 0 : index
    %c0_23 = arith.constant 0 : index
    %31 = vector.load %arg3[%c0_21, %c2, %c0_22, %c0_23] : memref<2x8x16x32xbf16, #tpu.memory_space<vmem>>, vector<1x1x16x32xbf16>
    %32 = vector.shape_cast %31 : vector<1x1x16x32xbf16> to vector<16x32xbf16>
    %cst_24 = arith.constant dense<0.000000e+00> : vector<64x32xf32>
    %33 = tpu.matmul %30, %32, %cst_24 {dimension_numbers = #tpu.dot_dimension_numbers<[1], [0], [0], [1], [0, 0, 1, 1], [], []>} : vector<64x16xbf16>, vector<16x32xbf16>, vector<64x32xf32> -> vector<64x32xf32>
    %34 = arith.addf %27, %33 : vector<64x32xf32>
    %35 = vector.extract_strided_slice %12 {offsets = [3, 0, 0], sizes = [1, 64, 16], strides = [1, 1, 1]} : vector<8x64x16xf32> to vector<1x64x16xf32>
    %36 = vector.shape_cast %35 : vector<1x64x16xf32> to vector<64x16xf32>
    %37 = arith.truncf %36 : vector<64x16xf32> to vector<64x16xbf16>
    %c0_25 = arith.constant 0 : index
    %c3 = arith.constant 3 : index
    %c0_26 = arith.constant 0 : index
    %c0_27 = arith.constant 0 : index
    %38 = vector.load %arg3[%c0_25, %c3, %c0_26, %c0_27] : memref<2x8x16x32xbf16, #tpu.memory_space<vmem>>, vector<1x1x16x32xbf16>
    %39 = vector.shape_cast %38 : vector<1x1x16x32xbf16> to vector<16x32xbf16>
    %cst_28 = arith.constant dense<0.000000e+00> : vector<64x32xf32>
    %40 = tpu.matmul %37, %39, %cst_28 {dimension_numbers = #tpu.dot_dimension_numbers<[1], [0], [0], [1], [0, 0, 1, 1], [], []>} : vector<64x16xbf16>, vector<16x32xbf16>, vector<64x32xf32> -> vector<64x32xf32>
    %41 = arith.addf %34, %40 : vector<64x32xf32>
    %42 = vector.extract_strided_slice %12 {offsets = [4, 0, 0], sizes = [1, 64, 16], strides = [1, 1, 1]} : vector<8x64x16xf32> to vector<1x64x16xf32>
    %43 = vector.shape_cast %42 : vector<1x64x16xf32> to vector<64x16xf32>
    %44 = arith.truncf %43 : vector<64x16xf32> to vector<64x16xbf16>
    %c0_29 = arith.constant 0 : index
    %c4 = arith.constant 4 : index
    %c0_30 = arith.constant 0 : index
    %c0_31 = arith.constant 0 : index
    %45 = vector.load %arg3[%c0_29, %c4, %c0_30, %c0_31] : memref<2x8x16x32xbf16, #tpu.memory_space<vmem>>, vector<1x1x16x32xbf16>
    %46 = vector.shape_cast %45 : vector<1x1x16x32xbf16> to vector<16x32xbf16>
    %cst_32 = arith.constant dense<0.000000e+00> : vector<64x32xf32>
    %47 = tpu.matmul %44, %46, %cst_32 {dimension_numbers = #tpu.dot_dimension_numbers<[1], [0], [0], [1], [0, 0, 1, 1], [], []>} : vector<64x16xbf16>, vector<16x32xbf16>, vector<64x32xf32> -> vector<64x32xf32>
    %48 = arith.addf %41, %47 : vector<64x32xf32>
    %49 = vector.extract_strided_slice %12 {offsets = [5, 0, 0], sizes = [1, 64, 16], strides = [1, 1, 1]} : vector<8x64x16xf32> to vector<1x64x16xf32>
    %50 = vector.shape_cast %49 : vector<1x64x16xf32> to vector<64x16xf32>
    %51 = arith.truncf %50 : vector<64x16xf32> to vector<64x16xbf16>
    %c0_33 = arith.constant 0 : index
    %c5 = arith.constant 5 : index
    %c0_34 = arith.constant 0 : index
    %c0_35 = arith.constant 0 : index
    %52 = vector.load %arg3[%c0_33, %c5, %c0_34, %c0_35] : memref<2x8x16x32xbf16, #tpu.memory_space<vmem>>, vector<1x1x16x32xbf16>
    %53 = vector.shape_cast %52 : vector<1x1x16x32xbf16> to vector<16x32xbf16>
    %cst_36 = arith.constant dense<0.000000e+00> : vector<64x32xf32>
    %54 = tpu.matmul %51, %53, %cst_36 {dimension_numbers = #tpu.dot_dimension_numbers<[1], [0], [0], [1], [0, 0, 1, 1], [], []>} : vector<64x16xbf16>, vector<16x32xbf16>, vector<64x32xf32> -> vector<64x32xf32>
    %55 = arith.addf %48, %54 : vector<64x32xf32>
    %56 = vector.extract_strided_slice %12 {offsets = [6, 0, 0], sizes = [1, 64, 16], strides = [1, 1, 1]} : vector<8x64x16xf32> to vector<1x64x16xf32>
    %57 = vector.shape_cast %56 : vector<1x64x16xf32> to vector<64x16xf32>
    %58 = arith.truncf %57 : vector<64x16xf32> to vector<64x16xbf16>
    %c0_37 = arith.constant 0 : index
    %c6 = arith.constant 6 : index
    %c0_38 = arith.constant 0 : index
    %c0_39 = arith.constant 0 : index
    %59 = vector.load %arg3[%c0_37, %c6, %c0_38, %c0_39] : memref<2x8x16x32xbf16, #tpu.memory_space<vmem>>, vector<1x1x16x32xbf16>
    %60 = vector.shape_cast %59 : vector<1x1x16x32xbf16> to vector<16x32xbf16>
    %cst_40 = arith.constant dense<0.000000e+00> : vector<64x32xf32>
    %61 = tpu.matmul %58, %60, %cst_40 {dimension_numbers = #tpu.dot_dimension_numbers<[1], [0], [0], [1], [0, 0, 1, 1], [], []>} : vector<64x16xbf16>, vector<16x32xbf16>, vector<64x32xf32> -> vector<64x32xf32>
    %62 = arith.addf %55, %61 : vector<64x32xf32>
    %63 = vector.extract_strided_slice %12 {offsets = [7, 0, 0], sizes = [1, 64, 16], strides = [1, 1, 1]} : vector<8x64x16xf32> to vector<1x64x16xf32>
    %64 = vector.shape_cast %63 : vector<1x64x16xf32> to vector<64x16xf32>
    %65 = arith.truncf %64 : vector<64x16xf32> to vector<64x16xbf16>
    %c0_41 = arith.constant 0 : index
    %c7 = arith.constant 7 : index
    %c0_42 = arith.constant 0 : index
    %c0_43 = arith.constant 0 : index
    %66 = vector.load %arg3[%c0_41, %c7, %c0_42, %c0_43] : memref<2x8x16x32xbf16, #tpu.memory_space<vmem>>, vector<1x1x16x32xbf16>
    %67 = vector.shape_cast %66 : vector<1x1x16x32xbf16> to vector<16x32xbf16>
    %cst_44 = arith.constant dense<0.000000e+00> : vector<64x32xf32>
    %68 = tpu.matmul %65, %67, %cst_44 {dimension_numbers = #tpu.dot_dimension_numbers<[1], [0], [0], [1], [0, 0, 1, 1], [], []>} : vector<64x16xbf16>, vector<16x32xbf16>, vector<64x32xf32> -> vector<64x32xf32>
    %69 = arith.addf %62, %68 : vector<64x32xf32>
    %c0_45 = arith.constant 0 : index
    %c0_46 = arith.constant 0 : index
    %c0_47 = arith.constant 0 : index
    %70 = vector.load %arg4[%c0_45, %c0_46, %c0_47] : memref<2x1x32xf32, #tpu.memory_space<vmem>>, vector<1x1x32xf32>
    %71 = vector.shape_cast %70 : vector<1x1x32xf32> to vector<1x32xf32>
    %72 = vector.broadcast %71 : vector<1x32xf32> to vector<64x32xf32>
    %73 = arith.addf %69, %72 : vector<64x32xf32>
    %cst_48 = arith.constant 0.000000e+00 : f32
    %74 = vector.broadcast %cst_48 : f32 to vector<64x32xf32>
    %75 = arith.maximumf %73, %74 : vector<64x32xf32>
    %76 = vector.shape_cast %75 : vector<64x32xf32> to vector<8x8x32xf32>
    %cst_49 = arith.constant 0.000000e+00 : f32
    %77 = vector.broadcast %cst_49 : f32 to vector<8x64xf32>
    %78 = vector.extract_strided_slice %76 {offsets = [0, 0, 0], sizes = [1, 8, 32], strides = [1, 1, 1]} : vector<8x8x32xf32> to vector<1x8x32xf32>
    %79 = vector.shape_cast %78 : vector<1x8x32xf32> to vector<8x32xf32>
    %80 = arith.truncf %79 : vector<8x32xf32> to vector<8x32xbf16>
    %c0_50 = arith.constant 0 : index
    %c0_51 = arith.constant 0 : index
    %c0_52 = arith.constant 0 : index
    %c0_53 = arith.constant 0 : index
    %81 = vector.load %arg5[%c0_50, %c0_51, %c0_52, %c0_53] : memref<2x8x32x64xbf16, #tpu.memory_space<vmem>>, vector<1x1x32x64xbf16>
    %82 = vector.shape_cast %81 : vector<1x1x32x64xbf16> to vector<32x64xbf16>
    %cst_54 = arith.constant dense<0.000000e+00> : vector<8x64xf32>
    %83 = tpu.matmul %80, %82, %cst_54 {dimension_numbers = #tpu.dot_dimension_numbers<[1], [0], [0], [1], [0, 0, 1, 1], [], []>} : vector<8x32xbf16>, vector<32x64xbf16>, vector<8x64xf32> -> vector<8x64xf32>
    %84 = arith.addf %77, %83 : vector<8x64xf32>
    %85 = vector.extract_strided_slice %76 {offsets = [1, 0, 0], sizes = [1, 8, 32], strides = [1, 1, 1]} : vector<8x8x32xf32> to vector<1x8x32xf32>
    %86 = vector.shape_cast %85 : vector<1x8x32xf32> to vector<8x32xf32>
    %87 = arith.truncf %86 : vector<8x32xf32> to vector<8x32xbf16>
    %c0_55 = arith.constant 0 : index
    %c1_56 = arith.constant 1 : index
    %c0_57 = arith.constant 0 : index
    %c0_58 = arith.constant 0 : index
    %88 = vector.load %arg5[%c0_55, %c1_56, %c0_57, %c0_58] : memref<2x8x32x64xbf16, #tpu.memory_space<vmem>>, vector<1x1x32x64xbf16>
    %89 = vector.shape_cast %88 : vector<1x1x32x64xbf16> to vector<32x64xbf16>
    %cst_59 = arith.constant dense<0.000000e+00> : vector<8x64xf32>
    %90 = tpu.matmul %87, %89, %cst_59 {dimension_numbers = #tpu.dot_dimension_numbers<[1], [0], [0], [1], [0, 0, 1, 1], [], []>} : vector<8x32xbf16>, vector<32x64xbf16>, vector<8x64xf32> -> vector<8x64xf32>
    %91 = arith.addf %84, %90 : vector<8x64xf32>
    %92 = vector.extract_strided_slice %76 {offsets = [2, 0, 0], sizes = [1, 8, 32], strides = [1, 1, 1]} : vector<8x8x32xf32> to vector<1x8x32xf32>
    %93 = vector.shape_cast %92 : vector<1x8x32xf32> to vector<8x32xf32>
    %94 = arith.truncf %93 : vector<8x32xf32> to vector<8x32xbf16>
    %c0_60 = arith.constant 0 : index
    %c2_61 = arith.constant 2 : index
    %c0_62 = arith.constant 0 : index
    %c0_63 = arith.constant 0 : index
    %95 = vector.load %arg5[%c0_60, %c2_61, %c0_62, %c0_63] : memref<2x8x32x64xbf16, #tpu.memory_space<vmem>>, vector<1x1x32x64xbf16>
    %96 = vector.shape_cast %95 : vector<1x1x32x64xbf16> to vector<32x64xbf16>
    %cst_64 = arith.constant dense<0.000000e+00> : vector<8x64xf32>
    %97 = tpu.matmul %94, %96, %cst_64 {dimension_numbers = #tpu.dot_dimension_numbers<[1], [0], [0], [1], [0, 0, 1, 1], [], []>} : vector<8x32xbf16>, vector<32x64xbf16>, vector<8x64xf32> -> vector<8x64xf32>
    %98 = arith.addf %91, %97 : vector<8x64xf32>
    %99 = vector.extract_strided_slice %76 {offsets = [3, 0, 0], sizes = [1, 8, 32], strides = [1, 1, 1]} : vector<8x8x32xf32> to vector<1x8x32xf32>
    %100 = vector.shape_cast %99 : vector<1x8x32xf32> to vector<8x32xf32>
    %101 = arith.truncf %100 : vector<8x32xf32> to vector<8x32xbf16>
    %c0_65 = arith.constant 0 : index
    %c3_66 = arith.constant 3 : index
    %c0_67 = arith.constant 0 : index
    %c0_68 = arith.constant 0 : index
    %102 = vector.load %arg5[%c0_65, %c3_66, %c0_67, %c0_68] : memref<2x8x32x64xbf16, #tpu.memory_space<vmem>>, vector<1x1x32x64xbf16>
    %103 = vector.shape_cast %102 : vector<1x1x32x64xbf16> to vector<32x64xbf16>
    %cst_69 = arith.constant dense<0.000000e+00> : vector<8x64xf32>
    %104 = tpu.matmul %101, %103, %cst_69 {dimension_numbers = #tpu.dot_dimension_numbers<[1], [0], [0], [1], [0, 0, 1, 1], [], []>} : vector<8x32xbf16>, vector<32x64xbf16>, vector<8x64xf32> -> vector<8x64xf32>
    %105 = arith.addf %98, %104 : vector<8x64xf32>
    %106 = vector.extract_strided_slice %76 {offsets = [4, 0, 0], sizes = [1, 8, 32], strides = [1, 1, 1]} : vector<8x8x32xf32> to vector<1x8x32xf32>
    %107 = vector.shape_cast %106 : vector<1x8x32xf32> to vector<8x32xf32>
    %108 = arith.truncf %107 : vector<8x32xf32> to vector<8x32xbf16>
    %c0_70 = arith.constant 0 : index
    %c4_71 = arith.constant 4 : index
    %c0_72 = arith.constant 0 : index
    %c0_73 = arith.constant 0 : index
    %109 = vector.load %arg5[%c0_70, %c4_71, %c0_72, %c0_73] : memref<2x8x32x64xbf16, #tpu.memory_space<vmem>>, vector<1x1x32x64xbf16>
    %110 = vector.shape_cast %109 : vector<1x1x32x64xbf16> to vector<32x64xbf16>
    %cst_74 = arith.constant dense<0.000000e+00> : vector<8x64xf32>
    %111 = tpu.matmul %108, %110, %cst_74 {dimension_numbers = #tpu.dot_dimension_numbers<[1], [0], [0], [1], [0, 0, 1, 1], [], []>} : vector<8x32xbf16>, vector<32x64xbf16>, vector<8x64xf32> -> vector<8x64xf32>
    %112 = arith.addf %105, %111 : vector<8x64xf32>
    %113 = vector.extract_strided_slice %76 {offsets = [5, 0, 0], sizes = [1, 8, 32], strides = [1, 1, 1]} : vector<8x8x32xf32> to vector<1x8x32xf32>
    %114 = vector.shape_cast %113 : vector<1x8x32xf32> to vector<8x32xf32>
    %115 = arith.truncf %114 : vector<8x32xf32> to vector<8x32xbf16>
    %c0_75 = arith.constant 0 : index
    %c5_76 = arith.constant 5 : index
    %c0_77 = arith.constant 0 : index
    %c0_78 = arith.constant 0 : index
    %116 = vector.load %arg5[%c0_75, %c5_76, %c0_77, %c0_78] : memref<2x8x32x64xbf16, #tpu.memory_space<vmem>>, vector<1x1x32x64xbf16>
    %117 = vector.shape_cast %116 : vector<1x1x32x64xbf16> to vector<32x64xbf16>
    %cst_79 = arith.constant dense<0.000000e+00> : vector<8x64xf32>
    %118 = tpu.matmul %115, %117, %cst_79 {dimension_numbers = #tpu.dot_dimension_numbers<[1], [0], [0], [1], [0, 0, 1, 1], [], []>} : vector<8x32xbf16>, vector<32x64xbf16>, vector<8x64xf32> -> vector<8x64xf32>
    %119 = arith.addf %112, %118 : vector<8x64xf32>
    %120 = vector.extract_strided_slice %76 {offsets = [6, 0, 0], sizes = [1, 8, 32], strides = [1, 1, 1]} : vector<8x8x32xf32> to vector<1x8x32xf32>
    %121 = vector.shape_cast %120 : vector<1x8x32xf32> to vector<8x32xf32>
    %122 = arith.truncf %121 : vector<8x32xf32> to vector<8x32xbf16>
    %c0_80 = arith.constant 0 : index
    %c6_81 = arith.constant 6 : index
    %c0_82 = arith.constant 0 : index
    %c0_83 = arith.constant 0 : index
    %123 = vector.load %arg5[%c0_80, %c6_81, %c0_82, %c0_83] : memref<2x8x32x64xbf16, #tpu.memory_space<vmem>>, vector<1x1x32x64xbf16>
    %124 = vector.shape_cast %123 : vector<1x1x32x64xbf16> to vector<32x64xbf16>
    %cst_84 = arith.constant dense<0.000000e+00> : vector<8x64xf32>
    %125 = tpu.matmul %122, %124, %cst_84 {dimension_numbers = #tpu.dot_dimension_numbers<[1], [0], [0], [1], [0, 0, 1, 1], [], []>} : vector<8x32xbf16>, vector<32x64xbf16>, vector<8x64xf32> -> vector<8x64xf32>
    %126 = arith.addf %119, %125 : vector<8x64xf32>
    %127 = vector.extract_strided_slice %76 {offsets = [7, 0, 0], sizes = [1, 8, 32], strides = [1, 1, 1]} : vector<8x8x32xf32> to vector<1x8x32xf32>
    %128 = vector.shape_cast %127 : vector<1x8x32xf32> to vector<8x32xf32>
    %129 = arith.truncf %128 : vector<8x32xf32> to vector<8x32xbf16>
    %c0_85 = arith.constant 0 : index
    %c7_86 = arith.constant 7 : index
    %c0_87 = arith.constant 0 : index
    %c0_88 = arith.constant 0 : index
    %130 = vector.load %arg5[%c0_85, %c7_86, %c0_87, %c0_88] : memref<2x8x32x64xbf16, #tpu.memory_space<vmem>>, vector<1x1x32x64xbf16>
    %131 = vector.shape_cast %130 : vector<1x1x32x64xbf16> to vector<32x64xbf16>
    %cst_89 = arith.constant dense<0.000000e+00> : vector<8x64xf32>
    %132 = tpu.matmul %129, %131, %cst_89 {dimension_numbers = #tpu.dot_dimension_numbers<[1], [0], [0], [1], [0, 0, 1, 1], [], []>} : vector<8x32xbf16>, vector<32x64xbf16>, vector<8x64xf32> -> vector<8x64xf32>
    %133 = arith.addf %126, %132 : vector<8x64xf32>
    %c0_90 = arith.constant 0 : index
    %c0_91 = arith.constant 0 : index
    %c0_92 = arith.constant 0 : index
    %134 = vector.load %arg6[%c0_90, %c0_91, %c0_92] : memref<2x1x64xf32, #tpu.memory_space<vmem>>, vector<1x1x64xf32>
    %135 = vector.shape_cast %134 : vector<1x1x64xf32> to vector<1x64xf32>
    %136 = vector.broadcast %135 : vector<1x64xf32> to vector<8x64xf32>
    %137 = arith.addf %133, %136 : vector<8x64xf32>
    %cst_93 = arith.constant 0.000000e+00 : f32
    %138 = vector.broadcast %cst_93 : f32 to vector<8x64xf32>
    %139 = arith.maximumf %137, %138 : vector<8x64xf32>
    %140 = vector.extract_strided_slice %139 {offsets = [0, 0], sizes = [1, 64], strides = [1, 1]} : vector<8x64xf32> to vector<1x64xf32>
    %141 = arith.truncf %140 : vector<1x64xf32> to vector<1x64xbf16>
    %c0_94 = arith.constant 0 : index
    %c0_95 = arith.constant 0 : index
    %c0_96 = arith.constant 0 : index
    %c0_97 = arith.constant 0 : index
    %142 = vector.load %arg7[%c0_94, %c0_95, %c0_96, %c0_97] : memref<2x8x64x256xbf16, #tpu.memory_space<vmem>>, vector<1x1x64x256xbf16>
    %143 = vector.shape_cast %142 : vector<1x1x64x256xbf16> to vector<64x256xbf16>
    %cst_98 = arith.constant dense<0.000000e+00> : vector<1x256xf32>
    %144 = tpu.matmul %141, %143, %cst_98 {dimension_numbers = #tpu.dot_dimension_numbers<[1], [0], [0], [1], [0, 0, 1, 1], [], []>} : vector<1x64xbf16>, vector<64x256xbf16>, vector<1x256xf32> -> vector<1x256xf32>
    %145 = arith.addf %0, %144 : vector<1x256xf32>
    %146 = vector.extract_strided_slice %139 {offsets = [1, 0], sizes = [1, 64], strides = [1, 1]} : vector<8x64xf32> to vector<1x64xf32>
    %147 = arith.truncf %146 : vector<1x64xf32> to vector<1x64xbf16>
    %c0_99 = arith.constant 0 : index
    %c1_100 = arith.constant 1 : index
    %c0_101 = arith.constant 0 : index
    %c0_102 = arith.constant 0 : index
    %148 = vector.load %arg7[%c0_99, %c1_100, %c0_101, %c0_102] : memref<2x8x64x256xbf16, #tpu.memory_space<vmem>>, vector<1x1x64x256xbf16>
    %149 = vector.shape_cast %148 : vector<1x1x64x256xbf16> to vector<64x256xbf16>
    %cst_103 = arith.constant dense<0.000000e+00> : vector<1x256xf32>
    %150 = tpu.matmul %147, %149, %cst_103 {dimension_numbers = #tpu.dot_dimension_numbers<[1], [0], [0], [1], [0, 0, 1, 1], [], []>} : vector<1x64xbf16>, vector<64x256xbf16>, vector<1x256xf32> -> vector<1x256xf32>
    %151 = arith.addf %145, %150 : vector<1x256xf32>
    %152 = vector.extract_strided_slice %139 {offsets = [2, 0], sizes = [1, 64], strides = [1, 1]} : vector<8x64xf32> to vector<1x64xf32>
    %153 = arith.truncf %152 : vector<1x64xf32> to vector<1x64xbf16>
    %c0_104 = arith.constant 0 : index
    %c2_105 = arith.constant 2 : index
    %c0_106 = arith.constant 0 : index
    %c0_107 = arith.constant 0 : index
    %154 = vector.load %arg7[%c0_104, %c2_105, %c0_106, %c0_107] : memref<2x8x64x256xbf16, #tpu.memory_space<vmem>>, vector<1x1x64x256xbf16>
    %155 = vector.shape_cast %154 : vector<1x1x64x256xbf16> to vector<64x256xbf16>
    %cst_108 = arith.constant dense<0.000000e+00> : vector<1x256xf32>
    %156 = tpu.matmul %153, %155, %cst_108 {dimension_numbers = #tpu.dot_dimension_numbers<[1], [0], [0], [1], [0, 0, 1, 1], [], []>} : vector<1x64xbf16>, vector<64x256xbf16>, vector<1x256xf32> -> vector<1x256xf32>
    %157 = arith.addf %151, %156 : vector<1x256xf32>
    %158 = vector.extract_strided_slice %139 {offsets = [3, 0], sizes = [1, 64], strides = [1, 1]} : vector<8x64xf32> to vector<1x64xf32>
    %159 = arith.truncf %158 : vector<1x64xf32> to vector<1x64xbf16>
    %c0_109 = arith.constant 0 : index
    %c3_110 = arith.constant 3 : index
    %c0_111 = arith.constant 0 : index
    %c0_112 = arith.constant 0 : index
    %160 = vector.load %arg7[%c0_109, %c3_110, %c0_111, %c0_112] : memref<2x8x64x256xbf16, #tpu.memory_space<vmem>>, vector<1x1x64x256xbf16>
    %161 = vector.shape_cast %160 : vector<1x1x64x256xbf16> to vector<64x256xbf16>
    %cst_113 = arith.constant dense<0.000000e+00> : vector<1x256xf32>
    %162 = tpu.matmul %159, %161, %cst_113 {dimension_numbers = #tpu.dot_dimension_numbers<[1], [0], [0], [1], [0, 0, 1, 1], [], []>} : vector<1x64xbf16>, vector<64x256xbf16>, vector<1x256xf32> -> vector<1x256xf32>
    %163 = arith.addf %157, %162 : vector<1x256xf32>
    %164 = vector.extract_strided_slice %139 {offsets = [4, 0], sizes = [1, 64], strides = [1, 1]} : vector<8x64xf32> to vector<1x64xf32>
    %165 = arith.truncf %164 : vector<1x64xf32> to vector<1x64xbf16>
    %c0_114 = arith.constant 0 : index
    %c4_115 = arith.constant 4 : index
    %c0_116 = arith.constant 0 : index
    %c0_117 = arith.constant 0 : index
    %166 = vector.load %arg7[%c0_114, %c4_115, %c0_116, %c0_117] : memref<2x8x64x256xbf16, #tpu.memory_space<vmem>>, vector<1x1x64x256xbf16>
    %167 = vector.shape_cast %166 : vector<1x1x64x256xbf16> to vector<64x256xbf16>
    %cst_118 = arith.constant dense<0.000000e+00> : vector<1x256xf32>
    %168 = tpu.matmul %165, %167, %cst_118 {dimension_numbers = #tpu.dot_dimension_numbers<[1], [0], [0], [1], [0, 0, 1, 1], [], []>} : vector<1x64xbf16>, vector<64x256xbf16>, vector<1x256xf32> -> vector<1x256xf32>
    %169 = arith.addf %163, %168 : vector<1x256xf32>
    %170 = vector.extract_strided_slice %139 {offsets = [5, 0], sizes = [1, 64], strides = [1, 1]} : vector<8x64xf32> to vector<1x64xf32>
    %171 = arith.truncf %170 : vector<1x64xf32> to vector<1x64xbf16>
    %c0_119 = arith.constant 0 : index
    %c5_120 = arith.constant 5 : index
    %c0_121 = arith.constant 0 : index
    %c0_122 = arith.constant 0 : index
    %172 = vector.load %arg7[%c0_119, %c5_120, %c0_121, %c0_122] : memref<2x8x64x256xbf16, #tpu.memory_space<vmem>>, vector<1x1x64x256xbf16>
    %173 = vector.shape_cast %172 : vector<1x1x64x256xbf16> to vector<64x256xbf16>
    %cst_123 = arith.constant dense<0.000000e+00> : vector<1x256xf32>
    %174 = tpu.matmul %171, %173, %cst_123 {dimension_numbers = #tpu.dot_dimension_numbers<[1], [0], [0], [1], [0, 0, 1, 1], [], []>} : vector<1x64xbf16>, vector<64x256xbf16>, vector<1x256xf32> -> vector<1x256xf32>
    %175 = arith.addf %169, %174 : vector<1x256xf32>
    %176 = vector.extract_strided_slice %139 {offsets = [6, 0], sizes = [1, 64], strides = [1, 1]} : vector<8x64xf32> to vector<1x64xf32>
    %177 = arith.truncf %176 : vector<1x64xf32> to vector<1x64xbf16>
    %c0_124 = arith.constant 0 : index
    %c6_125 = arith.constant 6 : index
    %c0_126 = arith.constant 0 : index
    %c0_127 = arith.constant 0 : index
    %178 = vector.load %arg7[%c0_124, %c6_125, %c0_126, %c0_127] : memref<2x8x64x256xbf16, #tpu.memory_space<vmem>>, vector<1x1x64x256xbf16>
    %179 = vector.shape_cast %178 : vector<1x1x64x256xbf16> to vector<64x256xbf16>
    %cst_128 = arith.constant dense<0.000000e+00> : vector<1x256xf32>
    %180 = tpu.matmul %177, %179, %cst_128 {dimension_numbers = #tpu.dot_dimension_numbers<[1], [0], [0], [1], [0, 0, 1, 1], [], []>} : vector<1x64xbf16>, vector<64x256xbf16>, vector<1x256xf32> -> vector<1x256xf32>
    %181 = arith.addf %175, %180 : vector<1x256xf32>
    %182 = vector.extract_strided_slice %139 {offsets = [7, 0], sizes = [1, 64], strides = [1, 1]} : vector<8x64xf32> to vector<1x64xf32>
    %183 = arith.truncf %182 : vector<1x64xf32> to vector<1x64xbf16>
    %c0_129 = arith.constant 0 : index
    %c7_130 = arith.constant 7 : index
    %c0_131 = arith.constant 0 : index
    %c0_132 = arith.constant 0 : index
    %184 = vector.load %arg7[%c0_129, %c7_130, %c0_131, %c0_132] : memref<2x8x64x256xbf16, #tpu.memory_space<vmem>>, vector<1x1x64x256xbf16>
    %185 = vector.shape_cast %184 : vector<1x1x64x256xbf16> to vector<64x256xbf16>
    %cst_133 = arith.constant dense<0.000000e+00> : vector<1x256xf32>
    %186 = tpu.matmul %183, %185, %cst_133 {dimension_numbers = #tpu.dot_dimension_numbers<[1], [0], [0], [1], [0, 0, 1, 1], [], []>} : vector<1x64xbf16>, vector<64x256xbf16>, vector<1x256xf32> -> vector<1x256xf32>
    %187 = arith.addf %181, %186 : vector<1x256xf32>
    %c1_134 = arith.constant 1 : index
    %c0_135 = arith.constant 0 : index
    %c0_136 = arith.constant 0 : index
    %188 = vector.load %arg0[%c1_134, %c0_135, %c0_136] : memref<2x512x24xbf16, #tpu.memory_space<vmem>>, vector<1x512x24xbf16>
    %189 = vector.shape_cast %188 : vector<1x512x24xbf16> to vector<512x24xbf16>
    %c1_137 = arith.constant 1 : index
    %c0_138 = arith.constant 0 : index
    %c0_139 = arith.constant 0 : index
    %190 = vector.load %arg1[%c1_137, %c0_138, %c0_139] : memref<2x24x16xbf16, #tpu.memory_space<vmem>>, vector<1x24x16xbf16>
    %191 = vector.shape_cast %190 : vector<1x24x16xbf16> to vector<24x16xbf16>
    %cst_140 = arith.constant dense<0.000000e+00> : vector<512x16xf32>
    %192 = tpu.matmul %189, %191, %cst_140 {dimension_numbers = #tpu.dot_dimension_numbers<[1], [0], [0], [1], [0, 0, 1, 1], [], []>} : vector<512x24xbf16>, vector<24x16xbf16>, vector<512x16xf32> -> vector<512x16xf32>
    %c1_141 = arith.constant 1 : index
    %c0_142 = arith.constant 0 : index
    %c0_143 = arith.constant 0 : index
    %193 = vector.load %arg2[%c1_141, %c0_142, %c0_143] : memref<2x1x16xf32, #tpu.memory_space<vmem>>, vector<1x1x16xf32>
    %194 = vector.shape_cast %193 : vector<1x1x16xf32> to vector<1x16xf32>
    %195 = vector.broadcast %194 : vector<1x16xf32> to vector<512x16xf32>
    %196 = arith.addf %192, %195 : vector<512x16xf32>
    %cst_144 = arith.constant 0.000000e+00 : f32
    %197 = vector.broadcast %cst_144 : f32 to vector<512x16xf32>
    %198 = arith.maximumf %196, %197 : vector<512x16xf32>
    %199 = vector.shape_cast %198 : vector<512x16xf32> to vector<8x64x16xf32>
    %cst_145 = arith.constant 0.000000e+00 : f32
    %200 = vector.broadcast %cst_145 : f32 to vector<64x32xf32>
    %201 = vector.extract_strided_slice %199 {offsets = [0, 0, 0], sizes = [1, 64, 16], strides = [1, 1, 1]} : vector<8x64x16xf32> to vector<1x64x16xf32>
    %202 = vector.shape_cast %201 : vector<1x64x16xf32> to vector<64x16xf32>
    %203 = arith.truncf %202 : vector<64x16xf32> to vector<64x16xbf16>
    %c1_146 = arith.constant 1 : index
    %c0_147 = arith.constant 0 : index
    %c0_148 = arith.constant 0 : index
    %c0_149 = arith.constant 0 : index
    %204 = vector.load %arg3[%c1_146, %c0_147, %c0_148, %c0_149] : memref<2x8x16x32xbf16, #tpu.memory_space<vmem>>, vector<1x1x16x32xbf16>
    %205 = vector.shape_cast %204 : vector<1x1x16x32xbf16> to vector<16x32xbf16>
    %cst_150 = arith.constant dense<0.000000e+00> : vector<64x32xf32>
    %206 = tpu.matmul %203, %205, %cst_150 {dimension_numbers = #tpu.dot_dimension_numbers<[1], [0], [0], [1], [0, 0, 1, 1], [], []>} : vector<64x16xbf16>, vector<16x32xbf16>, vector<64x32xf32> -> vector<64x32xf32>
    %207 = arith.addf %200, %206 : vector<64x32xf32>
    %208 = vector.extract_strided_slice %199 {offsets = [1, 0, 0], sizes = [1, 64, 16], strides = [1, 1, 1]} : vector<8x64x16xf32> to vector<1x64x16xf32>
    %209 = vector.shape_cast %208 : vector<1x64x16xf32> to vector<64x16xf32>
    %210 = arith.truncf %209 : vector<64x16xf32> to vector<64x16xbf16>
    %c1_151 = arith.constant 1 : index
    %c1_152 = arith.constant 1 : index
    %c0_153 = arith.constant 0 : index
    %c0_154 = arith.constant 0 : index
    %211 = vector.load %arg3[%c1_151, %c1_152, %c0_153, %c0_154] : memref<2x8x16x32xbf16, #tpu.memory_space<vmem>>, vector<1x1x16x32xbf16>
    %212 = vector.shape_cast %211 : vector<1x1x16x32xbf16> to vector<16x32xbf16>
    %cst_155 = arith.constant dense<0.000000e+00> : vector<64x32xf32>
    %213 = tpu.matmul %210, %212, %cst_155 {dimension_numbers = #tpu.dot_dimension_numbers<[1], [0], [0], [1], [0, 0, 1, 1], [], []>} : vector<64x16xbf16>, vector<16x32xbf16>, vector<64x32xf32> -> vector<64x32xf32>
    %214 = arith.addf %207, %213 : vector<64x32xf32>
    %215 = vector.extract_strided_slice %199 {offsets = [2, 0, 0], sizes = [1, 64, 16], strides = [1, 1, 1]} : vector<8x64x16xf32> to vector<1x64x16xf32>
    %216 = vector.shape_cast %215 : vector<1x64x16xf32> to vector<64x16xf32>
    %217 = arith.truncf %216 : vector<64x16xf32> to vector<64x16xbf16>
    %c1_156 = arith.constant 1 : index
    %c2_157 = arith.constant 2 : index
    %c0_158 = arith.constant 0 : index
    %c0_159 = arith.constant 0 : index
    %218 = vector.load %arg3[%c1_156, %c2_157, %c0_158, %c0_159] : memref<2x8x16x32xbf16, #tpu.memory_space<vmem>>, vector<1x1x16x32xbf16>
    %219 = vector.shape_cast %218 : vector<1x1x16x32xbf16> to vector<16x32xbf16>
    %cst_160 = arith.constant dense<0.000000e+00> : vector<64x32xf32>
    %220 = tpu.matmul %217, %219, %cst_160 {dimension_numbers = #tpu.dot_dimension_numbers<[1], [0], [0], [1], [0, 0, 1, 1], [], []>} : vector<64x16xbf16>, vector<16x32xbf16>, vector<64x32xf32> -> vector<64x32xf32>
    %221 = arith.addf %214, %220 : vector<64x32xf32>
    %222 = vector.extract_strided_slice %199 {offsets = [3, 0, 0], sizes = [1, 64, 16], strides = [1, 1, 1]} : vector<8x64x16xf32> to vector<1x64x16xf32>
    %223 = vector.shape_cast %222 : vector<1x64x16xf32> to vector<64x16xf32>
    %224 = arith.truncf %223 : vector<64x16xf32> to vector<64x16xbf16>
    %c1_161 = arith.constant 1 : index
    %c3_162 = arith.constant 3 : index
    %c0_163 = arith.constant 0 : index
    %c0_164 = arith.constant 0 : index
    %225 = vector.load %arg3[%c1_161, %c3_162, %c0_163, %c0_164] : memref<2x8x16x32xbf16, #tpu.memory_space<vmem>>, vector<1x1x16x32xbf16>
    %226 = vector.shape_cast %225 : vector<1x1x16x32xbf16> to vector<16x32xbf16>
    %cst_165 = arith.constant dense<0.000000e+00> : vector<64x32xf32>
    %227 = tpu.matmul %224, %226, %cst_165 {dimension_numbers = #tpu.dot_dimension_numbers<[1], [0], [0], [1], [0, 0, 1, 1], [], []>} : vector<64x16xbf16>, vector<16x32xbf16>, vector<64x32xf32> -> vector<64x32xf32>
    %228 = arith.addf %221, %227 : vector<64x32xf32>
    %229 = vector.extract_strided_slice %199 {offsets = [4, 0, 0], sizes = [1, 64, 16], strides = [1, 1, 1]} : vector<8x64x16xf32> to vector<1x64x16xf32>
    %230 = vector.shape_cast %229 : vector<1x64x16xf32> to vector<64x16xf32>
    %231 = arith.truncf %230 : vector<64x16xf32> to vector<64x16xbf16>
    %c1_166 = arith.constant 1 : index
    %c4_167 = arith.constant 4 : index
    %c0_168 = arith.constant 0 : index
    %c0_169 = arith.constant 0 : index
    %232 = vector.load %arg3[%c1_166, %c4_167, %c0_168, %c0_169] : memref<2x8x16x32xbf16, #tpu.memory_space<vmem>>, vector<1x1x16x32xbf16>
    %233 = vector.shape_cast %232 : vector<1x1x16x32xbf16> to vector<16x32xbf16>
    %cst_170 = arith.constant dense<0.000000e+00> : vector<64x32xf32>
    %234 = tpu.matmul %231, %233, %cst_170 {dimension_numbers = #tpu.dot_dimension_numbers<[1], [0], [0], [1], [0, 0, 1, 1], [], []>} : vector<64x16xbf16>, vector<16x32xbf16>, vector<64x32xf32> -> vector<64x32xf32>
    %235 = arith.addf %228, %234 : vector<64x32xf32>
    %236 = vector.extract_strided_slice %199 {offsets = [5, 0, 0], sizes = [1, 64, 16], strides = [1, 1, 1]} : vector<8x64x16xf32> to vector<1x64x16xf32>
    %237 = vector.shape_cast %236 : vector<1x64x16xf32> to vector<64x16xf32>
    %238 = arith.truncf %237 : vector<64x16xf32> to vector<64x16xbf16>
    %c1_171 = arith.constant 1 : index
    %c5_172 = arith.constant 5 : index
    %c0_173 = arith.constant 0 : index
    %c0_174 = arith.constant 0 : index
    %239 = vector.load %arg3[%c1_171, %c5_172, %c0_173, %c0_174] : memref<2x8x16x32xbf16, #tpu.memory_space<vmem>>, vector<1x1x16x32xbf16>
    %240 = vector.shape_cast %239 : vector<1x1x16x32xbf16> to vector<16x32xbf16>
    %cst_175 = arith.constant dense<0.000000e+00> : vector<64x32xf32>
    %241 = tpu.matmul %238, %240, %cst_175 {dimension_numbers = #tpu.dot_dimension_numbers<[1], [0], [0], [1], [0, 0, 1, 1], [], []>} : vector<64x16xbf16>, vector<16x32xbf16>, vector<64x32xf32> -> vector<64x32xf32>
    %242 = arith.addf %235, %241 : vector<64x32xf32>
    %243 = vector.extract_strided_slice %199 {offsets = [6, 0, 0], sizes = [1, 64, 16], strides = [1, 1, 1]} : vector<8x64x16xf32> to vector<1x64x16xf32>
    %244 = vector.shape_cast %243 : vector<1x64x16xf32> to vector<64x16xf32>
    %245 = arith.truncf %244 : vector<64x16xf32> to vector<64x16xbf16>
    %c1_176 = arith.constant 1 : index
    %c6_177 = arith.constant 6 : index
    %c0_178 = arith.constant 0 : index
    %c0_179 = arith.constant 0 : index
    %246 = vector.load %arg3[%c1_176, %c6_177, %c0_178, %c0_179] : memref<2x8x16x32xbf16, #tpu.memory_space<vmem>>, vector<1x1x16x32xbf16>
    %247 = vector.shape_cast %246 : vector<1x1x16x32xbf16> to vector<16x32xbf16>
    %cst_180 = arith.constant dense<0.000000e+00> : vector<64x32xf32>
    %248 = tpu.matmul %245, %247, %cst_180 {dimension_numbers = #tpu.dot_dimension_numbers<[1], [0], [0], [1], [0, 0, 1, 1], [], []>} : vector<64x16xbf16>, vector<16x32xbf16>, vector<64x32xf32> -> vector<64x32xf32>
    %249 = arith.addf %242, %248 : vector<64x32xf32>
    %250 = vector.extract_strided_slice %199 {offsets = [7, 0, 0], sizes = [1, 64, 16], strides = [1, 1, 1]} : vector<8x64x16xf32> to vector<1x64x16xf32>
    %251 = vector.shape_cast %250 : vector<1x64x16xf32> to vector<64x16xf32>
    %252 = arith.truncf %251 : vector<64x16xf32> to vector<64x16xbf16>
    %c1_181 = arith.constant 1 : index
    %c7_182 = arith.constant 7 : index
    %c0_183 = arith.constant 0 : index
    %c0_184 = arith.constant 0 : index
    %253 = vector.load %arg3[%c1_181, %c7_182, %c0_183, %c0_184] : memref<2x8x16x32xbf16, #tpu.memory_space<vmem>>, vector<1x1x16x32xbf16>
    %254 = vector.shape_cast %253 : vector<1x1x16x32xbf16> to vector<16x32xbf16>
    %cst_185 = arith.constant dense<0.000000e+00> : vector<64x32xf32>
    %255 = tpu.matmul %252, %254, %cst_185 {dimension_numbers = #tpu.dot_dimension_numbers<[1], [0], [0], [1], [0, 0, 1, 1], [], []>} : vector<64x16xbf16>, vector<16x32xbf16>, vector<64x32xf32> -> vector<64x32xf32>
    %256 = arith.addf %249, %255 : vector<64x32xf32>
    %c1_186 = arith.constant 1 : index
    %c0_187 = arith.constant 0 : index
    %c0_188 = arith.constant 0 : index
    %257 = vector.load %arg4[%c1_186, %c0_187, %c0_188] : memref<2x1x32xf32, #tpu.memory_space<vmem>>, vector<1x1x32xf32>
    %258 = vector.shape_cast %257 : vector<1x1x32xf32> to vector<1x32xf32>
    %259 = vector.broadcast %258 : vector<1x32xf32> to vector<64x32xf32>
    %260 = arith.addf %256, %259 : vector<64x32xf32>
    %cst_189 = arith.constant 0.000000e+00 : f32
    %261 = vector.broadcast %cst_189 : f32 to vector<64x32xf32>
    %262 = arith.maximumf %260, %261 : vector<64x32xf32>
    %263 = vector.shape_cast %262 : vector<64x32xf32> to vector<8x8x32xf32>
    %cst_190 = arith.constant 0.000000e+00 : f32
    %264 = vector.broadcast %cst_190 : f32 to vector<8x64xf32>
    %265 = vector.extract_strided_slice %263 {offsets = [0, 0, 0], sizes = [1, 8, 32], strides = [1, 1, 1]} : vector<8x8x32xf32> to vector<1x8x32xf32>
    %266 = vector.shape_cast %265 : vector<1x8x32xf32> to vector<8x32xf32>
    %267 = arith.truncf %266 : vector<8x32xf32> to vector<8x32xbf16>
    %c1_191 = arith.constant 1 : index
    %c0_192 = arith.constant 0 : index
    %c0_193 = arith.constant 0 : index
    %c0_194 = arith.constant 0 : index
    %268 = vector.load %arg5[%c1_191, %c0_192, %c0_193, %c0_194] : memref<2x8x32x64xbf16, #tpu.memory_space<vmem>>, vector<1x1x32x64xbf16>
    %269 = vector.shape_cast %268 : vector<1x1x32x64xbf16> to vector<32x64xbf16>
    %cst_195 = arith.constant dense<0.000000e+00> : vector<8x64xf32>
    %270 = tpu.matmul %267, %269, %cst_195 {dimension_numbers = #tpu.dot_dimension_numbers<[1], [0], [0], [1], [0, 0, 1, 1], [], []>} : vector<8x32xbf16>, vector<32x64xbf16>, vector<8x64xf32> -> vector<8x64xf32>
    %271 = arith.addf %264, %270 : vector<8x64xf32>
    %272 = vector.extract_strided_slice %263 {offsets = [1, 0, 0], sizes = [1, 8, 32], strides = [1, 1, 1]} : vector<8x8x32xf32> to vector<1x8x32xf32>
    %273 = vector.shape_cast %272 : vector<1x8x32xf32> to vector<8x32xf32>
    %274 = arith.truncf %273 : vector<8x32xf32> to vector<8x32xbf16>
    %c1_196 = arith.constant 1 : index
    %c1_197 = arith.constant 1 : index
    %c0_198 = arith.constant 0 : index
    %c0_199 = arith.constant 0 : index
    %275 = vector.load %arg5[%c1_196, %c1_197, %c0_198, %c0_199] : memref<2x8x32x64xbf16, #tpu.memory_space<vmem>>, vector<1x1x32x64xbf16>
    %276 = vector.shape_cast %275 : vector<1x1x32x64xbf16> to vector<32x64xbf16>
    %cst_200 = arith.constant dense<0.000000e+00> : vector<8x64xf32>
    %277 = tpu.matmul %274, %276, %cst_200 {dimension_numbers = #tpu.dot_dimension_numbers<[1], [0], [0], [1], [0, 0, 1, 1], [], []>} : vector<8x32xbf16>, vector<32x64xbf16>, vector<8x64xf32> -> vector<8x64xf32>
    %278 = arith.addf %271, %277 : vector<8x64xf32>
    %279 = vector.extract_strided_slice %263 {offsets = [2, 0, 0], sizes = [1, 8, 32], strides = [1, 1, 1]} : vector<8x8x32xf32> to vector<1x8x32xf32>
    %280 = vector.shape_cast %279 : vector<1x8x32xf32> to vector<8x32xf32>
    %281 = arith.truncf %280 : vector<8x32xf32> to vector<8x32xbf16>
    %c1_201 = arith.constant 1 : index
    %c2_202 = arith.constant 2 : index
    %c0_203 = arith.constant 0 : index
    %c0_204 = arith.constant 0 : index
    %282 = vector.load %arg5[%c1_201, %c2_202, %c0_203, %c0_204] : memref<2x8x32x64xbf16, #tpu.memory_space<vmem>>, vector<1x1x32x64xbf16>
    %283 = vector.shape_cast %282 : vector<1x1x32x64xbf16> to vector<32x64xbf16>
    %cst_205 = arith.constant dense<0.000000e+00> : vector<8x64xf32>
    %284 = tpu.matmul %281, %283, %cst_205 {dimension_numbers = #tpu.dot_dimension_numbers<[1], [0], [0], [1], [0, 0, 1, 1], [], []>} : vector<8x32xbf16>, vector<32x64xbf16>, vector<8x64xf32> -> vector<8x64xf32>
    %285 = arith.addf %278, %284 : vector<8x64xf32>
    %286 = vector.extract_strided_slice %263 {offsets = [3, 0, 0], sizes = [1, 8, 32], strides = [1, 1, 1]} : vector<8x8x32xf32> to vector<1x8x32xf32>
    %287 = vector.shape_cast %286 : vector<1x8x32xf32> to vector<8x32xf32>
    %288 = arith.truncf %287 : vector<8x32xf32> to vector<8x32xbf16>
    %c1_206 = arith.constant 1 : index
    %c3_207 = arith.constant 3 : index
    %c0_208 = arith.constant 0 : index
    %c0_209 = arith.constant 0 : index
    %289 = vector.load %arg5[%c1_206, %c3_207, %c0_208, %c0_209] : memref<2x8x32x64xbf16, #tpu.memory_space<vmem>>, vector<1x1x32x64xbf16>
    %290 = vector.shape_cast %289 : vector<1x1x32x64xbf16> to vector<32x64xbf16>
    %cst_210 = arith.constant dense<0.000000e+00> : vector<8x64xf32>
    %291 = tpu.matmul %288, %290, %cst_210 {dimension_numbers = #tpu.dot_dimension_numbers<[1], [0], [0], [1], [0, 0, 1, 1], [], []>} : vector<8x32xbf16>, vector<32x64xbf16>, vector<8x64xf32> -> vector<8x64xf32>
    %292 = arith.addf %285, %291 : vector<8x64xf32>
    %293 = vector.extract_strided_slice %263 {offsets = [4, 0, 0], sizes = [1, 8, 32], strides = [1, 1, 1]} : vector<8x8x32xf32> to vector<1x8x32xf32>
    %294 = vector.shape_cast %293 : vector<1x8x32xf32> to vector<8x32xf32>
    %295 = arith.truncf %294 : vector<8x32xf32> to vector<8x32xbf16>
    %c1_211 = arith.constant 1 : index
    %c4_212 = arith.constant 4 : index
    %c0_213 = arith.constant 0 : index
    %c0_214 = arith.constant 0 : index
    %296 = vector.load %arg5[%c1_211, %c4_212, %c0_213, %c0_214] : memref<2x8x32x64xbf16, #tpu.memory_space<vmem>>, vector<1x1x32x64xbf16>
    %297 = vector.shape_cast %296 : vector<1x1x32x64xbf16> to vector<32x64xbf16>
    %cst_215 = arith.constant dense<0.000000e+00> : vector<8x64xf32>
    %298 = tpu.matmul %295, %297, %cst_215 {dimension_numbers = #tpu.dot_dimension_numbers<[1], [0], [0], [1], [0, 0, 1, 1], [], []>} : vector<8x32xbf16>, vector<32x64xbf16>, vector<8x64xf32> -> vector<8x64xf32>
    %299 = arith.addf %292, %298 : vector<8x64xf32>
    %300 = vector.extract_strided_slice %263 {offsets = [5, 0, 0], sizes = [1, 8, 32], strides = [1, 1, 1]} : vector<8x8x32xf32> to vector<1x8x32xf32>
    %301 = vector.shape_cast %300 : vector<1x8x32xf32> to vector<8x32xf32>
    %302 = arith.truncf %301 : vector<8x32xf32> to vector<8x32xbf16>
    %c1_216 = arith.constant 1 : index
    %c5_217 = arith.constant 5 : index
    %c0_218 = arith.constant 0 : index
    %c0_219 = arith.constant 0 : index
    %303 = vector.load %arg5[%c1_216, %c5_217, %c0_218, %c0_219] : memref<2x8x32x64xbf16, #tpu.memory_space<vmem>>, vector<1x1x32x64xbf16>
    %304 = vector.shape_cast %303 : vector<1x1x32x64xbf16> to vector<32x64xbf16>
    %cst_220 = arith.constant dense<0.000000e+00> : vector<8x64xf32>
    %305 = tpu.matmul %302, %304, %cst_220 {dimension_numbers = #tpu.dot_dimension_numbers<[1], [0], [0], [1], [0, 0, 1, 1], [], []>} : vector<8x32xbf16>, vector<32x64xbf16>, vector<8x64xf32> -> vector<8x64xf32>
    %306 = arith.addf %299, %305 : vector<8x64xf32>
    %307 = vector.extract_strided_slice %263 {offsets = [6, 0, 0], sizes = [1, 8, 32], strides = [1, 1, 1]} : vector<8x8x32xf32> to vector<1x8x32xf32>
    %308 = vector.shape_cast %307 : vector<1x8x32xf32> to vector<8x32xf32>
    %309 = arith.truncf %308 : vector<8x32xf32> to vector<8x32xbf16>
    %c1_221 = arith.constant 1 : index
    %c6_222 = arith.constant 6 : index
    %c0_223 = arith.constant 0 : index
    %c0_224 = arith.constant 0 : index
    %310 = vector.load %arg5[%c1_221, %c6_222, %c0_223, %c0_224] : memref<2x8x32x64xbf16, #tpu.memory_space<vmem>>, vector<1x1x32x64xbf16>
    %311 = vector.shape_cast %310 : vector<1x1x32x64xbf16> to vector<32x64xbf16>
    %cst_225 = arith.constant dense<0.000000e+00> : vector<8x64xf32>
    %312 = tpu.matmul %309, %311, %cst_225 {dimension_numbers = #tpu.dot_dimension_numbers<[1], [0], [0], [1], [0, 0, 1, 1], [], []>} : vector<8x32xbf16>, vector<32x64xbf16>, vector<8x64xf32> -> vector<8x64xf32>
    %313 = arith.addf %306, %312 : vector<8x64xf32>
    %314 = vector.extract_strided_slice %263 {offsets = [7, 0, 0], sizes = [1, 8, 32], strides = [1, 1, 1]} : vector<8x8x32xf32> to vector<1x8x32xf32>
    %315 = vector.shape_cast %314 : vector<1x8x32xf32> to vector<8x32xf32>
    %316 = arith.truncf %315 : vector<8x32xf32> to vector<8x32xbf16>
    %c1_226 = arith.constant 1 : index
    %c7_227 = arith.constant 7 : index
    %c0_228 = arith.constant 0 : index
    %c0_229 = arith.constant 0 : index
    %317 = vector.load %arg5[%c1_226, %c7_227, %c0_228, %c0_229] : memref<2x8x32x64xbf16, #tpu.memory_space<vmem>>, vector<1x1x32x64xbf16>
    %318 = vector.shape_cast %317 : vector<1x1x32x64xbf16> to vector<32x64xbf16>
    %cst_230 = arith.constant dense<0.000000e+00> : vector<8x64xf32>
    %319 = tpu.matmul %316, %318, %cst_230 {dimension_numbers = #tpu.dot_dimension_numbers<[1], [0], [0], [1], [0, 0, 1, 1], [], []>} : vector<8x32xbf16>, vector<32x64xbf16>, vector<8x64xf32> -> vector<8x64xf32>
    %320 = arith.addf %313, %319 : vector<8x64xf32>
    %c1_231 = arith.constant 1 : index
    %c0_232 = arith.constant 0 : index
    %c0_233 = arith.constant 0 : index
    %321 = vector.load %arg6[%c1_231, %c0_232, %c0_233] : memref<2x1x64xf32, #tpu.memory_space<vmem>>, vector<1x1x64xf32>
    %322 = vector.shape_cast %321 : vector<1x1x64xf32> to vector<1x64xf32>
    %323 = vector.broadcast %322 : vector<1x64xf32> to vector<8x64xf32>
    %324 = arith.addf %320, %323 : vector<8x64xf32>
    %cst_234 = arith.constant 0.000000e+00 : f32
    %325 = vector.broadcast %cst_234 : f32 to vector<8x64xf32>
    %326 = arith.maximumf %324, %325 : vector<8x64xf32>
    %327 = vector.extract_strided_slice %326 {offsets = [0, 0], sizes = [1, 64], strides = [1, 1]} : vector<8x64xf32> to vector<1x64xf32>
    %328 = arith.truncf %327 : vector<1x64xf32> to vector<1x64xbf16>
    %c1_235 = arith.constant 1 : index
    %c0_236 = arith.constant 0 : index
    %c0_237 = arith.constant 0 : index
    %c0_238 = arith.constant 0 : index
    %329 = vector.load %arg7[%c1_235, %c0_236, %c0_237, %c0_238] : memref<2x8x64x256xbf16, #tpu.memory_space<vmem>>, vector<1x1x64x256xbf16>
    %330 = vector.shape_cast %329 : vector<1x1x64x256xbf16> to vector<64x256xbf16>
    %cst_239 = arith.constant dense<0.000000e+00> : vector<1x256xf32>
    %331 = tpu.matmul %328, %330, %cst_239 {dimension_numbers = #tpu.dot_dimension_numbers<[1], [0], [0], [1], [0, 0, 1, 1], [], []>} : vector<1x64xbf16>, vector<64x256xbf16>, vector<1x256xf32> -> vector<1x256xf32>
    %332 = arith.addf %187, %331 : vector<1x256xf32>
    %333 = vector.extract_strided_slice %326 {offsets = [1, 0], sizes = [1, 64], strides = [1, 1]} : vector<8x64xf32> to vector<1x64xf32>
    %334 = arith.truncf %333 : vector<1x64xf32> to vector<1x64xbf16>
    %c1_240 = arith.constant 1 : index
    %c1_241 = arith.constant 1 : index
    %c0_242 = arith.constant 0 : index
    %c0_243 = arith.constant 0 : index
    %335 = vector.load %arg7[%c1_240, %c1_241, %c0_242, %c0_243] : memref<2x8x64x256xbf16, #tpu.memory_space<vmem>>, vector<1x1x64x256xbf16>
    %336 = vector.shape_cast %335 : vector<1x1x64x256xbf16> to vector<64x256xbf16>
    %cst_244 = arith.constant dense<0.000000e+00> : vector<1x256xf32>
    %337 = tpu.matmul %334, %336, %cst_244 {dimension_numbers = #tpu.dot_dimension_numbers<[1], [0], [0], [1], [0, 0, 1, 1], [], []>} : vector<1x64xbf16>, vector<64x256xbf16>, vector<1x256xf32> -> vector<1x256xf32>
    %338 = arith.addf %332, %337 : vector<1x256xf32>
    %339 = vector.extract_strided_slice %326 {offsets = [2, 0], sizes = [1, 64], strides = [1, 1]} : vector<8x64xf32> to vector<1x64xf32>
    %340 = arith.truncf %339 : vector<1x64xf32> to vector<1x64xbf16>
    %c1_245 = arith.constant 1 : index
    %c2_246 = arith.constant 2 : index
    %c0_247 = arith.constant 0 : index
    %c0_248 = arith.constant 0 : index
    %341 = vector.load %arg7[%c1_245, %c2_246, %c0_247, %c0_248] : memref<2x8x64x256xbf16, #tpu.memory_space<vmem>>, vector<1x1x64x256xbf16>
    %342 = vector.shape_cast %341 : vector<1x1x64x256xbf16> to vector<64x256xbf16>
    %cst_249 = arith.constant dense<0.000000e+00> : vector<1x256xf32>
    %343 = tpu.matmul %340, %342, %cst_249 {dimension_numbers = #tpu.dot_dimension_numbers<[1], [0], [0], [1], [0, 0, 1, 1], [], []>} : vector<1x64xbf16>, vector<64x256xbf16>, vector<1x256xf32> -> vector<1x256xf32>
    %344 = arith.addf %338, %343 : vector<1x256xf32>
    %345 = vector.extract_strided_slice %326 {offsets = [3, 0], sizes = [1, 64], strides = [1, 1]} : vector<8x64xf32> to vector<1x64xf32>
    %346 = arith.truncf %345 : vector<1x64xf32> to vector<1x64xbf16>
    %c1_250 = arith.constant 1 : index
    %c3_251 = arith.constant 3 : index
    %c0_252 = arith.constant 0 : index
    %c0_253 = arith.constant 0 : index
    %347 = vector.load %arg7[%c1_250, %c3_251, %c0_252, %c0_253] : memref<2x8x64x256xbf16, #tpu.memory_space<vmem>>, vector<1x1x64x256xbf16>
    %348 = vector.shape_cast %347 : vector<1x1x64x256xbf16> to vector<64x256xbf16>
    %cst_254 = arith.constant dense<0.000000e+00> : vector<1x256xf32>
    %349 = tpu.matmul %346, %348, %cst_254 {dimension_numbers = #tpu.dot_dimension_numbers<[1], [0], [0], [1], [0, 0, 1, 1], [], []>} : vector<1x64xbf16>, vector<64x256xbf16>, vector<1x256xf32> -> vector<1x256xf32>
    %350 = arith.addf %344, %349 : vector<1x256xf32>
    %351 = vector.extract_strided_slice %326 {offsets = [4, 0], sizes = [1, 64], strides = [1, 1]} : vector<8x64xf32> to vector<1x64xf32>
    %352 = arith.truncf %351 : vector<1x64xf32> to vector<1x64xbf16>
    %c1_255 = arith.constant 1 : index
    %c4_256 = arith.constant 4 : index
    %c0_257 = arith.constant 0 : index
    %c0_258 = arith.constant 0 : index
    %353 = vector.load %arg7[%c1_255, %c4_256, %c0_257, %c0_258] : memref<2x8x64x256xbf16, #tpu.memory_space<vmem>>, vector<1x1x64x256xbf16>
    %354 = vector.shape_cast %353 : vector<1x1x64x256xbf16> to vector<64x256xbf16>
    %cst_259 = arith.constant dense<0.000000e+00> : vector<1x256xf32>
    %355 = tpu.matmul %352, %354, %cst_259 {dimension_numbers = #tpu.dot_dimension_numbers<[1], [0], [0], [1], [0, 0, 1, 1], [], []>} : vector<1x64xbf16>, vector<64x256xbf16>, vector<1x256xf32> -> vector<1x256xf32>
    %356 = arith.addf %350, %355 : vector<1x256xf32>
    %357 = vector.extract_strided_slice %326 {offsets = [5, 0], sizes = [1, 64], strides = [1, 1]} : vector<8x64xf32> to vector<1x64xf32>
    %358 = arith.truncf %357 : vector<1x64xf32> to vector<1x64xbf16>
    %c1_260 = arith.constant 1 : index
    %c5_261 = arith.constant 5 : index
    %c0_262 = arith.constant 0 : index
    %c0_263 = arith.constant 0 : index
    %359 = vector.load %arg7[%c1_260, %c5_261, %c0_262, %c0_263] : memref<2x8x64x256xbf16, #tpu.memory_space<vmem>>, vector<1x1x64x256xbf16>
    %360 = vector.shape_cast %359 : vector<1x1x64x256xbf16> to vector<64x256xbf16>
    %cst_264 = arith.constant dense<0.000000e+00> : vector<1x256xf32>
    %361 = tpu.matmul %358, %360, %cst_264 {dimension_numbers = #tpu.dot_dimension_numbers<[1], [0], [0], [1], [0, 0, 1, 1], [], []>} : vector<1x64xbf16>, vector<64x256xbf16>, vector<1x256xf32> -> vector<1x256xf32>
    %362 = arith.addf %356, %361 : vector<1x256xf32>
    %363 = vector.extract_strided_slice %326 {offsets = [6, 0], sizes = [1, 64], strides = [1, 1]} : vector<8x64xf32> to vector<1x64xf32>
    %364 = arith.truncf %363 : vector<1x64xf32> to vector<1x64xbf16>
    %c1_265 = arith.constant 1 : index
    %c6_266 = arith.constant 6 : index
    %c0_267 = arith.constant 0 : index
    %c0_268 = arith.constant 0 : index
    %365 = vector.load %arg7[%c1_265, %c6_266, %c0_267, %c0_268] : memref<2x8x64x256xbf16, #tpu.memory_space<vmem>>, vector<1x1x64x256xbf16>
    %366 = vector.shape_cast %365 : vector<1x1x64x256xbf16> to vector<64x256xbf16>
    %cst_269 = arith.constant dense<0.000000e+00> : vector<1x256xf32>
    %367 = tpu.matmul %364, %366, %cst_269 {dimension_numbers = #tpu.dot_dimension_numbers<[1], [0], [0], [1], [0, 0, 1, 1], [], []>} : vector<1x64xbf16>, vector<64x256xbf16>, vector<1x256xf32> -> vector<1x256xf32>
    %368 = arith.addf %362, %367 : vector<1x256xf32>
    %369 = vector.extract_strided_slice %326 {offsets = [7, 0], sizes = [1, 64], strides = [1, 1]} : vector<8x64xf32> to vector<1x64xf32>
    %370 = arith.truncf %369 : vector<1x64xf32> to vector<1x64xbf16>
    %c1_270 = arith.constant 1 : index
    %c7_271 = arith.constant 7 : index
    %c0_272 = arith.constant 0 : index
    %c0_273 = arith.constant 0 : index
    %371 = vector.load %arg7[%c1_270, %c7_271, %c0_272, %c0_273] : memref<2x8x64x256xbf16, #tpu.memory_space<vmem>>, vector<1x1x64x256xbf16>
    %372 = vector.shape_cast %371 : vector<1x1x64x256xbf16> to vector<64x256xbf16>
    %cst_274 = arith.constant dense<0.000000e+00> : vector<1x256xf32>
    %373 = tpu.matmul %370, %372, %cst_274 {dimension_numbers = #tpu.dot_dimension_numbers<[1], [0], [0], [1], [0, 0, 1, 1], [], []>} : vector<1x64xbf16>, vector<64x256xbf16>, vector<1x256xf32> -> vector<1x256xf32>
    %374 = arith.addf %368, %373 : vector<1x256xf32>
    %cst_275 = arith.constant 0.000000e+00 : f32
    %375 = vector.broadcast %cst_275 : f32 to vector<1x256xf32>
    %376 = arith.maximumf %374, %375 : vector<1x256xf32>
    %377 = arith.truncf %376 : vector<1x256xf32> to vector<1x256xbf16>
    %c0_276 = arith.constant 0 : index
    %c0_277 = arith.constant 0 : index
    %378 = vector.load %arg9[%c0_276, %c0_277] : memref<256x512xbf16, #tpu.memory_space<vmem>>, vector<256x512xbf16>
    %cst_278 = arith.constant dense<0.000000e+00> : vector<1x512xf32>
    %379 = tpu.matmul %377, %378, %cst_278 {dimension_numbers = #tpu.dot_dimension_numbers<[1], [0], [0], [1], [0, 0, 1, 1], [], []>} : vector<1x256xbf16>, vector<256x512xbf16>, vector<1x512xf32> -> vector<1x512xf32>
    %cst_279 = arith.constant 0.000000e+00 : f32
    %380 = vector.broadcast %cst_279 : f32 to vector<1x512xf32>
    %381 = arith.maximumf %379, %380 : vector<1x512xf32>
    %382 = arith.truncf %381 : vector<1x512xf32> to vector<1x512xbf16>
    %c0_280 = arith.constant 0 : index
    %c0_281 = arith.constant 0 : index
    %383 = vector.load %arg10[%c0_280, %c0_281] : memref<512x2xbf16, #tpu.memory_space<vmem>>, vector<512x2xbf16>
    %cst_282 = arith.constant dense<0.000000e+00> : vector<1x2xf32>
    %384 = tpu.matmul %382, %383, %cst_282 {dimension_numbers = #tpu.dot_dimension_numbers<[1], [0], [0], [1], [0, 0, 1, 1], [], []>} : vector<1x512xbf16>, vector<512x2xbf16>, vector<1x2xf32> -> vector<1x2xf32>
    %c0_283 = arith.constant 0 : index
    %c0_284 = arith.constant 0 : index
    %385 = vector.load %arg11[%c0_283, %c0_284] : memref<1x2xf32, #tpu.memory_space<vmem>>, vector<1x2xf32>
    tpu.vector_store %arg11[%c0_283, %c0_284], %384 {strides = array<i32>} : memref<1x2xf32, #tpu.memory_space<vmem>>, vector<1x2xf32>,
    return
  }
}

</mosaic_0001>

<llo_original>
// kernel: two_stream_forward.1
$region0: #{two_stream_forward.1}
  #allocation0 [shape = 'u32[]', space=smem, size = 0x4, offset = 0x4, fixed_abs, tag = 'smem constant byte address 0x4 - core index']
  #allocation1 [shape = 'u32[144,128]{1,0:T(1,128)}', space=vmem, size = 0x12000, scoped, tag = 'internal scratch']
  %s0 = inlined_call_operand.vmem [shape: bf16[2,512,24], index: 0, kind: input, shape index: {}]
  %s1 = inlined_call_operand.vmem [shape: bf16[2,24,16], index: 1, kind: input, shape index: {}]
  %s2 = inlined_call_operand.vmem [shape: f32[2,1,16], index: 2, kind: input, shape index: {}]
  %s3 = inlined_call_operand.vmem [shape: bf16[2,8,16,32], index: 3, kind: input, shape index: {}]
  %s4 = inlined_call_operand.vmem [shape: f32[2,1,32], index: 4, kind: input, shape index: {}]
  %s5 = inlined_call_operand.vmem [shape: bf16[2,8,32,64], index: 5, kind: input, shape index: {}]
  %s6 = inlined_call_operand.vmem [shape: f32[2,1,64], index: 6, kind: input, shape index: {}]
  %s7 = inlined_call_operand.vmem [shape: bf16[2,8,64,256], index: 7, kind: input, shape index: {}]
  %s8 = inlined_call_operand.vmem [shape: f32[1,256], index: 8, kind: input, shape index: {}]
  %s9 = inlined_call_operand.vmem [shape: bf16[256,512], index: 9, kind: input, shape index: {}]
  %s10 = inlined_call_operand.vmem [shape: bf16[512,2], index: 10, kind: input, shape index: {}]
  %s11 = inlined_call_operand.hbm [shape: f32[1,2], index: 11, kind: output, shape index: {}]
  %s12 = sld [smem:[#allocation0]]
  $region54: #{two_stream_forward.1} parent=0
    _
  %s14 = ssub.s32 1, %s12
  %s15 = scalar_select 0, %s14, %s12
  $region1: #{two_stream_forward.1} parent=0
    #allocation2 [shape = 'u8[512]{0}', space=vmem, size = 0x400, scoped, tag = 'output window, operand 0, single buffered']
    #allocation3 [shape = 's32[1]{0}', space=sflag, size = 0x4, scoped, tag = 'scoped memory for two_stream_forward.1']
    %16 = vsyncpa [#allocation3], 0
    // Predicated region
    $region2: #{two_stream_forward.1} parent=1 // pred_check
      _
    $region3: #{two_stream_forward.1} parent=1 // pred_check_branch
      %18 = sbr.rel (0) target = $region5
    $region4: #{two_stream_forward.1} parent=1 // pred_region
      _
    $region5: #{two_stream_forward.1} parent=1 // pred_fallthru
      _
    // Predicated region
    $region6: #{two_stream_forward.1} parent=1 // pred_check
      _
    $region7: #{two_stream_forward.1} parent=1 // pred_check_branch
      %20 = sbr.rel (0) target = $region9
    $region8: #{two_stream_forward.1} parent=1 // pred_region
      _
    $region9: #{two_stream_forward.1} parent=1 // pred_fallthru
      _
    // Predicated region
    $region10: #{two_stream_forward.1} parent=1 // pred_check
      _
    $region11: #{two_stream_forward.1} parent=1 // pred_check_branch
      %22 = sbr.rel (0) target = $region13
    $region12: #{two_stream_forward.1} parent=1 // pred_region
      _
    $region13: #{two_stream_forward.1} parent=1 // pred_fallthru
      _
    // Predicated region
    $region14: #{two_stream_forward.1} parent=1 // pred_check
      _
    $region15: #{two_stream_forward.1} parent=1 // pred_check_branch
      %24 = sbr.rel (0) target = $region17
    $region16: #{two_stream_forward.1} parent=1 // pred_region
      _
    $region17: #{two_stream_forward.1} parent=1 // pred_fallthru
      _
    // Predicated region
    $region18: #{two_stream_forward.1} parent=1 // pred_check
      _
    $region19: #{two_stream_forward.1} parent=1 // pred_check_branch
      %26 = sbr.rel (0) target = $region21
    $region20: #{two_stream_forward.1} parent=1 // pred_region
      _
    $region21: #{two_stream_forward.1} parent=1 // pred_fallthru
      _
    // Predicated region
    $region22: #{two_stream_forward.1} parent=1 // pred_check
      _
    $region23: #{two_stream_forward.1} parent=1 // pred_check_branch
      %28 = sbr.rel (0) target = $region25
    $region24: #{two_stream_forward.1} parent=1 // pred_region
      _
    $region25: #{two_stream_forward.1} parent=1 // pred_fallthru
      _
    // Predicated region
    $region26: #{two_stream_forward.1} parent=1 // pred_check
      _
    $region27: #{two_stream_forward.1} parent=1 // pred_check_branch
      %30 = sbr.rel (0) target = $region29
    $region28: #{two_stream_forward.1} parent=1 // pred_region
      _
    $region29: #{two_stream_forward.1} parent=1 // pred_fallthru
      _
    // Predicated region
    $region30: #{two_stream_forward.1} parent=1 // pred_check
      _
    $region31: #{two_stream_forward.1} parent=1 // pred_check_branch
      %32 = sbr.rel (0) target = $region33
    $region32: #{two_stream_forward.1} parent=1 // pred_region
      _
    $region33: #{two_stream_forward.1} parent=1 // pred_fallthru
      _
    // Predicated region
    $region34: #{two_stream_forward.1} parent=1 // pred_check
      _
    $region35: #{two_stream_forward.1} parent=1 // pred_check_branch
      %34 = sbr.rel (0) target = $region37
    $region36: #{two_stream_forward.1} parent=1 // pred_region
      _
    $region37: #{two_stream_forward.1} parent=1 // pred_fallthru
      _
    // Predicated region
    $region38: #{two_stream_forward.1} parent=1 // pred_check
      _
    $region39: #{two_stream_forward.1} parent=1 // pred_check_branch
      %36 = sbr.rel (0) target = $region41
    $region40: #{two_stream_forward.1} parent=1 // pred_region
      _
    $region41: #{two_stream_forward.1} parent=1 // pred_fallthru
      _
    // Predicated region
    $region42: #{two_stream_forward.1} parent=1 // pred_check
      _
    $region43: #{two_stream_forward.1} parent=1 // pred_check_branch
      %38 = sbr.rel (0) target = $region45
    $region44: #{two_stream_forward.1} parent=1 // pred_region
      _
    $region45: #{two_stream_forward.1} parent=1 // pred_fallthru
      _
    %v40 = vld [vmem:[%s8] sm:$0x3]
    %v41 = vld [vmem:[%s0] sm:$0xf]
    %v42 = vld [vmem:[%s0 + $0x4] sm:$0xf]
    %v43 = vld [vmem:[%s0 + $0x8] sm:$0xf]
    %v44 = vld [vmem:[%s0 + $0xc] sm:$0xf]
    %v45 = vld [vmem:[%s0 + $0x10] sm:$0xf]
    %v46 = vld [vmem:[%s0 + $0x14] sm:$0xf]
    %v47 = vld [vmem:[%s0 + $0x18] sm:$0xf]
    %v48 = vld [vmem:[%s0 + $0x1c] sm:$0xf]
    %v49 = vld [vmem:[%s0 + $0x20] sm:$0xf]
    %v50 = vld [vmem:[%s0 + $0x24] sm:$0xf]
    %v51 = vld [vmem:[%s0 + $0x28] sm:$0xf]
    %v52 = vld [vmem:[%s0 + $0x2c] sm:$0xf]
    %v53 = vld [vmem:[%s0 + $0x30] sm:$0xf]
    %v54 = vld [vmem:[%s0 + $0x34] sm:$0xf]
    %v55 = vld [vmem:[%s0 + $0x38] sm:$0xf]
    %v56 = vld [vmem:[%s0 + $0x3c] sm:$0xf]
    %v57 = vld [vmem:[%s0 + $0x40] sm:$0xf]
    %v58 = vld [vmem:[%s0 + $0x44] sm:$0xf]
    %v59 = vld [vmem:[%s0 + $0x48] sm:$0xf]
    %v60 = vld [vmem:[%s0 + $0x4c] sm:$0xf]
    %v61 = vld [vmem:[%s0 + $0x50] sm:$0xf]
    %v62 = vld [vmem:[%s0 + $0x54] sm:$0xf]
    %v63 = vld [vmem:[%s0 + $0x58] sm:$0xf]
    %v64 = vld [vmem:[%s0 + $0x5c] sm:$0xf]
    %v65 = vld [vmem:[%s0 + $0x60] sm:$0xf]
    %v66 = vld [vmem:[%s0 + $0x64] sm:$0xf]
    %v67 = vld [vmem:[%s0 + $0x68] sm:$0xf]
    %v68 = vld [vmem:[%s0 + $0x6c] sm:$0xf]
    %v69 = vld [vmem:[%s0 + $0x70] sm:$0xf]
    %v70 = vld [vmem:[%s0 + $0x74] sm:$0xf]
    %v71 = vld [vmem:[%s0 + $0x78] sm:$0xf]
    %v72 = vld [vmem:[%s0 + $0x7c] sm:$0xf]
    %v73 = vld [vmem:[%s0 + $0x80] sm:$0xf]
    %v74 = vld [vmem:[%s0 + $0x84] sm:$0xf]
    %v75 = vld [vmem:[%s0 + $0x88] sm:$0xf]
    %v76 = vld [vmem:[%s0 + $0x8c] sm:$0xf]
    %v77 = vld [vmem:[%s0 + $0x90] sm:$0xf]
    %v78 = vld [vmem:[%s0 + $0x94] sm:$0xf]
    %v79 = vld [vmem:[%s0 + $0x98] sm:$0xf]
    %v80 = vld [vmem:[%s0 + $0x9c] sm:$0xf]
    %v81 = vld [vmem:[%s0 + $0xa0] sm:$0xf]
    %v82 = vld [vmem:[%s0 + $0xa4] sm:$0xf]
    %v83 = vld [vmem:[%s0 + $0xa8] sm:$0xf]
    %v84 = vld [vmem:[%s0 + $0xac] sm:$0xf]
    %v85 = vld [vmem:[%s0 + $0xb0] sm:$0xf]
    %v86 = vld [vmem:[%s0 + $0xb4] sm:$0xf]
    %v87 = vld [vmem:[%s0 + $0xb8] sm:$0xf]
    %v88 = vld [vmem:[%s0 + $0xbc] sm:$0xf]
    %v89 = vld [vmem:[%s0 + $0xc0] sm:$0xf]
    %v90 = vld [vmem:[%s0 + $0xc4] sm:$0xf]
    %v91 = vld [vmem:[%s0 + $0xc8] sm:$0xf]
    %v92 = vld [vmem:[%s0 + $0xcc] sm:$0xf]
    %v93 = vld [vmem:[%s0 + $0xd0] sm:$0xf]
    %v94 = vld [vmem:[%s0 + $0xd4] sm:$0xf]
    %v95 = vld [vmem:[%s0 + $0xd8] sm:$0xf]
    %v96 = vld [vmem:[%s0 + $0xdc] sm:$0xf]
    %v97 = vld [vmem:[%s0 + $0xe0] sm:$0xf]
    %v98 = vld [vmem:[%s0 + $0xe4] sm:$0xf]
    %v99 = vld [vmem:[%s0 + $0xe8] sm:$0xf]
    %v100 = vld [vmem:[%s0 + $0xec] sm:$0xf]
    %v101 = vld [vmem:[%s0 + $0xf0] sm:$0xf]
    %v102 = vld [vmem:[%s0 + $0xf4] sm:$0xf]
    %v103 = vld [vmem:[%s0 + $0xf8] sm:$0xf]
    %v104 = vld [vmem:[%s0 + $0xfc] sm:$0xf]
    %v105 = vld [vmem:[%s1] sm:$0xf]
    %v106 = vld [vmem:[%s1 + $0x4] sm:$0xf]
    %v107 = vld [vmem:[%s1 + $0x8] sm:$0xf]
    %v108 = vld [vmem:[%s2] sm:$0x1]
    %v110 = vlaneseq
    %v111 = vshrl.u32 %v110, 7
    %v112 = vsub.s32 0, %v111
    %v113 = vrot.slane %v108, %v112
    %v179 = vunpack.c.l.b16 %v41
    %v180 = vunpack.c.l.b16 %v42
    %v181 = vunpack.c.l.b16 %v43
    %v182 = vunpack.c.l.b16 %v44
    %v183 = vunpack.c.l.b16 %v45
    %v184 = vunpack.c.l.b16 %v46
    %v185 = vunpack.c.l.b16 %v47
    %v186 = vunpack.c.l.b16 %v48
    %v187 = vunpack.c.l.b16 %v49
    %v188 = vunpack.c.l.b16 %v50
    %v189 = vunpack.c.l.b16 %v51
    %v190 = vunpack.c.l.b16 %v52
    %v191 = vunpack.c.l.b16 %v53
    %v192 = vunpack.c.l.b16 %v54
    %v193 = vunpack.c.l.b16 %v55
    %v194 = vunpack.c.l.b16 %v56
    %v195 = vunpack.c.l.b16 %v57
    %v196 = vunpack.c.l.b16 %v58
    %v197 = vunpack.c.l.b16 %v59
    %v198 = vunpack.c.l.b16 %v60
    %v199 = vunpack.c.l.b16 %v61
    %v200 = vunpack.c.l.b16 %v62
    %v201 = vunpack.c.l.b16 %v63
    %v202 = vunpack.c.l.b16 %v64
    %v203 = vunpack.c.l.b16 %v65
    %v204 = vunpack.c.l.b16 %v66
    %v205 = vunpack.c.l.b16 %v67
    %v206 = vunpack.c.l.b16 %v68
    %v207 = vunpack.c.l.b16 %v69
    %v208 = vunpack.c.l.b16 %v70
    %v209 = vunpack.c.l.b16 %v71
    %v210 = vunpack.c.l.b16 %v72
    %v211 = vunpack.c.l.b16 %v73
    %v212 = vunpack.c.l.b16 %v74
    %v213 = vunpack.c.l.b16 %v75
    %v214 = vunpack.c.l.b16 %v76
    %v215 = vunpack.c.l.b16 %v77
    %v216 = vunpack.c.l.b16 %v78
    %v217 = vunpack.c.l.b16 %v79
    %v218 = vunpack.c.l.b16 %v80
    %v219 = vunpack.c.l.b16 %v81
    %v220 = vunpack.c.l.b16 %v82
    %v221 = vunpack.c.l.b16 %v83
    %v222 = vunpack.c.l.b16 %v84
    %v223 = vunpack.c.l.b16 %v85
    %v224 = vunpack.c.l.b16 %v86
    %v225 = vunpack.c.l.b16 %v87
    %v226 = vunpack.c.l.b16 %v88
    %v227 = vunpack.c.l.b16 %v89
    %v228 = vunpack.c.l.b16 %v90
    %v229 = vunpack.c.l.b16 %v91
    %v230 = vunpack.c.l.b16 %v92
    %v231 = vunpack.c.l.b16 %v93
    %v232 = vunpack.c.l.b16 %v94
    %v233 = vunpack.c.l.b16 %v95
    %v234 = vunpack.c.l.b16 %v96
    %v235 = vunpack.c.l.b16 %v97
    %v236 = vunpack.c.l.b16 %v98
    %v237 = vunpack.c.l.b16 %v99
    %v238 = vunpack.c.l.b16 %v100
    %v239 = vunpack.c.l.b16 %v101
    %v240 = vunpack.c.l.b16 %v102
    %v241 = vunpack.c.l.b16 %v103
    %v242 = vunpack.c.l.b16 %v104
    %v243 = vpack.c.b16 %v180, %v179
    %v244 = vpack.c.b16 %v182, %v181
    %v245 = vpack.c.b16 %v184, %v183
    %v246 = vpack.c.b16 %v186, %v185
    %v247 = vpack.c.b16 %v188, %v187
    %v248 = vpack.c.b16 %v190, %v189
    %v249 = vpack.c.b16 %v192, %v191
    %v250 = vpack.c.b16 %v194, %v193
    %v251 = vpack.c.b16 %v196, %v195
    %v252 = vpack.c.b16 %v198, %v197
    %v253 = vpack.c.b16 %v200, %v199
    %v254 = vpack.c.b16 %v202, %v201
    %v255 = vpack.c.b16 %v204, %v203
    %v256 = vpack.c.b16 %v206, %v205
    %v257 = vpack.c.b16 %v208, %v207
    %v258 = vpack.c.b16 %v210, %v209
    %v259 = vpack.c.b16 %v212, %v211
    %v260 = vpack.c.b16 %v214, %v213
    %v261 = vpack.c.b16 %v216, %v215
    %v262 = vpack.c.b16 %v218, %v217
    %v263 = vpack.c.b16 %v220, %v219
    %v264 = vpack.c.b16 %v222, %v221
    %v265 = vpack.c.b16 %v224, %v223
    %v266 = vpack.c.b16 %v226, %v225
    %v267 = vpack.c.b16 %v228, %v227
    %v268 = vpack.c.b16 %v230, %v229
    %v269 = vpack.c.b16 %v232, %v231
    %v270 = vpack.c.b16 %v234, %v233
    %v271 = vpack.c.b16 %v236, %v235
    %v272 = vpack.c.b16 %v238, %v237
    %v273 = vpack.c.b16 %v240, %v239
    %v274 = vpack.c.b16 %v242, %v241
    %v278 = vunpack.c.l.b16 %v105
    %v279 = vunpack.c.l.b16 %v106
    %v280 = vunpack.c.l.b16 %v107
    %v281 = vpack.c.b16 %v279, %v278
    %v282 = vpack.c.b16 %v280, %v280
    %vm284 = vcmask 195584
    %v286 = vsel %vm284, %v243, 0
    %v289 = vsel %vm284, %v244, 0
    %v292 = vsel %vm284, %v245, 0
    %v295 = vsel %vm284, %v246, 0
    %v298 = vsel %vm284, %v247, 0
    %v301 = vsel %vm284, %v248, 0
    %v304 = vsel %vm284, %v249, 0
    %v307 = vsel %vm284, %v250, 0
    %v310 = vsel %vm284, %v251, 0
    %v313 = vsel %vm284, %v252, 0
    %v316 = vsel %vm284, %v253, 0
    %v319 = vsel %vm284, %v254, 0
    %v322 = vsel %vm284, %v255, 0
    %v325 = vsel %vm284, %v256, 0
    %v328 = vsel %vm284, %v257, 0
    %v331 = vsel %vm284, %v258, 0
    %v334 = vsel %vm284, %v259, 0
    %v337 = vsel %vm284, %v260, 0
    %v340 = vsel %vm284, %v261, 0
    %v343 = vsel %vm284, %v262, 0
    %v346 = vsel %vm284, %v263, 0
    %v349 = vsel %vm284, %v264, 0
    %v352 = vsel %vm284, %v265, 0
    %v355 = vsel %vm284, %v266, 0
    %v358 = vsel %vm284, %v267, 0
    %v361 = vsel %vm284, %v268, 0
    %v364 = vsel %vm284, %v269, 0
    %v367 = vsel %vm284, %v270, 0
    %v370 = vsel %vm284, %v271, 0
    %v373 = vsel %vm284, %v272, 0
    %v376 = vsel %vm284, %v273, 0
    %v379 = vsel %vm284, %v274, 0
    %vm381 = vcmask 1043456
    %v383 = vsel %vm381, %v282, 0
    %385 = vmatprep.subr.bf16.mxu0 0
    %386 = vmatpush1.bf16.msra.mxu0 %v281
    %387 = vmatprep.subr.bf16.mxu0 0
    %388 = vmatpush1.bf16.msra.mxu0 %v383
    %389 = vmatprep.subr.bf16.mxu0 0
    %390 = vmatpush1.bf16.msra.mxu0 0
    %391 = vmatprep.subr.bf16.mxu0 0
    %392 = vmatpush1.bf16.msra.mxu0 0
    %393 = vmatprep.subr.bf16.mxu0 0
    %394 = vmatpush1.bf16.msra.mxu0 0
    %395 = vmatprep.subr.bf16.mxu0 0
    %396 = vmatpush1.bf16.msra.mxu0 0
    %397 = vmatprep.subr.bf16.mxu0 0
    %398 = vmatpush1.bf16.msra.mxu0 0
    %399 = vmatprep.subr.bf16.mxu0 0
    %400 = vmatpush1.bf16.msra.mxu0 0
    %401 = vmatprep.subr.bf16.mxu0 0
    %402 = vmatpush1.bf16.msra.mxu0 0
    %403 = vmatprep.subr.bf16.mxu0 0
    %404 = vmatpush1.bf16.msra.mxu0 0
    %405 = vmatprep.subr.bf16.mxu0 0
    %406 = vmatpush1.bf16.msra.mxu0 0
    %407 = vmatprep.subr.bf16.mxu0 0
    %408 = vmatpush1.bf16.msra.mxu0 0
    %409 = vmatprep.subr.bf16.mxu0 0
    %410 = vmatpush1.bf16.msra.mxu0 0
    %411 = vmatprep.subr.bf16.mxu0 0
    %412 = vmatpush1.bf16.msra.mxu0 0
    %413 = vmatprep.subr.bf16.mxu0 0
    %414 = vmatpush1.bf16.msra.mxu0 0
    %415 = vmatprep.subr.bf16.mxu0 0
    %416 = vmatpush1.bf16.msra.mxu0 0
    %417 = vmatprep.mubr.bf16.mxu0 0
    %418 = vmatmul.mubr.bf16.gmra.mrb[0].mxu0 %v286
    %v419 = vpop.f32.mrb[0].mxu0
    %v420 = vadd.f32 %v113, %v419
    %v421 = vpop.f32.mrb[0].mxu0
    %v422 = vpop.f32.mrb[0].mxu0
    %v423 = vadd.f32 %v113, %v422
    %v424 = vpop.f32.mrb[0].mxu0
    %425 = vmatprep.mubr.bf16.mxu0 0
    %426 = vmatmul.mubr.bf16.gmra.mrb[0].mxu0 %v289
    %v427 = vpop.f32.mrb[0].mxu0
    %v428 = vadd.f32 %v113, %v427
    %v429 = vpop.f32.mrb[0].mxu0
    %v430 = vpop.f32.mrb[0].mxu0
    %v431 = vadd.f32 %v113, %v430
    %v432 = vpop.f32.mrb[0].mxu0
    %433 = vmatprep.mubr.bf16.mxu0 0
    %434 = vmatmul.mubr.bf16.gmra.mrb[0].mxu0 %v292
    %v435 = vpop.f32.mrb[0].mxu0
    %v436 = vadd.f32 %v113, %v435
    %v437 = vpop.f32.mrb[0].mxu0
    %v438 = vpop.f32.mrb[0].mxu0
    %v439 = vadd.f32 %v113, %v438
    %v440 = vpop.f32.mrb[0].mxu0
    %441 = vmatprep.mubr.bf16.mxu0 0
    %442 = vmatmul.mubr.bf16.gmra.mrb[0].mxu0 %v295
    %v443 = vpop.f32.mrb[0].mxu0
    %v444 = vadd.f32 %v113, %v443
    %v445 = vpop.f32.mrb[0].mxu0
    %v446 = vpop.f32.mrb[0].mxu0
    %v447 = vadd.f32 %v113, %v446
    %v448 = vpop.f32.mrb[0].mxu0
    %449 = vmatprep.mubr.bf16.mxu0 0
    %450 = vmatmul.mubr.bf16.gmra.mrb[0].mxu0 %v298
    %v451 = vpop.f32.mrb[0].mxu0
    %v452 = vadd.f32 %v113, %v451
    %v453 = vpop.f32.mrb[0].mxu0
    %v454 = vpop.f32.mrb[0].mxu0
    %v455 = vadd.f32 %v113, %v454
    %v456 = vpop.f32.mrb[0].mxu0
    %457 = vmatprep.mubr.bf16.mxu0 0
    %458 = vmatmul.mubr.bf16.gmra.mrb[0].mxu0 %v301
    %v459 = vpop.f32.mrb[0].mxu0
    %v460 = vadd.f32 %v113, %v459
    %v461 = vpop.f32.mrb[0].mxu0
    %v462 = vpop.f32.mrb[0].mxu0
    %v463 = vadd.f32 %v113, %v462
    %v464 = vpop.f32.mrb[0].mxu0
    %465 = vmatprep.mubr.bf16.mxu0 0
    %466 = vmatmul.mubr.bf16.gmra.mrb[0].mxu0 %v304
    %v467 = vpop.f32.mrb[0].mxu0
    %v468 = vadd.f32 %v113, %v467
    %v469 = vpop.f32.mrb[0].mxu0
    %v470 = vpop.f32.mrb[0].mxu0
    %v471 = vadd.f32 %v113, %v470
    %v472 = vpop.f32.mrb[0].mxu0
    %473 = vmatprep.mubr.bf16.mxu0 0
    %474 = vmatmul.mubr.bf16.gmra.mrb[0].mxu0 %v307
    %v475 = vpop.f32.mrb[0].mxu0
    %v476 = vadd.f32 %v113, %v475
    %v477 = vpop.f32.mrb[0].mxu0
    %v478 = vpop.f32.mrb[0].mxu0
    %v479 = vadd.f32 %v113, %v478
    %v480 = vpop.f32.mrb[0].mxu0
    %481 = vmatprep.mubr.bf16.mxu0 0
    %482 = vmatmul.mubr.bf16.gmra.mrb[0].mxu0 %v310
    %v483 = vpop.f32.mrb[0].mxu0
    %v484 = vadd.f32 %v113, %v483
    %v485 = vpop.f32.mrb[0].mxu0
    %v486 = vpop.f32.mrb[0].mxu0
    %v487 = vadd.f32 %v113, %v486
    %v488 = vpop.f32.mrb[0].mxu0
    %489 = vmatprep.mubr.bf16.mxu0 0
    %490 = vmatmul.mubr.bf16.gmra.mrb[0].mxu0 %v313
    %v491 = vpop.f32.mrb[0].mxu0
    %v492 = vadd.f32 %v113, %v491
    %v493 = vpop.f32.mrb[0].mxu0
    %v494 = vpop.f32.mrb[0].mxu0
    %v495 = vadd.f32 %v113, %v494
    %v496 = vpop.f32.mrb[0].mxu0
    %497 = vmatprep.mubr.bf16.mxu0 0
    %498 = vmatmul.mubr.bf16.gmra.mrb[0].mxu0 %v316
    %v499 = vpop.f32.mrb[0].mxu0
    %v500 = vadd.f32 %v113, %v499
    %v501 = vpop.f32.mrb[0].mxu0
    %v502 = vpop.f32.mrb[0].mxu0
    %v503 = vadd.f32 %v113, %v502
    %v504 = vpop.f32.mrb[0].mxu0
    %505 = vmatprep.mubr.bf16.mxu0 0
    %506 = vmatmul.mubr.bf16.gmra.mrb[0].mxu0 %v319
    %v507 = vpop.f32.mrb[0].mxu0
    %v508 = vadd.f32 %v113, %v507
    %v509 = vpop.f32.mrb[0].mxu0
    %v510 = vpop.f32.mrb[0].mxu0
    %v511 = vadd.f32 %v113, %v510
    %v512 = vpop.f32.mrb[0].mxu0
    %513 = vmatprep.mubr.bf16.mxu0 0
    %514 = vmatmul.mubr.bf16.gmra.mrb[0].mxu0 %v322
    %v515 = vpop.f32.mrb[0].mxu0
    %v516 = vadd.f32 %v113, %v515
    %v517 = vpop.f32.mrb[0].mxu0
    %v518 = vpop.f32.mrb[0].mxu0
    %v519 = vadd.f32 %v113, %v518
    %v520 = vpop.f32.mrb[0].mxu0
    %521 = vmatprep.mubr.bf16.mxu0 0
    %522 = vmatmul.mubr.bf16.gmra.mrb[0].mxu0 %v325
    %v523 = vpop.f32.mrb[0].mxu0
    %v524 = vadd.f32 %v113, %v523
    %v525 = vpop.f32.mrb[0].mxu0
    %v526 = vpop.f32.mrb[0].mxu0
    %v527 = vadd.f32 %v113, %v526
    %v528 = vpop.f32.mrb[0].mxu0
    %529 = vmatprep.mubr.bf16.mxu0 0
    %530 = vmatmul.mubr.bf16.gmra.mrb[0].mxu0 %v328
    %v531 = vpop.f32.mrb[0].mxu0
    %v532 = vadd.f32 %v113, %v531
    %v533 = vpop.f32.mrb[0].mxu0
    %v534 = vpop.f32.mrb[0].mxu0
    %v535 = vadd.f32 %v113, %v534
    %v536 = vpop.f32.mrb[0].mxu0
    %537 = vmatprep.mubr.bf16.mxu0 0
    %538 = vmatmul.mubr.bf16.gmra.mrb[0].mxu0 %v331
    %v539 = vpop.f32.mrb[0].mxu0
    %v540 = vadd.f32 %v113, %v539
    %v541 = vpop.f32.mrb[0].mxu0
    %v542 = vpop.f32.mrb[0].mxu0
    %v543 = vadd.f32 %v113, %v542
    %v544 = vpop.f32.mrb[0].mxu0
    %545 = vmatprep.mubr.bf16.mxu0 0
    %546 = vmatmul.mubr.bf16.gmra.mrb[0].mxu0 %v334
    %v547 = vpop.f32.mrb[0].mxu0
    %v548 = vadd.f32 %v113, %v547
    %v549 = vpop.f32.mrb[0].mxu0
    %v550 = vpop.f32.mrb[0].mxu0
    %v551 = vadd.f32 %v113, %v550
    %v552 = vpop.f32.mrb[0].mxu0
    %553 = vmatprep.mubr.bf16.mxu0 0
    %554 = vmatmul.mubr.bf16.gmra.mrb[0].mxu0 %v337
    %v555 = vpop.f32.mrb[0].mxu0
    %v556 = vadd.f32 %v113, %v555
    %v557 = vpop.f32.mrb[0].mxu0
    %v558 = vpop.f32.mrb[0].mxu0
    %v559 = vadd.f32 %v113, %v558
    %v560 = vpop.f32.mrb[0].mxu0
    %561 = vmatprep.mubr.bf16.mxu0 0
    %562 = vmatmul.mubr.bf16.gmra.mrb[0].mxu0 %v340
    %v563 = vpop.f32.mrb[0].mxu0
    %v564 = vadd.f32 %v113, %v563
    %v565 = vpop.f32.mrb[0].mxu0
    %v566 = vpop.f32.mrb[0].mxu0
    %v567 = vadd.f32 %v113, %v566
    %v568 = vpop.f32.mrb[0].mxu0
    %569 = vmatprep.mubr.bf16.mxu0 0
    %570 = vmatmul.mubr.bf16.gmra.mrb[0].mxu0 %v343
    %v571 = vpop.f32.mrb[0].mxu0
    %v572 = vadd.f32 %v113, %v571
    %v573 = vpop.f32.mrb[0].mxu0
    %v574 = vpop.f32.mrb[0].mxu0
    %v575 = vadd.f32 %v113, %v574
    %v576 = vpop.f32.mrb[0].mxu0
    %577 = vmatprep.mubr.bf16.mxu0 0
    %578 = vmatmul.mubr.bf16.gmra.mrb[0].mxu0 %v346
    %v579 = vpop.f32.mrb[0].mxu0
    %v580 = vadd.f32 %v113, %v579
    %v581 = vpop.f32.mrb[0].mxu0
    %v582 = vpop.f32.mrb[0].mxu0
    %v583 = vadd.f32 %v113, %v582
    %v584 = vpop.f32.mrb[0].mxu0
    %585 = vmatprep.mubr.bf16.mxu0 0
    %586 = vmatmul.mubr.bf16.gmra.mrb[0].mxu0 %v349
    %v587 = vpop.f32.mrb[0].mxu0
    %v588 = vadd.f32 %v113, %v587
    %v589 = vpop.f32.mrb[0].mxu0
    %v590 = vpop.f32.mrb[0].mxu0
    %v591 = vadd.f32 %v113, %v590
    %v592 = vpop.f32.mrb[0].mxu0
    %593 = vmatprep.mubr.bf16.mxu0 0
    %594 = vmatmul.mubr.bf16.gmra.mrb[0].mxu0 %v352
    %v595 = vpop.f32.mrb[0].mxu0
    %v596 = vadd.f32 %v113, %v595
    %v597 = vpop.f32.mrb[0].mxu0
    %v598 = vpop.f32.mrb[0].mxu0
    %v599 = vadd.f32 %v113, %v598
    %v600 = vpop.f32.mrb[0].mxu0
    %601 = vmatprep.mubr.bf16.mxu0 0
    %602 = vmatmul.mubr.bf16.gmra.mrb[0].mxu0 %v355
    %v603 = vpop.f32.mrb[0].mxu0
    %v604 = vadd.f32 %v113, %v603
    %v605 = vpop.f32.mrb[0].mxu0
    %v606 = vpop.f32.mrb[0].mxu0
    %v607 = vadd.f32 %v113, %v606
    %v608 = vpop.f32.mrb[0].mxu0
    %609 = vmatprep.mubr.bf16.mxu0 0
    %610 = vmatmul.mubr.bf16.gmra.mrb[0].mxu0 %v358
    %v611 = vpop.f32.mrb[0].mxu0
    %v612 = vadd.f32 %v113, %v611
    %v613 = vpop.f32.mrb[0].mxu0
    %v614 = vpop.f32.mrb[0].mxu0
    %v615 = vadd.f32 %v113, %v614
    %v616 = vpop.f32.mrb[0].mxu0
    %617 = vmatprep.mubr.bf16.mxu0 0
    %618 = vmatmul.mubr.bf16.gmra.mrb[0].mxu0 %v361
    %v619 = vpop.f32.mrb[0].mxu0
    %v620 = vadd.f32 %v113, %v619
    %v621 = vpop.f32.mrb[0].mxu0
    %v622 = vpop.f32.mrb[0].mxu0
    %v623 = vadd.f32 %v113, %v622
    %v624 = vpop.f32.mrb[0].mxu0
    %625 = vmatprep.mubr.bf16.mxu0 0
    %626 = vmatmul.mubr.bf16.gmra.mrb[0].mxu0 %v364
    %v627 = vpop.f32.mrb[0].mxu0
    %v628 = vadd.f32 %v113, %v627
    %v629 = vpop.f32.mrb[0].mxu0
    %v630 = vpop.f32.mrb[0].mxu0
    %v631 = vadd.f32 %v113, %v630
    %v632 = vpop.f32.mrb[0].mxu0
    %633 = vmatprep.mubr.bf16.mxu0 0
    %634 = vmatmul.mubr.bf16.gmra.mrb[0].mxu0 %v367
    %v635 = vpop.f32.mrb[0].mxu0
    %v636 = vadd.f32 %v113, %v635
    %v637 = vpop.f32.mrb[0].mxu0
    %v638 = vpop.f32.mrb[0].mxu0
    %v639 = vadd.f32 %v113, %v638
    %v640 = vpop.f32.mrb[0].mxu0
    %641 = vmatprep.mubr.bf16.mxu0 0
    %642 = vmatmul.mubr.bf16.gmra.mrb[0].mxu0 %v370
    %v643 = vpop.f32.mrb[0].mxu0
    %v644 = vadd.f32 %v113, %v643
    %v645 = vpop.f32.mrb[0].mxu0
    %v646 = vpop.f32.mrb[0].mxu0
    %v647 = vadd.f32 %v113, %v646
    %v648 = vpop.f32.mrb[0].mxu0
    %649 = vmatprep.mubr.bf16.mxu0 0
    %650 = vmatmul.mubr.bf16.gmra.mrb[0].mxu0 %v373
    %v651 = vpop.f32.mrb[0].mxu0
    %v652 = vadd.f32 %v113, %v651
    %v653 = vpop.f32.mrb[0].mxu0
    %v654 = vpop.f32.mrb[0].mxu0
    %v655 = vadd.f32 %v113, %v654
    %v656 = vpop.f32.mrb[0].mxu0
    %657 = vmatprep.mubr.bf16.mxu0 0
    %658 = vmatmul.mubr.bf16.gmra.mrb[0].mxu0 %v376
    %v659 = vpop.f32.mrb[0].mxu0
    %v660 = vadd.f32 %v113, %v659
    %v661 = vpop.f32.mrb[0].mxu0
    %v662 = vpop.f32.mrb[0].mxu0
    %v663 = vadd.f32 %v113, %v662
    %v664 = vpop.f32.mrb[0].mxu0
    %665 = vmatprep.mubr.bf16.mxu0 0
    %666 = vmatmul.mubr.bf16.gmra.mrb[0].mxu0 %v379
    %v667 = vpop.f32.mrb[0].mxu0
    %v668 = vadd.f32 %v113, %v667
    %v669 = vpop.f32.mrb[0].mxu0
    %v670 = vpop.f32.mrb[0].mxu0
    %v671 = vadd.f32 %v113, %v670
    %v672 = vpop.f32.mrb[0].mxu0
    %673 = vdwg.mxu0
    %v674 = vmax.f32 %v420, 0.0
    %v675 = vmax.f32 %v423, 0.0
    %v676 = vmax.f32 %v428, 0.0
    %v677 = vmax.f32 %v431, 0.0
    %v678 = vmax.f32 %v436, 0.0
    %v679 = vmax.f32 %v439, 0.0
    %v680 = vmax.f32 %v444, 0.0
    %v681 = vmax.f32 %v447, 0.0
    %v682 = vmax.f32 %v452, 0.0
    %v683 = vmax.f32 %v455, 0.0
    %v684 = vmax.f32 %v460, 0.0
    %v685 = vmax.f32 %v463, 0.0
    %v686 = vmax.f32 %v468, 0.0
    %v687 = vmax.f32 %v471, 0.0
    %v688 = vmax.f32 %v476, 0.0
    %v689 = vmax.f32 %v479, 0.0
    %v690 = vmax.f32 %v484, 0.0
    %v691 = vmax.f32 %v487, 0.0
    %v692 = vmax.f32 %v492, 0.0
    %v693 = vmax.f32 %v495, 0.0
    %v694 = vmax.f32 %v500, 0.0
    %v695 = vmax.f32 %v503, 0.0
    %v696 = vmax.f32 %v508, 0.0
    %v697 = vmax.f32 %v511, 0.0
    %v698 = vmax.f32 %v516, 0.0
    %v699 = vmax.f32 %v519, 0.0
    %v700 = vmax.f32 %v524, 0.0
    %v701 = vmax.f32 %v527, 0.0
    %v702 = vmax.f32 %v532, 0.0
    %v703 = vmax.f32 %v535, 0.0
    %v704 = vmax.f32 %v540, 0.0
    %v705 = vmax.f32 %v543, 0.0
    %v706 = vmax.f32 %v548, 0.0
    %v707 = vmax.f32 %v551, 0.0
    %v708 = vmax.f32 %v556, 0.0
    %v709 = vmax.f32 %v559, 0.0
    %v710 = vmax.f32 %v564, 0.0
    %v711 = vmax.f32 %v567, 0.0
    %v712 = vmax.f32 %v572, 0.0
    %v713 = vmax.f32 %v575, 0.0
    %v714 = vmax.f32 %v580, 0.0
    %v715 = vmax.f32 %v583, 0.0
    %v716 = vmax.f32 %v588, 0.0
    %v717 = vmax.f32 %v591, 0.0
    %v718 = vmax.f32 %v596, 0.0
    %v719 = vmax.f32 %v599, 0.0
    %v720 = vmax.f32 %v604, 0.0
    %v721 = vmax.f32 %v607, 0.0
    %v722 = vmax.f32 %v612, 0.0
    %v723 = vmax.f32 %v615, 0.0
    %v724 = vmax.f32 %v620, 0.0
    %v725 = vmax.f32 %v623, 0.0
    %v726 = vmax.f32 %v628, 0.0
    %v727 = vmax.f32 %v631, 0.0
    %v728 = vmax.f32 %v636, 0.0
    %v729 = vmax.f32 %v639, 0.0
    %v730 = vmax.f32 %v644, 0.0
    %v731 = vmax.f32 %v647, 0.0
    %v732 = vmax.f32 %v652, 0.0
    %v733 = vmax.f32 %v655, 0.0
    %v734 = vmax.f32 %v660, 0.0
    %v735 = vmax.f32 %v663, 0.0
    %v736 = vmax.f32 %v668, 0.0
    %v737 = vmax.f32 %v671, 0.0
    %v738 = vpack.c.bf16 %v675, %v674
    %v739 = vpack.c.bf16 %v677, %v676
    %v740 = vpack.c.bf16 %v679, %v678
    %v741 = vpack.c.bf16 %v681, %v680
    %v742 = vld [vmem:[%s3] sm:$0xf]
    %v743 = vld [vmem:[%s3 + $0x4] sm:$0xf]
    %v744 = vpack.c.bf16 %v683, %v682
    %v745 = vpack.c.bf16 %v685, %v684
    %v746 = vpack.c.bf16 %v687, %v686
    %v747 = vpack.c.bf16 %v689, %v688
    %s748 = scalar_lea.vmem %s3, 8
    %v749 = vld [vmem:[%s748] sm:$0xf]
    %v750 = vld [vmem:[%s748 + $0x4] sm:$0xf]
    %v753 = vunpack.c.l.b16 %v749
    %v754 = vunpack.c.l.b16 %v750
    %v755 = vpack.c.b16 %v754, %v753
    %vm757 = vcmask 130048
    %v759 = vsel %vm757, %v744, 0
    %v762 = vsel %vm757, %v745, 0
    %v765 = vsel %vm757, %v746, 0
    %v768 = vsel %vm757, %v747, 0
    %770 = vmatprep.subr.bf16.mxu0 0
    %771 = vmatpush1.bf16.msra.mxu0 %v755
    %772 = vmatprep.subr.bf16.mxu0 0
    %773 = vmatpush1.bf16.msra.mxu0 0
    %774 = vmatprep.subr.bf16.mxu0 0
    %775 = vmatpush1.bf16.msra.mxu0 0
    %776 = vmatprep.subr.bf16.mxu0 0
    %777 = vmatpush1.bf16.msra.mxu0 0
    %778 = vmatprep.subr.bf16.mxu0 0
    %779 = vmatpush1.bf16.msra.mxu0 0
    %780 = vmatprep.subr.bf16.mxu0 0
    %781 = vmatpush1.bf16.msra.mxu0 0
    %782 = vmatprep.subr.bf16.mxu0 0
    %783 = vmatpush1.bf16.msra.mxu0 0
    %784 = vmatprep.subr.bf16.mxu0 0
    %785 = vmatpush1.bf16.msra.mxu0 0
    %786 = vmatprep.subr.bf16.mxu0 0
    %787 = vmatpush1.bf16.msra.mxu0 0
    %788 = vmatprep.subr.bf16.mxu0 0
    %789 = vmatpush1.bf16.msra.mxu0 0
    %790 = vmatprep.subr.bf16.mxu0 0
    %791 = vmatpush1.bf16.msra.mxu0 0
    %792 = vmatprep.subr.bf16.mxu0 0
    %793 = vmatpush1.bf16.msra.mxu0 0
    %794 = vmatprep.subr.bf16.mxu0 0
    %795 = vmatpush1.bf16.msra.mxu0 0
    %796 = vmatprep.subr.bf16.mxu0 0
    %797 = vmatpush1.bf16.msra.mxu0 0
    %798 = vmatprep.subr.bf16.mxu0 0
    %799 = vmatpush1.bf16.msra.mxu0 0
    %800 = vmatprep.subr.bf16.mxu0 0
    %801 = vmatpush1.bf16.msra.mxu0 0
    %802 = vmatprep.mubr.bf16.mxu0 0
    %803 = vmatmul.mubr.bf16.gmra.mrb[0].mxu0 %v759
    %v804 = vpop.f32.mrb[0].mxu0
    %v805 = vadd.f32 0.0, %v804
    %v806 = vpop.f32.mrb[0].mxu0
    %v807 = vpop.f32.mrb[0].mxu0
    %v808 = vadd.f32 0.0, %v807
    %v809 = vpop.f32.mrb[0].mxu0
    %810 = vmatprep.mubr.bf16.mxu0 0
    %811 = vmatmul.mubr.bf16.gmra.mrb[0].mxu0 %v762
    %v812 = vpop.f32.mrb[0].mxu0
    %v813 = vadd.f32 0.0, %v812
    %v814 = vpop.f32.mrb[0].mxu0
    %v815 = vpop.f32.mrb[0].mxu0
    %v816 = vadd.f32 0.0, %v815
    %v817 = vpop.f32.mrb[0].mxu0
    %818 = vmatprep.mubr.bf16.mxu0 0
    %819 = vmatmul.mubr.bf16.gmra.mrb[0].mxu0 %v765
    %v820 = vpop.f32.mrb[0].mxu0
    %v821 = vadd.f32 0.0, %v820
    %v822 = vpop.f32.mrb[0].mxu0
    %v823 = vpop.f32.mrb[0].mxu0
    %v824 = vadd.f32 0.0, %v823
    %v825 = vpop.f32.mrb[0].mxu0
    %826 = vmatprep.mubr.bf16.mxu0 0
    %827 = vmatmul.mubr.bf16.gmra.mrb[0].mxu0 %v768
    %v828 = vpop.f32.mrb[0].mxu0
    %v829 = vadd.f32 0.0, %v828
    %v830 = vpop.f32.mrb[0].mxu0
    %v831 = vpop.f32.mrb[0].mxu0
    %v832 = vadd.f32 0.0, %v831
    %v833 = vpop.f32.mrb[0].mxu0
    %834 = vdwg.mxu0
    %v837 = vunpack.c.l.b16 %v742
    %v838 = vunpack.c.l.b16 %v743
    %v839 = vpack.c.b16 %v838, %v837
    %v842 = vsel %vm757, %v738, 0
    %v845 = vsel %vm757, %v739, 0
    %v848 = vsel %vm757, %v740, 0
    %v851 = vsel %vm757, %v741, 0
    %853 = vmatprep.subr.bf16.mxu0 0
    %854 = vmatpush1.bf16.msra.mxu0 %v839
    %855 = vmatprep.subr.bf16.mxu0 0
    %856 = vmatpush1.bf16.msra.mxu0 0
    %857 = vmatprep.subr.bf16.mxu0 0
    %858 = vmatpush1.bf16.msra.mxu0 0
    %859 = vmatprep.subr.bf16.mxu0 0
    %860 = vmatpush1.bf16.msra.mxu0 0
    %861 = vmatprep.subr.bf16.mxu0 0
    %862 = vmatpush1.bf16.msra.mxu0 0
    %863 = vmatprep.subr.bf16.mxu0 0
    %864 = vmatpush1.bf16.msra.mxu0 0
    %865 = vmatprep.subr.bf16.mxu0 0
    %866 = vmatpush1.bf16.msra.mxu0 0
    %867 = vmatprep.subr.bf16.mxu0 0
    %868 = vmatpush1.bf16.msra.mxu0 0
    %869 = vmatprep.subr.bf16.mxu0 0
    %870 = vmatpush1.bf16.msra.mxu0 0
    %871 = vmatprep.subr.bf16.mxu0 0
    %872 = vmatpush1.bf16.msra.mxu0 0
    %873 = vmatprep.subr.bf16.mxu0 0
    %874 = vmatpush1.bf16.msra.mxu0 0
    %875 = vmatprep.subr.bf16.mxu0 0
    %876 = vmatpush1.bf16.msra.mxu0 0
    %877 = vmatprep.subr.bf16.mxu0 0
    %878 = vmatpush1.bf16.msra.mxu0 0
    %879 = vmatprep.subr.bf16.mxu0 0
    %880 = vmatpush1.bf16.msra.mxu0 0
    %881 = vmatprep.subr.bf16.mxu0 0
    %882 = vmatpush1.bf16.msra.mxu0 0
    %883 = vmatprep.subr.bf16.mxu0 0
    %884 = vmatpush1.bf16.msra.mxu0 0
    %885 = vmatprep.mubr.bf16.mxu0 0
    %886 = vmatmul.mubr.bf16.gmra.mrb[0].mxu0 %v842
    %v887 = vpop.f32.mrb[0].mxu0
    %v888 = vadd.f32 %v805, %v887
    %v889 = vpop.f32.mrb[0].mxu0
    %v890 = vpop.f32.mrb[0].mxu0
    %v891 = vadd.f32 %v808, %v890
    %v892 = vpop.f32.mrb[0].mxu0
    %893 = vmatprep.mubr.bf16.mxu0 0
    %894 = vmatmul.mubr.bf16.gmra.mrb[0].mxu0 %v845
    %v895 = vpop.f32.mrb[0].mxu0
    %v896 = vadd.f32 %v813, %v895
    %v897 = vpop.f32.mrb[0].mxu0
    %v898 = vpop.f32.mrb[0].mxu0
    %v899 = vadd.f32 %v816, %v898
    %v900 = vpop.f32.mrb[0].mxu0
    %901 = vmatprep.mubr.bf16.mxu0 0
    %902 = vmatmul.mubr.bf16.gmra.mrb[0].mxu0 %v848
    %v903 = vpop.f32.mrb[0].mxu0
    %v904 = vadd.f32 %v821, %v903
    %v905 = vpop.f32.mrb[0].mxu0
    %v906 = vpop.f32.mrb[0].mxu0
    %v907 = vadd.f32 %v824, %v906
    %v908 = vpop.f32.mrb[0].mxu0
    %909 = vmatprep.mubr.bf16.mxu0 0
    %910 = vmatmul.mubr.bf16.gmra.mrb[0].mxu0 %v851
    %v911 = vpop.f32.mrb[0].mxu0
    %v912 = vadd.f32 %v829, %v911
    %v913 = vpop.f32.mrb[0].mxu0
    %v914 = vpop.f32.mrb[0].mxu0
    %v915 = vadd.f32 %v832, %v914
    %v916 = vpop.f32.mrb[0].mxu0
    %917 = vdwg.mxu0
    %v918 = vpack.c.bf16 %v691, %v690
    %v919 = vpack.c.bf16 %v693, %v692
    %v920 = vpack.c.bf16 %v695, %v694
    %v921 = vpack.c.bf16 %v697, %v696
    %s922 = scalar_lea.vmem %s3, 16
    %v923 = vld [vmem:[%s922] sm:$0xf]
    %v924 = vld [vmem:[%s922 + $0x4] sm:$0xf]
    %v927 = vunpack.c.l.b16 %v923
    %v928 = vunpack.c.l.b16 %v924
    %v929 = vpack.c.b16 %v928, %v927
    %v932 = vsel %vm757, %v918, 0
    %v935 = vsel %vm757, %v919, 0
    %v938 = vsel %vm757, %v920, 0
    %v941 = vsel %vm757, %v921, 0
    %943 = vmatprep.subr.bf16.mxu0 0
    %944 = vmatpush1.bf16.msra.mxu0 %v929
    %945 = vmatprep.subr.bf16.mxu0 0
    %946 = vmatpush1.bf16.msra.mxu0 0
    %947 = vmatprep.subr.bf16.mxu0 0
    %948 = vmatpush1.bf16.msra.mxu0 0
    %949 = vmatprep.subr.bf16.mxu0 0
    %950 = vmatpush1.bf16.msra.mxu0 0
    %951 = vmatprep.subr.bf16.mxu0 0
    %952 = vmatpush1.bf16.msra.mxu0 0
    %953 = vmatprep.subr.bf16.mxu0 0
    %954 = vmatpush1.bf16.msra.mxu0 0
    %955 = vmatprep.subr.bf16.mxu0 0
    %956 = vmatpush1.bf16.msra.mxu0 0
    %957 = vmatprep.subr.bf16.mxu0 0
    %958 = vmatpush1.bf16.msra.mxu0 0
    %959 = vmatprep.subr.bf16.mxu0 0
    %960 = vmatpush1.bf16.msra.mxu0 0
    %961 = vmatprep.subr.bf16.mxu0 0
    %962 = vmatpush1.bf16.msra.mxu0 0
    %963 = vmatprep.subr.bf16.mxu0 0
    %964 = vmatpush1.bf16.msra.mxu0 0
    %965 = vmatprep.subr.bf16.mxu0 0
    %966 = vmatpush1.bf16.msra.mxu0 0
    %967 = vmatprep.subr.bf16.mxu0 0
    %968 = vmatpush1.bf16.msra.mxu0 0
    %969 = vmatprep.subr.bf16.mxu0 0
    %970 = vmatpush1.bf16.msra.mxu0 0
    %971 = vmatprep.subr.bf16.mxu0 0
    %972 = vmatpush1.bf16.msra.mxu0 0
    %973 = vmatprep.subr.bf16.mxu0 0
    %974 = vmatpush1.bf16.msra.mxu0 0
    %975 = vmatprep.mubr.bf16.mxu0 0
    %976 = vmatmul.mubr.bf16.gmra.mrb[0].mxu0 %v932
    %v977 = vpop.f32.mrb[0].mxu0
    %v978 = vadd.f32 0.0, %v977
    %v979 = vpop.f32.mrb[0].mxu0
    %v980 = vpop.f32.mrb[0].mxu0
    %v981 = vadd.f32 0.0, %v980
    %v982 = vpop.f32.mrb[0].mxu0
    %983 = vmatprep.mubr.bf16.mxu0 0
    %984 = vmatmul.mubr.bf16.gmra.mrb[0].mxu0 %v935
    %v985 = vpop.f32.mrb[0].mxu0
    %v986 = vadd.f32 0.0, %v985
    %v987 = vpop.f32.mrb[0].mxu0
    %v988 = vpop.f32.mrb[0].mxu0
    %v989 = vadd.f32 0.0, %v988
    %v990 = vpop.f32.mrb[0].mxu0
    %991 = vmatprep.mubr.bf16.mxu0 0
    %992 = vmatmul.mubr.bf16.gmra.mrb[0].mxu0 %v938
    %v993 = vpop.f32.mrb[0].mxu0
    %v994 = vadd.f32 0.0, %v993
    %v995 = vpop.f32.mrb[0].mxu0
    %v996 = vpop.f32.mrb[0].mxu0
    %v997 = vadd.f32 0.0, %v996
    %v998 = vpop.f32.mrb[0].mxu0
    %999 = vmatprep.mubr.bf16.mxu0 0
    %1000 = vmatmul.mubr.bf16.gmra.mrb[0].mxu0 %v941
    %v1001 = vpop.f32.mrb[0].mxu0
    %v1002 = vadd.f32 0.0, %v1001
    %v1003 = vpop.f32.mrb[0].mxu0
    %v1004 = vpop.f32.mrb[0].mxu0
    %v1005 = vadd.f32 0.0, %v1004
    %v1006 = vpop.f32.mrb[0].mxu0
    %1007 = vdwg.mxu0
    %v1008 = vadd.f32 %v888, %v978
    %v1009 = vadd.f32 %v891, %v981
    %v1010 = vadd.f32 %v896, %v986
    %v1011 = vadd.f32 %v899, %v989
    %v1012 = vadd.f32 %v904, %v994
    %v1013 = vadd.f32 %v907, %v997
    %v1014 = vadd.f32 %v912, %v1002
    %v1015 = vadd.f32 %v915, %v1005
    %v1016 = vpack.c.bf16 %v699, %v698
    %v1017 = vpack.c.bf16 %v701, %v700
    %v1018 = vpack.c.bf16 %v703, %v702
    %v1019 = vpack.c.bf16 %v705, %v704
    %s1020 = scalar_lea.vmem %s3, 24
    %v1021 = vld [vmem:[%s1020] sm:$0xf]
    %v1022 = vld [vmem:[%s1020 + $0x4] sm:$0xf]
    %v1025 = vunpack.c.l.b16 %v1021
    %v1026 = vunpack.c.l.b16 %v1022
    %v1027 = vpack.c.b16 %v1026, %v1025
    %v1030 = vsel %vm757, %v1016, 0
    %v1033 = vsel %vm757, %v1017, 0
    %v1036 = vsel %vm757, %v1018, 0
    %v1039 = vsel %vm757, %v1019, 0
    %1041 = vmatprep.subr.bf16.mxu0 0
    %1042 = vmatpush1.bf16.msra.mxu0 %v1027
    %1043 = vmatprep.subr.bf16.mxu0 0
    %1044 = vmatpush1.bf16.msra.mxu0 0
    %1045 = vmatprep.subr.bf16.mxu0 0
    %1046 = vmatpush1.bf16.msra.mxu0 0
    %1047 = vmatprep.subr.bf16.mxu0 0
    %1048 = vmatpush1.bf16.msra.mxu0 0
    %1049 = vmatprep.subr.bf16.mxu0 0
    %1050 = vmatpush1.bf16.msra.mxu0 0
    %1051 = vmatprep.subr.bf16.mxu0 0
    %1052 = vmatpush1.bf16.msra.mxu0 0
    %1053 = vmatprep.subr.bf16.mxu0 0
    %1054 = vmatpush1.bf16.msra.mxu0 0
    %1055 = vmatprep.subr.bf16.mxu0 0
    %1056 = vmatpush1.bf16.msra.mxu0 0
    %1057 = vmatprep.subr.bf16.mxu0 0
    %1058 = vmatpush1.bf16.msra.mxu0 0
    %1059 = vmatprep.subr.bf16.mxu0 0
    %1060 = vmatpush1.bf16.msra.mxu0 0
    %1061 = vmatprep.subr.bf16.mxu0 0
    %1062 = vmatpush1.bf16.msra.mxu0 0
    %1063 = vmatprep.subr.bf16.mxu0 0
    %1064 = vmatpush1.bf16.msra.mxu0 0
    %1065 = vmatprep.subr.bf16.mxu0 0
    %1066 = vmatpush1.bf16.msra.mxu0 0
    %1067 = vmatprep.subr.bf16.mxu0 0
    %1068 = vmatpush1.bf16.msra.mxu0 0
    %1069 = vmatprep.subr.bf16.mxu0 0
    %1070 = vmatpush1.bf16.msra.mxu0 0
    %1071 = vmatprep.subr.bf16.mxu0 0
    %1072 = vmatpush1.bf16.msra.mxu0 0
    %1073 = vmatprep.mubr.bf16.mxu0 0
    %1074 = vmatmul.mubr.bf16.gmra.mrb[0].mxu0 %v1030
    %v1075 = vpop.f32.mrb[0].mxu0
    %v1076 = vadd.f32 0.0, %v1075
    %v1077 = vpop.f32.mrb[0].mxu0
    %v1078 = vpop.f32.mrb[0].mxu0
    %v1079 = vadd.f32 0.0, %v1078
    %v1080 = vpop.f32.mrb[0].mxu0
    %1081 = vmatprep.mubr.bf16.mxu0 0
    %1082 = vmatmul.mubr.bf16.gmra.mrb[0].mxu0 %v1033
    %v1083 = vpop.f32.mrb[0].mxu0
    %v1084 = vadd.f32 0.0, %v1083
    %v1085 = vpop.f32.mrb[0].mxu0
    %v1086 = vpop.f32.mrb[0].mxu0
    %v1087 = vadd.f32 0.0, %v1086
    %v1088 = vpop.f32.mrb[0].mxu0
    %1089 = vmatprep.mubr.bf16.mxu0 0
    %1090 = vmatmul.mubr.bf16.gmra.mrb[0].mxu0 %v1036
    %v1091 = vpop.f32.mrb[0].mxu0
    %v1092 = vadd.f32 0.0, %v1091
    %v1093 = vpop.f32.mrb[0].mxu0
    %v1094 = vpop.f32.mrb[0].mxu0
    %v1095 = vadd.f32 0.0, %v1094
    %v1096 = vpop.f32.mrb[0].mxu0
    %1097 = vmatprep.mubr.bf16.mxu0 0
    %1098 = vmatmul.mubr.bf16.gmra.mrb[0].mxu0 %v1039
    %v1099 = vpop.f32.mrb[0].mxu0
    %v1100 = vadd.f32 0.0, %v1099
    %v1101 = vpop.f32.mrb[0].mxu0
    %v1102 = vpop.f32.mrb[0].mxu0
    %v1103 = vadd.f32 0.0, %v1102
    %v1104 = vpop.f32.mrb[0].mxu0
    %1105 = vdwg.mxu0
    %v1106 = vadd.f32 %v1008, %v1076
    %v1107 = vadd.f32 %v1009, %v1079
    %v1108 = vadd.f32 %v1010, %v1084
    %v1109 = vadd.f32 %v1011, %v1087
    %v1110 = vadd.f32 %v1012, %v1092
    %v1111 = vadd.f32 %v1013, %v1095
    %v1112 = vadd.f32 %v1014, %v1100
    %v1113 = vadd.f32 %v1015, %v1103
    %v1114 = vpack.c.bf16 %v707, %v706
    %v1115 = vpack.c.bf16 %v709, %v708
    %v1116 = vpack.c.bf16 %v711, %v710
    %v1117 = vpack.c.bf16 %v713, %v712
    %s1118 = scalar_lea.vmem %s3, 32
    %v1119 = vld [vmem:[%s1118] sm:$0xf]
    %v1120 = vld [vmem:[%s1118 + $0x4] sm:$0xf]
    %v1123 = vunpack.c.l.b16 %v1119
    %v1124 = vunpack.c.l.b16 %v1120
    %v1125 = vpack.c.b16 %v1124, %v1123
    %v1128 = vsel %vm757, %v1114, 0
    %v1131 = vsel %vm757, %v1115, 0
    %v1134 = vsel %vm757, %v1116, 0
    %v1137 = vsel %vm757, %v1117, 0
    %1139 = vmatprep.subr.bf16.mxu0 0
    %1140 = vmatpush1.bf16.msra.mxu0 %v1125
    %1141 = vmatprep.subr.bf16.mxu0 0
    %1142 = vmatpush1.bf16.msra.mxu0 0
    %1143 = vmatprep.subr.bf16.mxu0 0
    %1144 = vmatpush1.bf16.msra.mxu0 0
    %1145 = vmatprep.subr.bf16.mxu0 0
    %1146 = vmatpush1.bf16.msra.mxu0 0
    %1147 = vmatprep.subr.bf16.mxu0 0
    %1148 = vmatpush1.bf16.msra.mxu0 0
    %1149 = vmatprep.subr.bf16.mxu0 0
    %1150 = vmatpush1.bf16.msra.mxu0 0
    %1151 = vmatprep.subr.bf16.mxu0 0
    %1152 = vmatpush1.bf16.msra.mxu0 0
    %1153 = vmatprep.subr.bf16.mxu0 0
    %1154 = vmatpush1.bf16.msra.mxu0 0
    %1155 = vmatprep.subr.bf16.mxu0 0
    %1156 = vmatpush1.bf16.msra.mxu0 0
    %1157 = vmatprep.subr.bf16.mxu0 0
    %1158 = vmatpush1.bf16.msra.mxu0 0
    %1159 = vmatprep.subr.bf16.mxu0 0
    %1160 = vmatpush1.bf16.msra.mxu0 0
    %1161 = vmatprep.subr.bf16.mxu0 0
    %1162 = vmatpush1.bf16.msra.mxu0 0
    %1163 = vmatprep.subr.bf16.mxu0 0
    %1164 = vmatpush1.bf16.msra.mxu0 0
    %1165 = vmatprep.subr.bf16.mxu0 0
    %1166 = vmatpush1.bf16.msra.mxu0 0
    %1167 = vmatprep.subr.bf16.mxu0 0
    %1168 = vmatpush1.bf16.msra.mxu0 0
    %1169 = vmatprep.subr.bf16.mxu0 0
    %1170 = vmatpush1.bf16.msra.mxu0 0
    %1171 = vmatprep.mubr.bf16.mxu0 0
    %1172 = vmatmul.mubr.bf16.gmra.mrb[0].mxu0 %v1128
    %v1173 = vpop.f32.mrb[0].mxu0
    %v1174 = vadd.f32 0.0, %v1173
    %v1175 = vpop.f32.mrb[0].mxu0
    %v1176 = vpop.f32.mrb[0].mxu0
    %v1177 = vadd.f32 0.0, %v1176
    %v1178 = vpop.f32.mrb[0].mxu0
    %1179 = vmatprep.mubr.bf16.mxu0 0
    %1180 = vmatmul.mubr.bf16.gmra.mrb[0].mxu0 %v1131
    %v1181 = vpop.f32.mrb[0].mxu0
    %v1182 = vadd.f32 0.0, %v1181
    %v1183 = vpop.f32.mrb[0].mxu0
    %v1184 = vpop.f32.mrb[0].mxu0
    %v1185 = vadd.f32 0.0, %v1184
    %v1186 = vpop.f32.mrb[0].mxu0
    %1187 = vmatprep.mubr.bf16.mxu0 0
    %1188 = vmatmul.mubr.bf16.gmra.mrb[0].mxu0 %v1134
    %v1189 = vpop.f32.mrb[0].mxu0
    %v1190 = vadd.f32 0.0, %v1189
    %v1191 = vpop.f32.mrb[0].mxu0
    %v1192 = vpop.f32.mrb[0].mxu0
    %v1193 = vadd.f32 0.0, %v1192
    %v1194 = vpop.f32.mrb[0].mxu0
    %1195 = vmatprep.mubr.bf16.mxu0 0
    %1196 = vmatmul.mubr.bf16.gmra.mrb[0].mxu0 %v1137
    %v1197 = vpop.f32.mrb[0].mxu0
    %v1198 = vadd.f32 0.0, %v1197
    %v1199 = vpop.f32.mrb[0].mxu0
    %v1200 = vpop.f32.mrb[0].mxu0
    %v1201 = vadd.f32 0.0, %v1200
    %v1202 = vpop.f32.mrb[0].mxu0
    %1203 = vdwg.mxu0
    %v1204 = vadd.f32 %v1106, %v1174
    %v1205 = vadd.f32 %v1107, %v1177
    %v1206 = vadd.f32 %v1108, %v1182
    %v1207 = vadd.f32 %v1109, %v1185
    %v1208 = vadd.f32 %v1110, %v1190
    %v1209 = vadd.f32 %v1111, %v1193
    %v1210 = vadd.f32 %v1112, %v1198
    %v1211 = vadd.f32 %v1113, %v1201
    %v1212 = vpack.c.bf16 %v715, %v714
    %v1213 = vpack.c.bf16 %v717, %v716
    %v1214 = vpack.c.bf16 %v719, %v718
    %v1215 = vpack.c.bf16 %v721, %v720
    %s1216 = scalar_lea.vmem %s3, 40
    %v1217 = vld [vmem:[%s1216] sm:$0xf]
    %v1218 = vld [vmem:[%s1216 + $0x4] sm:$0xf]
    %v1221 = vunpack.c.l.b16 %v1217
    %v1222 = vunpack.c.l.b16 %v1218
    %v1223 = vpack.c.b16 %v1222, %v1221
    %v1226 = vsel %vm757, %v1212, 0
    %v1229 = vsel %vm757, %v1213, 0
    %v1232 = vsel %vm757, %v1214, 0
    %v1235 = vsel %vm757, %v1215, 0
    %1237 = vmatprep.subr.bf16.mxu0 0
    %1238 = vmatpush1.bf16.msra.mxu0 %v1223
    %1239 = vmatprep.subr.bf16.mxu0 0
    %1240 = vmatpush1.bf16.msra.mxu0 0
    %1241 = vmatprep.subr.bf16.mxu0 0
    %1242 = vmatpush1.bf16.msra.mxu0 0
    %1243 = vmatprep.subr.bf16.mxu0 0
    %1244 = vmatpush1.bf16.msra.mxu0 0
    %1245 = vmatprep.subr.bf16.mxu0 0
    %1246 = vmatpush1.bf16.msra.mxu0 0
    %1247 = vmatprep.subr.bf16.mxu0 0
    %1248 = vmatpush1.bf16.msra.mxu0 0
    %1249 = vmatprep.subr.bf16.mxu0 0
    %1250 = vmatpush1.bf16.msra.mxu0 0
    %1251 = vmatprep.subr.bf16.mxu0 0
    %1252 = vmatpush1.bf16.msra.mxu0 0
    %1253 = vmatprep.subr.bf16.mxu0 0
    %1254 = vmatpush1.bf16.msra.mxu0 0
    %1255 = vmatprep.subr.bf16.mxu0 0
    %1256 = vmatpush1.bf16.msra.mxu0 0
    %1257 = vmatprep.subr.bf16.mxu0 0
    %1258 = vmatpush1.bf16.msra.mxu0 0
    %1259 = vmatprep.subr.bf16.mxu0 0
    %1260 = vmatpush1.bf16.msra.mxu0 0
    %1261 = vmatprep.subr.bf16.mxu0 0
    %1262 = vmatpush1.bf16.msra.mxu0 0
    %1263 = vmatprep.subr.bf16.mxu0 0
    %1264 = vmatpush1.bf16.msra.mxu0 0
    %1265 = vmatprep.subr.bf16.mxu0 0
    %1266 = vmatpush1.bf16.msra.mxu0 0
    %1267 = vmatprep.subr.bf16.mxu0 0
    %1268 = vmatpush1.bf16.msra.mxu0 0
    %1269 = vmatprep.mubr.bf16.mxu0 0
    %1270 = vmatmul.mubr.bf16.gmra.mrb[0].mxu0 %v1226
    %v1271 = vpop.f32.mrb[0].mxu0
    %v1272 = vadd.f32 0.0, %v1271
    %v1273 = vpop.f32.mrb[0].mxu0
    %v1274 = vpop.f32.mrb[0].mxu0
    %v1275 = vadd.f32 0.0, %v1274
    %v1276 = vpop.f32.mrb[0].mxu0
    %1277 = vmatprep.mubr.bf16.mxu0 0
    %1278 = vmatmul.mubr.bf16.gmra.mrb[0].mxu0 %v1229
    %v1279 = vpop.f32.mrb[0].mxu0
    %v1280 = vadd.f32 0.0, %v1279
    %v1281 = vpop.f32.mrb[0].mxu0
    %v1282 = vpop.f32.mrb[0].mxu0
    %v1283 = vadd.f32 0.0, %v1282
    %v1284 = vpop.f32.mrb[0].mxu0
    %1285 = vmatprep.mubr.bf16.mxu0 0
    %1286 = vmatmul.mubr.bf16.gmra.mrb[0].mxu0 %v1232
    %v1287 = vpop.f32.mrb[0].mxu0
    %v1288 = vadd.f32 0.0, %v1287
    %v1289 = vpop.f32.mrb[0].mxu0
    %v1290 = vpop.f32.mrb[0].mxu0
    %v1291 = vadd.f32 0.0, %v1290
    %v1292 = vpop.f32.mrb[0].mxu0
    %1293 = vmatprep.mubr.bf16.mxu0 0
    %1294 = vmatmul.mubr.bf16.gmra.mrb[0].mxu0 %v1235
    %v1295 = vpop.f32.mrb[0].mxu0
    %v1296 = vadd.f32 0.0, %v1295
    %v1297 = vpop.f32.mrb[0].mxu0
    %v1298 = vpop.f32.mrb[0].mxu0
    %v1299 = vadd.f32 0.0, %v1298
    %v1300 = vpop.f32.mrb[0].mxu0
    %1301 = vdwg.mxu0
    %v1302 = vadd.f32 %v1204, %v1272
    %v1303 = vadd.f32 %v1205, %v1275
    %v1304 = vadd.f32 %v1206, %v1280
    %v1305 = vadd.f32 %v1207, %v1283
    %v1306 = vadd.f32 %v1208, %v1288
    %v1307 = vadd.f32 %v1209, %v1291
    %v1308 = vadd.f32 %v1210, %v1296
    %v1309 = vadd.f32 %v1211, %v1299
    %v1310 = vpack.c.bf16 %v723, %v722
    %v1311 = vpack.c.bf16 %v725, %v724
    %v1312 = vpack.c.bf16 %v727, %v726
    %v1313 = vpack.c.bf16 %v729, %v728
    %s1314 = scalar_lea.vmem %s3, 48
    %v1315 = vld [vmem:[%s1314] sm:$0xf]
    %v1316 = vld [vmem:[%s1314 + $0x4] sm:$0xf]
    %v1319 = vunpack.c.l.b16 %v1315
    %v1320 = vunpack.c.l.b16 %v1316
    %v1321 = vpack.c.b16 %v1320, %v1319
    %v1324 = vsel %vm757, %v1310, 0
    %v1327 = vsel %vm757, %v1311, 0
    %v1330 = vsel %vm757, %v1312, 0
    %v1333 = vsel %vm757, %v1313, 0
    %1335 = vmatprep.subr.bf16.mxu0 0
    %1336 = vmatpush1.bf16.msra.mxu0 %v1321
    %1337 = vmatprep.subr.bf16.mxu0 0
    %1338 = vmatpush1.bf16.msra.mxu0 0
    %1339 = vmatprep.subr.bf16.mxu0 0
    %1340 = vmatpush1.bf16.msra.mxu0 0
    %1341 = vmatprep.subr.bf16.mxu0 0
    %1342 = vmatpush1.bf16.msra.mxu0 0
    %1343 = vmatprep.subr.bf16.mxu0 0
    %1344 = vmatpush1.bf16.msra.mxu0 0
    %1345 = vmatprep.subr.bf16.mxu0 0
    %1346 = vmatpush1.bf16.msra.mxu0 0
    %1347 = vmatprep.subr.bf16.mxu0 0
    %1348 = vmatpush1.bf16.msra.mxu0 0
    %1349 = vmatprep.subr.bf16.mxu0 0
    %1350 = vmatpush1.bf16.msra.mxu0 0
    %1351 = vmatprep.subr.bf16.mxu0 0
    %1352 = vmatpush1.bf16.msra.mxu0 0
    %1353 = vmatprep.subr.bf16.mxu0 0
    %1354 = vmatpush1.bf16.msra.mxu0 0
    %1355 = vmatprep.subr.bf16.mxu0 0
    %1356 = vmatpush1.bf16.msra.mxu0 0
    %1357 = vmatprep.subr.bf16.mxu0 0
    %1358 = vmatpush1.bf16.msra.mxu0 0
    %1359 = vmatprep.subr.bf16.mxu0 0
    %1360 = vmatpush1.bf16.msra.mxu0 0
    %1361 = vmatprep.subr.bf16.mxu0 0
    %1362 = vmatpush1.bf16.msra.mxu0 0
    %1363 = vmatprep.subr.bf16.mxu0 0
    %1364 = vmatpush1.bf16.msra.mxu0 0
    %1365 = vmatprep.subr.bf16.mxu0 0
    %1366 = vmatpush1.bf16.msra.mxu0 0
    %1367 = vmatprep.mubr.bf16.mxu0 0
    %1368 = vmatmul.mubr.bf16.gmra.mrb[0].mxu0 %v1324
    %v1369 = vpop.f32.mrb[0].mxu0
    %v1370 = vadd.f32 0.0, %v1369
    %v1371 = vpop.f32.mrb[0].mxu0
    %v1372 = vpop.f32.mrb[0].mxu0
    %v1373 = vadd.f32 0.0, %v1372
    %v1374 = vpop.f32.mrb[0].mxu0
    %1375 = vmatprep.mubr.bf16.mxu0 0
    %1376 = vmatmul.mubr.bf16.gmra.mrb[0].mxu0 %v1327
    %v1377 = vpop.f32.mrb[0].mxu0
    %v1378 = vadd.f32 0.0, %v1377
    %v1379 = vpop.f32.mrb[0].mxu0
    %v1380 = vpop.f32.mrb[0].mxu0
    %v1381 = vadd.f32 0.0, %v1380
    %v1382 = vpop.f32.mrb[0].mxu0
    %1383 = vmatprep.mubr.bf16.mxu0 0
    %1384 = vmatmul.mubr.bf16.gmra.mrb[0].mxu0 %v1330
    %v1385 = vpop.f32.mrb[0].mxu0
    %v1386 = vadd.f32 0.0, %v1385
    %v1387 = vpop.f32.mrb[0].mxu0
    %v1388 = vpop.f32.mrb[0].mxu0
    %v1389 = vadd.f32 0.0, %v1388
    %v1390 = vpop.f32.mrb[0].mxu0
    %1391 = vmatprep.mubr.bf16.mxu0 0
    %1392 = vmatmul.mubr.bf16.gmra.mrb[0].mxu0 %v1333
    %v1393 = vpop.f32.mrb[0].mxu0
    %v1394 = vadd.f32 0.0, %v1393
    %v1395 = vpop.f32.mrb[0].mxu0
    %v1396 = vpop.f32.mrb[0].mxu0
    %v1397 = vadd.f32 0.0, %v1396
    %v1398 = vpop.f32.mrb[0].mxu0
    %1399 = vdwg.mxu0
    %v1400 = vadd.f32 %v1302, %v1370
    %v1401 = vadd.f32 %v1303, %v1373
    %v1402 = vadd.f32 %v1304, %v1378
    %v1403 = vadd.f32 %v1305, %v1381
    %v1404 = vadd.f32 %v1306, %v1386
    %v1405 = vadd.f32 %v1307, %v1389
    %v1406 = vadd.f32 %v1308, %v1394
    %v1407 = vadd.f32 %v1309, %v1397
    %v1408 = vpack.c.bf16 %v731, %v730
    %v1409 = vpack.c.bf16 %v733, %v732
    %v1410 = vpack.c.bf16 %v735, %v734
    %v1411 = vpack.c.bf16 %v737, %v736
    %s1412 = scalar_lea.vmem %s3, 56
    %v1413 = vld [vmem:[%s1412] sm:$0xf]
    %v1414 = vld [vmem:[%s1412 + $0x4] sm:$0xf]
    %v1417 = vunpack.c.l.b16 %v1413
    %v1418 = vunpack.c.l.b16 %v1414
    %v1419 = vpack.c.b16 %v1418, %v1417
    %v1422 = vsel %vm757, %v1408, 0
    %v1425 = vsel %vm757, %v1409, 0
    %v1428 = vsel %vm757, %v1410, 0
    %v1431 = vsel %vm757, %v1411, 0
    %1433 = vmatprep.subr.bf16.mxu0 0
    %1434 = vmatpush1.bf16.msra.mxu0 %v1419
    %1435 = vmatprep.subr.bf16.mxu0 0
    %1436 = vmatpush1.bf16.msra.mxu0 0
    %1437 = vmatprep.subr.bf16.mxu0 0
    %1438 = vmatpush1.bf16.msra.mxu0 0
    %1439 = vmatprep.subr.bf16.mxu0 0
    %1440 = vmatpush1.bf16.msra.mxu0 0
    %1441 = vmatprep.subr.bf16.mxu0 0
    %1442 = vmatpush1.bf16.msra.mxu0 0
    %1443 = vmatprep.subr.bf16.mxu0 0
    %1444 = vmatpush1.bf16.msra.mxu0 0
    %1445 = vmatprep.subr.bf16.mxu0 0
    %1446 = vmatpush1.bf16.msra.mxu0 0
    %1447 = vmatprep.subr.bf16.mxu0 0
    %1448 = vmatpush1.bf16.msra.mxu0 0
    %1449 = vmatprep.subr.bf16.mxu0 0
    %1450 = vmatpush1.bf16.msra.mxu0 0
    %1451 = vmatprep.subr.bf16.mxu0 0
    %1452 = vmatpush1.bf16.msra.mxu0 0
    %1453 = vmatprep.subr.bf16.mxu0 0
    %1454 = vmatpush1.bf16.msra.mxu0 0
    %1455 = vmatprep.subr.bf16.mxu0 0
    %1456 = vmatpush1.bf16.msra.mxu0 0
    %1457 = vmatprep.subr.bf16.mxu0 0
    %1458 = vmatpush1.bf16.msra.mxu0 0
    %1459 = vmatprep.subr.bf16.mxu0 0
    %1460 = vmatpush1.bf16.msra.mxu0 0
    %1461 = vmatprep.subr.bf16.mxu0 0
    %1462 = vmatpush1.bf16.msra.mxu0 0
    %1463 = vmatprep.subr.bf16.mxu0 0
    %1464 = vmatpush1.bf16.msra.mxu0 0
    %1465 = vmatprep.mubr.bf16.mxu0 0
    %1466 = vmatmul.mubr.bf16.gmra.mrb[0].mxu0 %v1422
    %v1467 = vpop.f32.mrb[0].mxu0
    %v1468 = vadd.f32 0.0, %v1467
    %v1469 = vpop.f32.mrb[0].mxu0
    %v1470 = vpop.f32.mrb[0].mxu0
    %v1471 = vadd.f32 0.0, %v1470
    %v1472 = vpop.f32.mrb[0].mxu0
    %1473 = vmatprep.mubr.bf16.mxu0 0
    %1474 = vmatmul.mubr.bf16.gmra.mrb[0].mxu0 %v1425
    %v1475 = vpop.f32.mrb[0].mxu0
    %v1476 = vadd.f32 0.0, %v1475
    %v1477 = vpop.f32.mrb[0].mxu0
    %v1478 = vpop.f32.mrb[0].mxu0
    %v1479 = vadd.f32 0.0, %v1478
    %v1480 = vpop.f32.mrb[0].mxu0
    %1481 = vmatprep.mubr.bf16.mxu0 0
    %1482 = vmatmul.mubr.bf16.gmra.mrb[0].mxu0 %v1428
    %v1483 = vpop.f32.mrb[0].mxu0
    %v1484 = vadd.f32 0.0, %v1483
    %v1485 = vpop.f32.mrb[0].mxu0
    %v1486 = vpop.f32.mrb[0].mxu0
    %v1487 = vadd.f32 0.0, %v1486
    %v1488 = vpop.f32.mrb[0].mxu0
    %1489 = vmatprep.mubr.bf16.mxu0 0
    %1490 = vmatmul.mubr.bf16.gmra.mrb[0].mxu0 %v1431
    %v1491 = vpop.f32.mrb[0].mxu0
    %v1492 = vadd.f32 0.0, %v1491
    %v1493 = vpop.f32.mrb[0].mxu0
    %v1494 = vpop.f32.mrb[0].mxu0
    %v1495 = vadd.f32 0.0, %v1494
    %v1496 = vpop.f32.mrb[0].mxu0
    %1497 = vdwg.mxu0
    %v1498 = vadd.f32 %v1400, %v1468
    %v1499 = vadd.f32 %v1401, %v1471
    %v1500 = vadd.f32 %v1402, %v1476
    %v1501 = vadd.f32 %v1403, %v1479
    %v1502 = vadd.f32 %v1404, %v1484
    %v1503 = vadd.f32 %v1405, %v1487
    %v1504 = vadd.f32 %v1406, %v1492
    %v1505 = vadd.f32 %v1407, %v1495
    %v1506 = vld [vmem:[%s4] sm:$0x1]
    %v1508 = vlaneseq
    %v1509 = vshrl.u32 %v1508, 7
    %v1510 = vsub.s32 0, %v1509
    %v1511 = vrot.slane %v1506, %v1510
    %v1513 = vadd.f32 %v1498, %v1511
    %v1514 = vadd.f32 %v1499, %v1511
    %v1515 = vadd.f32 %v1500, %v1511
    %v1516 = vadd.f32 %v1501, %v1511
    %v1517 = vadd.f32 %v1502, %v1511
    %v1518 = vadd.f32 %v1503, %v1511
    %v1519 = vadd.f32 %v1504, %v1511
    %v1520 = vadd.f32 %v1505, %v1511
    %v1521 = vmax.f32 %v1513, 0.0
    %v1522 = vmax.f32 %v1514, 0.0
    %v1523 = vmax.f32 %v1515, 0.0
    %v1524 = vmax.f32 %v1516, 0.0
    %v1525 = vmax.f32 %v1517, 0.0
    %v1526 = vmax.f32 %v1518, 0.0
    %v1527 = vmax.f32 %v1519, 0.0
    %v1528 = vmax.f32 %v1520, 0.0
    %v1529 = vpack.c.bf16 %v1521, %v1521
    %v1530 = vld [vmem:[%s5] sm:$0xf]
    %v1531 = vld [vmem:[%s5 + $0x4] sm:$0xf]
    %v1532 = vld [vmem:[%s5 + $0x8] sm:$0xf]
    %v1533 = vld [vmem:[%s5 + $0xc] sm:$0xf]
    %v1534 = vpack.c.bf16 %v1522, %v1522
    %s1535 = scalar_lea.vmem %s5, 16
    %v1536 = vld [vmem:[%s1535] sm:$0xf]
    %v1537 = vld [vmem:[%s1535 + $0x4] sm:$0xf]
    %v1538 = vld [vmem:[%s1535 + $0x8] sm:$0xf]
    %v1539 = vld [vmem:[%s1535 + $0xc] sm:$0xf]
    %v1544 = vunpack.c.l.b16 %v1536
    %v1545 = vunpack.c.l.b16 %v1537
    %v1546 = vunpack.c.l.b16 %v1538
    %v1547 = vunpack.c.l.b16 %v1539
    %v1548 = vpack.c.b16 %v1545, %v1544
    %v1549 = vpack.c.b16 %v1547, %v1546
    %vm1552 = vcmask 261120
    %v1554 = vsel %vm1552, %v1534, 0
    %1556 = vmatprep.subr.bf16.mxu0 0
    %1557 = vmatpush1.bf16.msra.mxu0 %v1548
    %1558 = vmatprep.subr.bf16.mxu0 0
    %1559 = vmatpush1.bf16.msra.mxu0 %v1549
    %1560 = vmatprep.subr.bf16.mxu0 0
    %1561 = vmatpush1.bf16.msra.mxu0 0
    %1562 = vmatprep.subr.bf16.mxu0 0
    %1563 = vmatpush1.bf16.msra.mxu0 0
    %1564 = vmatprep.subr.bf16.mxu0 0
    %1565 = vmatpush1.bf16.msra.mxu0 0
    %1566 = vmatprep.subr.bf16.mxu0 0
    %1567 = vmatpush1.bf16.msra.mxu0 0
    %1568 = vmatprep.subr.bf16.mxu0 0
    %1569 = vmatpush1.bf16.msra.mxu0 0
    %1570 = vmatprep.subr.bf16.mxu0 0
    %1571 = vmatpush1.bf16.msra.mxu0 0
    %1572 = vmatprep.subr.bf16.mxu0 0
    %1573 = vmatpush1.bf16.msra.mxu0 0
    %1574 = vmatprep.subr.bf16.mxu0 0
    %1575 = vmatpush1.bf16.msra.mxu0 0
    %1576 = vmatprep.subr.bf16.mxu0 0
    %1577 = vmatpush1.bf16.msra.mxu0 0
    %1578 = vmatprep.subr.bf16.mxu0 0
    %1579 = vmatpush1.bf16.msra.mxu0 0
    %1580 = vmatprep.subr.bf16.mxu0 0
    %1581 = vmatpush1.bf16.msra.mxu0 0
    %1582 = vmatprep.subr.bf16.mxu0 0
    %1583 = vmatpush1.bf16.msra.mxu0 0
    %1584 = vmatprep.subr.bf16.mxu0 0
    %1585 = vmatpush1.bf16.msra.mxu0 0
    %1586 = vmatprep.subr.bf16.mxu0 0
    %1587 = vmatpush1.bf16.msra.mxu0 0
    %1588 = vmatprep.mubr.bf16.mxu0 0
    %1589 = vmatmul.mubr.bf16.gmra.mrb[0].mxu0 %v1554
    %v1590 = vpop.f32.mrb[0].mxu0
    %v1591 = vadd.f32 0.0, %v1590
    %v1592 = vpop.f32.mrb[0].mxu0
    %v1593 = vpop.f32.mrb[0].mxu0
    %v1594 = vpop.f32.mrb[0].mxu0
    %1595 = vdwg.mxu0
    %v1600 = vunpack.c.l.b16 %v1530
    %v1601 = vunpack.c.l.b16 %v1531
    %v1602 = vunpack.c.l.b16 %v1532
    %v1603 = vunpack.c.l.b16 %v1533
    %v1604 = vpack.c.b16 %v1601, %v1600
    %v1605 = vpack.c.b16 %v1603, %v1602
    %v1609 = vsel %vm1552, %v1529, 0
    %1611 = vmatprep.subr.bf16.mxu0 0
    %1612 = vmatpush1.bf16.msra.mxu0 %v1604
    %1613 = vmatprep.subr.bf16.mxu0 0
    %1614 = vmatpush1.bf16.msra.mxu0 %v1605
    %1615 = vmatprep.subr.bf16.mxu0 0
    %1616 = vmatpush1.bf16.msra.mxu0 0
    %1617 = vmatprep.subr.bf16.mxu0 0
    %1618 = vmatpush1.bf16.msra.mxu0 0
    %1619 = vmatprep.subr.bf16.mxu0 0
    %1620 = vmatpush1.bf16.msra.mxu0 0
    %1621 = vmatprep.subr.bf16.mxu0 0
    %1622 = vmatpush1.bf16.msra.mxu0 0
    %1623 = vmatprep.subr.bf16.mxu0 0
    %1624 = vmatpush1.bf16.msra.mxu0 0
    %1625 = vmatprep.subr.bf16.mxu0 0
    %1626 = vmatpush1.bf16.msra.mxu0 0
    %1627 = vmatprep.subr.bf16.mxu0 0
    %1628 = vmatpush1.bf16.msra.mxu0 0
    %1629 = vmatprep.subr.bf16.mxu0 0
    %1630 = vmatpush1.bf16.msra.mxu0 0
    %1631 = vmatprep.subr.bf16.mxu0 0
    %1632 = vmatpush1.bf16.msra.mxu0 0
    %1633 = vmatprep.subr.bf16.mxu0 0
    %1634 = vmatpush1.bf16.msra.mxu0 0
    %1635 = vmatprep.subr.bf16.mxu0 0
    %1636 = vmatpush1.bf16.msra.mxu0 0
    %1637 = vmatprep.subr.bf16.mxu0 0
    %1638 = vmatpush1.bf16.msra.mxu0 0
    %1639 = vmatprep.subr.bf16.mxu0 0
    %1640 = vmatpush1.bf16.msra.mxu0 0
    %1641 = vmatprep.subr.bf16.mxu0 0
    %1642 = vmatpush1.bf16.msra.mxu0 0
    %1643 = vmatprep.mubr.bf16.mxu0 0
    %1644 = vmatmul.mubr.bf16.gmra.mrb[0].mxu0 %v1609
    %v1645 = vpop.f32.mrb[0].mxu0
    %v1646 = vadd.f32 %v1591, %v1645
    %v1647 = vpop.f32.mrb[0].mxu0
    %v1648 = vpop.f32.mrb[0].mxu0
    %v1649 = vpop.f32.mrb[0].mxu0
    %1650 = vdwg.mxu0
    %v1651 = vpack.c.bf16 %v1523, %v1523
    %s1652 = scalar_lea.vmem %s5, 32
    %v1653 = vld [vmem:[%s1652] sm:$0xf]
    %v1654 = vld [vmem:[%s1652 + $0x4] sm:$0xf]
    %v1655 = vld [vmem:[%s1652 + $0x8] sm:$0xf]
    %v1656 = vld [vmem:[%s1652 + $0xc] sm:$0xf]
    %v1661 = vunpack.c.l.b16 %v1653
    %v1662 = vunpack.c.l.b16 %v1654
    %v1663 = vunpack.c.l.b16 %v1655
    %v1664 = vunpack.c.l.b16 %v1656
    %v1665 = vpack.c.b16 %v1662, %v1661
    %v1666 = vpack.c.b16 %v1664, %v1663
    %v1670 = vsel %vm1552, %v1651, 0
    %1672 = vmatprep.subr.bf16.mxu0 0
    %1673 = vmatpush1.bf16.msra.mxu0 %v1665
    %1674 = vmatprep.subr.bf16.mxu0 0
    %1675 = vmatpush1.bf16.msra.mxu0 %v1666
    %1676 = vmatprep.subr.bf16.mxu0 0
    %1677 = vmatpush1.bf16.msra.mxu0 0
    %1678 = vmatprep.subr.bf16.mxu0 0
    %1679 = vmatpush1.bf16.msra.mxu0 0
    %1680 = vmatprep.subr.bf16.mxu0 0
    %1681 = vmatpush1.bf16.msra.mxu0 0
    %1682 = vmatprep.subr.bf16.mxu0 0
    %1683 = vmatpush1.bf16.msra.mxu0 0
    %1684 = vmatprep.subr.bf16.mxu0 0
    %1685 = vmatpush1.bf16.msra.mxu0 0
    %1686 = vmatprep.subr.bf16.mxu0 0
    %1687 = vmatpush1.bf16.msra.mxu0 0
    %1688 = vmatprep.subr.bf16.mxu0 0
    %1689 = vmatpush1.bf16.msra.mxu0 0
    %1690 = vmatprep.subr.bf16.mxu0 0
    %1691 = vmatpush1.bf16.msra.mxu0 0
    %1692 = vmatprep.subr.bf16.mxu0 0
    %1693 = vmatpush1.bf16.msra.mxu0 0
    %1694 = vmatprep.subr.bf16.mxu0 0
    %1695 = vmatpush1.bf16.msra.mxu0 0
    %1696 = vmatprep.subr.bf16.mxu0 0
    %1697 = vmatpush1.bf16.msra.mxu0 0
    %1698 = vmatprep.subr.bf16.mxu0 0
    %1699 = vmatpush1.bf16.msra.mxu0 0
    %1700 = vmatprep.subr.bf16.mxu0 0
    %1701 = vmatpush1.bf16.msra.mxu0 0
    %1702 = vmatprep.subr.bf16.mxu0 0
    %1703 = vmatpush1.bf16.msra.mxu0 0
    %1704 = vmatprep.mubr.bf16.mxu0 0
    %1705 = vmatmul.mubr.bf16.gmra.mrb[0].mxu0 %v1670
    %v1706 = vpop.f32.mrb[0].mxu0
    %v1707 = vadd.f32 0.0, %v1706
    %v1708 = vpop.f32.mrb[0].mxu0
    %v1709 = vpop.f32.mrb[0].mxu0
    %v1710 = vpop.f32.mrb[0].mxu0
    %1711 = vdwg.mxu0
    %v1712 = vadd.f32 %v1646, %v1707
    %v1713 = vpack.c.bf16 %v1524, %v1524
    %s1714 = scalar_lea.vmem %s5, 48
    %v1715 = vld [vmem:[%s1714] sm:$0xf]
    %v1716 = vld [vmem:[%s1714 + $0x4] sm:$0xf]
    %v1717 = vld [vmem:[%s1714 + $0x8] sm:$0xf]
    %v1718 = vld [vmem:[%s1714 + $0xc] sm:$0xf]
    %v1723 = vunpack.c.l.b16 %v1715
    %v1724 = vunpack.c.l.b16 %v1716
    %v1725 = vunpack.c.l.b16 %v1717
    %v1726 = vunpack.c.l.b16 %v1718
    %v1727 = vpack.c.b16 %v1724, %v1723
    %v1728 = vpack.c.b16 %v1726, %v1725
    %v1732 = vsel %vm1552, %v1713, 0
    %1734 = vmatprep.subr.bf16.mxu0 0
    %1735 = vmatpush1.bf16.msra.mxu0 %v1727
    %1736 = vmatprep.subr.bf16.mxu0 0
    %1737 = vmatpush1.bf16.msra.mxu0 %v1728
    %1738 = vmatprep.subr.bf16.mxu0 0
    %1739 = vmatpush1.bf16.msra.mxu0 0
    %1740 = vmatprep.subr.bf16.mxu0 0
    %1741 = vmatpush1.bf16.msra.mxu0 0
    %1742 = vmatprep.subr.bf16.mxu0 0
    %1743 = vmatpush1.bf16.msra.mxu0 0
    %1744 = vmatprep.subr.bf16.mxu0 0
    %1745 = vmatpush1.bf16.msra.mxu0 0
    %1746 = vmatprep.subr.bf16.mxu0 0
    %1747 = vmatpush1.bf16.msra.mxu0 0
    %1748 = vmatprep.subr.bf16.mxu0 0
    %1749 = vmatpush1.bf16.msra.mxu0 0
    %1750 = vmatprep.subr.bf16.mxu0 0
    %1751 = vmatpush1.bf16.msra.mxu0 0
    %1752 = vmatprep.subr.bf16.mxu0 0
    %1753 = vmatpush1.bf16.msra.mxu0 0
    %1754 = vmatprep.subr.bf16.mxu0 0
    %1755 = vmatpush1.bf16.msra.mxu0 0
    %1756 = vmatprep.subr.bf16.mxu0 0
    %1757 = vmatpush1.bf16.msra.mxu0 0
    %1758 = vmatprep.subr.bf16.mxu0 0
    %1759 = vmatpush1.bf16.msra.mxu0 0
    %1760 = vmatprep.subr.bf16.mxu0 0
    %1761 = vmatpush1.bf16.msra.mxu0 0
    %1762 = vmatprep.subr.bf16.mxu0 0
    %1763 = vmatpush1.bf16.msra.mxu0 0
    %1764 = vmatprep.subr.bf16.mxu0 0
    %1765 = vmatpush1.bf16.msra.mxu0 0
    %1766 = vmatprep.mubr.bf16.mxu0 0
    %1767 = vmatmul.mubr.bf16.gmra.mrb[0].mxu0 %v1732
    %v1768 = vpop.f32.mrb[0].mxu0
    %v1769 = vadd.f32 0.0, %v1768
    %v1770 = vpop.f32.mrb[0].mxu0
    %v1771 = vpop.f32.mrb[0].mxu0
    %v1772 = vpop.f32.mrb[0].mxu0
    %1773 = vdwg.mxu0
    %v1774 = vadd.f32 %v1712, %v1769
    %v1775 = vpack.c.bf16 %v1525, %v1525
    %s1776 = scalar_lea.vmem %s5, 64
    %v1777 = vld [vmem:[%s1776] sm:$0xf]
    %v1778 = vld [vmem:[%s1776 + $0x4] sm:$0xf]
    %v1779 = vld [vmem:[%s1776 + $0x8] sm:$0xf]
    %v1780 = vld [vmem:[%s1776 + $0xc] sm:$0xf]
    %v1785 = vunpack.c.l.b16 %v1777
    %v1786 = vunpack.c.l.b16 %v1778
    %v1787 = vunpack.c.l.b16 %v1779
    %v1788 = vunpack.c.l.b16 %v1780
    %v1789 = vpack.c.b16 %v1786, %v1785
    %v1790 = vpack.c.b16 %v1788, %v1787
    %v1794 = vsel %vm1552, %v1775, 0
    %1796 = vmatprep.subr.bf16.mxu0 0
    %1797 = vmatpush1.bf16.msra.mxu0 %v1789
    %1798 = vmatprep.subr.bf16.mxu0 0
    %1799 = vmatpush1.bf16.msra.mxu0 %v1790
    %1800 = vmatprep.subr.bf16.mxu0 0
    %1801 = vmatpush1.bf16.msra.mxu0 0
    %1802 = vmatprep.subr.bf16.mxu0 0
    %1803 = vmatpush1.bf16.msra.mxu0 0
    %1804 = vmatprep.subr.bf16.mxu0 0
    %1805 = vmatpush1.bf16.msra.mxu0 0
    %1806 = vmatprep.subr.bf16.mxu0 0
    %1807 = vmatpush1.bf16.msra.mxu0 0
    %1808 = vmatprep.subr.bf16.mxu0 0
    %1809 = vmatpush1.bf16.msra.mxu0 0
    %1810 = vmatprep.subr.bf16.mxu0 0
    %1811 = vmatpush1.bf16.msra.mxu0 0
    %1812 = vmatprep.subr.bf16.mxu0 0
    %1813 = vmatpush1.bf16.msra.mxu0 0
    %1814 = vmatprep.subr.bf16.mxu0 0
    %1815 = vmatpush1.bf16.msra.mxu0 0
    %1816 = vmatprep.subr.bf16.mxu0 0
    %1817 = vmatpush1.bf16.msra.mxu0 0
    %1818 = vmatprep.subr.bf16.mxu0 0
    %1819 = vmatpush1.bf16.msra.mxu0 0
    %1820 = vmatprep.subr.bf16.mxu0 0
    %1821 = vmatpush1.bf16.msra.mxu0 0
    %1822 = vmatprep.subr.bf16.mxu0 0
    %1823 = vmatpush1.bf16.msra.mxu0 0
    %1824 = vmatprep.subr.bf16.mxu0 0
    %1825 = vmatpush1.bf16.msra.mxu0 0
    %1826 = vmatprep.subr.bf16.mxu0 0
    %1827 = vmatpush1.bf16.msra.mxu0 0
    %1828 = vmatprep.mubr.bf16.mxu0 0
    %1829 = vmatmul.mubr.bf16.gmra.mrb[0].mxu0 %v1794
    %v1830 = vpop.f32.mrb[0].mxu0
    %v1831 = vadd.f32 0.0, %v1830
    %v1832 = vpop.f32.mrb[0].mxu0
    %v1833 = vpop.f32.mrb[0].mxu0
    %v1834 = vpop.f32.mrb[0].mxu0
    %1835 = vdwg.mxu0
    %v1836 = vadd.f32 %v1774, %v1831
    %v1837 = vpack.c.bf16 %v1526, %v1526
    %s1838 = scalar_lea.vmem %s5, 80
    %v1839 = vld [vmem:[%s1838] sm:$0xf]
    %v1840 = vld [vmem:[%s1838 + $0x4] sm:$0xf]
    %v1841 = vld [vmem:[%s1838 + $0x8] sm:$0xf]
    %v1842 = vld [vmem:[%s1838 + $0xc] sm:$0xf]
    %v1847 = vunpack.c.l.b16 %v1839
    %v1848 = vunpack.c.l.b16 %v1840
    %v1849 = vunpack.c.l.b16 %v1841
    %v1850 = vunpack.c.l.b16 %v1842
    %v1851 = vpack.c.b16 %v1848, %v1847
    %v1852 = vpack.c.b16 %v1850, %v1849
    %v1856 = vsel %vm1552, %v1837, 0
    %1858 = vmatprep.subr.bf16.mxu0 0
    %1859 = vmatpush1.bf16.msra.mxu0 %v1851
    %1860 = vmatprep.subr.bf16.mxu0 0
    %1861 = vmatpush1.bf16.msra.mxu0 %v1852
    %1862 = vmatprep.subr.bf16.mxu0 0
    %1863 = vmatpush1.bf16.msra.mxu0 0
    %1864 = vmatprep.subr.bf16.mxu0 0
    %1865 = vmatpush1.bf16.msra.mxu0 0
    %1866 = vmatprep.subr.bf16.mxu0 0
    %1867 = vmatpush1.bf16.msra.mxu0 0
    %1868 = vmatprep.subr.bf16.mxu0 0
    %1869 = vmatpush1.bf16.msra.mxu0 0
    %1870 = vmatprep.subr.bf16.mxu0 0
    %1871 = vmatpush1.bf16.msra.mxu0 0
    %1872 = vmatprep.subr.bf16.mxu0 0
    %1873 = vmatpush1.bf16.msra.mxu0 0
    %1874 = vmatprep.subr.bf16.mxu0 0
    %1875 = vmatpush1.bf16.msra.mxu0 0
    %1876 = vmatprep.subr.bf16.mxu0 0
    %1877 = vmatpush1.bf16.msra.mxu0 0
    %1878 = vmatprep.subr.bf16.mxu0 0
    %1879 = vmatpush1.bf16.msra.mxu0 0
    %1880 = vmatprep.subr.bf16.mxu0 0
    %1881 = vmatpush1.bf16.msra.mxu0 0
    %1882 = vmatprep.subr.bf16.mxu0 0
    %1883 = vmatpush1.bf16.msra.mxu0 0
    %1884 = vmatprep.subr.bf16.mxu0 0
    %1885 = vmatpush1.bf16.msra.mxu0 0
    %1886 = vmatprep.subr.bf16.mxu0 0
    %1887 = vmatpush1.bf16.msra.mxu0 0
    %1888 = vmatprep.subr.bf16.mxu0 0
    %1889 = vmatpush1.bf16.msra.mxu0 0
    %1890 = vmatprep.mubr.bf16.mxu0 0
    %1891 = vmatmul.mubr.bf16.gmra.mrb[0].mxu0 %v1856
    %v1892 = vpop.f32.mrb[0].mxu0
    %v1893 = vadd.f32 0.0, %v1892
    %v1894 = vpop.f32.mrb[0].mxu0
    %v1895 = vpop.f32.mrb[0].mxu0
    %v1896 = vpop.f32.mrb[0].mxu0
    %1897 = vdwg.mxu0
    %v1898 = vadd.f32 %v1836, %v1893
    %v1899 = vpack.c.bf16 %v1527, %v1527
    %s1900 = scalar_lea.vmem %s5, 96
    %v1901 = vld [vmem:[%s1900] sm:$0xf]
    %v1902 = vld [vmem:[%s1900 + $0x4] sm:$0xf]
    %v1903 = vld [vmem:[%s1900 + $0x8] sm:$0xf]
    %v1904 = vld [vmem:[%s1900 + $0xc] sm:$0xf]
    %v1909 = vunpack.c.l.b16 %v1901
    %v1910 = vunpack.c.l.b16 %v1902
    %v1911 = vunpack.c.l.b16 %v1903
    %v1912 = vunpack.c.l.b16 %v1904
    %v1913 = vpack.c.b16 %v1910, %v1909
    %v1914 = vpack.c.b16 %v1912, %v1911
    %v1918 = vsel %vm1552, %v1899, 0
    %1920 = vmatprep.subr.bf16.mxu0 0
    %1921 = vmatpush1.bf16.msra.mxu0 %v1913
    %1922 = vmatprep.subr.bf16.mxu0 0
    %1923 = vmatpush1.bf16.msra.mxu0 %v1914
    %1924 = vmatprep.subr.bf16.mxu0 0
    %1925 = vmatpush1.bf16.msra.mxu0 0
    %1926 = vmatprep.subr.bf16.mxu0 0
    %1927 = vmatpush1.bf16.msra.mxu0 0
    %1928 = vmatprep.subr.bf16.mxu0 0
    %1929 = vmatpush1.bf16.msra.mxu0 0
    %1930 = vmatprep.subr.bf16.mxu0 0
    %1931 = vmatpush1.bf16.msra.mxu0 0
    %1932 = vmatprep.subr.bf16.mxu0 0
    %1933 = vmatpush1.bf16.msra.mxu0 0
    %1934 = vmatprep.subr.bf16.mxu0 0
    %1935 = vmatpush1.bf16.msra.mxu0 0
    %1936 = vmatprep.subr.bf16.mxu0 0
    %1937 = vmatpush1.bf16.msra.mxu0 0
    %1938 = vmatprep.subr.bf16.mxu0 0
    %1939 = vmatpush1.bf16.msra.mxu0 0
    %1940 = vmatprep.subr.bf16.mxu0 0
    %1941 = vmatpush1.bf16.msra.mxu0 0
    %1942 = vmatprep.subr.bf16.mxu0 0
    %1943 = vmatpush1.bf16.msra.mxu0 0
    %1944 = vmatprep.subr.bf16.mxu0 0
    %1945 = vmatpush1.bf16.msra.mxu0 0
    %1946 = vmatprep.subr.bf16.mxu0 0
    %1947 = vmatpush1.bf16.msra.mxu0 0
    %1948 = vmatprep.subr.bf16.mxu0 0
    %1949 = vmatpush1.bf16.msra.mxu0 0
    %1950 = vmatprep.subr.bf16.mxu0 0
    %1951 = vmatpush1.bf16.msra.mxu0 0
    %1952 = vmatprep.mubr.bf16.mxu0 0
    %1953 = vmatmul.mubr.bf16.gmra.mrb[0].mxu0 %v1918
    %v1954 = vpop.f32.mrb[0].mxu0
    %v1955 = vadd.f32 0.0, %v1954
    %v1956 = vpop.f32.mrb[0].mxu0
    %v1957 = vpop.f32.mrb[0].mxu0
    %v1958 = vpop.f32.mrb[0].mxu0
    %1959 = vdwg.mxu0
    %v1960 = vadd.f32 %v1898, %v1955
    %v1961 = vpack.c.bf16 %v1528, %v1528
    %s1962 = scalar_lea.vmem %s5, 112
    %v1963 = vld [vmem:[%s1962] sm:$0xf]
    %v1964 = vld [vmem:[%s1962 + $0x4] sm:$0xf]
    %v1965 = vld [vmem:[%s1962 + $0x8] sm:$0xf]
    %v1966 = vld [vmem:[%s1962 + $0xc] sm:$0xf]
    %v1971 = vunpack.c.l.b16 %v1963
    %v1972 = vunpack.c.l.b16 %v1964
    %v1973 = vunpack.c.l.b16 %v1965
    %v1974 = vunpack.c.l.b16 %v1966
    %v1975 = vpack.c.b16 %v1972, %v1971
    %v1976 = vpack.c.b16 %v1974, %v1973
    %v1980 = vsel %vm1552, %v1961, 0
    %1982 = vmatprep.subr.bf16.mxu0 0
    %1983 = vmatpush1.bf16.msra.mxu0 %v1975
    %1984 = vmatprep.subr.bf16.mxu0 0
    %1985 = vmatpush1.bf16.msra.mxu0 %v1976
    %1986 = vmatprep.subr.bf16.mxu0 0
    %1987 = vmatpush1.bf16.msra.mxu0 0
    %1988 = vmatprep.subr.bf16.mxu0 0
    %1989 = vmatpush1.bf16.msra.mxu0 0
    %1990 = vmatprep.subr.bf16.mxu0 0
    %1991 = vmatpush1.bf16.msra.mxu0 0
    %1992 = vmatprep.subr.bf16.mxu0 0
    %1993 = vmatpush1.bf16.msra.mxu0 0
    %1994 = vmatprep.subr.bf16.mxu0 0
    %1995 = vmatpush1.bf16.msra.mxu0 0
    %1996 = vmatprep.subr.bf16.mxu0 0
    %1997 = vmatpush1.bf16.msra.mxu0 0
    %1998 = vmatprep.subr.bf16.mxu0 0
    %1999 = vmatpush1.bf16.msra.mxu0 0
    %2000 = vmatprep.subr.bf16.mxu0 0
    %2001 = vmatpush1.bf16.msra.mxu0 0
    %2002 = vmatprep.subr.bf16.mxu0 0
    %2003 = vmatpush1.bf16.msra.mxu0 0
    %2004 = vmatprep.subr.bf16.mxu0 0
    %2005 = vmatpush1.bf16.msra.mxu0 0
    %2006 = vmatprep.subr.bf16.mxu0 0
    %2007 = vmatpush1.bf16.msra.mxu0 0
    %2008 = vmatprep.subr.bf16.mxu0 0
    %2009 = vmatpush1.bf16.msra.mxu0 0
    %2010 = vmatprep.subr.bf16.mxu0 0
    %2011 = vmatpush1.bf16.msra.mxu0 0
    %2012 = vmatprep.subr.bf16.mxu0 0
    %2013 = vmatpush1.bf16.msra.mxu0 0
    %2014 = vmatprep.mubr.bf16.mxu0 0
    %2015 = vmatmul.mubr.bf16.gmra.mrb[0].mxu0 %v1980
    %v2016 = vpop.f32.mrb[0].mxu0
    %v2017 = vadd.f32 0.0, %v2016
    %v2018 = vpop.f32.mrb[0].mxu0
    %v2019 = vpop.f32.mrb[0].mxu0
    %v2020 = vpop.f32.mrb[0].mxu0
    %2021 = vdwg.mxu0
    %v2022 = vadd.f32 %v1960, %v2017
    %v2023 = vld [vmem:[%s6] sm:$0x1]
    %v2025 = vlaneseq
    %v2026 = vshrl.u32 %v2025, 7
    %v2027 = vsub.s32 0, %v2026
    %v2028 = vrot.slane %v2023, %v2027
    %v2030 = vadd.f32 %v2022, %v2028
    %v2031 = vmax.f32 %v2030, 0.0
    %v2032 = vpack.c.bf16 %v2031, %v2031
    %v2033 = vld [vmem:[%s7] sm:$0xff]
    %v2034 = vld [vmem:[%s7 + $0x8] sm:$0xff]
    %v2035 = vld [vmem:[%s7 + $0x10] sm:$0xff]
    %v2036 = vld [vmem:[%s7 + $0x18] sm:$0xff]
    %v2037 = vld [vmem:[%s7 + $0x20] sm:$0xff]
    %v2038 = vld [vmem:[%s7 + $0x28] sm:$0xff]
    %v2039 = vld [vmem:[%s7 + $0x30] sm:$0xff]
    %v2040 = vld [vmem:[%s7 + $0x38] sm:$0xff]
    %v2049 = vunpack.c.l.b16 %v2033
    %v2050 = vunpack.c.h.b16 %v2033
    %v2051 = vunpack.c.l.b16 %v2034
    %v2052 = vunpack.c.h.b16 %v2034
    %v2053 = vunpack.c.l.b16 %v2035
    %v2054 = vunpack.c.h.b16 %v2035
    %v2055 = vunpack.c.l.b16 %v2036
    %v2056 = vunpack.c.h.b16 %v2036
    %v2057 = vunpack.c.l.b16 %v2037
    %v2058 = vunpack.c.h.b16 %v2037
    %v2059 = vunpack.c.l.b16 %v2038
    %v2060 = vunpack.c.h.b16 %v2038
    %v2061 = vunpack.c.l.b16 %v2039
    %v2062 = vunpack.c.h.b16 %v2039
    %v2063 = vunpack.c.l.b16 %v2040
    %v2064 = vunpack.c.h.b16 %v2040
    %v2065 = vpack.c.b16 %v2051, %v2049
    %v2066 = vpack.c.b16 %v2052, %v2050
    %v2067 = vpack.c.b16 %v2055, %v2053
    %v2068 = vpack.c.b16 %v2056, %v2054
    %v2069 = vpack.c.b16 %v2059, %v2057
    %v2070 = vpack.c.b16 %v2060, %v2058
    %v2071 = vpack.c.b16 %v2063, %v2061
    %v2072 = vpack.c.b16 %v2064, %v2062
    %vm2081 = vcmask 523264
    %v2083 = vsel %vm2081, %v2032, 0
    %2085 = vmatprep.subr.bf16.mxu0 %v2066
    %2086 = vmatpush1.bf16.msra.mxu0 %v2065
    %2087 = vmatprep.subr.bf16.mxu0 %v2068
    %2088 = vmatpush1.bf16.msra.mxu0 %v2067
    %2089 = vmatprep.subr.bf16.mxu0 %v2070
    %2090 = vmatpush1.bf16.msra.mxu0 %v2069
    %2091 = vmatprep.subr.bf16.mxu0 %v2072
    %2092 = vmatpush1.bf16.msra.mxu0 %v2071
    %2093 = vmatprep.subr.bf16.mxu0 0
    %2094 = vmatpush1.bf16.msra.mxu0 0
    %2095 = vmatprep.subr.bf16.mxu0 0
    %2096 = vmatpush1.bf16.msra.mxu0 0
    %2097 = vmatprep.subr.bf16.mxu0 0
    %2098 = vmatpush1.bf16.msra.mxu0 0
    %2099 = vmatprep.subr.bf16.mxu0 0
    %2100 = vmatpush1.bf16.msra.mxu0 0
    %2101 = vmatprep.subr.bf16.mxu0 0
    %2102 = vmatpush1.bf16.msra.mxu0 0
    %2103 = vmatprep.subr.bf16.mxu0 0
    %2104 = vmatpush1.bf16.msra.mxu0 0
    %2105 = vmatprep.subr.bf16.mxu0 0
    %2106 = vmatpush1.bf16.msra.mxu0 0
    %2107 = vmatprep.subr.bf16.mxu0 0
    %2108 = vmatpush1.bf16.msra.mxu0 0
    %2109 = vmatprep.subr.bf16.mxu0 0
    %2110 = vmatpush1.bf16.msra.mxu0 0
    %2111 = vmatprep.subr.bf16.mxu0 0
    %2112 = vmatpush1.bf16.msra.mxu0 0
    %2113 = vmatprep.subr.bf16.mxu0 0
    %2114 = vmatpush1.bf16.msra.mxu0 0
    %2115 = vmatprep.subr.bf16.mxu0 0
    %2116 = vmatpush1.bf16.msra.mxu0 0
    %2117 = vmatprep.mubr.bf16.mxu0 0
    %2118 = vmatmul.mubr.bf16.gmra.mrb[0].mxu0 %v2083
    %v2119 = vpop.f32.mrb[0].mxu0
    %v2120 = vadd.f32 0.0, %v2119
    %v2121 = vpop.f32.mrb[0].mxu0
    %v2122 = vadd.f32 0.0, %v2121
    %v2123 = vpop.f32.mrb[0].mxu0
    %v2124 = vpop.f32.mrb[0].mxu0
    %2125 = vdwg.mxu0
    %v2128 = vcombine.low %v2120, %v2122
    %v2130 = vunpack.c.l.s4 1966171168
    %v2131 = vunpack.c.0.s8 %v2130
    %v2132 = vlaneseq
    %v2133 = vshrl.u32 %v2132, 7
    %v2134 = vsub.s32 %v2131, %v2133
    %v2135 = vrot.slane %v2128, %v2134
    %v2137 = vunpack.c.l.s4 1966171168
    %v2138 = vunpack.c.0.s8 %v2137
    %v2139 = vlaneseq
    %v2140 = vshrl.u32 %v2139, 7
    %v2141 = vsub.s32 %v2138, %v2140
    %v2142 = vrot.slane %v2135, %v2141
    %v2144 = vadd.f32 %v40, %v2142
    %s2145 = scalar_lea.vmem %s7, 64
    %v2146 = vld [vmem:[%s2145] sm:$0xff]
    %v2147 = vld [vmem:[%s2145 + $0x8] sm:$0xff]
    %v2148 = vld [vmem:[%s2145 + $0x10] sm:$0xff]
    %v2149 = vld [vmem:[%s2145 + $0x18] sm:$0xff]
    %v2150 = vld [vmem:[%s2145 + $0x20] sm:$0xff]
    %v2151 = vld [vmem:[%s2145 + $0x28] sm:$0xff]
    %v2152 = vld [vmem:[%s2145 + $0x30] sm:$0xff]
    %v2153 = vld [vmem:[%s2145 + $0x38] sm:$0xff]
    %v2154 = vshrl.u32 %v2032, 16
    %v2164 = vunpack.c.l.b16 %v2146
    %v2165 = vunpack.c.h.b16 %v2146
    %v2166 = vunpack.c.l.b16 %v2147
    %v2167 = vunpack.c.h.b16 %v2147
    %v2168 = vunpack.c.l.b16 %v2148
    %v2169 = vunpack.c.h.b16 %v2148
    %v2170 = vunpack.c.l.b16 %v2149
    %v2171 = vunpack.c.h.b16 %v2149
    %v2172 = vunpack.c.l.b16 %v2150
    %v2173 = vunpack.c.h.b16 %v2150
    %v2174 = vunpack.c.l.b16 %v2151
    %v2175 = vunpack.c.h.b16 %v2151
    %v2176 = vunpack.c.l.b16 %v2152
    %v2177 = vunpack.c.h.b16 %v2152
    %v2178 = vunpack.c.l.b16 %v2153
    %v2179 = vunpack.c.h.b16 %v2153
    %v2180 = vpack.c.b16 %v2166, %v2164
    %v2181 = vpack.c.b16 %v2167, %v2165
    %v2182 = vpack.c.b16 %v2170, %v2168
    %v2183 = vpack.c.b16 %v2171, %v2169
    %v2184 = vpack.c.b16 %v2174, %v2172
    %v2185 = vpack.c.b16 %v2175, %v2173
    %v2186 = vpack.c.b16 %v2178, %v2176
    %v2187 = vpack.c.b16 %v2179, %v2177
    %v2197 = vsel %vm2081, %v2154, 0
    %2199 = vmatprep.subr.bf16.mxu0 %v2181
    %2200 = vmatpush1.bf16.msra.mxu0 %v2180
    %2201 = vmatprep.subr.bf16.mxu0 %v2183
    %2202 = vmatpush1.bf16.msra.mxu0 %v2182
    %2203 = vmatprep.subr.bf16.mxu0 %v2185
    %2204 = vmatpush1.bf16.msra.mxu0 %v2184
    %2205 = vmatprep.subr.bf16.mxu0 %v2187
    %2206 = vmatpush1.bf16.msra.mxu0 %v2186
    %2207 = vmatprep.subr.bf16.mxu0 0
    %2208 = vmatpush1.bf16.msra.mxu0 0
    %2209 = vmatprep.subr.bf16.mxu0 0
    %2210 = vmatpush1.bf16.msra.mxu0 0
    %2211 = vmatprep.subr.bf16.mxu0 0
    %2212 = vmatpush1.bf16.msra.mxu0 0
    %2213 = vmatprep.subr.bf16.mxu0 0
    %2214 = vmatpush1.bf16.msra.mxu0 0
    %2215 = vmatprep.subr.bf16.mxu0 0
    %2216 = vmatpush1.bf16.msra.mxu0 0
    %2217 = vmatprep.subr.bf16.mxu0 0
    %2218 = vmatpush1.bf16.msra.mxu0 0
    %2219 = vmatprep.subr.bf16.mxu0 0
    %2220 = vmatpush1.bf16.msra.mxu0 0
    %2221 = vmatprep.subr.bf16.mxu0 0
    %2222 = vmatpush1.bf16.msra.mxu0 0
    %2223 = vmatprep.subr.bf16.mxu0 0
    %2224 = vmatpush1.bf16.msra.mxu0 0
    %2225 = vmatprep.subr.bf16.mxu0 0
    %2226 = vmatpush1.bf16.msra.mxu0 0
    %2227 = vmatprep.subr.bf16.mxu0 0
    %2228 = vmatpush1.bf16.msra.mxu0 0
    %2229 = vmatprep.subr.bf16.mxu0 0
    %2230 = vmatpush1.bf16.msra.mxu0 0
    %2231 = vmatprep.mubr.bf16.mxu0 0
    %2232 = vmatmul.mubr.bf16.gmra.mrb[0].mxu0 %v2197
    %v2233 = vpop.f32.mrb[0].mxu0
    %v2234 = vadd.f32 0.0, %v2233
    %v2235 = vpop.f32.mrb[0].mxu0
    %v2236 = vadd.f32 0.0, %v2235
    %v2237 = vpop.f32.mrb[0].mxu0
    %v2238 = vpop.f32.mrb[0].mxu0
    %2239 = vdwg.mxu0
    %v2242 = vcombine.low %v2234, %v2236
    %v2244 = vunpack.c.l.s4 1966171168
    %v2245 = vunpack.c.0.s8 %v2244
    %v2246 = vlaneseq
    %v2247 = vshrl.u32 %v2246, 7
    %v2248 = vsub.s32 %v2245, %v2247
    %v2249 = vrot.slane %v2242, %v2248
    %v2251 = vunpack.c.l.s4 1966171168
    %v2252 = vunpack.c.0.s8 %v2251
    %v2253 = vlaneseq
    %v2254 = vshrl.u32 %v2253, 7
    %v2255 = vsub.s32 %v2252, %v2254
    %v2256 = vrot.slane %v2249, %v2255
    %v2258 = vadd.f32 %v2144, %v2256
    %s2259 = scalar_lea.vmem %s7, 128
    %v2260 = vld [vmem:[%s2259] sm:$0xff]
    %v2261 = vld [vmem:[%s2259 + $0x8] sm:$0xff]
    %v2262 = vld [vmem:[%s2259 + $0x10] sm:$0xff]
    %v2263 = vld [vmem:[%s2259 + $0x18] sm:$0xff]
    %v2264 = vld [vmem:[%s2259 + $0x20] sm:$0xff]
    %v2265 = vld [vmem:[%s2259 + $0x28] sm:$0xff]
    %v2266 = vld [vmem:[%s2259 + $0x30] sm:$0xff]
    %v2267 = vld [vmem:[%s2259 + $0x38] sm:$0xff]
    %v2269 = vrot.slane %v2032, 1
    %v2278 = vunpack.c.l.b16 %v2260
    %v2279 = vunpack.c.h.b16 %v2260
    %v2280 = vunpack.c.l.b16 %v2261
    %v2281 = vunpack.c.h.b16 %v2261
    %v2282 = vunpack.c.l.b16 %v2262
    %v2283 = vunpack.c.h.b16 %v2262
    %v2284 = vunpack.c.l.b16 %v2263
    %v2285 = vunpack.c.h.b16 %v2263
    %v2286 = vunpack.c.l.b16 %v2264
    %v2287 = vunpack.c.h.b16 %v2264
    %v2288 = vunpack.c.l.b16 %v2265
    %v2289 = vunpack.c.h.b16 %v2265
    %v2290 = vunpack.c.l.b16 %v2266
    %v2291 = vunpack.c.h.b16 %v2266
    %v2292 = vunpack.c.l.b16 %v2267
    %v2293 = vunpack.c.h.b16 %v2267
    %v2294 = vpack.c.b16 %v2280, %v2278
    %v2295 = vpack.c.b16 %v2281, %v2279
    %v2296 = vpack.c.b16 %v2284, %v2282
    %v2297 = vpack.c.b16 %v2285, %v2283
    %v2298 = vpack.c.b16 %v2288, %v2286
    %v2299 = vpack.c.b16 %v2289, %v2287
    %v2300 = vpack.c.b16 %v2292, %v2290
    %v2301 = vpack.c.b16 %v2293, %v2291
    %v2311 = vsel %vm2081, %v2269, 0
    %2313 = vmatprep.subr.bf16.mxu0 %v2295
    %2314 = vmatpush1.bf16.msra.mxu0 %v2294
    %2315 = vmatprep.subr.bf16.mxu0 %v2297
    %2316 = vmatpush1.bf16.msra.mxu0 %v2296
    %2317 = vmatprep.subr.bf16.mxu0 %v2299
    %2318 = vmatpush1.bf16.msra.mxu0 %v2298
    %2319 = vmatprep.subr.bf16.mxu0 %v2301
    %2320 = vmatpush1.bf16.msra.mxu0 %v2300
    %2321 = vmatprep.subr.bf16.mxu0 0
    %2322 = vmatpush1.bf16.msra.mxu0 0
    %2323 = vmatprep.subr.bf16.mxu0 0
    %2324 = vmatpush1.bf16.msra.mxu0 0
    %2325 = vmatprep.subr.bf16.mxu0 0
    %2326 = vmatpush1.bf16.msra.mxu0 0
    %2327 = vmatprep.subr.bf16.mxu0 0
    %2328 = vmatpush1.bf16.msra.mxu0 0
    %2329 = vmatprep.subr.bf16.mxu0 0
    %2330 = vmatpush1.bf16.msra.mxu0 0
    %2331 = vmatprep.subr.bf16.mxu0 0
    %2332 = vmatpush1.bf16.msra.mxu0 0
    %2333 = vmatprep.subr.bf16.mxu0 0
    %2334 = vmatpush1.bf16.msra.mxu0 0
    %2335 = vmatprep.subr.bf16.mxu0 0
    %2336 = vmatpush1.bf16.msra.mxu0 0
    %2337 = vmatprep.subr.bf16.mxu0 0
    %2338 = vmatpush1.bf16.msra.mxu0 0
    %2339 = vmatprep.subr.bf16.mxu0 0
    %2340 = vmatpush1.bf16.msra.mxu0 0
    %2341 = vmatprep.subr.bf16.mxu0 0
    %2342 = vmatpush1.bf16.msra.mxu0 0
    %2343 = vmatprep.subr.bf16.mxu0 0
    %2344 = vmatpush1.bf16.msra.mxu0 0
    %2345 = vmatprep.mubr.bf16.mxu0 0
    %2346 = vmatmul.mubr.bf16.gmra.mrb[0].mxu0 %v2311
    %v2347 = vpop.f32.mrb[0].mxu0
    %v2348 = vadd.f32 0.0, %v2347
    %v2349 = vpop.f32.mrb[0].mxu0
    %v2350 = vadd.f32 0.0, %v2349
    %v2351 = vpop.f32.mrb[0].mxu0
    %v2352 = vpop.f32.mrb[0].mxu0
    %2353 = vdwg.mxu0
    %v2356 = vcombine.low %v2348, %v2350
    %v2358 = vunpack.c.l.s4 1966171168
    %v2359 = vunpack.c.0.s8 %v2358
    %v2360 = vlaneseq
    %v2361 = vshrl.u32 %v2360, 7
    %v2362 = vsub.s32 %v2359, %v2361
    %v2363 = vrot.slane %v2356, %v2362
    %v2365 = vunpack.c.l.s4 1966171168
    %v2366 = vunpack.c.0.s8 %v2365
    %v2367 = vlaneseq
    %v2368 = vshrl.u32 %v2367, 7
    %v2369 = vsub.s32 %v2366, %v2368
    %v2370 = vrot.slane %v2363, %v2369
    %v2372 = vadd.f32 %v2258, %v2370
    %s2373 = scalar_lea.vmem %s7, 192
    %v2374 = vld [vmem:[%s2373] sm:$0xff]
    %v2375 = vld [vmem:[%s2373 + $0x8] sm:$0xff]
    %v2376 = vld [vmem:[%s2373 + $0x10] sm:$0xff]
    %v2377 = vld [vmem:[%s2373 + $0x18] sm:$0xff]
    %v2378 = vld [vmem:[%s2373 + $0x20] sm:$0xff]
    %v2379 = vld [vmem:[%s2373 + $0x28] sm:$0xff]
    %v2380 = vld [vmem:[%s2373 + $0x30] sm:$0xff]
    %v2381 = vld [vmem:[%s2373 + $0x38] sm:$0xff]
    %v2382 = vrot.slane %v2154, 1
    %v2391 = vunpack.c.l.b16 %v2374
    %v2392 = vunpack.c.h.b16 %v2374
    %v2393 = vunpack.c.l.b16 %v2375
    %v2394 = vunpack.c.h.b16 %v2375
    %v2395 = vunpack.c.l.b16 %v2376
    %v2396 = vunpack.c.h.b16 %v2376
    %v2397 = vunpack.c.l.b16 %v2377
    %v2398 = vunpack.c.h.b16 %v2377
    %v2399 = vunpack.c.l.b16 %v2378
    %v2400 = vunpack.c.h.b16 %v2378
    %v2401 = vunpack.c.l.b16 %v2379
    %v2402 = vunpack.c.h.b16 %v2379
    %v2403 = vunpack.c.l.b16 %v2380
    %v2404 = vunpack.c.h.b16 %v2380
    %v2405 = vunpack.c.l.b16 %v2381
    %v2406 = vunpack.c.h.b16 %v2381
    %v2407 = vpack.c.b16 %v2393, %v2391
    %v2408 = vpack.c.b16 %v2394, %v2392
    %v2409 = vpack.c.b16 %v2397, %v2395
    %v2410 = vpack.c.b16 %v2398, %v2396
    %v2411 = vpack.c.b16 %v2401, %v2399
    %v2412 = vpack.c.b16 %v2402, %v2400
    %v2413 = vpack.c.b16 %v2405, %v2403
    %v2414 = vpack.c.b16 %v2406, %v2404
    %v2424 = vsel %vm2081, %v2382, 0
    %2426 = vmatprep.subr.bf16.mxu0 %v2408
    %2427 = vmatpush1.bf16.msra.mxu0 %v2407
    %2428 = vmatprep.subr.bf16.mxu0 %v2410
    %2429 = vmatpush1.bf16.msra.mxu0 %v2409
    %2430 = vmatprep.subr.bf16.mxu0 %v2412
    %2431 = vmatpush1.bf16.msra.mxu0 %v2411
    %2432 = vmatprep.subr.bf16.mxu0 %v2414
    %2433 = vmatpush1.bf16.msra.mxu0 %v2413
    %2434 = vmatprep.subr.bf16.mxu0 0
    %2435 = vmatpush1.bf16.msra.mxu0 0
    %2436 = vmatprep.subr.bf16.mxu0 0
    %2437 = vmatpush1.bf16.msra.mxu0 0
    %2438 = vmatprep.subr.bf16.mxu0 0
    %2439 = vmatpush1.bf16.msra.mxu0 0
    %2440 = vmatprep.subr.bf16.mxu0 0
    %2441 = vmatpush1.bf16.msra.mxu0 0
    %2442 = vmatprep.subr.bf16.mxu0 0
    %2443 = vmatpush1.bf16.msra.mxu0 0
    %2444 = vmatprep.subr.bf16.mxu0 0
    %2445 = vmatpush1.bf16.msra.mxu0 0
    %2446 = vmatprep.subr.bf16.mxu0 0
    %2447 = vmatpush1.bf16.msra.mxu0 0
    %2448 = vmatprep.subr.bf16.mxu0 0
    %2449 = vmatpush1.bf16.msra.mxu0 0
    %2450 = vmatprep.subr.bf16.mxu0 0
    %2451 = vmatpush1.bf16.msra.mxu0 0
    %2452 = vmatprep.subr.bf16.mxu0 0
    %2453 = vmatpush1.bf16.msra.mxu0 0
    %2454 = vmatprep.subr.bf16.mxu0 0
    %2455 = vmatpush1.bf16.msra.mxu0 0
    %2456 = vmatprep.subr.bf16.mxu0 0
    %2457 = vmatpush1.bf16.msra.mxu0 0
    %2458 = vmatprep.mubr.bf16.mxu0 0
    %2459 = vmatmul.mubr.bf16.gmra.mrb[0].mxu0 %v2424
    %v2460 = vpop.f32.mrb[0].mxu0
    %v2461 = vadd.f32 0.0, %v2460
    %v2462 = vpop.f32.mrb[0].mxu0
    %v2463 = vadd.f32 0.0, %v2462
    %v2464 = vpop.f32.mrb[0].mxu0
    %v2465 = vpop.f32.mrb[0].mxu0
    %2466 = vdwg.mxu0
    %v2469 = vcombine.low %v2461, %v2463
    %v2471 = vunpack.c.l.s4 1966171168
    %v2472 = vunpack.c.0.s8 %v2471
    %v2473 = vlaneseq
    %v2474 = vshrl.u32 %v2473, 7
    %v2475 = vsub.s32 %v2472, %v2474
    %v2476 = vrot.slane %v2469, %v2475
    %v2478 = vunpack.c.l.s4 1966171168
    %v2479 = vunpack.c.0.s8 %v2478
    %v2480 = vlaneseq
    %v2481 = vshrl.u32 %v2480, 7
    %v2482 = vsub.s32 %v2479, %v2481
    %v2483 = vrot.slane %v2476, %v2482
    %v2485 = vadd.f32 %v2372, %v2483
    %s2486 = scalar_lea.vmem %s7, 256
    %v2487 = vld [vmem:[%s2486] sm:$0xff]
    %v2488 = vld [vmem:[%s2486 + $0x8] sm:$0xff]
    %v2489 = vld [vmem:[%s2486 + $0x10] sm:$0xff]
    %v2490 = vld [vmem:[%s2486 + $0x18] sm:$0xff]
    %v2491 = vld [vmem:[%s2486 + $0x20] sm:$0xff]
    %v2492 = vld [vmem:[%s2486 + $0x28] sm:$0xff]
    %v2493 = vld [vmem:[%s2486 + $0x30] sm:$0xff]
    %v2494 = vld [vmem:[%s2486 + $0x38] sm:$0xff]
    %v2495 = vrot.slane %v2032, 2
    %v2504 = vunpack.c.l.b16 %v2487
    %v2505 = vunpack.c.h.b16 %v2487
    %v2506 = vunpack.c.l.b16 %v2488
    %v2507 = vunpack.c.h.b16 %v2488
    %v2508 = vunpack.c.l.b16 %v2489
    %v2509 = vunpack.c.h.b16 %v2489
    %v2510 = vunpack.c.l.b16 %v2490
    %v2511 = vunpack.c.h.b16 %v2490
    %v2512 = vunpack.c.l.b16 %v2491
    %v2513 = vunpack.c.h.b16 %v2491
    %v2514 = vunpack.c.l.b16 %v2492
    %v2515 = vunpack.c.h.b16 %v2492
    %v2516 = vunpack.c.l.b16 %v2493
    %v2517 = vunpack.c.h.b16 %v2493
    %v2518 = vunpack.c.l.b16 %v2494
    %v2519 = vunpack.c.h.b16 %v2494
    %v2520 = vpack.c.b16 %v2506, %v2504
    %v2521 = vpack.c.b16 %v2507, %v2505
    %v2522 = vpack.c.b16 %v2510, %v2508
    %v2523 = vpack.c.b16 %v2511, %v2509
    %v2524 = vpack.c.b16 %v2514, %v2512
    %v2525 = vpack.c.b16 %v2515, %v2513
    %v2526 = vpack.c.b16 %v2518, %v2516
    %v2527 = vpack.c.b16 %v2519, %v2517
    %v2537 = vsel %vm2081, %v2495, 0
    %2539 = vmatprep.subr.bf16.mxu0 %v2521
    %2540 = vmatpush1.bf16.msra.mxu0 %v2520
    %2541 = vmatprep.subr.bf16.mxu0 %v2523
    %2542 = vmatpush1.bf16.msra.mxu0 %v2522
    %2543 = vmatprep.subr.bf16.mxu0 %v2525
    %2544 = vmatpush1.bf16.msra.mxu0 %v2524
    %2545 = vmatprep.subr.bf16.mxu0 %v2527
    %2546 = vmatpush1.bf16.msra.mxu0 %v2526
    %2547 = vmatprep.subr.bf16.mxu0 0
    %2548 = vmatpush1.bf16.msra.mxu0 0
    %2549 = vmatprep.subr.bf16.mxu0 0
    %2550 = vmatpush1.bf16.msra.mxu0 0
    %2551 = vmatprep.subr.bf16.mxu0 0
    %2552 = vmatpush1.bf16.msra.mxu0 0
    %2553 = vmatprep.subr.bf16.mxu0 0
    %2554 = vmatpush1.bf16.msra.mxu0 0
    %2555 = vmatprep.subr.bf16.mxu0 0
    %2556 = vmatpush1.bf16.msra.mxu0 0
    %2557 = vmatprep.subr.bf16.mxu0 0
    %2558 = vmatpush1.bf16.msra.mxu0 0
    %2559 = vmatprep.subr.bf16.mxu0 0
    %2560 = vmatpush1.bf16.msra.mxu0 0
    %2561 = vmatprep.subr.bf16.mxu0 0
    %2562 = vmatpush1.bf16.msra.mxu0 0
    %2563 = vmatprep.subr.bf16.mxu0 0
    %2564 = vmatpush1.bf16.msra.mxu0 0
    %2565 = vmatprep.subr.bf16.mxu0 0
    %2566 = vmatpush1.bf16.msra.mxu0 0
    %2567 = vmatprep.subr.bf16.mxu0 0
    %2568 = vmatpush1.bf16.msra.mxu0 0
    %2569 = vmatprep.subr.bf16.mxu0 0
    %2570 = vmatpush1.bf16.msra.mxu0 0
    %2571 = vmatprep.mubr.bf16.mxu0 0
    %2572 = vmatmul.mubr.bf16.gmra.mrb[0].mxu0 %v2537
    %v2573 = vpop.f32.mrb[0].mxu0
    %v2574 = vadd.f32 0.0, %v2573
    %v2575 = vpop.f32.mrb[0].mxu0
    %v2576 = vadd.f32 0.0, %v2575
    %v2577 = vpop.f32.mrb[0].mxu0
    %v2578 = vpop.f32.mrb[0].mxu0
    %2579 = vdwg.mxu0
    %v2582 = vcombine.low %v2574, %v2576
    %v2584 = vunpack.c.l.s4 1966171168
    %v2585 = vunpack.c.0.s8 %v2584
    %v2586 = vlaneseq
    %v2587 = vshrl.u32 %v2586, 7
    %v2588 = vsub.s32 %v2585, %v2587
    %v2589 = vrot.slane %v2582, %v2588
    %v2591 = vunpack.c.l.s4 1966171168
    %v2592 = vunpack.c.0.s8 %v2591
    %v2593 = vlaneseq
    %v2594 = vshrl.u32 %v2593, 7
    %v2595 = vsub.s32 %v2592, %v2594
    %v2596 = vrot.slane %v2589, %v2595
    %v2598 = vadd.f32 %v2485, %v2596
    %s2599 = scalar_lea.vmem %s7, 320
    %v2600 = vld [vmem:[%s2599] sm:$0xff]
    %v2601 = vld [vmem:[%s2599 + $0x8] sm:$0xff]
    %v2602 = vld [vmem:[%s2599 + $0x10] sm:$0xff]
    %v2603 = vld [vmem:[%s2599 + $0x18] sm:$0xff]
    %v2604 = vld [vmem:[%s2599 + $0x20] sm:$0xff]
    %v2605 = vld [vmem:[%s2599 + $0x28] sm:$0xff]
    %v2606 = vld [vmem:[%s2599 + $0x30] sm:$0xff]
    %v2607 = vld [vmem:[%s2599 + $0x38] sm:$0xff]
    %v2608 = vrot.slane %v2154, 2
    %v2617 = vunpack.c.l.b16 %v2600
    %v2618 = vunpack.c.h.b16 %v2600
    %v2619 = vunpack.c.l.b16 %v2601
    %v2620 = vunpack.c.h.b16 %v2601
    %v2621 = vunpack.c.l.b16 %v2602
    %v2622 = vunpack.c.h.b16 %v2602
    %v2623 = vunpack.c.l.b16 %v2603
    %v2624 = vunpack.c.h.b16 %v2603
    %v2625 = vunpack.c.l.b16 %v2604
    %v2626 = vunpack.c.h.b16 %v2604
    %v2627 = vunpack.c.l.b16 %v2605
    %v2628 = vunpack.c.h.b16 %v2605
    %v2629 = vunpack.c.l.b16 %v2606
    %v2630 = vunpack.c.h.b16 %v2606
    %v2631 = vunpack.c.l.b16 %v2607
    %v2632 = vunpack.c.h.b16 %v2607
    %v2633 = vpack.c.b16 %v2619, %v2617
    %v2634 = vpack.c.b16 %v2620, %v2618
    %v2635 = vpack.c.b16 %v2623, %v2621
    %v2636 = vpack.c.b16 %v2624, %v2622
    %v2637 = vpack.c.b16 %v2627, %v2625
    %v2638 = vpack.c.b16 %v2628, %v2626
    %v2639 = vpack.c.b16 %v2631, %v2629
    %v2640 = vpack.c.b16 %v2632, %v2630
    %v2650 = vsel %vm2081, %v2608, 0
    %2652 = vmatprep.subr.bf16.mxu0 %v2634
    %2653 = vmatpush1.bf16.msra.mxu0 %v2633
    %2654 = vmatprep.subr.bf16.mxu0 %v2636
    %2655 = vmatpush1.bf16.msra.mxu0 %v2635
    %2656 = vmatprep.subr.bf16.mxu0 %v2638
    %2657 = vmatpush1.bf16.msra.mxu0 %v2637
    %2658 = vmatprep.subr.bf16.mxu0 %v2640
    %2659 = vmatpush1.bf16.msra.mxu0 %v2639
    %2660 = vmatprep.subr.bf16.mxu0 0
    %2661 = vmatpush1.bf16.msra.mxu0 0
    %2662 = vmatprep.subr.bf16.mxu0 0
    %2663 = vmatpush1.bf16.msra.mxu0 0
    %2664 = vmatprep.subr.bf16.mxu0 0
    %2665 = vmatpush1.bf16.msra.mxu0 0
    %2666 = vmatprep.subr.bf16.mxu0 0
    %2667 = vmatpush1.bf16.msra.mxu0 0
    %2668 = vmatprep.subr.bf16.mxu0 0
    %2669 = vmatpush1.bf16.msra.mxu0 0
    %2670 = vmatprep.subr.bf16.mxu0 0
    %2671 = vmatpush1.bf16.msra.mxu0 0
    %2672 = vmatprep.subr.bf16.mxu0 0
    %2673 = vmatpush1.bf16.msra.mxu0 0
    %2674 = vmatprep.subr.bf16.mxu0 0
    %2675 = vmatpush1.bf16.msra.mxu0 0
    %2676 = vmatprep.subr.bf16.mxu0 0
    %2677 = vmatpush1.bf16.msra.mxu0 0
    %2678 = vmatprep.subr.bf16.mxu0 0
    %2679 = vmatpush1.bf16.msra.mxu0 0
    %2680 = vmatprep.subr.bf16.mxu0 0
    %2681 = vmatpush1.bf16.msra.mxu0 0
    %2682 = vmatprep.subr.bf16.mxu0 0
    %2683 = vmatpush1.bf16.msra.mxu0 0
    %2684 = vmatprep.mubr.bf16.mxu0 0
    %2685 = vmatmul.mubr.bf16.gmra.mrb[0].mxu0 %v2650
    %v2686 = vpop.f32.mrb[0].mxu0
    %v2687 = vadd.f32 0.0, %v2686
    %v2688 = vpop.f32.mrb[0].mxu0
    %v2689 = vadd.f32 0.0, %v2688
    %v2690 = vpop.f32.mrb[0].mxu0
    %v2691 = vpop.f32.mrb[0].mxu0
    %2692 = vdwg.mxu0
    %v2695 = vcombine.low %v2687, %v2689
    %v2697 = vunpack.c.l.s4 1966171168
    %v2698 = vunpack.c.0.s8 %v2697
    %v2699 = vlaneseq
    %v2700 = vshrl.u32 %v2699, 7
    %v2701 = vsub.s32 %v2698, %v2700
    %v2702 = vrot.slane %v2695, %v2701
    %v2704 = vunpack.c.l.s4 1966171168
    %v2705 = vunpack.c.0.s8 %v2704
    %v2706 = vlaneseq
    %v2707 = vshrl.u32 %v2706, 7
    %v2708 = vsub.s32 %v2705, %v2707
    %v2709 = vrot.slane %v2702, %v2708
    %v2711 = vadd.f32 %v2598, %v2709
    %s2712 = scalar_lea.vmem %s7, 384
    %v2713 = vld [vmem:[%s2712] sm:$0xff]
    %v2714 = vld [vmem:[%s2712 + $0x8] sm:$0xff]
    %v2715 = vld [vmem:[%s2712 + $0x10] sm:$0xff]
    %v2716 = vld [vmem:[%s2712 + $0x18] sm:$0xff]
    %v2717 = vld [vmem:[%s2712 + $0x20] sm:$0xff]
    %v2718 = vld [vmem:[%s2712 + $0x28] sm:$0xff]
    %v2719 = vld [vmem:[%s2712 + $0x30] sm:$0xff]
    %v2720 = vld [vmem:[%s2712 + $0x38] sm:$0xff]
    %v2721 = vrot.slane %v2032, 3
    %v2730 = vunpack.c.l.b16 %v2713
    %v2731 = vunpack.c.h.b16 %v2713
    %v2732 = vunpack.c.l.b16 %v2714
    %v2733 = vunpack.c.h.b16 %v2714
    %v2734 = vunpack.c.l.b16 %v2715
    %v2735 = vunpack.c.h.b16 %v2715
    %v2736 = vunpack.c.l.b16 %v2716
    %v2737 = vunpack.c.h.b16 %v2716
    %v2738 = vunpack.c.l.b16 %v2717
    %v2739 = vunpack.c.h.b16 %v2717
    %v2740 = vunpack.c.l.b16 %v2718
    %v2741 = vunpack.c.h.b16 %v2718
    %v2742 = vunpack.c.l.b16 %v2719
    %v2743 = vunpack.c.h.b16 %v2719
    %v2744 = vunpack.c.l.b16 %v2720
    %v2745 = vunpack.c.h.b16 %v2720
    %v2746 = vpack.c.b16 %v2732, %v2730
    %v2747 = vpack.c.b16 %v2733, %v2731
    %v2748 = vpack.c.b16 %v2736, %v2734
    %v2749 = vpack.c.b16 %v2737, %v2735
    %v2750 = vpack.c.b16 %v2740, %v2738
    %v2751 = vpack.c.b16 %v2741, %v2739
    %v2752 = vpack.c.b16 %v2744, %v2742
    %v2753 = vpack.c.b16 %v2745, %v2743
    %v2763 = vsel %vm2081, %v2721, 0
    %2765 = vmatprep.subr.bf16.mxu0 %v2747
    %2766 = vmatpush1.bf16.msra.mxu0 %v2746
    %2767 = vmatprep.subr.bf16.mxu0 %v2749
    %2768 = vmatpush1.bf16.msra.mxu0 %v2748
    %2769 = vmatprep.subr.bf16.mxu0 %v2751
    %2770 = vmatpush1.bf16.msra.mxu0 %v2750
    %2771 = vmatprep.subr.bf16.mxu0 %v2753
    %2772 = vmatpush1.bf16.msra.mxu0 %v2752
    %2773 = vmatprep.subr.bf16.mxu0 0
    %2774 = vmatpush1.bf16.msra.mxu0 0
    %2775 = vmatprep.subr.bf16.mxu0 0
    %2776 = vmatpush1.bf16.msra.mxu0 0
    %2777 = vmatprep.subr.bf16.mxu0 0
    %2778 = vmatpush1.bf16.msra.mxu0 0
    %2779 = vmatprep.subr.bf16.mxu0 0
    %2780 = vmatpush1.bf16.msra.mxu0 0
    %2781 = vmatprep.subr.bf16.mxu0 0
    %2782 = vmatpush1.bf16.msra.mxu0 0
    %2783 = vmatprep.subr.bf16.mxu0 0
    %2784 = vmatpush1.bf16.msra.mxu0 0
    %2785 = vmatprep.subr.bf16.mxu0 0
    %2786 = vmatpush1.bf16.msra.mxu0 0
    %2787 = vmatprep.subr.bf16.mxu0 0
    %2788 = vmatpush1.bf16.msra.mxu0 0
    %2789 = vmatprep.subr.bf16.mxu0 0
    %2790 = vmatpush1.bf16.msra.mxu0 0
    %2791 = vmatprep.subr.bf16.mxu0 0
    %2792 = vmatpush1.bf16.msra.mxu0 0
    %2793 = vmatprep.subr.bf16.mxu0 0
    %2794 = vmatpush1.bf16.msra.mxu0 0
    %2795 = vmatprep.subr.bf16.mxu0 0
    %2796 = vmatpush1.bf16.msra.mxu0 0
    %2797 = vmatprep.mubr.bf16.mxu0 0
    %2798 = vmatmul.mubr.bf16.gmra.mrb[0].mxu0 %v2763
    %v2799 = vpop.f32.mrb[0].mxu0
    %v2800 = vadd.f32 0.0, %v2799
    %v2801 = vpop.f32.mrb[0].mxu0
    %v2802 = vadd.f32 0.0, %v2801
    %v2803 = vpop.f32.mrb[0].mxu0
    %v2804 = vpop.f32.mrb[0].mxu0
    %2805 = vdwg.mxu0
    %v2808 = vcombine.low %v2800, %v2802
    %v2810 = vunpack.c.l.s4 1966171168
    %v2811 = vunpack.c.0.s8 %v2810
    %v2812 = vlaneseq
    %v2813 = vshrl.u32 %v2812, 7
    %v2814 = vsub.s32 %v2811, %v2813
    %v2815 = vrot.slane %v2808, %v2814
    %v2817 = vunpack.c.l.s4 1966171168
    %v2818 = vunpack.c.0.s8 %v2817
    %v2819 = vlaneseq
    %v2820 = vshrl.u32 %v2819, 7
    %v2821 = vsub.s32 %v2818, %v2820
    %v2822 = vrot.slane %v2815, %v2821
    %v2824 = vadd.f32 %v2711, %v2822
    %s2825 = scalar_lea.vmem %s7, 448
    %v2826 = vld [vmem:[%s2825] sm:$0xff]
    %v2827 = vld [vmem:[%s2825 + $0x8] sm:$0xff]
    %v2828 = vld [vmem:[%s2825 + $0x10] sm:$0xff]
    %v2829 = vld [vmem:[%s2825 + $0x18] sm:$0xff]
    %v2830 = vld [vmem:[%s2825 + $0x20] sm:$0xff]
    %v2831 = vld [vmem:[%s2825 + $0x28] sm:$0xff]
    %v2832 = vld [vmem:[%s2825 + $0x30] sm:$0xff]
    %v2833 = vld [vmem:[%s2825 + $0x38] sm:$0xff]
    %v2834 = vrot.slane %v2154, 3
    %v2843 = vunpack.c.l.b16 %v2826
    %v2844 = vunpack.c.h.b16 %v2826
    %v2845 = vunpack.c.l.b16 %v2827
    %v2846 = vunpack.c.h.b16 %v2827
    %v2847 = vunpack.c.l.b16 %v2828
    %v2848 = vunpack.c.h.b16 %v2828
    %v2849 = vunpack.c.l.b16 %v2829
    %v2850 = vunpack.c.h.b16 %v2829
    %v2851 = vunpack.c.l.b16 %v2830
    %v2852 = vunpack.c.h.b16 %v2830
    %v2853 = vunpack.c.l.b16 %v2831
    %v2854 = vunpack.c.h.b16 %v2831
    %v2855 = vunpack.c.l.b16 %v2832
    %v2856 = vunpack.c.h.b16 %v2832
    %v2857 = vunpack.c.l.b16 %v2833
    %v2858 = vunpack.c.h.b16 %v2833
    %v2859 = vpack.c.b16 %v2845, %v2843
    %v2860 = vpack.c.b16 %v2846, %v2844
    %v2861 = vpack.c.b16 %v2849, %v2847
    %v2862 = vpack.c.b16 %v2850, %v2848
    %v2863 = vpack.c.b16 %v2853, %v2851
    %v2864 = vpack.c.b16 %v2854, %v2852
    %v2865 = vpack.c.b16 %v2857, %v2855
    %v2866 = vpack.c.b16 %v2858, %v2856
    %v2876 = vsel %vm2081, %v2834, 0
    %2878 = vmatprep.subr.bf16.mxu0 %v2860
    %2879 = vmatpush1.bf16.msra.mxu0 %v2859
    %2880 = vmatprep.subr.bf16.mxu0 %v2862
    %2881 = vmatpush1.bf16.msra.mxu0 %v2861
    %2882 = vmatprep.subr.bf16.mxu0 %v2864
    %2883 = vmatpush1.bf16.msra.mxu0 %v2863
    %2884 = vmatprep.subr.bf16.mxu0 %v2866
    %2885 = vmatpush1.bf16.msra.mxu0 %v2865
    %2886 = vmatprep.subr.bf16.mxu0 0
    %2887 = vmatpush1.bf16.msra.mxu0 0
    %2888 = vmatprep.subr.bf16.mxu0 0
    %2889 = vmatpush1.bf16.msra.mxu0 0
    %2890 = vmatprep.subr.bf16.mxu0 0
    %2891 = vmatpush1.bf16.msra.mxu0 0
    %2892 = vmatprep.subr.bf16.mxu0 0
    %2893 = vmatpush1.bf16.msra.mxu0 0
    %2894 = vmatprep.subr.bf16.mxu0 0
    %2895 = vmatpush1.bf16.msra.mxu0 0
    %2896 = vmatprep.subr.bf16.mxu0 0
    %2897 = vmatpush1.bf16.msra.mxu0 0
    %2898 = vmatprep.subr.bf16.mxu0 0
    %2899 = vmatpush1.bf16.msra.mxu0 0
    %2900 = vmatprep.subr.bf16.mxu0 0
    %2901 = vmatpush1.bf16.msra.mxu0 0
    %2902 = vmatprep.subr.bf16.mxu0 0
    %2903 = vmatpush1.bf16.msra.mxu0 0
    %2904 = vmatprep.subr.bf16.mxu0 0
    %2905 = vmatpush1.bf16.msra.mxu0 0
    %2906 = vmatprep.subr.bf16.mxu0 0
    %2907 = vmatpush1.bf16.msra.mxu0 0
    %2908 = vmatprep.subr.bf16.mxu0 0
    %2909 = vmatpush1.bf16.msra.mxu0 0
    %2910 = vmatprep.mubr.bf16.mxu0 0
    %2911 = vmatmul.mubr.bf16.gmra.mrb[0].mxu0 %v2876
    %v2912 = vpop.f32.mrb[0].mxu0
    %v2913 = vadd.f32 0.0, %v2912
    %v2914 = vpop.f32.mrb[0].mxu0
    %v2915 = vadd.f32 0.0, %v2914
    %v2916 = vpop.f32.mrb[0].mxu0
    %v2917 = vpop.f32.mrb[0].mxu0
    %2918 = vdwg.mxu0
    %v2921 = vcombine.low %v2913, %v2915
    %v2923 = vunpack.c.l.s4 1966171168
    %v2924 = vunpack.c.0.s8 %v2923
    %v2925 = vlaneseq
    %v2926 = vshrl.u32 %v2925, 7
    %v2927 = vsub.s32 %v2924, %v2926
    %v2928 = vrot.slane %v2921, %v2927
    %v2930 = vunpack.c.l.s4 1966171168
    %v2931 = vunpack.c.0.s8 %v2930
    %v2932 = vlaneseq
    %v2933 = vshrl.u32 %v2932, 7
    %v2934 = vsub.s32 %v2931, %v2933
    %v2935 = vrot.slane %v2928, %v2934
    %v2937 = vadd.f32 %v2824, %v2935
    %s2938 = scalar_lea.vmem %s0, 256
    %v2939 = vld [vmem:[%s2938] sm:$0xf]
    %v2940 = vld [vmem:[%s2938 + $0x4] sm:$0xf]
    %v2941 = vld [vmem:[%s2938 + $0x8] sm:$0xf]
    %v2942 = vld [vmem:[%s2938 + $0xc] sm:$0xf]
    %v2943 = vld [vmem:[%s2938 + $0x10] sm:$0xf]
    %v2944 = vld [vmem:[%s2938 + $0x14] sm:$0xf]
    %v2945 = vld [vmem:[%s2938 + $0x18] sm:$0xf]
    %v2946 = vld [vmem:[%s2938 + $0x1c] sm:$0xf]
    %v2947 = vld [vmem:[%s2938 + $0x20] sm:$0xf]
    %v2948 = vld [vmem:[%s2938 + $0x24] sm:$0xf]
    %v2949 = vld [vmem:[%s2938 + $0x28] sm:$0xf]
    %v2950 = vld [vmem:[%s2938 + $0x2c] sm:$0xf]
    %v2951 = vld [vmem:[%s2938 + $0x30] sm:$0xf]
    %v2952 = vld [vmem:[%s2938 + $0x34] sm:$0xf]
    %v2953 = vld [vmem:[%s2938 + $0x38] sm:$0xf]
    %v2954 = vld [vmem:[%s2938 + $0x3c] sm:$0xf]
    %v2955 = vld [vmem:[%s2938 + $0x40] sm:$0xf]
    %v2956 = vld [vmem:[%s2938 + $0x44] sm:$0xf]
    %v2957 = vld [vmem:[%s2938 + $0x48] sm:$0xf]
    %v2958 = vld [vmem:[%s2938 + $0x4c] sm:$0xf]
    %v2959 = vld [vmem:[%s2938 + $0x50] sm:$0xf]
    %v2960 = vld [vmem:[%s2938 + $0x54] sm:$0xf]
    %v2961 = vld [vmem:[%s2938 + $0x58] sm:$0xf]
    %v2962 = vld [vmem:[%s2938 + $0x5c] sm:$0xf]
    %v2963 = vld [vmem:[%s2938 + $0x60] sm:$0xf]
    %v2964 = vld [vmem:[%s2938 + $0x64] sm:$0xf]
    %v2965 = vld [vmem:[%s2938 + $0x68] sm:$0xf]
    %v2966 = vld [vmem:[%s2938 + $0x6c] sm:$0xf]
    %v2967 = vld [vmem:[%s2938 + $0x70] sm:$0xf]
    %v2968 = vld [vmem:[%s2938 + $0x74] sm:$0xf]
    %v2969 = vld [vmem:[%s2938 + $0x78] sm:$0xf]
    %v2970 = vld [vmem:[%s2938 + $0x7c] sm:$0xf]
    %v2971 = vld [vmem:[%s2938 + $0x80] sm:$0xf]
    %v2972 = vld [vmem:[%s2938 + $0x84] sm:$0xf]
    %v2973 = vld [vmem:[%s2938 + $0x88] sm:$0xf]
    %v2974 = vld [vmem:[%s2938 + $0x8c] sm:$0xf]
    %v2975 = vld [vmem:[%s2938 + $0x90] sm:$0xf]
    %v2976 = vld [vmem:[%s2938 + $0x94] sm:$0xf]
    %v2977 = vld [vmem:[%s2938 + $0x98] sm:$0xf]
    %v2978 = vld [vmem:[%s2938 + $0x9c] sm:$0xf]
    %v2979 = vld [vmem:[%s2938 + $0xa0] sm:$0xf]
    %v2980 = vld [vmem:[%s2938 + $0xa4] sm:$0xf]
    %v2981 = vld [vmem:[%s2938 + $0xa8] sm:$0xf]
    %v2982 = vld [vmem:[%s2938 + $0xac] sm:$0xf]
    %v2983 = vld [vmem:[%s2938 + $0xb0] sm:$0xf]
    %v2984 = vld [vmem:[%s2938 + $0xb4] sm:$0xf]
    %v2985 = vld [vmem:[%s2938 + $0xb8] sm:$0xf]
    %v2986 = vld [vmem:[%s2938 + $0xbc] sm:$0xf]
    %v2987 = vld [vmem:[%s2938 + $0xc0] sm:$0xf]
    %v2988 = vld [vmem:[%s2938 + $0xc4] sm:$0xf]
    %v2989 = vld [vmem:[%s2938 + $0xc8] sm:$0xf]
    %v2990 = vld [vmem:[%s2938 + $0xcc] sm:$0xf]
    %v2991 = vld [vmem:[%s2938 + $0xd0] sm:$0xf]
    %v2992 = vld [vmem:[%s2938 + $0xd4] sm:$0xf]
    %v2993 = vld [vmem:[%s2938 + $0xd8] sm:$0xf]
    %v2994 = vld [vmem:[%s2938 + $0xdc] sm:$0xf]
    %v2995 = vld [vmem:[%s2938 + $0xe0] sm:$0xf]
    %v2996 = vld [vmem:[%s2938 + $0xe4] sm:$0xf]
    %v2997 = vld [vmem:[%s2938 + $0xe8] sm:$0xf]
    %v2998 = vld [vmem:[%s2938 + $0xec] sm:$0xf]
    %v2999 = vld [vmem:[%s2938 + $0xf0] sm:$0xf]
    %v3000 = vld [vmem:[%s2938 + $0xf4] sm:$0xf]
    %v3001 = vld [vmem:[%s2938 + $0xf8] sm:$0xf]
    %v3002 = vld [vmem:[%s2938 + $0xfc] sm:$0xf]
    %s3003 = scalar_lea.vmem %s1, 12
    %v3004 = vld [vmem:[%s3003] sm:$0xf]
    %v3005 = vld [vmem:[%s3003 + $0x4] sm:$0xf]
    %v3006 = vld [vmem:[%s3003 + $0x8] sm:$0xf]
    %s3007 = scalar_lea.vmem %s2, 1
    %v3008 = vld [vmem:[%s3007] sm:$0x1]
    %v3010 = vlaneseq
    %v3011 = vshrl.u32 %v3010, 7
    %v3012 = vsub.s32 0, %v3011
    %v3013 = vrot.slane %v3008, %v3012
    %v3079 = vunpack.c.l.b16 %v2939
    %v3080 = vunpack.c.l.b16 %v2940
    %v3081 = vunpack.c.l.b16 %v2941
    %v3082 = vunpack.c.l.b16 %v2942
    %v3083 = vunpack.c.l.b16 %v2943
    %v3084 = vunpack.c.l.b16 %v2944
    %v3085 = vunpack.c.l.b16 %v2945
    %v3086 = vunpack.c.l.b16 %v2946
    %v3087 = vunpack.c.l.b16 %v2947
    %v3088 = vunpack.c.l.b16 %v2948
    %v3089 = vunpack.c.l.b16 %v2949
    %v3090 = vunpack.c.l.b16 %v2950
    %v3091 = vunpack.c.l.b16 %v2951
    %v3092 = vunpack.c.l.b16 %v2952
    %v3093 = vunpack.c.l.b16 %v2953
    %v3094 = vunpack.c.l.b16 %v2954
    %v3095 = vunpack.c.l.b16 %v2955
    %v3096 = vunpack.c.l.b16 %v2956
    %v3097 = vunpack.c.l.b16 %v2957
    %v3098 = vunpack.c.l.b16 %v2958
    %v3099 = vunpack.c.l.b16 %v2959
    %v3100 = vunpack.c.l.b16 %v2960
    %v3101 = vunpack.c.l.b16 %v2961
    %v3102 = vunpack.c.l.b16 %v2962
    %v3103 = vunpack.c.l.b16 %v2963
    %v3104 = vunpack.c.l.b16 %v2964
    %v3105 = vunpack.c.l.b16 %v2965
    %v3106 = vunpack.c.l.b16 %v2966
    %v3107 = vunpack.c.l.b16 %v2967
    %v3108 = vunpack.c.l.b16 %v2968
    %v3109 = vunpack.c.l.b16 %v2969
    %v3110 = vunpack.c.l.b16 %v2970
    %v3111 = vunpack.c.l.b16 %v2971
    %v3112 = vunpack.c.l.b16 %v2972
    %v3113 = vunpack.c.l.b16 %v2973
    %v3114 = vunpack.c.l.b16 %v2974
    %v3115 = vunpack.c.l.b16 %v2975
    %v3116 = vunpack.c.l.b16 %v2976
    %v3117 = vunpack.c.l.b16 %v2977
    %v3118 = vunpack.c.l.b16 %v2978
    %v3119 = vunpack.c.l.b16 %v2979
    %v3120 = vunpack.c.l.b16 %v2980
    %v3121 = vunpack.c.l.b16 %v2981
    %v3122 = vunpack.c.l.b16 %v2982
    %v3123 = vunpack.c.l.b16 %v2983
    %v3124 = vunpack.c.l.b16 %v2984
    %v3125 = vunpack.c.l.b16 %v2985
    %v3126 = vunpack.c.l.b16 %v2986
    %v3127 = vunpack.c.l.b16 %v2987
    %v3128 = vunpack.c.l.b16 %v2988
    %v3129 = vunpack.c.l.b16 %v2989
    %v3130 = vunpack.c.l.b16 %v2990
    %v3131 = vunpack.c.l.b16 %v2991
    %v3132 = vunpack.c.l.b16 %v2992
    %v3133 = vunpack.c.l.b16 %v2993
    %v3134 = vunpack.c.l.b16 %v2994
    %v3135 = vunpack.c.l.b16 %v2995
    %v3136 = vunpack.c.l.b16 %v2996
    %v3137 = vunpack.c.l.b16 %v2997
    %v3138 = vunpack.c.l.b16 %v2998
    %v3139 = vunpack.c.l.b16 %v2999
    %v3140 = vunpack.c.l.b16 %v3000
    %v3141 = vunpack.c.l.b16 %v3001
    %v3142 = vunpack.c.l.b16 %v3002
    %v3143 = vpack.c.b16 %v3080, %v3079
    %v3144 = vpack.c.b16 %v3082, %v3081
    %v3145 = vpack.c.b16 %v3084, %v3083
    %v3146 = vpack.c.b16 %v3086, %v3085
    %v3147 = vpack.c.b16 %v3088, %v3087
    %v3148 = vpack.c.b16 %v3090, %v3089
    %v3149 = vpack.c.b16 %v3092, %v3091
    %v3150 = vpack.c.b16 %v3094, %v3093
    %v3151 = vpack.c.b16 %v3096, %v3095
    %v3152 = vpack.c.b16 %v3098, %v3097
    %v3153 = vpack.c.b16 %v3100, %v3099
    %v3154 = vpack.c.b16 %v3102, %v3101
    %v3155 = vpack.c.b16 %v3104, %v3103
    %v3156 = vpack.c.b16 %v3106, %v3105
    %v3157 = vpack.c.b16 %v3108, %v3107
    %v3158 = vpack.c.b16 %v3110, %v3109
    %v3159 = vpack.c.b16 %v3112, %v3111
    %v3160 = vpack.c.b16 %v3114, %v3113
    %v3161 = vpack.c.b16 %v3116, %v3115
    %v3162 = vpack.c.b16 %v3118, %v3117
    %v3163 = vpack.c.b16 %v3120, %v3119
    %v3164 = vpack.c.b16 %v3122, %v3121
    %v3165 = vpack.c.b16 %v3124, %v3123
    %v3166 = vpack.c.b16 %v3126, %v3125
    %v3167 = vpack.c.b16 %v3128, %v3127
    %v3168 = vpack.c.b16 %v3130, %v3129
    %v3169 = vpack.c.b16 %v3132, %v3131
    %v3170 = vpack.c.b16 %v3134, %v3133
    %v3171 = vpack.c.b16 %v3136, %v3135
    %v3172 = vpack.c.b16 %v3138, %v3137
    %v3173 = vpack.c.b16 %v3140, %v3139
    %v3174 = vpack.c.b16 %v3142, %v3141
    %v3178 = vunpack.c.l.b16 %v3004
    %v3179 = vunpack.c.l.b16 %v3005
    %v3180 = vunpack.c.l.b16 %v3006
    %v3181 = vpack.c.b16 %v3179, %v3178
    %v3182 = vpack.c.b16 %v3180, %v3180
    %v3185 = vsel %vm284, %v3143, 0
    %v3188 = vsel %vm284, %v3144, 0
    %v3191 = vsel %vm284, %v3145, 0
    %v3194 = vsel %vm284, %v3146, 0
    %v3197 = vsel %vm284, %v3147, 0
    %v3200 = vsel %vm284, %v3148, 0
    %v3203 = vsel %vm284, %v3149, 0
    %v3206 = vsel %vm284, %v3150, 0
    %v3209 = vsel %vm284, %v3151, 0
    %v3212 = vsel %vm284, %v3152, 0
    %v3215 = vsel %vm284, %v3153, 0
    %v3218 = vsel %vm284, %v3154, 0
    %v3221 = vsel %vm284, %v3155, 0
    %v3224 = vsel %vm284, %v3156, 0
    %v3227 = vsel %vm284, %v3157, 0
    %v3230 = vsel %vm284, %v3158, 0
    %v3233 = vsel %vm284, %v3159, 0
    %v3236 = vsel %vm284, %v3160, 0
    %v3239 = vsel %vm284, %v3161, 0
    %v3242 = vsel %vm284, %v3162, 0
    %v3245 = vsel %vm284, %v3163, 0
    %v3248 = vsel %vm284, %v3164, 0
    %v3251 = vsel %vm284, %v3165, 0
    %v3254 = vsel %vm284, %v3166, 0
    %v3257 = vsel %vm284, %v3167, 0
    %v3260 = vsel %vm284, %v3168, 0
    %v3263 = vsel %vm284, %v3169, 0
    %v3266 = vsel %vm284, %v3170, 0
    %v3269 = vsel %vm284, %v3171, 0
    %v3272 = vsel %vm284, %v3172, 0
    %v3275 = vsel %vm284, %v3173, 0
    %v3278 = vsel %vm284, %v3174, 0
    %v3281 = vsel %vm381, %v3182, 0
    %3283 = vmatprep.subr.bf16.mxu0 0
    %3284 = vmatpush1.bf16.msra.mxu0 %v3181
    %3285 = vmatprep.subr.bf16.mxu0 0
    %3286 = vmatpush1.bf16.msra.mxu0 %v3281
    %3287 = vmatprep.subr.bf16.mxu0 0
    %3288 = vmatpush1.bf16.msra.mxu0 0
    %3289 = vmatprep.subr.bf16.mxu0 0
    %3290 = vmatpush1.bf16.msra.mxu0 0
    %3291 = vmatprep.subr.bf16.mxu0 0
    %3292 = vmatpush1.bf16.msra.mxu0 0
    %3293 = vmatprep.subr.bf16.mxu0 0
    %3294 = vmatpush1.bf16.msra.mxu0 0
    %3295 = vmatprep.subr.bf16.mxu0 0
    %3296 = vmatpush1.bf16.msra.mxu0 0
    %3297 = vmatprep.subr.bf16.mxu0 0
    %3298 = vmatpush1.bf16.msra.mxu0 0
    %3299 = vmatprep.subr.bf16.mxu0 0
    %3300 = vmatpush1.bf16.msra.mxu0 0
    %3301 = vmatprep.subr.bf16.mxu0 0
    %3302 = vmatpush1.bf16.msra.mxu0 0
    %3303 = vmatprep.subr.bf16.mxu0 0
    %3304 = vmatpush1.bf16.msra.mxu0 0
    %3305 = vmatprep.subr.bf16.mxu0 0
    %3306 = vmatpush1.bf16.msra.mxu0 0
    %3307 = vmatprep.subr.bf16.mxu0 0
    %3308 = vmatpush1.bf16.msra.mxu0 0
    %3309 = vmatprep.subr.bf16.mxu0 0
    %3310 = vmatpush1.bf16.msra.mxu0 0
    %3311 = vmatprep.subr.bf16.mxu0 0
    %3312 = vmatpush1.bf16.msra.mxu0 0
    %3313 = vmatprep.subr.bf16.mxu0 0
    %3314 = vmatpush1.bf16.msra.mxu0 0
    %3315 = vmatprep.mubr.bf16.mxu0 0
    %3316 = vmatmul.mubr.bf16.gmra.mrb[0].mxu0 %v3185
    %v3317 = vpop.f32.mrb[0].mxu0
    %v3318 = vadd.f32 %v3013, %v3317
    %v3319 = vpop.f32.mrb[0].mxu0
    %v3320 = vpop.f32.mrb[0].mxu0
    %v3321 = vadd.f32 %v3013, %v3320
    %v3322 = vpop.f32.mrb[0].mxu0
    %3323 = vmatprep.mubr.bf16.mxu0 0
    %3324 = vmatmul.mubr.bf16.gmra.mrb[0].mxu0 %v3188
    %v3325 = vpop.f32.mrb[0].mxu0
    %v3326 = vadd.f32 %v3013, %v3325
    %v3327 = vpop.f32.mrb[0].mxu0
    %v3328 = vpop.f32.mrb[0].mxu0
    %v3329 = vadd.f32 %v3013, %v3328
    %v3330 = vpop.f32.mrb[0].mxu0
    %3331 = vmatprep.mubr.bf16.mxu0 0
    %3332 = vmatmul.mubr.bf16.gmra.mrb[0].mxu0 %v3191
    %v3333 = vpop.f32.mrb[0].mxu0
    %v3334 = vadd.f32 %v3013, %v3333
    %v3335 = vpop.f32.mrb[0].mxu0
    %v3336 = vpop.f32.mrb[0].mxu0
    %v3337 = vadd.f32 %v3013, %v3336
    %v3338 = vpop.f32.mrb[0].mxu0
    %3339 = vmatprep.mubr.bf16.mxu0 0
    %3340 = vmatmul.mubr.bf16.gmra.mrb[0].mxu0 %v3194
    %v3341 = vpop.f32.mrb[0].mxu0
    %v3342 = vadd.f32 %v3013, %v3341
    %v3343 = vpop.f32.mrb[0].mxu0
    %v3344 = vpop.f32.mrb[0].mxu0
    %v3345 = vadd.f32 %v3013, %v3344
    %v3346 = vpop.f32.mrb[0].mxu0
    %3347 = vmatprep.mubr.bf16.mxu0 0
    %3348 = vmatmul.mubr.bf16.gmra.mrb[0].mxu0 %v3197
    %v3349 = vpop.f32.mrb[0].mxu0
    %v3350 = vadd.f32 %v3013, %v3349
    %v3351 = vpop.f32.mrb[0].mxu0
    %v3352 = vpop.f32.mrb[0].mxu0
    %v3353 = vadd.f32 %v3013, %v3352
    %v3354 = vpop.f32.mrb[0].mxu0
    %3355 = vmatprep.mubr.bf16.mxu0 0
    %3356 = vmatmul.mubr.bf16.gmra.mrb[0].mxu0 %v3200
    %v3357 = vpop.f32.mrb[0].mxu0
    %v3358 = vadd.f32 %v3013, %v3357
    %v3359 = vpop.f32.mrb[0].mxu0
    %v3360 = vpop.f32.mrb[0].mxu0
    %v3361 = vadd.f32 %v3013, %v3360
    %v3362 = vpop.f32.mrb[0].mxu0
    %3363 = vmatprep.mubr.bf16.mxu0 0
    %3364 = vmatmul.mubr.bf16.gmra.mrb[0].mxu0 %v3203
    %v3365 = vpop.f32.mrb[0].mxu0
    %v3366 = vadd.f32 %v3013, %v3365
    %v3367 = vpop.f32.mrb[0].mxu0
    %v3368 = vpop.f32.mrb[0].mxu0
    %v3369 = vadd.f32 %v3013, %v3368
    %v3370 = vpop.f32.mrb[0].mxu0
    %3371 = vmatprep.mubr.bf16.mxu0 0
    %3372 = vmatmul.mubr.bf16.gmra.mrb[0].mxu0 %v3206
    %v3373 = vpop.f32.mrb[0].mxu0
    %v3374 = vadd.f32 %v3013, %v3373
    %v3375 = vpop.f32.mrb[0].mxu0
    %v3376 = vpop.f32.mrb[0].mxu0
    %v3377 = vadd.f32 %v3013, %v3376
    %v3378 = vpop.f32.mrb[0].mxu0
    %3379 = vmatprep.mubr.bf16.mxu0 0
    %3380 = vmatmul.mubr.bf16.gmra.mrb[0].mxu0 %v3209
    %v3381 = vpop.f32.mrb[0].mxu0
    %v3382 = vadd.f32 %v3013, %v3381
    %v3383 = vpop.f32.mrb[0].mxu0
    %v3384 = vpop.f32.mrb[0].mxu0
    %v3385 = vadd.f32 %v3013, %v3384
    %v3386 = vpop.f32.mrb[0].mxu0
    %3387 = vmatprep.mubr.bf16.mxu0 0
    %3388 = vmatmul.mubr.bf16.gmra.mrb[0].mxu0 %v3212
    %v3389 = vpop.f32.mrb[0].mxu0
    %v3390 = vadd.f32 %v3013, %v3389
    %v3391 = vpop.f32.mrb[0].mxu0
    %v3392 = vpop.f32.mrb[0].mxu0
    %v3393 = vadd.f32 %v3013, %v3392
    %v3394 = vpop.f32.mrb[0].mxu0
    %3395 = vmatprep.mubr.bf16.mxu0 0
    %3396 = vmatmul.mubr.bf16.gmra.mrb[0].mxu0 %v3215
    %v3397 = vpop.f32.mrb[0].mxu0
    %v3398 = vadd.f32 %v3013, %v3397
    %v3399 = vpop.f32.mrb[0].mxu0
    %v3400 = vpop.f32.mrb[0].mxu0
    %v3401 = vadd.f32 %v3013, %v3400
    %v3402 = vpop.f32.mrb[0].mxu0
    %3403 = vmatprep.mubr.bf16.mxu0 0
    %3404 = vmatmul.mubr.bf16.gmra.mrb[0].mxu0 %v3218
    %v3405 = vpop.f32.mrb[0].mxu0
    %v3406 = vadd.f32 %v3013, %v3405
    %v3407 = vpop.f32.mrb[0].mxu0
    %v3408 = vpop.f32.mrb[0].mxu0
    %v3409 = vadd.f32 %v3013, %v3408
    %v3410 = vpop.f32.mrb[0].mxu0
    %3411 = vmatprep.mubr.bf16.mxu0 0
    %3412 = vmatmul.mubr.bf16.gmra.mrb[0].mxu0 %v3221
    %v3413 = vpop.f32.mrb[0].mxu0
    %v3414 = vadd.f32 %v3013, %v3413
    %v3415 = vpop.f32.mrb[0].mxu0
    %v3416 = vpop.f32.mrb[0].mxu0
    %v3417 = vadd.f32 %v3013, %v3416
    %v3418 = vpop.f32.mrb[0].mxu0
    %3419 = vmatprep.mubr.bf16.mxu0 0
    %3420 = vmatmul.mubr.bf16.gmra.mrb[0].mxu0 %v3224
    %v3421 = vpop.f32.mrb[0].mxu0
    %v3422 = vadd.f32 %v3013, %v3421
    %v3423 = vpop.f32.mrb[0].mxu0
    %v3424 = vpop.f32.mrb[0].mxu0
    %v3425 = vadd.f32 %v3013, %v3424
    %v3426 = vpop.f32.mrb[0].mxu0
    %3427 = vmatprep.mubr.bf16.mxu0 0
    %3428 = vmatmul.mubr.bf16.gmra.mrb[0].mxu0 %v3227
    %v3429 = vpop.f32.mrb[0].mxu0
    %v3430 = vadd.f32 %v3013, %v3429
    %v3431 = vpop.f32.mrb[0].mxu0
    %v3432 = vpop.f32.mrb[0].mxu0
    %v3433 = vadd.f32 %v3013, %v3432
    %v3434 = vpop.f32.mrb[0].mxu0
    %3435 = vmatprep.mubr.bf16.mxu0 0
    %3436 = vmatmul.mubr.bf16.gmra.mrb[0].mxu0 %v3230
    %v3437 = vpop.f32.mrb[0].mxu0
    %v3438 = vadd.f32 %v3013, %v3437
    %v3439 = vpop.f32.mrb[0].mxu0
    %v3440 = vpop.f32.mrb[0].mxu0
    %v3441 = vadd.f32 %v3013, %v3440
    %v3442 = vpop.f32.mrb[0].mxu0
    %3443 = vmatprep.mubr.bf16.mxu0 0
    %3444 = vmatmul.mubr.bf16.gmra.mrb[0].mxu0 %v3233
    %v3445 = vpop.f32.mrb[0].mxu0
    %v3446 = vadd.f32 %v3013, %v3445
    %v3447 = vpop.f32.mrb[0].mxu0
    %v3448 = vpop.f32.mrb[0].mxu0
    %v3449 = vadd.f32 %v3013, %v3448
    %v3450 = vpop.f32.mrb[0].mxu0
    %3451 = vmatprep.mubr.bf16.mxu0 0
    %3452 = vmatmul.mubr.bf16.gmra.mrb[0].mxu0 %v3236
    %v3453 = vpop.f32.mrb[0].mxu0
    %v3454 = vadd.f32 %v3013, %v3453
    %v3455 = vpop.f32.mrb[0].mxu0
    %v3456 = vpop.f32.mrb[0].mxu0
    %v3457 = vadd.f32 %v3013, %v3456
    %v3458 = vpop.f32.mrb[0].mxu0
    %3459 = vmatprep.mubr.bf16.mxu0 0
    %3460 = vmatmul.mubr.bf16.gmra.mrb[0].mxu0 %v3239
    %v3461 = vpop.f32.mrb[0].mxu0
    %v3462 = vadd.f32 %v3013, %v3461
    %v3463 = vpop.f32.mrb[0].mxu0
    %v3464 = vpop.f32.mrb[0].mxu0
    %v3465 = vadd.f32 %v3013, %v3464
    %v3466 = vpop.f32.mrb[0].mxu0
    %3467 = vmatprep.mubr.bf16.mxu0 0
    %3468 = vmatmul.mubr.bf16.gmra.mrb[0].mxu0 %v3242
    %v3469 = vpop.f32.mrb[0].mxu0
    %v3470 = vadd.f32 %v3013, %v3469
    %v3471 = vpop.f32.mrb[0].mxu0
    %v3472 = vpop.f32.mrb[0].mxu0
    %v3473 = vadd.f32 %v3013, %v3472
    %v3474 = vpop.f32.mrb[0].mxu0
    %3475 = vmatprep.mubr.bf16.mxu0 0
    %3476 = vmatmul.mubr.bf16.gmra.mrb[0].mxu0 %v3245
    %v3477 = vpop.f32.mrb[0].mxu0
    %v3478 = vadd.f32 %v3013, %v3477
    %v3479 = vpop.f32.mrb[0].mxu0
    %v3480 = vpop.f32.mrb[0].mxu0
    %v3481 = vadd.f32 %v3013, %v3480
    %v3482 = vpop.f32.mrb[0].mxu0
    %3483 = vmatprep.mubr.bf16.mxu0 0
    %3484 = vmatmul.mubr.bf16.gmra.mrb[0].mxu0 %v3248
    %v3485 = vpop.f32.mrb[0].mxu0
    %v3486 = vadd.f32 %v3013, %v3485
    %v3487 = vpop.f32.mrb[0].mxu0
    %v3488 = vpop.f32.mrb[0].mxu0
    %v3489 = vadd.f32 %v3013, %v3488
    %v3490 = vpop.f32.mrb[0].mxu0
    %3491 = vmatprep.mubr.bf16.mxu0 0
    %3492 = vmatmul.mubr.bf16.gmra.mrb[0].mxu0 %v3251
    %v3493 = vpop.f32.mrb[0].mxu0
    %v3494 = vadd.f32 %v3013, %v3493
    %v3495 = vpop.f32.mrb[0].mxu0
    %v3496 = vpop.f32.mrb[0].mxu0
    %v3497 = vadd.f32 %v3013, %v3496
    %v3498 = vpop.f32.mrb[0].mxu0
    %3499 = vmatprep.mubr.bf16.mxu0 0
    %3500 = vmatmul.mubr.bf16.gmra.mrb[0].mxu0 %v3254
    %v3501 = vpop.f32.mrb[0].mxu0
    %v3502 = vadd.f32 %v3013, %v3501
    %v3503 = vpop.f32.mrb[0].mxu0
    %v3504 = vpop.f32.mrb[0].mxu0
    %v3505 = vadd.f32 %v3013, %v3504
    %v3506 = vpop.f32.mrb[0].mxu0
    %3507 = vmatprep.mubr.bf16.mxu0 0
    %3508 = vmatmul.mubr.bf16.gmra.mrb[0].mxu0 %v3257
    %v3509 = vpop.f32.mrb[0].mxu0
    %v3510 = vadd.f32 %v3013, %v3509
    %v3511 = vpop.f32.mrb[0].mxu0
    %v3512 = vpop.f32.mrb[0].mxu0
    %v3513 = vadd.f32 %v3013, %v3512
    %v3514 = vpop.f32.mrb[0].mxu0
    %3515 = vmatprep.mubr.bf16.mxu0 0
    %3516 = vmatmul.mubr.bf16.gmra.mrb[0].mxu0 %v3260
    %v3517 = vpop.f32.mrb[0].mxu0
    %v3518 = vadd.f32 %v3013, %v3517
    %v3519 = vpop.f32.mrb[0].mxu0
    %v3520 = vpop.f32.mrb[0].mxu0
    %v3521 = vadd.f32 %v3013, %v3520
    %v3522 = vpop.f32.mrb[0].mxu0
    %3523 = vmatprep.mubr.bf16.mxu0 0
    %3524 = vmatmul.mubr.bf16.gmra.mrb[0].mxu0 %v3263
    %v3525 = vpop.f32.mrb[0].mxu0
    %v3526 = vadd.f32 %v3013, %v3525
    %v3527 = vpop.f32.mrb[0].mxu0
    %v3528 = vpop.f32.mrb[0].mxu0
    %v3529 = vadd.f32 %v3013, %v3528
    %v3530 = vpop.f32.mrb[0].mxu0
    %3531 = vmatprep.mubr.bf16.mxu0 0
    %3532 = vmatmul.mubr.bf16.gmra.mrb[0].mxu0 %v3266
    %v3533 = vpop.f32.mrb[0].mxu0
    %v3534 = vadd.f32 %v3013, %v3533
    %v3535 = vpop.f32.mrb[0].mxu0
    %v3536 = vpop.f32.mrb[0].mxu0
    %v3537 = vadd.f32 %v3013, %v3536
    %v3538 = vpop.f32.mrb[0].mxu0
    %3539 = vmatprep.mubr.bf16.mxu0 0
    %3540 = vmatmul.mubr.bf16.gmra.mrb[0].mxu0 %v3269
    %v3541 = vpop.f32.mrb[0].mxu0
    %v3542 = vadd.f32 %v3013, %v3541
    %v3543 = vpop.f32.mrb[0].mxu0
    %v3544 = vpop.f32.mrb[0].mxu0
    %v3545 = vadd.f32 %v3013, %v3544
    %v3546 = vpop.f32.mrb[0].mxu0
    %3547 = vmatprep.mubr.bf16.mxu0 0
    %3548 = vmatmul.mubr.bf16.gmra.mrb[0].mxu0 %v3272
    %v3549 = vpop.f32.mrb[0].mxu0
    %v3550 = vadd.f32 %v3013, %v3549
    %v3551 = vpop.f32.mrb[0].mxu0
    %v3552 = vpop.f32.mrb[0].mxu0
    %v3553 = vadd.f32 %v3013, %v3552
    %v3554 = vpop.f32.mrb[0].mxu0
    %3555 = vmatprep.mubr.bf16.mxu0 0
    %3556 = vmatmul.mubr.bf16.gmra.mrb[0].mxu0 %v3275
    %v3557 = vpop.f32.mrb[0].mxu0
    %v3558 = vadd.f32 %v3013, %v3557
    %v3559 = vpop.f32.mrb[0].mxu0
    %v3560 = vpop.f32.mrb[0].mxu0
    %v3561 = vadd.f32 %v3013, %v3560
    %v3562 = vpop.f32.mrb[0].mxu0
    %3563 = vmatprep.mubr.bf16.mxu0 0
    %3564 = vmatmul.mubr.bf16.gmra.mrb[0].mxu0 %v3278
    %v3565 = vpop.f32.mrb[0].mxu0
    %v3566 = vadd.f32 %v3013, %v3565
    %v3567 = vpop.f32.mrb[0].mxu0
    %v3568 = vpop.f32.mrb[0].mxu0
    %v3569 = vadd.f32 %v3013, %v3568
    %v3570 = vpop.f32.mrb[0].mxu0
    %3571 = vdwg.mxu0
    %v3572 = vmax.f32 %v3318, 0.0
    %v3573 = vmax.f32 %v3321, 0.0
    %v3574 = vmax.f32 %v3326, 0.0
    %v3575 = vmax.f32 %v3329, 0.0
    %v3576 = vmax.f32 %v3334, 0.0
    %v3577 = vmax.f32 %v3337, 0.0
    %v3578 = vmax.f32 %v3342, 0.0
    %v3579 = vmax.f32 %v3345, 0.0
    %v3580 = vmax.f32 %v3350, 0.0
    %v3581 = vmax.f32 %v3353, 0.0
    %v3582 = vmax.f32 %v3358, 0.0
    %v3583 = vmax.f32 %v3361, 0.0
    %v3584 = vmax.f32 %v3366, 0.0
    %v3585 = vmax.f32 %v3369, 0.0
    %v3586 = vmax.f32 %v3374, 0.0
    %v3587 = vmax.f32 %v3377, 0.0
    %v3588 = vmax.f32 %v3382, 0.0
    %v3589 = vmax.f32 %v3385, 0.0
    %v3590 = vmax.f32 %v3390, 0.0
    %v3591 = vmax.f32 %v3393, 0.0
    %v3592 = vmax.f32 %v3398, 0.0
    %v3593 = vmax.f32 %v3401, 0.0
    %v3594 = vmax.f32 %v3406, 0.0
    %v3595 = vmax.f32 %v3409, 0.0
    %v3596 = vmax.f32 %v3414, 0.0
    %v3597 = vmax.f32 %v3417, 0.0
    %v3598 = vmax.f32 %v3422, 0.0
    %v3599 = vmax.f32 %v3425, 0.0
    %v3600 = vmax.f32 %v3430, 0.0
    %v3601 = vmax.f32 %v3433, 0.0
    %v3602 = vmax.f32 %v3438, 0.0
    %v3603 = vmax.f32 %v3441, 0.0
    %v3604 = vmax.f32 %v3446, 0.0
    %v3605 = vmax.f32 %v3449, 0.0
    %v3606 = vmax.f32 %v3454, 0.0
    %v3607 = vmax.f32 %v3457, 0.0
    %v3608 = vmax.f32 %v3462, 0.0
    %v3609 = vmax.f32 %v3465, 0.0
    %v3610 = vmax.f32 %v3470, 0.0
    %v3611 = vmax.f32 %v3473, 0.0
    %v3612 = vmax.f32 %v3478, 0.0
    %v3613 = vmax.f32 %v3481, 0.0
    %v3614 = vmax.f32 %v3486, 0.0
    %v3615 = vmax.f32 %v3489, 0.0
    %v3616 = vmax.f32 %v3494, 0.0
    %v3617 = vmax.f32 %v3497, 0.0
    %v3618 = vmax.f32 %v3502, 0.0
    %v3619 = vmax.f32 %v3505, 0.0
    %v3620 = vmax.f32 %v3510, 0.0
    %v3621 = vmax.f32 %v3513, 0.0
    %v3622 = vmax.f32 %v3518, 0.0
    %v3623 = vmax.f32 %v3521, 0.0
    %v3624 = vmax.f32 %v3526, 0.0
    %v3625 = vmax.f32 %v3529, 0.0
    %v3626 = vmax.f32 %v3534, 0.0
    %v3627 = vmax.f32 %v3537, 0.0
    %v3628 = vmax.f32 %v3542, 0.0
    %v3629 = vmax.f32 %v3545, 0.0
    %v3630 = vmax.f32 %v3550, 0.0
    %v3631 = vmax.f32 %v3553, 0.0
    %v3632 = vmax.f32 %v3558, 0.0
    %v3633 = vmax.f32 %v3561, 0.0
    %v3634 = vmax.f32 %v3566, 0.0
    %v3635 = vmax.f32 %v3569, 0.0
    %v3636 = vpack.c.bf16 %v3573, %v3572
    %v3637 = vpack.c.bf16 %v3575, %v3574
    %v3638 = vpack.c.bf16 %v3577, %v3576
    %v3639 = vpack.c.bf16 %v3579, %v3578
    %s3640 = scalar_lea.vmem %s3, 64
    %v3641 = vld [vmem:[%s3640] sm:$0xf]
    %v3642 = vld [vmem:[%s3640 + $0x4] sm:$0xf]
    %v3643 = vpack.c.bf16 %v3581, %v3580
    %v3644 = vpack.c.bf16 %v3583, %v3582
    %v3645 = vpack.c.bf16 %v3585, %v3584
    %v3646 = vpack.c.bf16 %v3587, %v3586
    %s3647 = scalar_lea.vmem %s3, 72
    %v3648 = vld [vmem:[%s3647] sm:$0xf]
    %v3649 = vld [vmem:[%s3647 + $0x4] sm:$0xf]
    %v3652 = vunpack.c.l.b16 %v3648
    %v3653 = vunpack.c.l.b16 %v3649
    %v3654 = vpack.c.b16 %v3653, %v3652
    %v3657 = vsel %vm757, %v3643, 0
    %v3660 = vsel %vm757, %v3644, 0
    %v3663 = vsel %vm757, %v3645, 0
    %v3666 = vsel %vm757, %v3646, 0
    %3668 = vmatprep.subr.bf16.mxu0 0
    %3669 = vmatpush1.bf16.msra.mxu0 %v3654
    %3670 = vmatprep.subr.bf16.mxu0 0
    %3671 = vmatpush1.bf16.msra.mxu0 0
    %3672 = vmatprep.subr.bf16.mxu0 0
    %3673 = vmatpush1.bf16.msra.mxu0 0
    %3674 = vmatprep.subr.bf16.mxu0 0
    %3675 = vmatpush1.bf16.msra.mxu0 0
    %3676 = vmatprep.subr.bf16.mxu0 0
    %3677 = vmatpush1.bf16.msra.mxu0 0
    %3678 = vmatprep.subr.bf16.mxu0 0
    %3679 = vmatpush1.bf16.msra.mxu0 0
    %3680 = vmatprep.subr.bf16.mxu0 0
    %3681 = vmatpush1.bf16.msra.mxu0 0
    %3682 = vmatprep.subr.bf16.mxu0 0
    %3683 = vmatpush1.bf16.msra.mxu0 0
    %3684 = vmatprep.subr.bf16.mxu0 0
    %3685 = vmatpush1.bf16.msra.mxu0 0
    %3686 = vmatprep.subr.bf16.mxu0 0
    %3687 = vmatpush1.bf16.msra.mxu0 0
    %3688 = vmatprep.subr.bf16.mxu0 0
    %3689 = vmatpush1.bf16.msra.mxu0 0
    %3690 = vmatprep.subr.bf16.mxu0 0
    %3691 = vmatpush1.bf16.msra.mxu0 0
    %3692 = vmatprep.subr.bf16.mxu0 0
    %3693 = vmatpush1.bf16.msra.mxu0 0
    %3694 = vmatprep.subr.bf16.mxu0 0
    %3695 = vmatpush1.bf16.msra.mxu0 0
    %3696 = vmatprep.subr.bf16.mxu0 0
    %3697 = vmatpush1.bf16.msra.mxu0 0
    %3698 = vmatprep.subr.bf16.mxu0 0
    %3699 = vmatpush1.bf16.msra.mxu0 0
    %3700 = vmatprep.mubr.bf16.mxu0 0
    %3701 = vmatmul.mubr.bf16.gmra.mrb[0].mxu0 %v3657
    %v3702 = vpop.f32.mrb[0].mxu0
    %v3703 = vadd.f32 0.0, %v3702
    %v3704 = vpop.f32.mrb[0].mxu0
    %v3705 = vpop.f32.mrb[0].mxu0
    %v3706 = vadd.f32 0.0, %v3705
    %v3707 = vpop.f32.mrb[0].mxu0
    %3708 = vmatprep.mubr.bf16.mxu0 0
    %3709 = vmatmul.mubr.bf16.gmra.mrb[0].mxu0 %v3660
    %v3710 = vpop.f32.mrb[0].mxu0
    %v3711 = vadd.f32 0.0, %v3710
    %v3712 = vpop.f32.mrb[0].mxu0
    %v3713 = vpop.f32.mrb[0].mxu0
    %v3714 = vadd.f32 0.0, %v3713
    %v3715 = vpop.f32.mrb[0].mxu0
    %3716 = vmatprep.mubr.bf16.mxu0 0
    %3717 = vmatmul.mubr.bf16.gmra.mrb[0].mxu0 %v3663
    %v3718 = vpop.f32.mrb[0].mxu0
    %v3719 = vadd.f32 0.0, %v3718
    %v3720 = vpop.f32.mrb[0].mxu0
    %v3721 = vpop.f32.mrb[0].mxu0
    %v3722 = vadd.f32 0.0, %v3721
    %v3723 = vpop.f32.mrb[0].mxu0
    %3724 = vmatprep.mubr.bf16.mxu0 0
    %3725 = vmatmul.mubr.bf16.gmra.mrb[0].mxu0 %v3666
    %v3726 = vpop.f32.mrb[0].mxu0
    %v3727 = vadd.f32 0.0, %v3726
    %v3728 = vpop.f32.mrb[0].mxu0
    %v3729 = vpop.f32.mrb[0].mxu0
    %v3730 = vadd.f32 0.0, %v3729
    %v3731 = vpop.f32.mrb[0].mxu0
    %3732 = vdwg.mxu0
    %v3735 = vunpack.c.l.b16 %v3641
    %v3736 = vunpack.c.l.b16 %v3642
    %v3737 = vpack.c.b16 %v3736, %v3735
    %v3740 = vsel %vm757, %v3636, 0
    %v3743 = vsel %vm757, %v3637, 0
    %v3746 = vsel %vm757, %v3638, 0
    %v3749 = vsel %vm757, %v3639, 0
    %3751 = vmatprep.subr.bf16.mxu0 0
    %3752 = vmatpush1.bf16.msra.mxu0 %v3737
    %3753 = vmatprep.subr.bf16.mxu0 0
    %3754 = vmatpush1.bf16.msra.mxu0 0
    %3755 = vmatprep.subr.bf16.mxu0 0
    %3756 = vmatpush1.bf16.msra.mxu0 0
    %3757 = vmatprep.subr.bf16.mxu0 0
    %3758 = vmatpush1.bf16.msra.mxu0 0
    %3759 = vmatprep.subr.bf16.mxu0 0
    %3760 = vmatpush1.bf16.msra.mxu0 0
    %3761 = vmatprep.subr.bf16.mxu0 0
    %3762 = vmatpush1.bf16.msra.mxu0 0
    %3763 = vmatprep.subr.bf16.mxu0 0
    %3764 = vmatpush1.bf16.msra.mxu0 0
    %3765 = vmatprep.subr.bf16.mxu0 0
    %3766 = vmatpush1.bf16.msra.mxu0 0
    %3767 = vmatprep.subr.bf16.mxu0 0
    %3768 = vmatpush1.bf16.msra.mxu0 0
    %3769 = vmatprep.subr.bf16.mxu0 0
    %3770 = vmatpush1.bf16.msra.mxu0 0
    %3771 = vmatprep.subr.bf16.mxu0 0
    %3772 = vmatpush1.bf16.msra.mxu0 0
    %3773 = vmatprep.subr.bf16.mxu0 0
    %3774 = vmatpush1.bf16.msra.mxu0 0
    %3775 = vmatprep.subr.bf16.mxu0 0
    %3776 = vmatpush1.bf16.msra.mxu0 0
    %3777 = vmatprep.subr.bf16.mxu0 0
    %3778 = vmatpush1.bf16.msra.mxu0 0
    %3779 = vmatprep.subr.bf16.mxu0 0
    %3780 = vmatpush1.bf16.msra.mxu0 0
    %3781 = vmatprep.subr.bf16.mxu0 0
    %3782 = vmatpush1.bf16.msra.mxu0 0
    %3783 = vmatprep.mubr.bf16.mxu0 0
    %3784 = vmatmul.mubr.bf16.gmra.mrb[0].mxu0 %v3740
    %v3785 = vpop.f32.mrb[0].mxu0
    %v3786 = vadd.f32 %v3703, %v3785
    %v3787 = vpop.f32.mrb[0].mxu0
    %v3788 = vpop.f32.mrb[0].mxu0
    %v3789 = vadd.f32 %v3706, %v3788
    %v3790 = vpop.f32.mrb[0].mxu0
    %3791 = vmatprep.mubr.bf16.mxu0 0
    %3792 = vmatmul.mubr.bf16.gmra.mrb[0].mxu0 %v3743
    %v3793 = vpop.f32.mrb[0].mxu0
    %v3794 = vadd.f32 %v3711, %v3793
    %v3795 = vpop.f32.mrb[0].mxu0
    %v3796 = vpop.f32.mrb[0].mxu0
    %v3797 = vadd.f32 %v3714, %v3796
    %v3798 = vpop.f32.mrb[0].mxu0
    %3799 = vmatprep.mubr.bf16.mxu0 0
    %3800 = vmatmul.mubr.bf16.gmra.mrb[0].mxu0 %v3746
    %v3801 = vpop.f32.mrb[0].mxu0
    %v3802 = vadd.f32 %v3719, %v3801
    %v3803 = vpop.f32.mrb[0].mxu0
    %v3804 = vpop.f32.mrb[0].mxu0
    %v3805 = vadd.f32 %v3722, %v3804
    %v3806 = vpop.f32.mrb[0].mxu0
    %3807 = vmatprep.mubr.bf16.mxu0 0
    %3808 = vmatmul.mubr.bf16.gmra.mrb[0].mxu0 %v3749
    %v3809 = vpop.f32.mrb[0].mxu0
    %v3810 = vadd.f32 %v3727, %v3809
    %v3811 = vpop.f32.mrb[0].mxu0
    %v3812 = vpop.f32.mrb[0].mxu0
    %v3813 = vadd.f32 %v3730, %v3812
    %v3814 = vpop.f32.mrb[0].mxu0
    %3815 = vdwg.mxu0
    %v3816 = vpack.c.bf16 %v3589, %v3588
    %v3817 = vpack.c.bf16 %v3591, %v3590
    %v3818 = vpack.c.bf16 %v3593, %v3592
    %v3819 = vpack.c.bf16 %v3595, %v3594
    %s3820 = scalar_lea.vmem %s3, 80
    %v3821 = vld [vmem:[%s3820] sm:$0xf]
    %v3822 = vld [vmem:[%s3820 + $0x4] sm:$0xf]
    %v3825 = vunpack.c.l.b16 %v3821
    %v3826 = vunpack.c.l.b16 %v3822
    %v3827 = vpack.c.b16 %v3826, %v3825
    %v3830 = vsel %vm757, %v3816, 0
    %v3833 = vsel %vm757, %v3817, 0
    %v3836 = vsel %vm757, %v3818, 0
    %v3839 = vsel %vm757, %v3819, 0
    %3841 = vmatprep.subr.bf16.mxu0 0
    %3842 = vmatpush1.bf16.msra.mxu0 %v3827
    %3843 = vmatprep.subr.bf16.mxu0 0
    %3844 = vmatpush1.bf16.msra.mxu0 0
    %3845 = vmatprep.subr.bf16.mxu0 0
    %3846 = vmatpush1.bf16.msra.mxu0 0
    %3847 = vmatprep.subr.bf16.mxu0 0
    %3848 = vmatpush1.bf16.msra.mxu0 0
    %3849 = vmatprep.subr.bf16.mxu0 0
    %3850 = vmatpush1.bf16.msra.mxu0 0
    %3851 = vmatprep.subr.bf16.mxu0 0
    %3852 = vmatpush1.bf16.msra.mxu0 0
    %3853 = vmatprep.subr.bf16.mxu0 0
    %3854 = vmatpush1.bf16.msra.mxu0 0
    %3855 = vmatprep.subr.bf16.mxu0 0
    %3856 = vmatpush1.bf16.msra.mxu0 0
    %3857 = vmatprep.subr.bf16.mxu0 0
    %3858 = vmatpush1.bf16.msra.mxu0 0
    %3859 = vmatprep.subr.bf16.mxu0 0
    %3860 = vmatpush1.bf16.msra.mxu0 0
    %3861 = vmatprep.subr.bf16.mxu0 0
    %3862 = vmatpush1.bf16.msra.mxu0 0
    %3863 = vmatprep.subr.bf16.mxu0 0
    %3864 = vmatpush1.bf16.msra.mxu0 0
    %3865 = vmatprep.subr.bf16.mxu0 0
    %3866 = vmatpush1.bf16.msra.mxu0 0
    %3867 = vmatprep.subr.bf16.mxu0 0
    %3868 = vmatpush1.bf16.msra.mxu0 0
    %3869 = vmatprep.subr.bf16.mxu0 0
    %3870 = vmatpush1.bf16.msra.mxu0 0
    %3871 = vmatprep.subr.bf16.mxu0 0
    %3872 = vmatpush1.bf16.msra.mxu0 0
    %3873 = vmatprep.mubr.bf16.mxu0 0
    %3874 = vmatmul.mubr.bf16.gmra.mrb[0].mxu0 %v3830
    %v3875 = vpop.f32.mrb[0].mxu0
    %v3876 = vadd.f32 0.0, %v3875
    %v3877 = vpop.f32.mrb[0].mxu0
    %v3878 = vpop.f32.mrb[0].mxu0
    %v3879 = vadd.f32 0.0, %v3878
    %v3880 = vpop.f32.mrb[0].mxu0
    %3881 = vmatprep.mubr.bf16.mxu0 0
    %3882 = vmatmul.mubr.bf16.gmra.mrb[0].mxu0 %v3833
    %v3883 = vpop.f32.mrb[0].mxu0
    %v3884 = vadd.f32 0.0, %v3883
    %v3885 = vpop.f32.mrb[0].mxu0
    %v3886 = vpop.f32.mrb[0].mxu0
    %v3887 = vadd.f32 0.0, %v3886
    %v3888 = vpop.f32.mrb[0].mxu0
    %3889 = vmatprep.mubr.bf16.mxu0 0
    %3890 = vmatmul.mubr.bf16.gmra.mrb[0].mxu0 %v3836
    %v3891 = vpop.f32.mrb[0].mxu0
    %v3892 = vadd.f32 0.0, %v3891
    %v3893 = vpop.f32.mrb[0].mxu0
    %v3894 = vpop.f32.mrb[0].mxu0
    %v3895 = vadd.f32 0.0, %v3894
    %v3896 = vpop.f32.mrb[0].mxu0
    %3897 = vmatprep.mubr.bf16.mxu0 0
    %3898 = vmatmul.mubr.bf16.gmra.mrb[0].mxu0 %v3839
    %v3899 = vpop.f32.mrb[0].mxu0
    %v3900 = vadd.f32 0.0, %v3899
    %v3901 = vpop.f32.mrb[0].mxu0
    %v3902 = vpop.f32.mrb[0].mxu0
    %v3903 = vadd.f32 0.0, %v3902
    %v3904 = vpop.f32.mrb[0].mxu0
    %3905 = vdwg.mxu0
    %v3906 = vadd.f32 %v3786, %v3876
    %v3907 = vadd.f32 %v3789, %v3879
    %v3908 = vadd.f32 %v3794, %v3884
    %v3909 = vadd.f32 %v3797, %v3887
    %v3910 = vadd.f32 %v3802, %v3892
    %v3911 = vadd.f32 %v3805, %v3895
    %v3912 = vadd.f32 %v3810, %v3900
    %v3913 = vadd.f32 %v3813, %v3903
    %v3914 = vpack.c.bf16 %v3597, %v3596
    %v3915 = vpack.c.bf16 %v3599, %v3598
    %v3916 = vpack.c.bf16 %v3601, %v3600
    %v3917 = vpack.c.bf16 %v3603, %v3602
    %s3918 = scalar_lea.vmem %s3, 88
    %v3919 = vld [vmem:[%s3918] sm:$0xf]
    %v3920 = vld [vmem:[%s3918 + $0x4] sm:$0xf]
    %v3923 = vunpack.c.l.b16 %v3919
    %v3924 = vunpack.c.l.b16 %v3920
    %v3925 = vpack.c.b16 %v3924, %v3923
    %v3928 = vsel %vm757, %v3914, 0
    %v3931 = vsel %vm757, %v3915, 0
    %v3934 = vsel %vm757, %v3916, 0
    %v3937 = vsel %vm757, %v3917, 0
    %3939 = vmatprep.subr.bf16.mxu0 0
    %3940 = vmatpush1.bf16.msra.mxu0 %v3925
    %3941 = vmatprep.subr.bf16.mxu0 0
    %3942 = vmatpush1.bf16.msra.mxu0 0
    %3943 = vmatprep.subr.bf16.mxu0 0
    %3944 = vmatpush1.bf16.msra.mxu0 0
    %3945 = vmatprep.subr.bf16.mxu0 0
    %3946 = vmatpush1.bf16.msra.mxu0 0
    %3947 = vmatprep.subr.bf16.mxu0 0
    %3948 = vmatpush1.bf16.msra.mxu0 0
    %3949 = vmatprep.subr.bf16.mxu0 0
    %3950 = vmatpush1.bf16.msra.mxu0 0
    %3951 = vmatprep.subr.bf16.mxu0 0
    %3952 = vmatpush1.bf16.msra.mxu0 0
    %3953 = vmatprep.subr.bf16.mxu0 0
    %3954 = vmatpush1.bf16.msra.mxu0 0
    %3955 = vmatprep.subr.bf16.mxu0 0
    %3956 = vmatpush1.bf16.msra.mxu0 0
    %3957 = vmatprep.subr.bf16.mxu0 0
    %3958 = vmatpush1.bf16.msra.mxu0 0
    %3959 = vmatprep.subr.bf16.mxu0 0
    %3960 = vmatpush1.bf16.msra.mxu0 0
    %3961 = vmatprep.subr.bf16.mxu0 0
    %3962 = vmatpush1.bf16.msra.mxu0 0
    %3963 = vmatprep.subr.bf16.mxu0 0
    %3964 = vmatpush1.bf16.msra.mxu0 0
    %3965 = vmatprep.subr.bf16.mxu0 0
    %3966 = vmatpush1.bf16.msra.mxu0 0
    %3967 = vmatprep.subr.bf16.mxu0 0
    %3968 = vmatpush1.bf16.msra.mxu0 0
    %3969 = vmatprep.subr.bf16.mxu0 0
    %3970 = vmatpush1.bf16.msra.mxu0 0
    %3971 = vmatprep.mubr.bf16.mxu0 0
    %3972 = vmatmul.mubr.bf16.gmra.mrb[0].mxu0 %v3928
    %v3973 = vpop.f32.mrb[0].mxu0
    %v3974 = vadd.f32 0.0, %v3973
    %v3975 = vpop.f32.mrb[0].mxu0
    %v3976 = vpop.f32.mrb[0].mxu0
    %v3977 = vadd.f32 0.0, %v3976
    %v3978 = vpop.f32.mrb[0].mxu0
    %3979 = vmatprep.mubr.bf16.mxu0 0
    %3980 = vmatmul.mubr.bf16.gmra.mrb[0].mxu0 %v3931
    %v3981 = vpop.f32.mrb[0].mxu0
    %v3982 = vadd.f32 0.0, %v3981
    %v3983 = vpop.f32.mrb[0].mxu0
    %v3984 = vpop.f32.mrb[0].mxu0
    %v3985 = vadd.f32 0.0, %v3984
    %v3986 = vpop.f32.mrb[0].mxu0
    %3987 = vmatprep.mubr.bf16.mxu0 0
    %3988 = vmatmul.mubr.bf16.gmra.mrb[0].mxu0 %v3934
    %v3989 = vpop.f32.mrb[0].mxu0
    %v3990 = vadd.f32 0.0, %v3989
    %v3991 = vpop.f32.mrb[0].mxu0
    %v3992 = vpop.f32.mrb[0].mxu0
    %v3993 = vadd.f32 0.0, %v3992
    %v3994 = vpop.f32.mrb[0].mxu0
    %3995 = vmatprep.mubr.bf16.mxu0 0
    %3996 = vmatmul.mubr.bf16.gmra.mrb[0].mxu0 %v3937
    %v3997 = vpop.f32.mrb[0].mxu0
    %v3998 = vadd.f32 0.0, %v3997
    %v3999 = vpop.f32.mrb[0].mxu0
    %v4000 = vpop.f32.mrb[0].mxu0
    %v4001 = vadd.f32 0.0, %v4000
    %v4002 = vpop.f32.mrb[0].mxu0
    %4003 = vdwg.mxu0
    %v4004 = vadd.f32 %v3906, %v3974
    %v4005 = vadd.f32 %v3907, %v3977
    %v4006 = vadd.f32 %v3908, %v3982
    %v4007 = vadd.f32 %v3909, %v3985
    %v4008 = vadd.f32 %v3910, %v3990
    %v4009 = vadd.f32 %v3911, %v3993
    %v4010 = vadd.f32 %v3912, %v3998
    %v4011 = vadd.f32 %v3913, %v4001
    %v4012 = vpack.c.bf16 %v3605, %v3604
    %v4013 = vpack.c.bf16 %v3607, %v3606
    %v4014 = vpack.c.bf16 %v3609, %v3608
    %v4015 = vpack.c.bf16 %v3611, %v3610
    %s4016 = scalar_lea.vmem %s3, 96
    %v4017 = vld [vmem:[%s4016] sm:$0xf]
    %v4018 = vld [vmem:[%s4016 + $0x4] sm:$0xf]
    %v4021 = vunpack.c.l.b16 %v4017
    %v4022 = vunpack.c.l.b16 %v4018
    %v4023 = vpack.c.b16 %v4022, %v4021
    %v4026 = vsel %vm757, %v4012, 0
    %v4029 = vsel %vm757, %v4013, 0
    %v4032 = vsel %vm757, %v4014, 0
    %v4035 = vsel %vm757, %v4015, 0
    %4037 = vmatprep.subr.bf16.mxu0 0
    %4038 = vmatpush1.bf16.msra.mxu0 %v4023
    %4039 = vmatprep.subr.bf16.mxu0 0
    %4040 = vmatpush1.bf16.msra.mxu0 0
    %4041 = vmatprep.subr.bf16.mxu0 0
    %4042 = vmatpush1.bf16.msra.mxu0 0
    %4043 = vmatprep.subr.bf16.mxu0 0
    %4044 = vmatpush1.bf16.msra.mxu0 0
    %4045 = vmatprep.subr.bf16.mxu0 0
    %4046 = vmatpush1.bf16.msra.mxu0 0
    %4047 = vmatprep.subr.bf16.mxu0 0
    %4048 = vmatpush1.bf16.msra.mxu0 0
    %4049 = vmatprep.subr.bf16.mxu0 0
    %4050 = vmatpush1.bf16.msra.mxu0 0
    %4051 = vmatprep.subr.bf16.mxu0 0
    %4052 = vmatpush1.bf16.msra.mxu0 0
    %4053 = vmatprep.subr.bf16.mxu0 0
    %4054 = vmatpush1.bf16.msra.mxu0 0
    %4055 = vmatprep.subr.bf16.mxu0 0
    %4056 = vmatpush1.bf16.msra.mxu0 0
    %4057 = vmatprep.subr.bf16.mxu0 0
    %4058 = vmatpush1.bf16.msra.mxu0 0
    %4059 = vmatprep.subr.bf16.mxu0 0
    %4060 = vmatpush1.bf16.msra.mxu0 0
    %4061 = vmatprep.subr.bf16.mxu0 0
    %4062 = vmatpush1.bf16.msra.mxu0 0
    %4063 = vmatprep.subr.bf16.mxu0 0
    %4064 = vmatpush1.bf16.msra.mxu0 0
    %4065 = vmatprep.subr.bf16.mxu0 0
    %4066 = vmatpush1.bf16.msra.mxu0 0
    %4067 = vmatprep.subr.bf16.mxu0 0
    %4068 = vmatpush1.bf16.msra.mxu0 0
    %4069 = vmatprep.mubr.bf16.mxu0 0
    %4070 = vmatmul.mubr.bf16.gmra.mrb[0].mxu0 %v4026
    %v4071 = vpop.f32.mrb[0].mxu0
    %v4072 = vadd.f32 0.0, %v4071
    %v4073 = vpop.f32.mrb[0].mxu0
    %v4074 = vpop.f32.mrb[0].mxu0
    %v4075 = vadd.f32 0.0, %v4074
    %v4076 = vpop.f32.mrb[0].mxu0
    %4077 = vmatprep.mubr.bf16.mxu0 0
    %4078 = vmatmul.mubr.bf16.gmra.mrb[0].mxu0 %v4029
    %v4079 = vpop.f32.mrb[0].mxu0
    %v4080 = vadd.f32 0.0, %v4079
    %v4081 = vpop.f32.mrb[0].mxu0
    %v4082 = vpop.f32.mrb[0].mxu0
    %v4083 = vadd.f32 0.0, %v4082
    %v4084 = vpop.f32.mrb[0].mxu0
    %4085 = vmatprep.mubr.bf16.mxu0 0
    %4086 = vmatmul.mubr.bf16.gmra.mrb[0].mxu0 %v4032
    %v4087 = vpop.f32.mrb[0].mxu0
    %v4088 = vadd.f32 0.0, %v4087
    %v4089 = vpop.f32.mrb[0].mxu0
    %v4090 = vpop.f32.mrb[0].mxu0
    %v4091 = vadd.f32 0.0, %v4090
    %v4092 = vpop.f32.mrb[0].mxu0
    %4093 = vmatprep.mubr.bf16.mxu0 0
    %4094 = vmatmul.mubr.bf16.gmra.mrb[0].mxu0 %v4035
    %v4095 = vpop.f32.mrb[0].mxu0
    %v4096 = vadd.f32 0.0, %v4095
    %v4097 = vpop.f32.mrb[0].mxu0
    %v4098 = vpop.f32.mrb[0].mxu0
    %v4099 = vadd.f32 0.0, %v4098
    %v4100 = vpop.f32.mrb[0].mxu0
    %4101 = vdwg.mxu0
    %v4102 = vadd.f32 %v4004, %v4072
    %v4103 = vadd.f32 %v4005, %v4075
    %v4104 = vadd.f32 %v4006, %v4080
    %v4105 = vadd.f32 %v4007, %v4083
    %v4106 = vadd.f32 %v4008, %v4088
    %v4107 = vadd.f32 %v4009, %v4091
    %v4108 = vadd.f32 %v4010, %v4096
    %v4109 = vadd.f32 %v4011, %v4099
    %v4110 = vpack.c.bf16 %v3613, %v3612
    %v4111 = vpack.c.bf16 %v3615, %v3614
    %v4112 = vpack.c.bf16 %v3617, %v3616
    %v4113 = vpack.c.bf16 %v3619, %v3618
    %s4114 = scalar_lea.vmem %s3, 104
    %v4115 = vld [vmem:[%s4114] sm:$0xf]
    %v4116 = vld [vmem:[%s4114 + $0x4] sm:$0xf]
    %v4119 = vunpack.c.l.b16 %v4115
    %v4120 = vunpack.c.l.b16 %v4116
    %v4121 = vpack.c.b16 %v4120, %v4119
    %v4124 = vsel %vm757, %v4110, 0
    %v4127 = vsel %vm757, %v4111, 0
    %v4130 = vsel %vm757, %v4112, 0
    %v4133 = vsel %vm757, %v4113, 0
    %4135 = vmatprep.subr.bf16.mxu0 0
    %4136 = vmatpush1.bf16.msra.mxu0 %v4121
    %4137 = vmatprep.subr.bf16.mxu0 0
    %4138 = vmatpush1.bf16.msra.mxu0 0
    %4139 = vmatprep.subr.bf16.mxu0 0
    %4140 = vmatpush1.bf16.msra.mxu0 0
    %4141 = vmatprep.subr.bf16.mxu0 0
    %4142 = vmatpush1.bf16.msra.mxu0 0
    %4143 = vmatprep.subr.bf16.mxu0 0
    %4144 = vmatpush1.bf16.msra.mxu0 0
    %4145 = vmatprep.subr.bf16.mxu0 0
    %4146 = vmatpush1.bf16.msra.mxu0 0
    %4147 = vmatprep.subr.bf16.mxu0 0
    %4148 = vmatpush1.bf16.msra.mxu0 0
    %4149 = vmatprep.subr.bf16.mxu0 0
    %4150 = vmatpush1.bf16.msra.mxu0 0
    %4151 = vmatprep.subr.bf16.mxu0 0
    %4152 = vmatpush1.bf16.msra.mxu0 0
    %4153 = vmatprep.subr.bf16.mxu0 0
    %4154 = vmatpush1.bf16.msra.mxu0 0
    %4155 = vmatprep.subr.bf16.mxu0 0
    %4156 = vmatpush1.bf16.msra.mxu0 0
    %4157 = vmatprep.subr.bf16.mxu0 0
    %4158 = vmatpush1.bf16.msra.mxu0 0
    %4159 = vmatprep.subr.bf16.mxu0 0
    %4160 = vmatpush1.bf16.msra.mxu0 0
    %4161 = vmatprep.subr.bf16.mxu0 0
    %4162 = vmatpush1.bf16.msra.mxu0 0
    %4163 = vmatprep.subr.bf16.mxu0 0
    %4164 = vmatpush1.bf16.msra.mxu0 0
    %4165 = vmatprep.subr.bf16.mxu0 0
    %4166 = vmatpush1.bf16.msra.mxu0 0
    %4167 = vmatprep.mubr.bf16.mxu0 0
    %4168 = vmatmul.mubr.bf16.gmra.mrb[0].mxu0 %v4124
    %v4169 = vpop.f32.mrb[0].mxu0
    %v4170 = vadd.f32 0.0, %v4169
    %v4171 = vpop.f32.mrb[0].mxu0
    %v4172 = vpop.f32.mrb[0].mxu0
    %v4173 = vadd.f32 0.0, %v4172
    %v4174 = vpop.f32.mrb[0].mxu0
    %4175 = vmatprep.mubr.bf16.mxu0 0
    %4176 = vmatmul.mubr.bf16.gmra.mrb[0].mxu0 %v4127
    %v4177 = vpop.f32.mrb[0].mxu0
    %v4178 = vadd.f32 0.0, %v4177
    %v4179 = vpop.f32.mrb[0].mxu0
    %v4180 = vpop.f32.mrb[0].mxu0
    %v4181 = vadd.f32 0.0, %v4180
    %v4182 = vpop.f32.mrb[0].mxu0
    %4183 = vmatprep.mubr.bf16.mxu0 0
    %4184 = vmatmul.mubr.bf16.gmra.mrb[0].mxu0 %v4130
    %v4185 = vpop.f32.mrb[0].mxu0
    %v4186 = vadd.f32 0.0, %v4185
    %v4187 = vpop.f32.mrb[0].mxu0
    %v4188 = vpop.f32.mrb[0].mxu0
    %v4189 = vadd.f32 0.0, %v4188
    %v4190 = vpop.f32.mrb[0].mxu0
    %4191 = vmatprep.mubr.bf16.mxu0 0
    %4192 = vmatmul.mubr.bf16.gmra.mrb[0].mxu0 %v4133
    %v4193 = vpop.f32.mrb[0].mxu0
    %v4194 = vadd.f32 0.0, %v4193
    %v4195 = vpop.f32.mrb[0].mxu0
    %v4196 = vpop.f32.mrb[0].mxu0
    %v4197 = vadd.f32 0.0, %v4196
    %v4198 = vpop.f32.mrb[0].mxu0
    %4199 = vdwg.mxu0
    %v4200 = vadd.f32 %v4102, %v4170
    %v4201 = vadd.f32 %v4103, %v4173
    %v4202 = vadd.f32 %v4104, %v4178
    %v4203 = vadd.f32 %v4105, %v4181
    %v4204 = vadd.f32 %v4106, %v4186
    %v4205 = vadd.f32 %v4107, %v4189
    %v4206 = vadd.f32 %v4108, %v4194
    %v4207 = vadd.f32 %v4109, %v4197
    %v4208 = vpack.c.bf16 %v3621, %v3620
    %v4209 = vpack.c.bf16 %v3623, %v3622
    %v4210 = vpack.c.bf16 %v3625, %v3624
    %v4211 = vpack.c.bf16 %v3627, %v3626
    %s4212 = scalar_lea.vmem %s3, 112
    %v4213 = vld [vmem:[%s4212] sm:$0xf]
    %v4214 = vld [vmem:[%s4212 + $0x4] sm:$0xf]
    %v4217 = vunpack.c.l.b16 %v4213
    %v4218 = vunpack.c.l.b16 %v4214
    %v4219 = vpack.c.b16 %v4218, %v4217
    %v4222 = vsel %vm757, %v4208, 0
    %v4225 = vsel %vm757, %v4209, 0
    %v4228 = vsel %vm757, %v4210, 0
    %v4231 = vsel %vm757, %v4211, 0
    %4233 = vmatprep.subr.bf16.mxu0 0
    %4234 = vmatpush1.bf16.msra.mxu0 %v4219
    %4235 = vmatprep.subr.bf16.mxu0 0
    %4236 = vmatpush1.bf16.msra.mxu0 0
    %4237 = vmatprep.subr.bf16.mxu0 0
    %4238 = vmatpush1.bf16.msra.mxu0 0
    %4239 = vmatprep.subr.bf16.mxu0 0
    %4240 = vmatpush1.bf16.msra.mxu0 0
    %4241 = vmatprep.subr.bf16.mxu0 0
    %4242 = vmatpush1.bf16.msra.mxu0 0
    %4243 = vmatprep.subr.bf16.mxu0 0
    %4244 = vmatpush1.bf16.msra.mxu0 0
    %4245 = vmatprep.subr.bf16.mxu0 0
    %4246 = vmatpush1.bf16.msra.mxu0 0
    %4247 = vmatprep.subr.bf16.mxu0 0
    %4248 = vmatpush1.bf16.msra.mxu0 0
    %4249 = vmatprep.subr.bf16.mxu0 0
    %4250 = vmatpush1.bf16.msra.mxu0 0
    %4251 = vmatprep.subr.bf16.mxu0 0
    %4252 = vmatpush1.bf16.msra.mxu0 0
    %4253 = vmatprep.subr.bf16.mxu0 0
    %4254 = vmatpush1.bf16.msra.mxu0 0
    %4255 = vmatprep.subr.bf16.mxu0 0
    %4256 = vmatpush1.bf16.msra.mxu0 0
    %4257 = vmatprep.subr.bf16.mxu0 0
    %4258 = vmatpush1.bf16.msra.mxu0 0
    %4259 = vmatprep.subr.bf16.mxu0 0
    %4260 = vmatpush1.bf16.msra.mxu0 0
    %4261 = vmatprep.subr.bf16.mxu0 0
    %4262 = vmatpush1.bf16.msra.mxu0 0
    %4263 = vmatprep.subr.bf16.mxu0 0
    %4264 = vmatpush1.bf16.msra.mxu0 0
    %4265 = vmatprep.mubr.bf16.mxu0 0
    %4266 = vmatmul.mubr.bf16.gmra.mrb[0].mxu0 %v4222
    %v4267 = vpop.f32.mrb[0].mxu0
    %v4268 = vadd.f32 0.0, %v4267
    %v4269 = vpop.f32.mrb[0].mxu0
    %v4270 = vpop.f32.mrb[0].mxu0
    %v4271 = vadd.f32 0.0, %v4270
    %v4272 = vpop.f32.mrb[0].mxu0
    %4273 = vmatprep.mubr.bf16.mxu0 0
    %4274 = vmatmul.mubr.bf16.gmra.mrb[0].mxu0 %v4225
    %v4275 = vpop.f32.mrb[0].mxu0
    %v4276 = vadd.f32 0.0, %v4275
    %v4277 = vpop.f32.mrb[0].mxu0
    %v4278 = vpop.f32.mrb[0].mxu0
    %v4279 = vadd.f32 0.0, %v4278
    %v4280 = vpop.f32.mrb[0].mxu0
    %4281 = vmatprep.mubr.bf16.mxu0 0
    %4282 = vmatmul.mubr.bf16.gmra.mrb[0].mxu0 %v4228
    %v4283 = vpop.f32.mrb[0].mxu0
    %v4284 = vadd.f32 0.0, %v4283
    %v4285 = vpop.f32.mrb[0].mxu0
    %v4286 = vpop.f32.mrb[0].mxu0
    %v4287 = vadd.f32 0.0, %v4286
    %v4288 = vpop.f32.mrb[0].mxu0
    %4289 = vmatprep.mubr.bf16.mxu0 0
    %4290 = vmatmul.mubr.bf16.gmra.mrb[0].mxu0 %v4231
    %v4291 = vpop.f32.mrb[0].mxu0
    %v4292 = vadd.f32 0.0, %v4291
    %v4293 = vpop.f32.mrb[0].mxu0
    %v4294 = vpop.f32.mrb[0].mxu0
    %v4295 = vadd.f32 0.0, %v4294
    %v4296 = vpop.f32.mrb[0].mxu0
    %4297 = vdwg.mxu0
    %v4298 = vadd.f32 %v4200, %v4268
    %v4299 = vadd.f32 %v4201, %v4271
    %v4300 = vadd.f32 %v4202, %v4276
    %v4301 = vadd.f32 %v4203, %v4279
    %v4302 = vadd.f32 %v4204, %v4284
    %v4303 = vadd.f32 %v4205, %v4287
    %v4304 = vadd.f32 %v4206, %v4292
    %v4305 = vadd.f32 %v4207, %v4295
    %v4306 = vpack.c.bf16 %v3629, %v3628
    %v4307 = vpack.c.bf16 %v3631, %v3630
    %v4308 = vpack.c.bf16 %v3633, %v3632
    %v4309 = vpack.c.bf16 %v3635, %v3634
    %s4310 = scalar_lea.vmem %s3, 120
    %v4311 = vld [vmem:[%s4310] sm:$0xf]
    %v4312 = vld [vmem:[%s4310 + $0x4] sm:$0xf]
    %v4315 = vunpack.c.l.b16 %v4311
    %v4316 = vunpack.c.l.b16 %v4312
    %v4317 = vpack.c.b16 %v4316, %v4315
    %v4320 = vsel %vm757, %v4306, 0
    %v4323 = vsel %vm757, %v4307, 0
    %v4326 = vsel %vm757, %v4308, 0
    %v4329 = vsel %vm757, %v4309, 0
    %4331 = vmatprep.subr.bf16.mxu0 0
    %4332 = vmatpush1.bf16.msra.mxu0 %v4317
    %4333 = vmatprep.subr.bf16.mxu0 0
    %4334 = vmatpush1.bf16.msra.mxu0 0
    %4335 = vmatprep.subr.bf16.mxu0 0
    %4336 = vmatpush1.bf16.msra.mxu0 0
    %4337 = vmatprep.subr.bf16.mxu0 0
    %4338 = vmatpush1.bf16.msra.mxu0 0
    %4339 = vmatprep.subr.bf16.mxu0 0
    %4340 = vmatpush1.bf16.msra.mxu0 0
    %4341 = vmatprep.subr.bf16.mxu0 0
    %4342 = vmatpush1.bf16.msra.mxu0 0
    %4343 = vmatprep.subr.bf16.mxu0 0
    %4344 = vmatpush1.bf16.msra.mxu0 0
    %4345 = vmatprep.subr.bf16.mxu0 0
    %4346 = vmatpush1.bf16.msra.mxu0 0
    %4347 = vmatprep.subr.bf16.mxu0 0
    %4348 = vmatpush1.bf16.msra.mxu0 0
    %4349 = vmatprep.subr.bf16.mxu0 0
    %4350 = vmatpush1.bf16.msra.mxu0 0
    %4351 = vmatprep.subr.bf16.mxu0 0
    %4352 = vmatpush1.bf16.msra.mxu0 0
    %4353 = vmatprep.subr.bf16.mxu0 0
    %4354 = vmatpush1.bf16.msra.mxu0 0
    %4355 = vmatprep.subr.bf16.mxu0 0
    %4356 = vmatpush1.bf16.msra.mxu0 0
    %4357 = vmatprep.subr.bf16.mxu0 0
    %4358 = vmatpush1.bf16.msra.mxu0 0
    %4359 = vmatprep.subr.bf16.mxu0 0
    %4360 = vmatpush1.bf16.msra.mxu0 0
    %4361 = vmatprep.subr.bf16.mxu0 0
    %4362 = vmatpush1.bf16.msra.mxu0 0
    %4363 = vmatprep.mubr.bf16.mxu0 0
    %4364 = vmatmul.mubr.bf16.gmra.mrb[0].mxu0 %v4320
    %v4365 = vpop.f32.mrb[0].mxu0
    %v4366 = vadd.f32 0.0, %v4365
    %v4367 = vpop.f32.mrb[0].mxu0
    %v4368 = vpop.f32.mrb[0].mxu0
    %v4369 = vadd.f32 0.0, %v4368
    %v4370 = vpop.f32.mrb[0].mxu0
    %4371 = vmatprep.mubr.bf16.mxu0 0
    %4372 = vmatmul.mubr.bf16.gmra.mrb[0].mxu0 %v4323
    %v4373 = vpop.f32.mrb[0].mxu0
    %v4374 = vadd.f32 0.0, %v4373
    %v4375 = vpop.f32.mrb[0].mxu0
    %v4376 = vpop.f32.mrb[0].mxu0
    %v4377 = vadd.f32 0.0, %v4376
    %v4378 = vpop.f32.mrb[0].mxu0
    %4379 = vmatprep.mubr.bf16.mxu0 0
    %4380 = vmatmul.mubr.bf16.gmra.mrb[0].mxu0 %v4326
    %v4381 = vpop.f32.mrb[0].mxu0
    %v4382 = vadd.f32 0.0, %v4381
    %v4383 = vpop.f32.mrb[0].mxu0
    %v4384 = vpop.f32.mrb[0].mxu0
    %v4385 = vadd.f32 0.0, %v4384
    %v4386 = vpop.f32.mrb[0].mxu0
    %4387 = vmatprep.mubr.bf16.mxu0 0
    %4388 = vmatmul.mubr.bf16.gmra.mrb[0].mxu0 %v4329
    %v4389 = vpop.f32.mrb[0].mxu0
    %v4390 = vadd.f32 0.0, %v4389
    %v4391 = vpop.f32.mrb[0].mxu0
    %v4392 = vpop.f32.mrb[0].mxu0
    %v4393 = vadd.f32 0.0, %v4392
    %v4394 = vpop.f32.mrb[0].mxu0
    %4395 = vdwg.mxu0
    %v4396 = vadd.f32 %v4298, %v4366
    %v4397 = vadd.f32 %v4299, %v4369
    %v4398 = vadd.f32 %v4300, %v4374
    %v4399 = vadd.f32 %v4301, %v4377
    %v4400 = vadd.f32 %v4302, %v4382
    %v4401 = vadd.f32 %v4303, %v4385
    %v4402 = vadd.f32 %v4304, %v4390
    %v4403 = vadd.f32 %v4305, %v4393
    %s4404 = scalar_lea.vmem %s4, 1
    %v4405 = vld [vmem:[%s4404] sm:$0x1]
    %v4407 = vlaneseq
    %v4408 = vshrl.u32 %v4407, 7
    %v4409 = vsub.s32 0, %v4408
    %v4410 = vrot.slane %v4405, %v4409
    %v4412 = vadd.f32 %v4396, %v4410
    %v4413 = vadd.f32 %v4397, %v4410
    %v4414 = vadd.f32 %v4398, %v4410
    %v4415 = vadd.f32 %v4399, %v4410
    %v4416 = vadd.f32 %v4400, %v4410
    %v4417 = vadd.f32 %v4401, %v4410
    %v4418 = vadd.f32 %v4402, %v4410
    %v4419 = vadd.f32 %v4403, %v4410
    %v4420 = vmax.f32 %v4412, 0.0
    %v4421 = vmax.f32 %v4413, 0.0
    %v4422 = vmax.f32 %v4414, 0.0
    %v4423 = vmax.f32 %v4415, 0.0
    %v4424 = vmax.f32 %v4416, 0.0
    %v4425 = vmax.f32 %v4417, 0.0
    %v4426 = vmax.f32 %v4418, 0.0
    %v4427 = vmax.f32 %v4419, 0.0
    %v4428 = vpack.c.bf16 %v4420, %v4420
    %s4429 = scalar_lea.vmem %s5, 128
    %v4430 = vld [vmem:[%s4429] sm:$0xf]
    %v4431 = vld [vmem:[%s4429 + $0x4] sm:$0xf]
    %v4432 = vld [vmem:[%s4429 + $0x8] sm:$0xf]
    %v4433 = vld [vmem:[%s4429 + $0xc] sm:$0xf]
    %v4434 = vpack.c.bf16 %v4421, %v4421
    %s4435 = scalar_lea.vmem %s5, 144
    %v4436 = vld [vmem:[%s4435] sm:$0xf]
    %v4437 = vld [vmem:[%s4435 + $0x4] sm:$0xf]
    %v4438 = vld [vmem:[%s4435 + $0x8] sm:$0xf]
    %v4439 = vld [vmem:[%s4435 + $0xc] sm:$0xf]
    %v4444 = vunpack.c.l.b16 %v4436
    %v4445 = vunpack.c.l.b16 %v4437
    %v4446 = vunpack.c.l.b16 %v4438
    %v4447 = vunpack.c.l.b16 %v4439
    %v4448 = vpack.c.b16 %v4445, %v4444
    %v4449 = vpack.c.b16 %v4447, %v4446
    %v4453 = vsel %vm1552, %v4434, 0
    %4455 = vmatprep.subr.bf16.mxu0 0
    %4456 = vmatpush1.bf16.msra.mxu0 %v4448
    %4457 = vmatprep.subr.bf16.mxu0 0
    %4458 = vmatpush1.bf16.msra.mxu0 %v4449
    %4459 = vmatprep.subr.bf16.mxu0 0
    %4460 = vmatpush1.bf16.msra.mxu0 0
    %4461 = vmatprep.subr.bf16.mxu0 0
    %4462 = vmatpush1.bf16.msra.mxu0 0
    %4463 = vmatprep.subr.bf16.mxu0 0
    %4464 = vmatpush1.bf16.msra.mxu0 0
    %4465 = vmatprep.subr.bf16.mxu0 0
    %4466 = vmatpush1.bf16.msra.mxu0 0
    %4467 = vmatprep.subr.bf16.mxu0 0
    %4468 = vmatpush1.bf16.msra.mxu0 0
    %4469 = vmatprep.subr.bf16.mxu0 0
    %4470 = vmatpush1.bf16.msra.mxu0 0
    %4471 = vmatprep.subr.bf16.mxu0 0
    %4472 = vmatpush1.bf16.msra.mxu0 0
    %4473 = vmatprep.subr.bf16.mxu0 0
    %4474 = vmatpush1.bf16.msra.mxu0 0
    %4475 = vmatprep.subr.bf16.mxu0 0
    %4476 = vmatpush1.bf16.msra.mxu0 0
    %4477 = vmatprep.subr.bf16.mxu0 0
    %4478 = vmatpush1.bf16.msra.mxu0 0
    %4479 = vmatprep.subr.bf16.mxu0 0
    %4480 = vmatpush1.bf16.msra.mxu0 0
    %4481 = vmatprep.subr.bf16.mxu0 0
    %4482 = vmatpush1.bf16.msra.mxu0 0
    %4483 = vmatprep.subr.bf16.mxu0 0
    %4484 = vmatpush1.bf16.msra.mxu0 0
    %4485 = vmatprep.subr.bf16.mxu0 0
    %4486 = vmatpush1.bf16.msra.mxu0 0
    %4487 = vmatprep.mubr.bf16.mxu0 0
    %4488 = vmatmul.mubr.bf16.gmra.mrb[0].mxu0 %v4453
    %v4489 = vpop.f32.mrb[0].mxu0
    %v4490 = vadd.f32 0.0, %v4489
    %v4491 = vpop.f32.mrb[0].mxu0
    %v4492 = vpop.f32.mrb[0].mxu0
    %v4493 = vpop.f32.mrb[0].mxu0
    %4494 = vdwg.mxu0
    %v4499 = vunpack.c.l.b16 %v4430
    %v4500 = vunpack.c.l.b16 %v4431
    %v4501 = vunpack.c.l.b16 %v4432
    %v4502 = vunpack.c.l.b16 %v4433
    %v4503 = vpack.c.b16 %v4500, %v4499
    %v4504 = vpack.c.b16 %v4502, %v4501
    %v4508 = vsel %vm1552, %v4428, 0
    %4510 = vmatprep.subr.bf16.mxu0 0
    %4511 = vmatpush1.bf16.msra.mxu0 %v4503
    %4512 = vmatprep.subr.bf16.mxu0 0
    %4513 = vmatpush1.bf16.msra.mxu0 %v4504
    %4514 = vmatprep.subr.bf16.mxu0 0
    %4515 = vmatpush1.bf16.msra.mxu0 0
    %4516 = vmatprep.subr.bf16.mxu0 0
    %4517 = vmatpush1.bf16.msra.mxu0 0
    %4518 = vmatprep.subr.bf16.mxu0 0
    %4519 = vmatpush1.bf16.msra.mxu0 0
    %4520 = vmatprep.subr.bf16.mxu0 0
    %4521 = vmatpush1.bf16.msra.mxu0 0
    %4522 = vmatprep.subr.bf16.mxu0 0
    %4523 = vmatpush1.bf16.msra.mxu0 0
    %4524 = vmatprep.subr.bf16.mxu0 0
    %4525 = vmatpush1.bf16.msra.mxu0 0
    %4526 = vmatprep.subr.bf16.mxu0 0
    %4527 = vmatpush1.bf16.msra.mxu0 0
    %4528 = vmatprep.subr.bf16.mxu0 0
    %4529 = vmatpush1.bf16.msra.mxu0 0
    %4530 = vmatprep.subr.bf16.mxu0 0
    %4531 = vmatpush1.bf16.msra.mxu0 0
    %4532 = vmatprep.subr.bf16.mxu0 0
    %4533 = vmatpush1.bf16.msra.mxu0 0
    %4534 = vmatprep.subr.bf16.mxu0 0
    %4535 = vmatpush1.bf16.msra.mxu0 0
    %4536 = vmatprep.subr.bf16.mxu0 0
    %4537 = vmatpush1.bf16.msra.mxu0 0
    %4538 = vmatprep.subr.bf16.mxu0 0
    %4539 = vmatpush1.bf16.msra.mxu0 0
    %4540 = vmatprep.subr.bf16.mxu0 0
    %4541 = vmatpush1.bf16.msra.mxu0 0
    %4542 = vmatprep.mubr.bf16.mxu0 0
    %4543 = vmatmul.mubr.bf16.gmra.mrb[0].mxu0 %v4508
    %v4544 = vpop.f32.mrb[0].mxu0
    %v4545 = vadd.f32 %v4490, %v4544
    %v4546 = vpop.f32.mrb[0].mxu0
    %v4547 = vpop.f32.mrb[0].mxu0
    %v4548 = vpop.f32.mrb[0].mxu0
    %4549 = vdwg.mxu0
    %v4550 = vpack.c.bf16 %v4422, %v4422
    %s4551 = scalar_lea.vmem %s5, 160
    %v4552 = vld [vmem:[%s4551] sm:$0xf]
    %v4553 = vld [vmem:[%s4551 + $0x4] sm:$0xf]
    %v4554 = vld [vmem:[%s4551 + $0x8] sm:$0xf]
    %v4555 = vld [vmem:[%s4551 + $0xc] sm:$0xf]
    %v4560 = vunpack.c.l.b16 %v4552
    %v4561 = vunpack.c.l.b16 %v4553
    %v4562 = vunpack.c.l.b16 %v4554
    %v4563 = vunpack.c.l.b16 %v4555
    %v4564 = vpack.c.b16 %v4561, %v4560
    %v4565 = vpack.c.b16 %v4563, %v4562
    %v4569 = vsel %vm1552, %v4550, 0
    %4571 = vmatprep.subr.bf16.mxu0 0
    %4572 = vmatpush1.bf16.msra.mxu0 %v4564
    %4573 = vmatprep.subr.bf16.mxu0 0
    %4574 = vmatpush1.bf16.msra.mxu0 %v4565
    %4575 = vmatprep.subr.bf16.mxu0 0
    %4576 = vmatpush1.bf16.msra.mxu0 0
    %4577 = vmatprep.subr.bf16.mxu0 0
    %4578 = vmatpush1.bf16.msra.mxu0 0
    %4579 = vmatprep.subr.bf16.mxu0 0
    %4580 = vmatpush1.bf16.msra.mxu0 0
    %4581 = vmatprep.subr.bf16.mxu0 0
    %4582 = vmatpush1.bf16.msra.mxu0 0
    %4583 = vmatprep.subr.bf16.mxu0 0
    %4584 = vmatpush1.bf16.msra.mxu0 0
    %4585 = vmatprep.subr.bf16.mxu0 0
    %4586 = vmatpush1.bf16.msra.mxu0 0
    %4587 = vmatprep.subr.bf16.mxu0 0
    %4588 = vmatpush1.bf16.msra.mxu0 0
    %4589 = vmatprep.subr.bf16.mxu0 0
    %4590 = vmatpush1.bf16.msra.mxu0 0
    %4591 = vmatprep.subr.bf16.mxu0 0
    %4592 = vmatpush1.bf16.msra.mxu0 0
    %4593 = vmatprep.subr.bf16.mxu0 0
    %4594 = vmatpush1.bf16.msra.mxu0 0
    %4595 = vmatprep.subr.bf16.mxu0 0
    %4596 = vmatpush1.bf16.msra.mxu0 0
    %4597 = vmatprep.subr.bf16.mxu0 0
    %4598 = vmatpush1.bf16.msra.mxu0 0
    %4599 = vmatprep.subr.bf16.mxu0 0
    %4600 = vmatpush1.bf16.msra.mxu0 0
    %4601 = vmatprep.subr.bf16.mxu0 0
    %4602 = vmatpush1.bf16.msra.mxu0 0
    %4603 = vmatprep.mubr.bf16.mxu0 0
    %4604 = vmatmul.mubr.bf16.gmra.mrb[0].mxu0 %v4569
    %v4605 = vpop.f32.mrb[0].mxu0
    %v4606 = vadd.f32 0.0, %v4605
    %v4607 = vpop.f32.mrb[0].mxu0
    %v4608 = vpop.f32.mrb[0].mxu0
    %v4609 = vpop.f32.mrb[0].mxu0
    %4610 = vdwg.mxu0
    %v4611 = vadd.f32 %v4545, %v4606
    %v4612 = vpack.c.bf16 %v4423, %v4423
    %s4613 = scalar_lea.vmem %s5, 176
    %v4614 = vld [vmem:[%s4613] sm:$0xf]
    %v4615 = vld [vmem:[%s4613 + $0x4] sm:$0xf]
    %v4616 = vld [vmem:[%s4613 + $0x8] sm:$0xf]
    %v4617 = vld [vmem:[%s4613 + $0xc] sm:$0xf]
    %v4622 = vunpack.c.l.b16 %v4614
    %v4623 = vunpack.c.l.b16 %v4615
    %v4624 = vunpack.c.l.b16 %v4616
    %v4625 = vunpack.c.l.b16 %v4617
    %v4626 = vpack.c.b16 %v4623, %v4622
    %v4627 = vpack.c.b16 %v4625, %v4624
    %v4631 = vsel %vm1552, %v4612, 0
    %4633 = vmatprep.subr.bf16.mxu0 0
    %4634 = vmatpush1.bf16.msra.mxu0 %v4626
    %4635 = vmatprep.subr.bf16.mxu0 0
    %4636 = vmatpush1.bf16.msra.mxu0 %v4627
    %4637 = vmatprep.subr.bf16.mxu0 0
    %4638 = vmatpush1.bf16.msra.mxu0 0
    %4639 = vmatprep.subr.bf16.mxu0 0
    %4640 = vmatpush1.bf16.msra.mxu0 0
    %4641 = vmatprep.subr.bf16.mxu0 0
    %4642 = vmatpush1.bf16.msra.mxu0 0
    %4643 = vmatprep.subr.bf16.mxu0 0
    %4644 = vmatpush1.bf16.msra.mxu0 0
    %4645 = vmatprep.subr.bf16.mxu0 0
    %4646 = vmatpush1.bf16.msra.mxu0 0
    %4647 = vmatprep.subr.bf16.mxu0 0
    %4648 = vmatpush1.bf16.msra.mxu0 0
    %4649 = vmatprep.subr.bf16.mxu0 0
    %4650 = vmatpush1.bf16.msra.mxu0 0
    %4651 = vmatprep.subr.bf16.mxu0 0
    %4652 = vmatpush1.bf16.msra.mxu0 0
    %4653 = vmatprep.subr.bf16.mxu0 0
    %4654 = vmatpush1.bf16.msra.mxu0 0
    %4655 = vmatprep.subr.bf16.mxu0 0
    %4656 = vmatpush1.bf16.msra.mxu0 0
    %4657 = vmatprep.subr.bf16.mxu0 0
    %4658 = vmatpush1.bf16.msra.mxu0 0
    %4659 = vmatprep.subr.bf16.mxu0 0
    %4660 = vmatpush1.bf16.msra.mxu0 0
    %4661 = vmatprep.subr.bf16.mxu0 0
    %4662 = vmatpush1.bf16.msra.mxu0 0
    %4663 = vmatprep.subr.bf16.mxu0 0
    %4664 = vmatpush1.bf16.msra.mxu0 0
    %4665 = vmatprep.mubr.bf16.mxu0 0
    %4666 = vmatmul.mubr.bf16.gmra.mrb[0].mxu0 %v4631
    %v4667 = vpop.f32.mrb[0].mxu0
    %v4668 = vadd.f32 0.0, %v4667
    %v4669 = vpop.f32.mrb[0].mxu0
    %v4670 = vpop.f32.mrb[0].mxu0
    %v4671 = vpop.f32.mrb[0].mxu0
    %4672 = vdwg.mxu0
    %v4673 = vadd.f32 %v4611, %v4668
    %v4674 = vpack.c.bf16 %v4424, %v4424
    %s4675 = scalar_lea.vmem %s5, 192
    %v4676 = vld [vmem:[%s4675] sm:$0xf]
    %v4677 = vld [vmem:[%s4675 + $0x4] sm:$0xf]
    %v4678 = vld [vmem:[%s4675 + $0x8] sm:$0xf]
    %v4679 = vld [vmem:[%s4675 + $0xc] sm:$0xf]
    %v4684 = vunpack.c.l.b16 %v4676
    %v4685 = vunpack.c.l.b16 %v4677
    %v4686 = vunpack.c.l.b16 %v4678
    %v4687 = vunpack.c.l.b16 %v4679
    %v4688 = vpack.c.b16 %v4685, %v4684
    %v4689 = vpack.c.b16 %v4687, %v4686
    %v4693 = vsel %vm1552, %v4674, 0
    %4695 = vmatprep.subr.bf16.mxu0 0
    %4696 = vmatpush1.bf16.msra.mxu0 %v4688
    %4697 = vmatprep.subr.bf16.mxu0 0
    %4698 = vmatpush1.bf16.msra.mxu0 %v4689
    %4699 = vmatprep.subr.bf16.mxu0 0
    %4700 = vmatpush1.bf16.msra.mxu0 0
    %4701 = vmatprep.subr.bf16.mxu0 0
    %4702 = vmatpush1.bf16.msra.mxu0 0
    %4703 = vmatprep.subr.bf16.mxu0 0
    %4704 = vmatpush1.bf16.msra.mxu0 0
    %4705 = vmatprep.subr.bf16.mxu0 0
    %4706 = vmatpush1.bf16.msra.mxu0 0
    %4707 = vmatprep.subr.bf16.mxu0 0
    %4708 = vmatpush1.bf16.msra.mxu0 0
    %4709 = vmatprep.subr.bf16.mxu0 0
    %4710 = vmatpush1.bf16.msra.mxu0 0
    %4711 = vmatprep.subr.bf16.mxu0 0
    %4712 = vmatpush1.bf16.msra.mxu0 0
    %4713 = vmatprep.subr.bf16.mxu0 0
    %4714 = vmatpush1.bf16.msra.mxu0 0
    %4715 = vmatprep.subr.bf16.mxu0 0
    %4716 = vmatpush1.bf16.msra.mxu0 0
    %4717 = vmatprep.subr.bf16.mxu0 0
    %4718 = vmatpush1.bf16.msra.mxu0 0
    %4719 = vmatprep.subr.bf16.mxu0 0
    %4720 = vmatpush1.bf16.msra.mxu0 0
    %4721 = vmatprep.subr.bf16.mxu0 0
    %4722 = vmatpush1.bf16.msra.mxu0 0
    %4723 = vmatprep.subr.bf16.mxu0 0
    %4724 = vmatpush1.bf16.msra.mxu0 0
    %4725 = vmatprep.subr.bf16.mxu0 0
    %4726 = vmatpush1.bf16.msra.mxu0 0
    %4727 = vmatprep.mubr.bf16.mxu0 0
    %4728 = vmatmul.mubr.bf16.gmra.mrb[0].mxu0 %v4693
    %v4729 = vpop.f32.mrb[0].mxu0
    %v4730 = vadd.f32 0.0, %v4729
    %v4731 = vpop.f32.mrb[0].mxu0
    %v4732 = vpop.f32.mrb[0].mxu0
    %v4733 = vpop.f32.mrb[0].mxu0
    %4734 = vdwg.mxu0
    %v4735 = vadd.f32 %v4673, %v4730
    %v4736 = vpack.c.bf16 %v4425, %v4425
    %s4737 = scalar_lea.vmem %s5, 208
    %v4738 = vld [vmem:[%s4737] sm:$0xf]
    %v4739 = vld [vmem:[%s4737 + $0x4] sm:$0xf]
    %v4740 = vld [vmem:[%s4737 + $0x8] sm:$0xf]
    %v4741 = vld [vmem:[%s4737 + $0xc] sm:$0xf]
    %v4746 = vunpack.c.l.b16 %v4738
    %v4747 = vunpack.c.l.b16 %v4739
    %v4748 = vunpack.c.l.b16 %v4740
    %v4749 = vunpack.c.l.b16 %v4741
    %v4750 = vpack.c.b16 %v4747, %v4746
    %v4751 = vpack.c.b16 %v4749, %v4748
    %v4755 = vsel %vm1552, %v4736, 0
    %4757 = vmatprep.subr.bf16.mxu0 0
    %4758 = vmatpush1.bf16.msra.mxu0 %v4750
    %4759 = vmatprep.subr.bf16.mxu0 0
    %4760 = vmatpush1.bf16.msra.mxu0 %v4751
    %4761 = vmatprep.subr.bf16.mxu0 0
    %4762 = vmatpush1.bf16.msra.mxu0 0
    %4763 = vmatprep.subr.bf16.mxu0 0
    %4764 = vmatpush1.bf16.msra.mxu0 0
    %4765 = vmatprep.subr.bf16.mxu0 0
    %4766 = vmatpush1.bf16.msra.mxu0 0
    %4767 = vmatprep.subr.bf16.mxu0 0
    %4768 = vmatpush1.bf16.msra.mxu0 0
    %4769 = vmatprep.subr.bf16.mxu0 0
    %4770 = vmatpush1.bf16.msra.mxu0 0
    %4771 = vmatprep.subr.bf16.mxu0 0
    %4772 = vmatpush1.bf16.msra.mxu0 0
    %4773 = vmatprep.subr.bf16.mxu0 0
    %4774 = vmatpush1.bf16.msra.mxu0 0
    %4775 = vmatprep.subr.bf16.mxu0 0
    %4776 = vmatpush1.bf16.msra.mxu0 0
    %4777 = vmatprep.subr.bf16.mxu0 0
    %4778 = vmatpush1.bf16.msra.mxu0 0
    %4779 = vmatprep.subr.bf16.mxu0 0
    %4780 = vmatpush1.bf16.msra.mxu0 0
    %4781 = vmatprep.subr.bf16.mxu0 0
    %4782 = vmatpush1.bf16.msra.mxu0 0
    %4783 = vmatprep.subr.bf16.mxu0 0
    %4784 = vmatpush1.bf16.msra.mxu0 0
    %4785 = vmatprep.subr.bf16.mxu0 0
    %4786 = vmatpush1.bf16.msra.mxu0 0
    %4787 = vmatprep.subr.bf16.mxu0 0
    %4788 = vmatpush1.bf16.msra.mxu0 0
    %4789 = vmatprep.mubr.bf16.mxu0 0
    %4790 = vmatmul.mubr.bf16.gmra.mrb[0].mxu0 %v4755
    %v4791 = vpop.f32.mrb[0].mxu0
    %v4792 = vadd.f32 0.0, %v4791
    %v4793 = vpop.f32.mrb[0].mxu0
    %v4794 = vpop.f32.mrb[0].mxu0
    %v4795 = vpop.f32.mrb[0].mxu0
    %4796 = vdwg.mxu0
    %v4797 = vadd.f32 %v4735, %v4792
    %v4798 = vpack.c.bf16 %v4426, %v4426
    %s4799 = scalar_lea.vmem %s5, 224
    %v4800 = vld [vmem:[%s4799] sm:$0xf]
    %v4801 = vld [vmem:[%s4799 + $0x4] sm:$0xf]
    %v4802 = vld [vmem:[%s4799 + $0x8] sm:$0xf]
    %v4803 = vld [vmem:[%s4799 + $0xc] sm:$0xf]
    %v4808 = vunpack.c.l.b16 %v4800
    %v4809 = vunpack.c.l.b16 %v4801
    %v4810 = vunpack.c.l.b16 %v4802
    %v4811 = vunpack.c.l.b16 %v4803
    %v4812 = vpack.c.b16 %v4809, %v4808
    %v4813 = vpack.c.b16 %v4811, %v4810
    %v4817 = vsel %vm1552, %v4798, 0
    %4819 = vmatprep.subr.bf16.mxu0 0
    %4820 = vmatpush1.bf16.msra.mxu0 %v4812
    %4821 = vmatprep.subr.bf16.mxu0 0
    %4822 = vmatpush1.bf16.msra.mxu0 %v4813
    %4823 = vmatprep.subr.bf16.mxu0 0
    %4824 = vmatpush1.bf16.msra.mxu0 0
    %4825 = vmatprep.subr.bf16.mxu0 0
    %4826 = vmatpush1.bf16.msra.mxu0 0
    %4827 = vmatprep.subr.bf16.mxu0 0
    %4828 = vmatpush1.bf16.msra.mxu0 0
    %4829 = vmatprep.subr.bf16.mxu0 0
    %4830 = vmatpush1.bf16.msra.mxu0 0
    %4831 = vmatprep.subr.bf16.mxu0 0
    %4832 = vmatpush1.bf16.msra.mxu0 0
    %4833 = vmatprep.subr.bf16.mxu0 0
    %4834 = vmatpush1.bf16.msra.mxu0 0
    %4835 = vmatprep.subr.bf16.mxu0 0
    %4836 = vmatpush1.bf16.msra.mxu0 0
    %4837 = vmatprep.subr.bf16.mxu0 0
    %4838 = vmatpush1.bf16.msra.mxu0 0
    %4839 = vmatprep.subr.bf16.mxu0 0
    %4840 = vmatpush1.bf16.msra.mxu0 0
    %4841 = vmatprep.subr.bf16.mxu0 0
    %4842 = vmatpush1.bf16.msra.mxu0 0
    %4843 = vmatprep.subr.bf16.mxu0 0
    %4844 = vmatpush1.bf16.msra.mxu0 0
    %4845 = vmatprep.subr.bf16.mxu0 0
    %4846 = vmatpush1.bf16.msra.mxu0 0
    %4847 = vmatprep.subr.bf16.mxu0 0
    %4848 = vmatpush1.bf16.msra.mxu0 0
    %4849 = vmatprep.subr.bf16.mxu0 0
    %4850 = vmatpush1.bf16.msra.mxu0 0
    %4851 = vmatprep.mubr.bf16.mxu0 0
    %4852 = vmatmul.mubr.bf16.gmra.mrb[0].mxu0 %v4817
    %v4853 = vpop.f32.mrb[0].mxu0
    %v4854 = vadd.f32 0.0, %v4853
    %v4855 = vpop.f32.mrb[0].mxu0
    %v4856 = vpop.f32.mrb[0].mxu0
    %v4857 = vpop.f32.mrb[0].mxu0
    %4858 = vdwg.mxu0
    %v4859 = vadd.f32 %v4797, %v4854
    %v4860 = vpack.c.bf16 %v4427, %v4427
    %s4861 = scalar_lea.vmem %s5, 240
    %v4862 = vld [vmem:[%s4861] sm:$0xf]
    %v4863 = vld [vmem:[%s4861 + $0x4] sm:$0xf]
    %v4864 = vld [vmem:[%s4861 + $0x8] sm:$0xf]
    %v4865 = vld [vmem:[%s4861 + $0xc] sm:$0xf]
    %v4870 = vunpack.c.l.b16 %v4862
    %v4871 = vunpack.c.l.b16 %v4863
    %v4872 = vunpack.c.l.b16 %v4864
    %v4873 = vunpack.c.l.b16 %v4865
    %v4874 = vpack.c.b16 %v4871, %v4870
    %v4875 = vpack.c.b16 %v4873, %v4872
    %v4879 = vsel %vm1552, %v4860, 0
    %4881 = vmatprep.subr.bf16.mxu0 0
    %4882 = vmatpush1.bf16.msra.mxu0 %v4874
    %4883 = vmatprep.subr.bf16.mxu0 0
    %4884 = vmatpush1.bf16.msra.mxu0 %v4875
    %4885 = vmatprep.subr.bf16.mxu0 0
    %4886 = vmatpush1.bf16.msra.mxu0 0
    %4887 = vmatprep.subr.bf16.mxu0 0
    %4888 = vmatpush1.bf16.msra.mxu0 0
    %4889 = vmatprep.subr.bf16.mxu0 0
    %4890 = vmatpush1.bf16.msra.mxu0 0
    %4891 = vmatprep.subr.bf16.mxu0 0
    %4892 = vmatpush1.bf16.msra.mxu0 0
    %4893 = vmatprep.subr.bf16.mxu0 0
    %4894 = vmatpush1.bf16.msra.mxu0 0
    %4895 = vmatprep.subr.bf16.mxu0 0
    %4896 = vmatpush1.bf16.msra.mxu0 0
    %4897 = vmatprep.subr.bf16.mxu0 0
    %4898 = vmatpush1.bf16.msra.mxu0 0
    %4899 = vmatprep.subr.bf16.mxu0 0
    %4900 = vmatpush1.bf16.msra.mxu0 0
    %4901 = vmatprep.subr.bf16.mxu0 0
    %4902 = vmatpush1.bf16.msra.mxu0 0
    %4903 = vmatprep.subr.bf16.mxu0 0
    %4904 = vmatpush1.bf16.msra.mxu0 0
    %4905 = vmatprep.subr.bf16.mxu0 0
    %4906 = vmatpush1.bf16.msra.mxu0 0
    %4907 = vmatprep.subr.bf16.mxu0 0
    %4908 = vmatpush1.bf16.msra.mxu0 0
    %4909 = vmatprep.subr.bf16.mxu0 0
    %4910 = vmatpush1.bf16.msra.mxu0 0
    %4911 = vmatprep.subr.bf16.mxu0 0
    %4912 = vmatpush1.bf16.msra.mxu0 0
    %4913 = vmatprep.mubr.bf16.mxu0 0
    %4914 = vmatmul.mubr.bf16.gmra.mrb[0].mxu0 %v4879
    %v4915 = vpop.f32.mrb[0].mxu0
    %v4916 = vadd.f32 0.0, %v4915
    %v4917 = vpop.f32.mrb[0].mxu0
    %v4918 = vpop.f32.mrb[0].mxu0
    %v4919 = vpop.f32.mrb[0].mxu0
    %4920 = vdwg.mxu0
    %v4921 = vadd.f32 %v4859, %v4916
    %s4922 = scalar_lea.vmem %s6, 1
    %v4923 = vld [vmem:[%s4922] sm:$0x1]
    %v4925 = vlaneseq
    %v4926 = vshrl.u32 %v4925, 7
    %v4927 = vsub.s32 0, %v4926
    %v4928 = vrot.slane %v4923, %v4927
    %v4930 = vadd.f32 %v4921, %v4928
    %v4931 = vmax.f32 %v4930, 0.0
    %v4932 = vpack.c.bf16 %v4931, %v4931
    %s4933 = scalar_lea.vmem %s7, 512
    %v4934 = vld [vmem:[%s4933] sm:$0xff]
    %v4935 = vld [vmem:[%s4933 + $0x8] sm:$0xff]
    %v4936 = vld [vmem:[%s4933 + $0x10] sm:$0xff]
    %v4937 = vld [vmem:[%s4933 + $0x18] sm:$0xff]
    %v4938 = vld [vmem:[%s4933 + $0x20] sm:$0xff]
    %v4939 = vld [vmem:[%s4933 + $0x28] sm:$0xff]
    %v4940 = vld [vmem:[%s4933 + $0x30] sm:$0xff]
    %v4941 = vld [vmem:[%s4933 + $0x38] sm:$0xff]
    %v4950 = vunpack.c.l.b16 %v4934
    %v4951 = vunpack.c.h.b16 %v4934
    %v4952 = vunpack.c.l.b16 %v4935
    %v4953 = vunpack.c.h.b16 %v4935
    %v4954 = vunpack.c.l.b16 %v4936
    %v4955 = vunpack.c.h.b16 %v4936
    %v4956 = vunpack.c.l.b16 %v4937
    %v4957 = vunpack.c.h.b16 %v4937
    %v4958 = vunpack.c.l.b16 %v4938
    %v4959 = vunpack.c.h.b16 %v4938
    %v4960 = vunpack.c.l.b16 %v4939
    %v4961 = vunpack.c.h.b16 %v4939
    %v4962 = vunpack.c.l.b16 %v4940
    %v4963 = vunpack.c.h.b16 %v4940
    %v4964 = vunpack.c.l.b16 %v4941
    %v4965 = vunpack.c.h.b16 %v4941
    %v4966 = vpack.c.b16 %v4952, %v4950
    %v4967 = vpack.c.b16 %v4953, %v4951
    %v4968 = vpack.c.b16 %v4956, %v4954
    %v4969 = vpack.c.b16 %v4957, %v4955
    %v4970 = vpack.c.b16 %v4960, %v4958
    %v4971 = vpack.c.b16 %v4961, %v4959
    %v4972 = vpack.c.b16 %v4964, %v4962
    %v4973 = vpack.c.b16 %v4965, %v4963
    %v4983 = vsel %vm2081, %v4932, 0
    %4985 = vmatprep.subr.bf16.mxu0 %v4967
    %4986 = vmatpush1.bf16.msra.mxu0 %v4966
    %4987 = vmatprep.subr.bf16.mxu0 %v4969
    %4988 = vmatpush1.bf16.msra.mxu0 %v4968
    %4989 = vmatprep.subr.bf16.mxu0 %v4971
    %4990 = vmatpush1.bf16.msra.mxu0 %v4970
    %4991 = vmatprep.subr.bf16.mxu0 %v4973
    %4992 = vmatpush1.bf16.msra.mxu0 %v4972
    %4993 = vmatprep.subr.bf16.mxu0 0
    %4994 = vmatpush1.bf16.msra.mxu0 0
    %4995 = vmatprep.subr.bf16.mxu0 0
    %4996 = vmatpush1.bf16.msra.mxu0 0
    %4997 = vmatprep.subr.bf16.mxu0 0
    %4998 = vmatpush1.bf16.msra.mxu0 0
    %4999 = vmatprep.subr.bf16.mxu0 0
    %5000 = vmatpush1.bf16.msra.mxu0 0
    %5001 = vmatprep.subr.bf16.mxu0 0
    %5002 = vmatpush1.bf16.msra.mxu0 0
    %5003 = vmatprep.subr.bf16.mxu0 0
    %5004 = vmatpush1.bf16.msra.mxu0 0
    %5005 = vmatprep.subr.bf16.mxu0 0
    %5006 = vmatpush1.bf16.msra.mxu0 0
    %5007 = vmatprep.subr.bf16.mxu0 0
    %5008 = vmatpush1.bf16.msra.mxu0 0
    %5009 = vmatprep.subr.bf16.mxu0 0
    %5010 = vmatpush1.bf16.msra.mxu0 0
    %5011 = vmatprep.subr.bf16.mxu0 0
    %5012 = vmatpush1.bf16.msra.mxu0 0
    %5013 = vmatprep.subr.bf16.mxu0 0
    %5014 = vmatpush1.bf16.msra.mxu0 0
    %5015 = vmatprep.subr.bf16.mxu0 0
    %5016 = vmatpush1.bf16.msra.mxu0 0
    %5017 = vmatprep.mubr.bf16.mxu0 0
    %5018 = vmatmul.mubr.bf16.gmra.mrb[0].mxu0 %v4983
    %v5019 = vpop.f32.mrb[0].mxu0
    %v5020 = vadd.f32 0.0, %v5019
    %v5021 = vpop.f32.mrb[0].mxu0
    %v5022 = vadd.f32 0.0, %v5021
    %v5023 = vpop.f32.mrb[0].mxu0
    %v5024 = vpop.f32.mrb[0].mxu0
    %5025 = vdwg.mxu0
    %v5028 = vcombine.low %v5020, %v5022
    %v5030 = vunpack.c.l.s4 1966171168
    %v5031 = vunpack.c.0.s8 %v5030
    %v5032 = vlaneseq
    %v5033 = vshrl.u32 %v5032, 7
    %v5034 = vsub.s32 %v5031, %v5033
    %v5035 = vrot.slane %v5028, %v5034
    %v5037 = vunpack.c.l.s4 1966171168
    %v5038 = vunpack.c.0.s8 %v5037
    %v5039 = vlaneseq
    %v5040 = vshrl.u32 %v5039, 7
    %v5041 = vsub.s32 %v5038, %v5040
    %v5042 = vrot.slane %v5035, %v5041
    %v5044 = vadd.f32 %v2937, %v5042
    %s5045 = scalar_lea.vmem %s7, 576
    %v5046 = vld [vmem:[%s5045] sm:$0xff]
    %v5047 = vld [vmem:[%s5045 + $0x8] sm:$0xff]
    %v5048 = vld [vmem:[%s5045 + $0x10] sm:$0xff]
    %v5049 = vld [vmem:[%s5045 + $0x18] sm:$0xff]
    %v5050 = vld [vmem:[%s5045 + $0x20] sm:$0xff]
    %v5051 = vld [vmem:[%s5045 + $0x28] sm:$0xff]
    %v5052 = vld [vmem:[%s5045 + $0x30] sm:$0xff]
    %v5053 = vld [vmem:[%s5045 + $0x38] sm:$0xff]
    %v5054 = vshrl.u32 %v4932, 16
    %v5064 = vunpack.c.l.b16 %v5046
    %v5065 = vunpack.c.h.b16 %v5046
    %v5066 = vunpack.c.l.b16 %v5047
    %v5067 = vunpack.c.h.b16 %v5047
    %v5068 = vunpack.c.l.b16 %v5048
    %v5069 = vunpack.c.h.b16 %v5048
    %v5070 = vunpack.c.l.b16 %v5049
    %v5071 = vunpack.c.h.b16 %v5049
    %v5072 = vunpack.c.l.b16 %v5050
    %v5073 = vunpack.c.h.b16 %v5050
    %v5074 = vunpack.c.l.b16 %v5051
    %v5075 = vunpack.c.h.b16 %v5051
    %v5076 = vunpack.c.l.b16 %v5052
    %v5077 = vunpack.c.h.b16 %v5052
    %v5078 = vunpack.c.l.b16 %v5053
    %v5079 = vunpack.c.h.b16 %v5053
    %v5080 = vpack.c.b16 %v5066, %v5064
    %v5081 = vpack.c.b16 %v5067, %v5065
    %v5082 = vpack.c.b16 %v5070, %v5068
    %v5083 = vpack.c.b16 %v5071, %v5069
    %v5084 = vpack.c.b16 %v5074, %v5072
    %v5085 = vpack.c.b16 %v5075, %v5073
    %v5086 = vpack.c.b16 %v5078, %v5076
    %v5087 = vpack.c.b16 %v5079, %v5077
    %v5097 = vsel %vm2081, %v5054, 0
    %5099 = vmatprep.subr.bf16.mxu0 %v5081
    %5100 = vmatpush1.bf16.msra.mxu0 %v5080
    %5101 = vmatprep.subr.bf16.mxu0 %v5083
    %5102 = vmatpush1.bf16.msra.mxu0 %v5082
    %5103 = vmatprep.subr.bf16.mxu0 %v5085
    %5104 = vmatpush1.bf16.msra.mxu0 %v5084
    %5105 = vmatprep.subr.bf16.mxu0 %v5087
    %5106 = vmatpush1.bf16.msra.mxu0 %v5086
    %5107 = vmatprep.subr.bf16.mxu0 0
    %5108 = vmatpush1.bf16.msra.mxu0 0
    %5109 = vmatprep.subr.bf16.mxu0 0
    %5110 = vmatpush1.bf16.msra.mxu0 0
    %5111 = vmatprep.subr.bf16.mxu0 0
    %5112 = vmatpush1.bf16.msra.mxu0 0
    %5113 = vmatprep.subr.bf16.mxu0 0
    %5114 = vmatpush1.bf16.msra.mxu0 0
    %5115 = vmatprep.subr.bf16.mxu0 0
    %5116 = vmatpush1.bf16.msra.mxu0 0
    %5117 = vmatprep.subr.bf16.mxu0 0
    %5118 = vmatpush1.bf16.msra.mxu0 0
    %5119 = vmatprep.subr.bf16.mxu0 0
    %5120 = vmatpush1.bf16.msra.mxu0 0
    %5121 = vmatprep.subr.bf16.mxu0 0
    %5122 = vmatpush1.bf16.msra.mxu0 0
    %5123 = vmatprep.subr.bf16.mxu0 0
    %5124 = vmatpush1.bf16.msra.mxu0 0
    %5125 = vmatprep.subr.bf16.mxu0 0
    %5126 = vmatpush1.bf16.msra.mxu0 0
    %5127 = vmatprep.subr.bf16.mxu0 0
    %5128 = vmatpush1.bf16.msra.mxu0 0
    %5129 = vmatprep.subr.bf16.mxu0 0
    %5130 = vmatpush1.bf16.msra.mxu0 0
    %5131 = vmatprep.mubr.bf16.mxu0 0
    %5132 = vmatmul.mubr.bf16.gmra.mrb[0].mxu0 %v5097
    %v5133 = vpop.f32.mrb[0].mxu0
    %v5134 = vadd.f32 0.0, %v5133
    %v5135 = vpop.f32.mrb[0].mxu0
    %v5136 = vadd.f32 0.0, %v5135
    %v5137 = vpop.f32.mrb[0].mxu0
    %v5138 = vpop.f32.mrb[0].mxu0
    %5139 = vdwg.mxu0
    %v5142 = vcombine.low %v5134, %v5136
    %v5144 = vunpack.c.l.s4 1966171168
    %v5145 = vunpack.c.0.s8 %v5144
    %v5146 = vlaneseq
    %v5147 = vshrl.u32 %v5146, 7
    %v5148 = vsub.s32 %v5145, %v5147
    %v5149 = vrot.slane %v5142, %v5148
    %v5151 = vunpack.c.l.s4 1966171168
    %v5152 = vunpack.c.0.s8 %v5151
    %v5153 = vlaneseq
    %v5154 = vshrl.u32 %v5153, 7
    %v5155 = vsub.s32 %v5152, %v5154
    %v5156 = vrot.slane %v5149, %v5155
    %v5158 = vadd.f32 %v5044, %v5156
    %s5159 = scalar_lea.vmem %s7, 640
    %v5160 = vld [vmem:[%s5159] sm:$0xff]
    %v5161 = vld [vmem:[%s5159 + $0x8] sm:$0xff]
    %v5162 = vld [vmem:[%s5159 + $0x10] sm:$0xff]
    %v5163 = vld [vmem:[%s5159 + $0x18] sm:$0xff]
    %v5164 = vld [vmem:[%s5159 + $0x20] sm:$0xff]
    %v5165 = vld [vmem:[%s5159 + $0x28] sm:$0xff]
    %v5166 = vld [vmem:[%s5159 + $0x30] sm:$0xff]
    %v5167 = vld [vmem:[%s5159 + $0x38] sm:$0xff]
    %v5169 = vrot.slane %v4932, 1
    %v5178 = vunpack.c.l.b16 %v5160
    %v5179 = vunpack.c.h.b16 %v5160
    %v5180 = vunpack.c.l.b16 %v5161
    %v5181 = vunpack.c.h.b16 %v5161
    %v5182 = vunpack.c.l.b16 %v5162
    %v5183 = vunpack.c.h.b16 %v5162
    %v5184 = vunpack.c.l.b16 %v5163
    %v5185 = vunpack.c.h.b16 %v5163
    %v5186 = vunpack.c.l.b16 %v5164
    %v5187 = vunpack.c.h.b16 %v5164
    %v5188 = vunpack.c.l.b16 %v5165
    %v5189 = vunpack.c.h.b16 %v5165
    %v5190 = vunpack.c.l.b16 %v5166
    %v5191 = vunpack.c.h.b16 %v5166
    %v5192 = vunpack.c.l.b16 %v5167
    %v5193 = vunpack.c.h.b16 %v5167
    %v5194 = vpack.c.b16 %v5180, %v5178
    %v5195 = vpack.c.b16 %v5181, %v5179
    %v5196 = vpack.c.b16 %v5184, %v5182
    %v5197 = vpack.c.b16 %v5185, %v5183
    %v5198 = vpack.c.b16 %v5188, %v5186
    %v5199 = vpack.c.b16 %v5189, %v5187
    %v5200 = vpack.c.b16 %v5192, %v5190
    %v5201 = vpack.c.b16 %v5193, %v5191
    %v5211 = vsel %vm2081, %v5169, 0
    %5213 = vmatprep.subr.bf16.mxu0 %v5195
    %5214 = vmatpush1.bf16.msra.mxu0 %v5194
    %5215 = vmatprep.subr.bf16.mxu0 %v5197
    %5216 = vmatpush1.bf16.msra.mxu0 %v5196
    %5217 = vmatprep.subr.bf16.mxu0 %v5199
    %5218 = vmatpush1.bf16.msra.mxu0 %v5198
    %5219 = vmatprep.subr.bf16.mxu0 %v5201
    %5220 = vmatpush1.bf16.msra.mxu0 %v5200
    %5221 = vmatprep.subr.bf16.mxu0 0
    %5222 = vmatpush1.bf16.msra.mxu0 0
    %5223 = vmatprep.subr.bf16.mxu0 0
    %5224 = vmatpush1.bf16.msra.mxu0 0
    %5225 = vmatprep.subr.bf16.mxu0 0
    %5226 = vmatpush1.bf16.msra.mxu0 0
    %5227 = vmatprep.subr.bf16.mxu0 0
    %5228 = vmatpush1.bf16.msra.mxu0 0
    %5229 = vmatprep.subr.bf16.mxu0 0
    %5230 = vmatpush1.bf16.msra.mxu0 0
    %5231 = vmatprep.subr.bf16.mxu0 0
    %5232 = vmatpush1.bf16.msra.mxu0 0
    %5233 = vmatprep.subr.bf16.mxu0 0
    %5234 = vmatpush1.bf16.msra.mxu0 0
    %5235 = vmatprep.subr.bf16.mxu0 0
    %5236 = vmatpush1.bf16.msra.mxu0 0
    %5237 = vmatprep.subr.bf16.mxu0 0
    %5238 = vmatpush1.bf16.msra.mxu0 0
    %5239 = vmatprep.subr.bf16.mxu0 0
    %5240 = vmatpush1.bf16.msra.mxu0 0
    %5241 = vmatprep.subr.bf16.mxu0 0
    %5242 = vmatpush1.bf16.msra.mxu0 0
    %5243 = vmatprep.subr.bf16.mxu0 0
    %5244 = vmatpush1.bf16.msra.mxu0 0
    %5245 = vmatprep.mubr.bf16.mxu0 0
    %5246 = vmatmul.mubr.bf16.gmra.mrb[0].mxu0 %v5211
    %v5247 = vpop.f32.mrb[0].mxu0
    %v5248 = vadd.f32 0.0, %v5247
    %v5249 = vpop.f32.mrb[0].mxu0
    %v5250 = vadd.f32 0.0, %v5249
    %v5251 = vpop.f32.mrb[0].mxu0
    %v5252 = vpop.f32.mrb[0].mxu0
    %5253 = vdwg.mxu0
    %v5256 = vcombine.low %v5248, %v5250
    %v5258 = vunpack.c.l.s4 1966171168
    %v5259 = vunpack.c.0.s8 %v5258
    %v5260 = vlaneseq
    %v5261 = vshrl.u32 %v5260, 7
    %v5262 = vsub.s32 %v5259, %v5261
    %v5263 = vrot.slane %v5256, %v5262
    %v5265 = vunpack.c.l.s4 1966171168
    %v5266 = vunpack.c.0.s8 %v5265
    %v5267 = vlaneseq
    %v5268 = vshrl.u32 %v5267, 7
    %v5269 = vsub.s32 %v5266, %v5268
    %v5270 = vrot.slane %v5263, %v5269
    %v5272 = vadd.f32 %v5158, %v5270
    %s5273 = scalar_lea.vmem %s7, 704
    %v5274 = vld [vmem:[%s5273] sm:$0xff]
    %v5275 = vld [vmem:[%s5273 + $0x8] sm:$0xff]
    %v5276 = vld [vmem:[%s5273 + $0x10] sm:$0xff]
    %v5277 = vld [vmem:[%s5273 + $0x18] sm:$0xff]
    %v5278 = vld [vmem:[%s5273 + $0x20] sm:$0xff]
    %v5279 = vld [vmem:[%s5273 + $0x28] sm:$0xff]
    %v5280 = vld [vmem:[%s5273 + $0x30] sm:$0xff]
    %v5281 = vld [vmem:[%s5273 + $0x38] sm:$0xff]
    %v5282 = vrot.slane %v5054, 1
    %v5291 = vunpack.c.l.b16 %v5274
    %v5292 = vunpack.c.h.b16 %v5274
    %v5293 = vunpack.c.l.b16 %v5275
    %v5294 = vunpack.c.h.b16 %v5275
    %v5295 = vunpack.c.l.b16 %v5276
    %v5296 = vunpack.c.h.b16 %v5276
    %v5297 = vunpack.c.l.b16 %v5277
    %v5298 = vunpack.c.h.b16 %v5277
    %v5299 = vunpack.c.l.b16 %v5278
    %v5300 = vunpack.c.h.b16 %v5278
    %v5301 = vunpack.c.l.b16 %v5279
    %v5302 = vunpack.c.h.b16 %v5279
    %v5303 = vunpack.c.l.b16 %v5280
    %v5304 = vunpack.c.h.b16 %v5280
    %v5305 = vunpack.c.l.b16 %v5281
    %v5306 = vunpack.c.h.b16 %v5281
    %v5307 = vpack.c.b16 %v5293, %v5291
    %v5308 = vpack.c.b16 %v5294, %v5292
    %v5309 = vpack.c.b16 %v5297, %v5295
    %v5310 = vpack.c.b16 %v5298, %v5296
    %v5311 = vpack.c.b16 %v5301, %v5299
    %v5312 = vpack.c.b16 %v5302, %v5300
    %v5313 = vpack.c.b16 %v5305, %v5303
    %v5314 = vpack.c.b16 %v5306, %v5304
    %v5324 = vsel %vm2081, %v5282, 0
    %5326 = vmatprep.subr.bf16.mxu0 %v5308
    %5327 = vmatpush1.bf16.msra.mxu0 %v5307
    %5328 = vmatprep.subr.bf16.mxu0 %v5310
    %5329 = vmatpush1.bf16.msra.mxu0 %v5309
    %5330 = vmatprep.subr.bf16.mxu0 %v5312
    %5331 = vmatpush1.bf16.msra.mxu0 %v5311
    %5332 = vmatprep.subr.bf16.mxu0 %v5314
    %5333 = vmatpush1.bf16.msra.mxu0 %v5313
    %5334 = vmatprep.subr.bf16.mxu0 0
    %5335 = vmatpush1.bf16.msra.mxu0 0
    %5336 = vmatprep.subr.bf16.mxu0 0
    %5337 = vmatpush1.bf16.msra.mxu0 0
    %5338 = vmatprep.subr.bf16.mxu0 0
    %5339 = vmatpush1.bf16.msra.mxu0 0
    %5340 = vmatprep.subr.bf16.mxu0 0
    %5341 = vmatpush1.bf16.msra.mxu0 0
    %5342 = vmatprep.subr.bf16.mxu0 0
    %5343 = vmatpush1.bf16.msra.mxu0 0
    %5344 = vmatprep.subr.bf16.mxu0 0
    %5345 = vmatpush1.bf16.msra.mxu0 0
    %5346 = vmatprep.subr.bf16.mxu0 0
    %5347 = vmatpush1.bf16.msra.mxu0 0
    %5348 = vmatprep.subr.bf16.mxu0 0
    %5349 = vmatpush1.bf16.msra.mxu0 0
    %5350 = vmatprep.subr.bf16.mxu0 0
    %5351 = vmatpush1.bf16.msra.mxu0 0
    %5352 = vmatprep.subr.bf16.mxu0 0
    %5353 = vmatpush1.bf16.msra.mxu0 0
    %5354 = vmatprep.subr.bf16.mxu0 0
    %5355 = vmatpush1.bf16.msra.mxu0 0
    %5356 = vmatprep.subr.bf16.mxu0 0
    %5357 = vmatpush1.bf16.msra.mxu0 0
    %5358 = vmatprep.mubr.bf16.mxu0 0
    %5359 = vmatmul.mubr.bf16.gmra.mrb[0].mxu0 %v5324
    %v5360 = vpop.f32.mrb[0].mxu0
    %v5361 = vadd.f32 0.0, %v5360
    %v5362 = vpop.f32.mrb[0].mxu0
    %v5363 = vadd.f32 0.0, %v5362
    %v5364 = vpop.f32.mrb[0].mxu0
    %v5365 = vpop.f32.mrb[0].mxu0
    %5366 = vdwg.mxu0
    %v5369 = vcombine.low %v5361, %v5363
    %v5371 = vunpack.c.l.s4 1966171168
    %v5372 = vunpack.c.0.s8 %v5371
    %v5373 = vlaneseq
    %v5374 = vshrl.u32 %v5373, 7
    %v5375 = vsub.s32 %v5372, %v5374
    %v5376 = vrot.slane %v5369, %v5375
    %v5378 = vunpack.c.l.s4 1966171168
    %v5379 = vunpack.c.0.s8 %v5378
    %v5380 = vlaneseq
    %v5381 = vshrl.u32 %v5380, 7
    %v5382 = vsub.s32 %v5379, %v5381
    %v5383 = vrot.slane %v5376, %v5382
    %v5385 = vadd.f32 %v5272, %v5383
    %s5386 = scalar_lea.vmem %s7, 768
    %v5387 = vld [vmem:[%s5386] sm:$0xff]
    %v5388 = vld [vmem:[%s5386 + $0x8] sm:$0xff]
    %v5389 = vld [vmem:[%s5386 + $0x10] sm:$0xff]
    %v5390 = vld [vmem:[%s5386 + $0x18] sm:$0xff]
    %v5391 = vld [vmem:[%s5386 + $0x20] sm:$0xff]
    %v5392 = vld [vmem:[%s5386 + $0x28] sm:$0xff]
    %v5393 = vld [vmem:[%s5386 + $0x30] sm:$0xff]
    %v5394 = vld [vmem:[%s5386 + $0x38] sm:$0xff]
    %v5395 = vrot.slane %v4932, 2
    %v5404 = vunpack.c.l.b16 %v5387
    %v5405 = vunpack.c.h.b16 %v5387
    %v5406 = vunpack.c.l.b16 %v5388
    %v5407 = vunpack.c.h.b16 %v5388
    %v5408 = vunpack.c.l.b16 %v5389
    %v5409 = vunpack.c.h.b16 %v5389
    %v5410 = vunpack.c.l.b16 %v5390
    %v5411 = vunpack.c.h.b16 %v5390
    %v5412 = vunpack.c.l.b16 %v5391
    %v5413 = vunpack.c.h.b16 %v5391
    %v5414 = vunpack.c.l.b16 %v5392
    %v5415 = vunpack.c.h.b16 %v5392
    %v5416 = vunpack.c.l.b16 %v5393
    %v5417 = vunpack.c.h.b16 %v5393
    %v5418 = vunpack.c.l.b16 %v5394
    %v5419 = vunpack.c.h.b16 %v5394
    %v5420 = vpack.c.b16 %v5406, %v5404
    %v5421 = vpack.c.b16 %v5407, %v5405
    %v5422 = vpack.c.b16 %v5410, %v5408
    %v5423 = vpack.c.b16 %v5411, %v5409
    %v5424 = vpack.c.b16 %v5414, %v5412
    %v5425 = vpack.c.b16 %v5415, %v5413
    %v5426 = vpack.c.b16 %v5418, %v5416
    %v5427 = vpack.c.b16 %v5419, %v5417
    %v5437 = vsel %vm2081, %v5395, 0
    %5439 = vmatprep.subr.bf16.mxu0 %v5421
    %5440 = vmatpush1.bf16.msra.mxu0 %v5420
    %5441 = vmatprep.subr.bf16.mxu0 %v5423
    %5442 = vmatpush1.bf16.msra.mxu0 %v5422
    %5443 = vmatprep.subr.bf16.mxu0 %v5425
    %5444 = vmatpush1.bf16.msra.mxu0 %v5424
    %5445 = vmatprep.subr.bf16.mxu0 %v5427
    %5446 = vmatpush1.bf16.msra.mxu0 %v5426
    %5447 = vmatprep.subr.bf16.mxu0 0
    %5448 = vmatpush1.bf16.msra.mxu0 0
    %5449 = vmatprep.subr.bf16.mxu0 0
    %5450 = vmatpush1.bf16.msra.mxu0 0
    %5451 = vmatprep.subr.bf16.mxu0 0
    %5452 = vmatpush1.bf16.msra.mxu0 0
    %5453 = vmatprep.subr.bf16.mxu0 0
    %5454 = vmatpush1.bf16.msra.mxu0 0
    %5455 = vmatprep.subr.bf16.mxu0 0
    %5456 = vmatpush1.bf16.msra.mxu0 0
    %5457 = vmatprep.subr.bf16.mxu0 0
    %5458 = vmatpush1.bf16.msra.mxu0 0
    %5459 = vmatprep.subr.bf16.mxu0 0
    %5460 = vmatpush1.bf16.msra.mxu0 0
    %5461 = vmatprep.subr.bf16.mxu0 0
    %5462 = vmatpush1.bf16.msra.mxu0 0
    %5463 = vmatprep.subr.bf16.mxu0 0
    %5464 = vmatpush1.bf16.msra.mxu0 0
    %5465 = vmatprep.subr.bf16.mxu0 0
    %5466 = vmatpush1.bf16.msra.mxu0 0
    %5467 = vmatprep.subr.bf16.mxu0 0
    %5468 = vmatpush1.bf16.msra.mxu0 0
    %5469 = vmatprep.subr.bf16.mxu0 0
    %5470 = vmatpush1.bf16.msra.mxu0 0
    %5471 = vmatprep.mubr.bf16.mxu0 0
    %5472 = vmatmul.mubr.bf16.gmra.mrb[0].mxu0 %v5437
    %v5473 = vpop.f32.mrb[0].mxu0
    %v5474 = vadd.f32 0.0, %v5473
    %v5475 = vpop.f32.mrb[0].mxu0
    %v5476 = vadd.f32 0.0, %v5475
    %v5477 = vpop.f32.mrb[0].mxu0
    %v5478 = vpop.f32.mrb[0].mxu0
    %5479 = vdwg.mxu0
    %v5482 = vcombine.low %v5474, %v5476
    %v5484 = vunpack.c.l.s4 1966171168
    %v5485 = vunpack.c.0.s8 %v5484
    %v5486 = vlaneseq
    %v5487 = vshrl.u32 %v5486, 7
    %v5488 = vsub.s32 %v5485, %v5487
    %v5489 = vrot.slane %v5482, %v5488
    %v5491 = vunpack.c.l.s4 1966171168
    %v5492 = vunpack.c.0.s8 %v5491
    %v5493 = vlaneseq
    %v5494 = vshrl.u32 %v5493, 7
    %v5495 = vsub.s32 %v5492, %v5494
    %v5496 = vrot.slane %v5489, %v5495
    %v5498 = vadd.f32 %v5385, %v5496
    %s5499 = scalar_lea.vmem %s7, 832
    %v5500 = vld [vmem:[%s5499] sm:$0xff]
    %v5501 = vld [vmem:[%s5499 + $0x8] sm:$0xff]
    %v5502 = vld [vmem:[%s5499 + $0x10] sm:$0xff]
    %v5503 = vld [vmem:[%s5499 + $0x18] sm:$0xff]
    %v5504 = vld [vmem:[%s5499 + $0x20] sm:$0xff]
    %v5505 = vld [vmem:[%s5499 + $0x28] sm:$0xff]
    %v5506 = vld [vmem:[%s5499 + $0x30] sm:$0xff]
    %v5507 = vld [vmem:[%s5499 + $0x38] sm:$0xff]
    %v5508 = vrot.slane %v5054, 2
    %v5517 = vunpack.c.l.b16 %v5500
    %v5518 = vunpack.c.h.b16 %v5500
    %v5519 = vunpack.c.l.b16 %v5501
    %v5520 = vunpack.c.h.b16 %v5501
    %v5521 = vunpack.c.l.b16 %v5502
    %v5522 = vunpack.c.h.b16 %v5502
    %v5523 = vunpack.c.l.b16 %v5503
    %v5524 = vunpack.c.h.b16 %v5503
    %v5525 = vunpack.c.l.b16 %v5504
    %v5526 = vunpack.c.h.b16 %v5504
    %v5527 = vunpack.c.l.b16 %v5505
    %v5528 = vunpack.c.h.b16 %v5505
    %v5529 = vunpack.c.l.b16 %v5506
    %v5530 = vunpack.c.h.b16 %v5506
    %v5531 = vunpack.c.l.b16 %v5507
    %v5532 = vunpack.c.h.b16 %v5507
    %v5533 = vpack.c.b16 %v5519, %v5517
    %v5534 = vpack.c.b16 %v5520, %v5518
    %v5535 = vpack.c.b16 %v5523, %v5521
    %v5536 = vpack.c.b16 %v5524, %v5522
    %v5537 = vpack.c.b16 %v5527, %v5525
    %v5538 = vpack.c.b16 %v5528, %v5526
    %v5539 = vpack.c.b16 %v5531, %v5529
    %v5540 = vpack.c.b16 %v5532, %v5530
    %v5550 = vsel %vm2081, %v5508, 0
    %5552 = vmatprep.subr.bf16.mxu0 %v5534
    %5553 = vmatpush1.bf16.msra.mxu0 %v5533
    %5554 = vmatprep.subr.bf16.mxu0 %v5536
    %5555 = vmatpush1.bf16.msra.mxu0 %v5535
    %5556 = vmatprep.subr.bf16.mxu0 %v5538
    %5557 = vmatpush1.bf16.msra.mxu0 %v5537
    %5558 = vmatprep.subr.bf16.mxu0 %v5540
    %5559 = vmatpush1.bf16.msra.mxu0 %v5539
    %5560 = vmatprep.subr.bf16.mxu0 0
    %5561 = vmatpush1.bf16.msra.mxu0 0
    %5562 = vmatprep.subr.bf16.mxu0 0
    %5563 = vmatpush1.bf16.msra.mxu0 0
    %5564 = vmatprep.subr.bf16.mxu0 0
    %5565 = vmatpush1.bf16.msra.mxu0 0
    %5566 = vmatprep.subr.bf16.mxu0 0
    %5567 = vmatpush1.bf16.msra.mxu0 0
    %5568 = vmatprep.subr.bf16.mxu0 0
    %5569 = vmatpush1.bf16.msra.mxu0 0
    %5570 = vmatprep.subr.bf16.mxu0 0
    %5571 = vmatpush1.bf16.msra.mxu0 0
    %5572 = vmatprep.subr.bf16.mxu0 0
    %5573 = vmatpush1.bf16.msra.mxu0 0
    %5574 = vmatprep.subr.bf16.mxu0 0
    %5575 = vmatpush1.bf16.msra.mxu0 0
    %5576 = vmatprep.subr.bf16.mxu0 0
    %5577 = vmatpush1.bf16.msra.mxu0 0
    %5578 = vmatprep.subr.bf16.mxu0 0
    %5579 = vmatpush1.bf16.msra.mxu0 0
    %5580 = vmatprep.subr.bf16.mxu0 0
    %5581 = vmatpush1.bf16.msra.mxu0 0
    %5582 = vmatprep.subr.bf16.mxu0 0
    %5583 = vmatpush1.bf16.msra.mxu0 0
    %5584 = vmatprep.mubr.bf16.mxu0 0
    %5585 = vmatmul.mubr.bf16.gmra.mrb[0].mxu0 %v5550
    %v5586 = vpop.f32.mrb[0].mxu0
    %v5587 = vadd.f32 0.0, %v5586
    %v5588 = vpop.f32.mrb[0].mxu0
    %v5589 = vadd.f32 0.0, %v5588
    %v5590 = vpop.f32.mrb[0].mxu0
    %v5591 = vpop.f32.mrb[0].mxu0
    %5592 = vdwg.mxu0
    %v5595 = vcombine.low %v5587, %v5589
    %v5597 = vunpack.c.l.s4 1966171168
    %v5598 = vunpack.c.0.s8 %v5597
    %v5599 = vlaneseq
    %v5600 = vshrl.u32 %v5599, 7
    %v5601 = vsub.s32 %v5598, %v5600
    %v5602 = vrot.slane %v5595, %v5601
    %v5604 = vunpack.c.l.s4 1966171168
    %v5605 = vunpack.c.0.s8 %v5604
    %v5606 = vlaneseq
    %v5607 = vshrl.u32 %v5606, 7
    %v5608 = vsub.s32 %v5605, %v5607
    %v5609 = vrot.slane %v5602, %v5608
    %v5611 = vadd.f32 %v5498, %v5609
    %s5612 = scalar_lea.vmem %s7, 896
    %v5613 = vld [vmem:[%s5612] sm:$0xff]
    %v5614 = vld [vmem:[%s5612 + $0x8] sm:$0xff]
    %v5615 = vld [vmem:[%s5612 + $0x10] sm:$0xff]
    %v5616 = vld [vmem:[%s5612 + $0x18] sm:$0xff]
    %v5617 = vld [vmem:[%s5612 + $0x20] sm:$0xff]
    %v5618 = vld [vmem:[%s5612 + $0x28] sm:$0xff]
    %v5619 = vld [vmem:[%s5612 + $0x30] sm:$0xff]
    %v5620 = vld [vmem:[%s5612 + $0x38] sm:$0xff]
    %v5621 = vrot.slane %v4932, 3
    %v5630 = vunpack.c.l.b16 %v5613
    %v5631 = vunpack.c.h.b16 %v5613
    %v5632 = vunpack.c.l.b16 %v5614
    %v5633 = vunpack.c.h.b16 %v5614
    %v5634 = vunpack.c.l.b16 %v5615
    %v5635 = vunpack.c.h.b16 %v5615
    %v5636 = vunpack.c.l.b16 %v5616
    %v5637 = vunpack.c.h.b16 %v5616
    %v5638 = vunpack.c.l.b16 %v5617
    %v5639 = vunpack.c.h.b16 %v5617
    %v5640 = vunpack.c.l.b16 %v5618
    %v5641 = vunpack.c.h.b16 %v5618
    %v5642 = vunpack.c.l.b16 %v5619
    %v5643 = vunpack.c.h.b16 %v5619
    %v5644 = vunpack.c.l.b16 %v5620
    %v5645 = vunpack.c.h.b16 %v5620
    %v5646 = vpack.c.b16 %v5632, %v5630
    %v5647 = vpack.c.b16 %v5633, %v5631
    %v5648 = vpack.c.b16 %v5636, %v5634
    %v5649 = vpack.c.b16 %v5637, %v5635
    %v5650 = vpack.c.b16 %v5640, %v5638
    %v5651 = vpack.c.b16 %v5641, %v5639
    %v5652 = vpack.c.b16 %v5644, %v5642
    %v5653 = vpack.c.b16 %v5645, %v5643
    %v5663 = vsel %vm2081, %v5621, 0
    %5665 = vmatprep.subr.bf16.mxu0 %v5647
    %5666 = vmatpush1.bf16.msra.mxu0 %v5646
    %5667 = vmatprep.subr.bf16.mxu0 %v5649
    %5668 = vmatpush1.bf16.msra.mxu0 %v5648
    %5669 = vmatprep.subr.bf16.mxu0 %v5651
    %5670 = vmatpush1.bf16.msra.mxu0 %v5650
    %5671 = vmatprep.subr.bf16.mxu0 %v5653
    %5672 = vmatpush1.bf16.msra.mxu0 %v5652
    %5673 = vmatprep.subr.bf16.mxu0 0
    %5674 = vmatpush1.bf16.msra.mxu0 0
    %5675 = vmatprep.subr.bf16.mxu0 0
    %5676 = vmatpush1.bf16.msra.mxu0 0
    %5677 = vmatprep.subr.bf16.mxu0 0
    %5678 = vmatpush1.bf16.msra.mxu0 0
    %5679 = vmatprep.subr.bf16.mxu0 0
    %5680 = vmatpush1.bf16.msra.mxu0 0
    %5681 = vmatprep.subr.bf16.mxu0 0
    %5682 = vmatpush1.bf16.msra.mxu0 0
    %5683 = vmatprep.subr.bf16.mxu0 0
    %5684 = vmatpush1.bf16.msra.mxu0 0
    %5685 = vmatprep.subr.bf16.mxu0 0
    %5686 = vmatpush1.bf16.msra.mxu0 0
    %5687 = vmatprep.subr.bf16.mxu0 0
    %5688 = vmatpush1.bf16.msra.mxu0 0
    %5689 = vmatprep.subr.bf16.mxu0 0
    %5690 = vmatpush1.bf16.msra.mxu0 0
    %5691 = vmatprep.subr.bf16.mxu0 0
    %5692 = vmatpush1.bf16.msra.mxu0 0
    %5693 = vmatprep.subr.bf16.mxu0 0
    %5694 = vmatpush1.bf16.msra.mxu0 0
    %5695 = vmatprep.subr.bf16.mxu0 0
    %5696 = vmatpush1.bf16.msra.mxu0 0
    %5697 = vmatprep.mubr.bf16.mxu0 0
    %5698 = vmatmul.mubr.bf16.gmra.mrb[0].mxu0 %v5663
    %v5699 = vpop.f32.mrb[0].mxu0
    %v5700 = vadd.f32 0.0, %v5699
    %v5701 = vpop.f32.mrb[0].mxu0
    %v5702 = vadd.f32 0.0, %v5701
    %v5703 = vpop.f32.mrb[0].mxu0
    %v5704 = vpop.f32.mrb[0].mxu0
    %5705 = vdwg.mxu0
    %v5708 = vcombine.low %v5700, %v5702
    %v5710 = vunpack.c.l.s4 1966171168
    %v5711 = vunpack.c.0.s8 %v5710
    %v5712 = vlaneseq
    %v5713 = vshrl.u32 %v5712, 7
    %v5714 = vsub.s32 %v5711, %v5713
    %v5715 = vrot.slane %v5708, %v5714
    %v5717 = vunpack.c.l.s4 1966171168
    %v5718 = vunpack.c.0.s8 %v5717
    %v5719 = vlaneseq
    %v5720 = vshrl.u32 %v5719, 7
    %v5721 = vsub.s32 %v5718, %v5720
    %v5722 = vrot.slane %v5715, %v5721
    %v5724 = vadd.f32 %v5611, %v5722
    %s5725 = scalar_lea.vmem %s7, 960
    %v5726 = vld [vmem:[%s5725] sm:$0xff]
    %v5727 = vld [vmem:[%s5725 + $0x8] sm:$0xff]
    %v5728 = vld [vmem:[%s5725 + $0x10] sm:$0xff]
    %v5729 = vld [vmem:[%s5725 + $0x18] sm:$0xff]
    %v5730 = vld [vmem:[%s5725 + $0x20] sm:$0xff]
    %v5731 = vld [vmem:[%s5725 + $0x28] sm:$0xff]
    %v5732 = vld [vmem:[%s5725 + $0x30] sm:$0xff]
    %v5733 = vld [vmem:[%s5725 + $0x38] sm:$0xff]
    %v5734 = vrot.slane %v5054, 3
    %v5743 = vunpack.c.l.b16 %v5726
    %v5744 = vunpack.c.h.b16 %v5726
    %v5745 = vunpack.c.l.b16 %v5727
    %v5746 = vunpack.c.h.b16 %v5727
    %v5747 = vunpack.c.l.b16 %v5728
    %v5748 = vunpack.c.h.b16 %v5728
    %v5749 = vunpack.c.l.b16 %v5729
    %v5750 = vunpack.c.h.b16 %v5729
    %v5751 = vunpack.c.l.b16 %v5730
    %v5752 = vunpack.c.h.b16 %v5730
    %v5753 = vunpack.c.l.b16 %v5731
    %v5754 = vunpack.c.h.b16 %v5731
    %v5755 = vunpack.c.l.b16 %v5732
    %v5756 = vunpack.c.h.b16 %v5732
    %v5757 = vunpack.c.l.b16 %v5733
    %v5758 = vunpack.c.h.b16 %v5733
    %v5759 = vpack.c.b16 %v5745, %v5743
    %v5760 = vpack.c.b16 %v5746, %v5744
    %v5761 = vpack.c.b16 %v5749, %v5747
    %v5762 = vpack.c.b16 %v5750, %v5748
    %v5763 = vpack.c.b16 %v5753, %v5751
    %v5764 = vpack.c.b16 %v5754, %v5752
    %v5765 = vpack.c.b16 %v5757, %v5755
    %v5766 = vpack.c.b16 %v5758, %v5756
    %v5776 = vsel %vm2081, %v5734, 0
    %5778 = vmatprep.subr.bf16.mxu0 %v5760
    %5779 = vmatpush1.bf16.msra.mxu0 %v5759
    %5780 = vmatprep.subr.bf16.mxu0 %v5762
    %5781 = vmatpush1.bf16.msra.mxu0 %v5761
    %5782 = vmatprep.subr.bf16.mxu0 %v5764
    %5783 = vmatpush1.bf16.msra.mxu0 %v5763
    %5784 = vmatprep.subr.bf16.mxu0 %v5766
    %5785 = vmatpush1.bf16.msra.mxu0 %v5765
    %5786 = vmatprep.subr.bf16.mxu0 0
    %5787 = vmatpush1.bf16.msra.mxu0 0
    %5788 = vmatprep.subr.bf16.mxu0 0
    %5789 = vmatpush1.bf16.msra.mxu0 0
    %5790 = vmatprep.subr.bf16.mxu0 0
    %5791 = vmatpush1.bf16.msra.mxu0 0
    %5792 = vmatprep.subr.bf16.mxu0 0
    %5793 = vmatpush1.bf16.msra.mxu0 0
    %5794 = vmatprep.subr.bf16.mxu0 0
    %5795 = vmatpush1.bf16.msra.mxu0 0
    %5796 = vmatprep.subr.bf16.mxu0 0
    %5797 = vmatpush1.bf16.msra.mxu0 0
    %5798 = vmatprep.subr.bf16.mxu0 0
    %5799 = vmatpush1.bf16.msra.mxu0 0
    %5800 = vmatprep.subr.bf16.mxu0 0
    %5801 = vmatpush1.bf16.msra.mxu0 0
    %5802 = vmatprep.subr.bf16.mxu0 0
    %5803 = vmatpush1.bf16.msra.mxu0 0
    %5804 = vmatprep.subr.bf16.mxu0 0
    %5805 = vmatpush1.bf16.msra.mxu0 0
    %5806 = vmatprep.subr.bf16.mxu0 0
    %5807 = vmatpush1.bf16.msra.mxu0 0
    %5808 = vmatprep.subr.bf16.mxu0 0
    %5809 = vmatpush1.bf16.msra.mxu0 0
    %5810 = vmatprep.mubr.bf16.mxu0 0
    %5811 = vmatmul.mubr.bf16.gmra.mrb[0].mxu0 %v5776
    %v5812 = vpop.f32.mrb[0].mxu0
    %v5813 = vadd.f32 0.0, %v5812
    %v5814 = vpop.f32.mrb[0].mxu0
    %v5815 = vadd.f32 0.0, %v5814
    %v5816 = vpop.f32.mrb[0].mxu0
    %v5817 = vpop.f32.mrb[0].mxu0
    %5818 = vdwg.mxu0
    %v5821 = vcombine.low %v5813, %v5815
    %v5823 = vunpack.c.l.s4 1966171168
    %v5824 = vunpack.c.0.s8 %v5823
    %v5825 = vlaneseq
    %v5826 = vshrl.u32 %v5825, 7
    %v5827 = vsub.s32 %v5824, %v5826
    %v5828 = vrot.slane %v5821, %v5827
    %v5830 = vunpack.c.l.s4 1966171168
    %v5831 = vunpack.c.0.s8 %v5830
    %v5832 = vlaneseq
    %v5833 = vshrl.u32 %v5832, 7
    %v5834 = vsub.s32 %v5831, %v5833
    %v5835 = vrot.slane %v5828, %v5834
    %v5837 = vadd.f32 %v5724, %v5835
    %v5838 = vmax.f32 %v5837, 0.0
    %v5840 = vlaneseq
    %v5841 = vshrl.u32 %v5840, 7
    %v5842 = vsub.s32 0, %v5841
    %v5843 = vrot.slane %v5838, %v5842
    %v5844 = vlaneseq
    %v5845 = vshrl.u32 %v5844, 7
    %v5846 = vsub.s32 1, %v5845
    %v5847 = vrot.slane %v5838, %v5846
    %v5850 = vpack.c.bf16 %v5843, %v5843
    %v5851 = vpack.c.bf16 %v5847, %v5847
    %v5852 = vld [vmem:[%s9] sm:$0xff]
    %v5853 = vld [vmem:[%s9 + $0x8] sm:$0xff]
    %v5854 = vld [vmem:[%s9 + $0x10] sm:$0xff]
    %v5855 = vld [vmem:[%s9 + $0x18] sm:$0xff]
    %v5856 = vld [vmem:[%s9 + $0x20] sm:$0xff]
    %v5857 = vld [vmem:[%s9 + $0x28] sm:$0xff]
    %v5858 = vld [vmem:[%s9 + $0x30] sm:$0xff]
    %v5859 = vld [vmem:[%s9 + $0x38] sm:$0xff]
    %v5860 = vld [vmem:[%s9 + $0x40] sm:$0xff]
    %v5861 = vld [vmem:[%s9 + $0x48] sm:$0xff]
    %v5862 = vld [vmem:[%s9 + $0x50] sm:$0xff]
    %v5863 = vld [vmem:[%s9 + $0x58] sm:$0xff]
    %v5864 = vld [vmem:[%s9 + $0x60] sm:$0xff]
    %v5865 = vld [vmem:[%s9 + $0x68] sm:$0xff]
    %v5866 = vld [vmem:[%s9 + $0x70] sm:$0xff]
    %v5867 = vld [vmem:[%s9 + $0x78] sm:$0xff]
    %v5868 = vld [vmem:[%s9 + $0x80] sm:$0xff]
    %v5869 = vld [vmem:[%s9 + $0x88] sm:$0xff]
    %v5870 = vld [vmem:[%s9 + $0x90] sm:$0xff]
    %v5871 = vld [vmem:[%s9 + $0x98] sm:$0xff]
    %v5872 = vld [vmem:[%s9 + $0xa0] sm:$0xff]
    %v5873 = vld [vmem:[%s9 + $0xa8] sm:$0xff]
    %v5874 = vld [vmem:[%s9 + $0xb0] sm:$0xff]
    %v5875 = vld [vmem:[%s9 + $0xb8] sm:$0xff]
    %v5876 = vld [vmem:[%s9 + $0xc0] sm:$0xff]
    %v5877 = vld [vmem:[%s9 + $0xc8] sm:$0xff]
    %v5878 = vld [vmem:[%s9 + $0xd0] sm:$0xff]
    %v5879 = vld [vmem:[%s9 + $0xd8] sm:$0xff]
    %v5880 = vld [vmem:[%s9 + $0xe0] sm:$0xff]
    %v5881 = vld [vmem:[%s9 + $0xe8] sm:$0xff]
    %v5882 = vld [vmem:[%s9 + $0xf0] sm:$0xff]
    %v5883 = vld [vmem:[%s9 + $0xf8] sm:$0xff]
    %v5884 = vld [vmem:[%s9 + $0x100] sm:$0xff]
    %v5885 = vld [vmem:[%s9 + $0x108] sm:$0xff]
    %v5886 = vld [vmem:[%s9 + $0x110] sm:$0xff]
    %v5887 = vld [vmem:[%s9 + $0x118] sm:$0xff]
    %v5888 = vld [vmem:[%s9 + $0x120] sm:$0xff]
    %v5889 = vld [vmem:[%s9 + $0x128] sm:$0xff]
    %v5890 = vld [vmem:[%s9 + $0x130] sm:$0xff]
    %v5891 = vld [vmem:[%s9 + $0x138] sm:$0xff]
    %v5892 = vld [vmem:[%s9 + $0x140] sm:$0xff]
    %v5893 = vld [vmem:[%s9 + $0x148] sm:$0xff]
    %v5894 = vld [vmem:[%s9 + $0x150] sm:$0xff]
    %v5895 = vld [vmem:[%s9 + $0x158] sm:$0xff]
    %v5896 = vld [vmem:[%s9 + $0x160] sm:$0xff]
    %v5897 = vld [vmem:[%s9 + $0x168] sm:$0xff]
    %v5898 = vld [vmem:[%s9 + $0x170] sm:$0xff]
    %v5899 = vld [vmem:[%s9 + $0x178] sm:$0xff]
    %v5900 = vld [vmem:[%s9 + $0x180] sm:$0xff]
    %v5901 = vld [vmem:[%s9 + $0x188] sm:$0xff]
    %v5902 = vld [vmem:[%s9 + $0x190] sm:$0xff]
    %v5903 = vld [vmem:[%s9 + $0x198] sm:$0xff]
    %v5904 = vld [vmem:[%s9 + $0x1a0] sm:$0xff]
    %v5905 = vld [vmem:[%s9 + $0x1a8] sm:$0xff]
    %v5906 = vld [vmem:[%s9 + $0x1b0] sm:$0xff]
    %v5907 = vld [vmem:[%s9 + $0x1b8] sm:$0xff]
    %v5908 = vld [vmem:[%s9 + $0x1c0] sm:$0xff]
    %v5909 = vld [vmem:[%s9 + $0x1c8] sm:$0xff]
    %v5910 = vld [vmem:[%s9 + $0x1d0] sm:$0xff]
    %v5911 = vld [vmem:[%s9 + $0x1d8] sm:$0xff]
    %v5912 = vld [vmem:[%s9 + $0x1e0] sm:$0xff]
    %v5913 = vld [vmem:[%s9 + $0x1e8] sm:$0xff]
    %v5914 = vld [vmem:[%s9 + $0x1f0] sm:$0xff]
    %v5915 = vld [vmem:[%s9 + $0x1f8] sm:$0xff]
    %v5980 = vunpack.c.l.b16 %v5852
    %v5981 = vunpack.c.h.b16 %v5852
    %v5982 = vunpack.c.l.b16 %v5853
    %v5983 = vunpack.c.h.b16 %v5853
    %v5984 = vunpack.c.l.b16 %v5854
    %v5985 = vunpack.c.h.b16 %v5854
    %v5986 = vunpack.c.l.b16 %v5855
    %v5987 = vunpack.c.h.b16 %v5855
    %v5988 = vunpack.c.l.b16 %v5856
    %v5989 = vunpack.c.h.b16 %v5856
    %v5990 = vunpack.c.l.b16 %v5857
    %v5991 = vunpack.c.h.b16 %v5857
    %v5992 = vunpack.c.l.b16 %v5858
    %v5993 = vunpack.c.h.b16 %v5858
    %v5994 = vunpack.c.l.b16 %v5859
    %v5995 = vunpack.c.h.b16 %v5859
    %v5996 = vunpack.c.l.b16 %v5860
    %v5997 = vunpack.c.h.b16 %v5860
    %v5998 = vunpack.c.l.b16 %v5861
    %v5999 = vunpack.c.h.b16 %v5861
    %v6000 = vunpack.c.l.b16 %v5862
    %v6001 = vunpack.c.h.b16 %v5862
    %v6002 = vunpack.c.l.b16 %v5863
    %v6003 = vunpack.c.h.b16 %v5863
    %v6004 = vunpack.c.l.b16 %v5864
    %v6005 = vunpack.c.h.b16 %v5864
    %v6006 = vunpack.c.l.b16 %v5865
    %v6007 = vunpack.c.h.b16 %v5865
    %v6008 = vunpack.c.l.b16 %v5866
    %v6009 = vunpack.c.h.b16 %v5866
    %v6010 = vunpack.c.l.b16 %v5867
    %v6011 = vunpack.c.h.b16 %v5867
    %v6012 = vunpack.c.l.b16 %v5868
    %v6013 = vunpack.c.h.b16 %v5868
    %v6014 = vunpack.c.l.b16 %v5869
    %v6015 = vunpack.c.h.b16 %v5869
    %v6016 = vunpack.c.l.b16 %v5870
    %v6017 = vunpack.c.h.b16 %v5870
    %v6018 = vunpack.c.l.b16 %v5871
    %v6019 = vunpack.c.h.b16 %v5871
    %v6020 = vunpack.c.l.b16 %v5872
    %v6021 = vunpack.c.h.b16 %v5872
    %v6022 = vunpack.c.l.b16 %v5873
    %v6023 = vunpack.c.h.b16 %v5873
    %v6024 = vunpack.c.l.b16 %v5874
    %v6025 = vunpack.c.h.b16 %v5874
    %v6026 = vunpack.c.l.b16 %v5875
    %v6027 = vunpack.c.h.b16 %v5875
    %v6028 = vunpack.c.l.b16 %v5876
    %v6029 = vunpack.c.h.b16 %v5876
    %v6030 = vunpack.c.l.b16 %v5877
    %v6031 = vunpack.c.h.b16 %v5877
    %v6032 = vunpack.c.l.b16 %v5878
    %v6033 = vunpack.c.h.b16 %v5878
    %v6034 = vunpack.c.l.b16 %v5879
    %v6035 = vunpack.c.h.b16 %v5879
    %v6036 = vunpack.c.l.b16 %v5880
    %v6037 = vunpack.c.h.b16 %v5880
    %v6038 = vunpack.c.l.b16 %v5881
    %v6039 = vunpack.c.h.b16 %v5881
    %v6040 = vunpack.c.l.b16 %v5882
    %v6041 = vunpack.c.h.b16 %v5882
    %v6042 = vunpack.c.l.b16 %v5883
    %v6043 = vunpack.c.h.b16 %v5883
    %v6044 = vunpack.c.l.b16 %v5884
    %v6045 = vunpack.c.h.b16 %v5884
    %v6046 = vunpack.c.l.b16 %v5885
    %v6047 = vunpack.c.h.b16 %v5885
    %v6048 = vunpack.c.l.b16 %v5886
    %v6049 = vunpack.c.h.b16 %v5886
    %v6050 = vunpack.c.l.b16 %v5887
    %v6051 = vunpack.c.h.b16 %v5887
    %v6052 = vunpack.c.l.b16 %v5888
    %v6053 = vunpack.c.h.b16 %v5888
    %v6054 = vunpack.c.l.b16 %v5889
    %v6055 = vunpack.c.h.b16 %v5889
    %v6056 = vunpack.c.l.b16 %v5890
    %v6057 = vunpack.c.h.b16 %v5890
    %v6058 = vunpack.c.l.b16 %v5891
    %v6059 = vunpack.c.h.b16 %v5891
    %v6060 = vunpack.c.l.b16 %v5892
    %v6061 = vunpack.c.h.b16 %v5892
    %v6062 = vunpack.c.l.b16 %v5893
    %v6063 = vunpack.c.h.b16 %v5893
    %v6064 = vunpack.c.l.b16 %v5894
    %v6065 = vunpack.c.h.b16 %v5894
    %v6066 = vunpack.c.l.b16 %v5895
    %v6067 = vunpack.c.h.b16 %v5895
    %v6068 = vunpack.c.l.b16 %v5896
    %v6069 = vunpack.c.h.b16 %v5896
    %v6070 = vunpack.c.l.b16 %v5897
    %v6071 = vunpack.c.h.b16 %v5897
    %v6072 = vunpack.c.l.b16 %v5898
    %v6073 = vunpack.c.h.b16 %v5898
    %v6074 = vunpack.c.l.b16 %v5899
    %v6075 = vunpack.c.h.b16 %v5899
    %v6076 = vunpack.c.l.b16 %v5900
    %v6077 = vunpack.c.h.b16 %v5900
    %v6078 = vunpack.c.l.b16 %v5901
    %v6079 = vunpack.c.h.b16 %v5901
    %v6080 = vunpack.c.l.b16 %v5902
    %v6081 = vunpack.c.h.b16 %v5902
    %v6082 = vunpack.c.l.b16 %v5903
    %v6083 = vunpack.c.h.b16 %v5903
    %v6084 = vunpack.c.l.b16 %v5904
    %v6085 = vunpack.c.h.b16 %v5904
    %v6086 = vunpack.c.l.b16 %v5905
    %v6087 = vunpack.c.h.b16 %v5905
    %v6088 = vunpack.c.l.b16 %v5906
    %v6089 = vunpack.c.h.b16 %v5906
    %v6090 = vunpack.c.l.b16 %v5907
    %v6091 = vunpack.c.h.b16 %v5907
    %v6092 = vunpack.c.l.b16 %v5908
    %v6093 = vunpack.c.h.b16 %v5908
    %v6094 = vunpack.c.l.b16 %v5909
    %v6095 = vunpack.c.h.b16 %v5909
    %v6096 = vunpack.c.l.b16 %v5910
    %v6097 = vunpack.c.h.b16 %v5910
    %v6098 = vunpack.c.l.b16 %v5911
    %v6099 = vunpack.c.h.b16 %v5911
    %v6100 = vunpack.c.l.b16 %v5912
    %v6101 = vunpack.c.h.b16 %v5912
    %v6102 = vunpack.c.l.b16 %v5913
    %v6103 = vunpack.c.h.b16 %v5913
    %v6104 = vunpack.c.l.b16 %v5914
    %v6105 = vunpack.c.h.b16 %v5914
    %v6106 = vunpack.c.l.b16 %v5915
    %v6107 = vunpack.c.h.b16 %v5915
    %v6108 = vpack.c.b16 %v5984, %v5980
    %v6109 = vpack.c.b16 %v5985, %v5981
    %v6110 = vpack.c.b16 %v5986, %v5982
    %v6111 = vpack.c.b16 %v5987, %v5983
    %v6112 = vpack.c.b16 %v5992, %v5988
    %v6113 = vpack.c.b16 %v5993, %v5989
    %v6114 = vpack.c.b16 %v5994, %v5990
    %v6115 = vpack.c.b16 %v5995, %v5991
    %v6116 = vpack.c.b16 %v6000, %v5996
    %v6117 = vpack.c.b16 %v6001, %v5997
    %v6118 = vpack.c.b16 %v6002, %v5998
    %v6119 = vpack.c.b16 %v6003, %v5999
    %v6120 = vpack.c.b16 %v6008, %v6004
    %v6121 = vpack.c.b16 %v6009, %v6005
    %v6122 = vpack.c.b16 %v6010, %v6006
    %v6123 = vpack.c.b16 %v6011, %v6007
    %v6124 = vpack.c.b16 %v6016, %v6012
    %v6125 = vpack.c.b16 %v6017, %v6013
    %v6126 = vpack.c.b16 %v6018, %v6014
    %v6127 = vpack.c.b16 %v6019, %v6015
    %v6128 = vpack.c.b16 %v6024, %v6020
    %v6129 = vpack.c.b16 %v6025, %v6021
    %v6130 = vpack.c.b16 %v6026, %v6022
    %v6131 = vpack.c.b16 %v6027, %v6023
    %v6132 = vpack.c.b16 %v6032, %v6028
    %v6133 = vpack.c.b16 %v6033, %v6029
    %v6134 = vpack.c.b16 %v6034, %v6030
    %v6135 = vpack.c.b16 %v6035, %v6031
    %v6136 = vpack.c.b16 %v6040, %v6036
    %v6137 = vpack.c.b16 %v6041, %v6037
    %v6138 = vpack.c.b16 %v6042, %v6038
    %v6139 = vpack.c.b16 %v6043, %v6039
    %v6140 = vpack.c.b16 %v6048, %v6044
    %v6141 = vpack.c.b16 %v6049, %v6045
    %v6142 = vpack.c.b16 %v6050, %v6046
    %v6143 = vpack.c.b16 %v6051, %v6047
    %v6144 = vpack.c.b16 %v6056, %v6052
    %v6145 = vpack.c.b16 %v6057, %v6053
    %v6146 = vpack.c.b16 %v6058, %v6054
    %v6147 = vpack.c.b16 %v6059, %v6055
    %v6148 = vpack.c.b16 %v6064, %v6060
    %v6149 = vpack.c.b16 %v6065, %v6061
    %v6150 = vpack.c.b16 %v6066, %v6062
    %v6151 = vpack.c.b16 %v6067, %v6063
    %v6152 = vpack.c.b16 %v6072, %v6068
    %v6153 = vpack.c.b16 %v6073, %v6069
    %v6154 = vpack.c.b16 %v6074, %v6070
    %v6155 = vpack.c.b16 %v6075, %v6071
    %v6156 = vpack.c.b16 %v6080, %v6076
    %v6157 = vpack.c.b16 %v6081, %v6077
    %v6158 = vpack.c.b16 %v6082, %v6078
    %v6159 = vpack.c.b16 %v6083, %v6079
    %v6160 = vpack.c.b16 %v6088, %v6084
    %v6161 = vpack.c.b16 %v6089, %v6085
    %v6162 = vpack.c.b16 %v6090, %v6086
    %v6163 = vpack.c.b16 %v6091, %v6087
    %v6164 = vpack.c.b16 %v6096, %v6092
    %v6165 = vpack.c.b16 %v6097, %v6093
    %v6166 = vpack.c.b16 %v6098, %v6094
    %v6167 = vpack.c.b16 %v6099, %v6095
    %v6168 = vpack.c.b16 %v6104, %v6100
    %v6169 = vpack.c.b16 %v6105, %v6101
    %v6170 = vpack.c.b16 %v6106, %v6102
    %v6171 = vpack.c.b16 %v6107, %v6103
    %6236 = vmatprep.subr.bf16.mxu0 %v6109
    %6237 = vmatpush1.bf16.msra.mxu0 %v6108
    %6238 = vmatprep.subr.bf16.mxu0 %v6113
    %6239 = vmatpush1.bf16.msra.mxu0 %v6112
    %6240 = vmatprep.subr.bf16.mxu0 %v6117
    %6241 = vmatpush1.bf16.msra.mxu0 %v6116
    %6242 = vmatprep.subr.bf16.mxu0 %v6121
    %6243 = vmatpush1.bf16.msra.mxu0 %v6120
    %6244 = vmatprep.subr.bf16.mxu0 %v6125
    %6245 = vmatpush1.bf16.msra.mxu0 %v6124
    %6246 = vmatprep.subr.bf16.mxu0 %v6129
    %6247 = vmatpush1.bf16.msra.mxu0 %v6128
    %6248 = vmatprep.subr.bf16.mxu0 %v6133
    %6249 = vmatpush1.bf16.msra.mxu0 %v6132
    %6250 = vmatprep.subr.bf16.mxu0 %v6137
    %6251 = vmatpush1.bf16.msra.mxu0 %v6136
    %6252 = vmatprep.subr.bf16.mxu0 %v6141
    %6253 = vmatpush1.bf16.msra.mxu0 %v6140
    %6254 = vmatprep.subr.bf16.mxu0 %v6145
    %6255 = vmatpush1.bf16.msra.mxu0 %v6144
    %6256 = vmatprep.subr.bf16.mxu0 %v6149
    %6257 = vmatpush1.bf16.msra.mxu0 %v6148
    %6258 = vmatprep.subr.bf16.mxu0 %v6153
    %6259 = vmatpush1.bf16.msra.mxu0 %v6152
    %6260 = vmatprep.subr.bf16.mxu0 %v6157
    %6261 = vmatpush1.bf16.msra.mxu0 %v6156
    %6262 = vmatprep.subr.bf16.mxu0 %v6161
    %6263 = vmatpush1.bf16.msra.mxu0 %v6160
    %6264 = vmatprep.subr.bf16.mxu0 %v6165
    %6265 = vmatpush1.bf16.msra.mxu0 %v6164
    %6266 = vmatprep.subr.bf16.mxu0 %v6169
    %6267 = vmatpush1.bf16.msra.mxu0 %v6168
    %6268 = vmatprep.mubr.bf16.mxu0 %v5851
    %6269 = vmatmul.mubr.bf16.gmra.mrb[0].mxu0 %v5850
    %v6270 = vpop.f32.mrb[0].mxu0
    %v6271 = vadd.f32 0.0, %v6270
    %v6272 = vpop.f32.mrb[0].mxu0
    %v6273 = vadd.f32 0.0, %v6272
    %v6274 = vpop.f32.mrb[0].mxu0
    %v6275 = vpop.f32.mrb[0].mxu0
    %6276 = vdwg.mxu0
    %6277 = vmatprep.subr.bf16.mxu0 %v6111
    %6278 = vmatpush1.bf16.msra.mxu0 %v6110
    %6279 = vmatprep.subr.bf16.mxu0 %v6115
    %6280 = vmatpush1.bf16.msra.mxu0 %v6114
    %6281 = vmatprep.subr.bf16.mxu0 %v6119
    %6282 = vmatpush1.bf16.msra.mxu0 %v6118
    %6283 = vmatprep.subr.bf16.mxu0 %v6123
    %6284 = vmatpush1.bf16.msra.mxu0 %v6122
    %6285 = vmatprep.subr.bf16.mxu0 %v6127
    %6286 = vmatpush1.bf16.msra.mxu0 %v6126
    %6287 = vmatprep.subr.bf16.mxu0 %v6131
    %6288 = vmatpush1.bf16.msra.mxu0 %v6130
    %6289 = vmatprep.subr.bf16.mxu0 %v6135
    %6290 = vmatpush1.bf16.msra.mxu0 %v6134
    %6291 = vmatprep.subr.bf16.mxu0 %v6139
    %6292 = vmatpush1.bf16.msra.mxu0 %v6138
    %6293 = vmatprep.subr.bf16.mxu0 %v6143
    %6294 = vmatpush1.bf16.msra.mxu0 %v6142
    %6295 = vmatprep.subr.bf16.mxu0 %v6147
    %6296 = vmatpush1.bf16.msra.mxu0 %v6146
    %6297 = vmatprep.subr.bf16.mxu0 %v6151
    %6298 = vmatpush1.bf16.msra.mxu0 %v6150
    %6299 = vmatprep.subr.bf16.mxu0 %v6155
    %6300 = vmatpush1.bf16.msra.mxu0 %v6154
    %6301 = vmatprep.subr.bf16.mxu0 %v6159
    %6302 = vmatpush1.bf16.msra.mxu0 %v6158
    %6303 = vmatprep.subr.bf16.mxu0 %v6163
    %6304 = vmatpush1.bf16.msra.mxu0 %v6162
    %6305 = vmatprep.subr.bf16.mxu0 %v6167
    %6306 = vmatpush1.bf16.msra.mxu0 %v6166
    %6307 = vmatprep.subr.bf16.mxu0 %v6171
    %6308 = vmatpush1.bf16.msra.mxu0 %v6170
    %6309 = vmatprep.mubr.bf16.mxu0 %v5851
    %6310 = vmatmul.mubr.bf16.gmra.mrb[0].mxu0 %v5850
    %v6311 = vpop.f32.mrb[0].mxu0
    %v6312 = vadd.f32 0.0, %v6311
    %v6313 = vpop.f32.mrb[0].mxu0
    %v6314 = vadd.f32 0.0, %v6313
    %v6315 = vpop.f32.mrb[0].mxu0
    %v6316 = vpop.f32.mrb[0].mxu0
    %6317 = vdwg.mxu0
    %v6318 = vmax.f32 %v6271, 0.0
    %v6319 = vmax.f32 %v6273, 0.0
    %v6320 = vmax.f32 %v6312, 0.0
    %v6321 = vmax.f32 %v6314, 0.0
    %v6322 = vpack.c.bf16 %v6318, %v6318
    %v6323 = vpack.c.bf16 %v6319, %v6319
    %v6324 = vpack.c.bf16 %v6320, %v6320
    %v6325 = vpack.c.bf16 %v6321, %v6321
    %v6326 = vld [vmem:[%s10] sm:$0xf]
    %v6327 = vld [vmem:[%s10 + $0x4] sm:$0xf]
    %v6328 = vld [vmem:[%s10 + $0x8] sm:$0xf]
    %v6329 = vld [vmem:[%s10 + $0xc] sm:$0xf]
    %v6330 = vld [vmem:[%s10 + $0x10] sm:$0xf]
    %v6331 = vld [vmem:[%s10 + $0x14] sm:$0xf]
    %v6332 = vld [vmem:[%s10 + $0x18] sm:$0xf]
    %v6333 = vld [vmem:[%s10 + $0x1c] sm:$0xf]
    %v6334 = vld [vmem:[%s10 + $0x20] sm:$0xf]
    %v6335 = vld [vmem:[%s10 + $0x24] sm:$0xf]
    %v6336 = vld [vmem:[%s10 + $0x28] sm:$0xf]
    %v6337 = vld [vmem:[%s10 + $0x2c] sm:$0xf]
    %v6338 = vld [vmem:[%s10 + $0x30] sm:$0xf]
    %v6339 = vld [vmem:[%s10 + $0x34] sm:$0xf]
    %v6340 = vld [vmem:[%s10 + $0x38] sm:$0xf]
    %v6341 = vld [vmem:[%s10 + $0x3c] sm:$0xf]
    %v6342 = vld [vmem:[%s10 + $0x40] sm:$0xf]
    %v6343 = vld [vmem:[%s10 + $0x44] sm:$0xf]
    %v6344 = vld [vmem:[%s10 + $0x48] sm:$0xf]
    %v6345 = vld [vmem:[%s10 + $0x4c] sm:$0xf]
    %v6346 = vld [vmem:[%s10 + $0x50] sm:$0xf]
    %v6347 = vld [vmem:[%s10 + $0x54] sm:$0xf]
    %v6348 = vld [vmem:[%s10 + $0x58] sm:$0xf]
    %v6349 = vld [vmem:[%s10 + $0x5c] sm:$0xf]
    %v6350 = vld [vmem:[%s10 + $0x60] sm:$0xf]
    %v6351 = vld [vmem:[%s10 + $0x64] sm:$0xf]
    %v6352 = vld [vmem:[%s10 + $0x68] sm:$0xf]
    %v6353 = vld [vmem:[%s10 + $0x6c] sm:$0xf]
    %v6354 = vld [vmem:[%s10 + $0x70] sm:$0xf]
    %v6355 = vld [vmem:[%s10 + $0x74] sm:$0xf]
    %v6356 = vld [vmem:[%s10 + $0x78] sm:$0xf]
    %v6357 = vld [vmem:[%s10 + $0x7c] sm:$0xf]
    %v6358 = vld [vmem:[%s10 + $0x80] sm:$0xf]
    %v6359 = vld [vmem:[%s10 + $0x84] sm:$0xf]
    %v6360 = vld [vmem:[%s10 + $0x88] sm:$0xf]
    %v6361 = vld [vmem:[%s10 + $0x8c] sm:$0xf]
    %v6362 = vld [vmem:[%s10 + $0x90] sm:$0xf]
    %v6363 = vld [vmem:[%s10 + $0x94] sm:$0xf]
    %v6364 = vld [vmem:[%s10 + $0x98] sm:$0xf]
    %v6365 = vld [vmem:[%s10 + $0x9c] sm:$0xf]
    %v6366 = vld [vmem:[%s10 + $0xa0] sm:$0xf]
    %v6367 = vld [vmem:[%s10 + $0xa4] sm:$0xf]
    %v6368 = vld [vmem:[%s10 + $0xa8] sm:$0xf]
    %v6369 = vld [vmem:[%s10 + $0xac] sm:$0xf]
    %v6370 = vld [vmem:[%s10 + $0xb0] sm:$0xf]
    %v6371 = vld [vmem:[%s10 + $0xb4] sm:$0xf]
    %v6372 = vld [vmem:[%s10 + $0xb8] sm:$0xf]
    %v6373 = vld [vmem:[%s10 + $0xbc] sm:$0xf]
    %v6374 = vld [vmem:[%s10 + $0xc0] sm:$0xf]
    %v6375 = vld [vmem:[%s10 + $0xc4] sm:$0xf]
    %v6376 = vld [vmem:[%s10 + $0xc8] sm:$0xf]
    %v6377 = vld [vmem:[%s10 + $0xcc] sm:$0xf]
    %v6378 = vld [vmem:[%s10 + $0xd0] sm:$0xf]
    %v6379 = vld [vmem:[%s10 + $0xd4] sm:$0xf]
    %v6380 = vld [vmem:[%s10 + $0xd8] sm:$0xf]
    %v6381 = vld [vmem:[%s10 + $0xdc] sm:$0xf]
    %v6382 = vld [vmem:[%s10 + $0xe0] sm:$0xf]
    %v6383 = vld [vmem:[%s10 + $0xe4] sm:$0xf]
    %v6384 = vld [vmem:[%s10 + $0xe8] sm:$0xf]
    %v6385 = vld [vmem:[%s10 + $0xec] sm:$0xf]
    %v6386 = vld [vmem:[%s10 + $0xf0] sm:$0xf]
    %v6387 = vld [vmem:[%s10 + $0xf4] sm:$0xf]
    %v6388 = vld [vmem:[%s10 + $0xf8] sm:$0xf]
    %v6389 = vld [vmem:[%s10 + $0xfc] sm:$0xf]
    %v6454 = vunpack.c.l.b16 %v6326
    %v6455 = vunpack.c.l.b16 %v6327
    %v6456 = vunpack.c.l.b16 %v6328
    %v6457 = vunpack.c.l.b16 %v6329
    %v6458 = vunpack.c.l.b16 %v6330
    %v6459 = vunpack.c.l.b16 %v6331
    %v6460 = vunpack.c.l.b16 %v6332
    %v6461 = vunpack.c.l.b16 %v6333
    %v6462 = vunpack.c.l.b16 %v6334
    %v6463 = vunpack.c.l.b16 %v6335
    %v6464 = vunpack.c.l.b16 %v6336
    %v6465 = vunpack.c.l.b16 %v6337
    %v6466 = vunpack.c.l.b16 %v6338
    %v6467 = vunpack.c.l.b16 %v6339
    %v6468 = vunpack.c.l.b16 %v6340
    %v6469 = vunpack.c.l.b16 %v6341
    %v6470 = vunpack.c.l.b16 %v6342
    %v6471 = vunpack.c.l.b16 %v6343
    %v6472 = vunpack.c.l.b16 %v6344
    %v6473 = vunpack.c.l.b16 %v6345
    %v6474 = vunpack.c.l.b16 %v6346
    %v6475 = vunpack.c.l.b16 %v6347
    %v6476 = vunpack.c.l.b16 %v6348
    %v6477 = vunpack.c.l.b16 %v6349
    %v6478 = vunpack.c.l.b16 %v6350
    %v6479 = vunpack.c.l.b16 %v6351
    %v6480 = vunpack.c.l.b16 %v6352
    %v6481 = vunpack.c.l.b16 %v6353
    %v6482 = vunpack.c.l.b16 %v6354
    %v6483 = vunpack.c.l.b16 %v6355
    %v6484 = vunpack.c.l.b16 %v6356
    %v6485 = vunpack.c.l.b16 %v6357
    %v6486 = vunpack.c.l.b16 %v6358
    %v6487 = vunpack.c.l.b16 %v6359
    %v6488 = vunpack.c.l.b16 %v6360
    %v6489 = vunpack.c.l.b16 %v6361
    %v6490 = vunpack.c.l.b16 %v6362
    %v6491 = vunpack.c.l.b16 %v6363
    %v6492 = vunpack.c.l.b16 %v6364
    %v6493 = vunpack.c.l.b16 %v6365
    %v6494 = vunpack.c.l.b16 %v6366
    %v6495 = vunpack.c.l.b16 %v6367
    %v6496 = vunpack.c.l.b16 %v6368
    %v6497 = vunpack.c.l.b16 %v6369
    %v6498 = vunpack.c.l.b16 %v6370
    %v6499 = vunpack.c.l.b16 %v6371
    %v6500 = vunpack.c.l.b16 %v6372
    %v6501 = vunpack.c.l.b16 %v6373
    %v6502 = vunpack.c.l.b16 %v6374
    %v6503 = vunpack.c.l.b16 %v6375
    %v6504 = vunpack.c.l.b16 %v6376
    %v6505 = vunpack.c.l.b16 %v6377
    %v6506 = vunpack.c.l.b16 %v6378
    %v6507 = vunpack.c.l.b16 %v6379
    %v6508 = vunpack.c.l.b16 %v6380
    %v6509 = vunpack.c.l.b16 %v6381
    %v6510 = vunpack.c.l.b16 %v6382
    %v6511 = vunpack.c.l.b16 %v6383
    %v6512 = vunpack.c.l.b16 %v6384
    %v6513 = vunpack.c.l.b16 %v6385
    %v6514 = vunpack.c.l.b16 %v6386
    %v6515 = vunpack.c.l.b16 %v6387
    %v6516 = vunpack.c.l.b16 %v6388
    %v6517 = vunpack.c.l.b16 %v6389
    %v6518 = vpack.c.b16 %v6455, %v6454
    %v6519 = vpack.c.b16 %v6457, %v6456
    %v6520 = vpack.c.b16 %v6459, %v6458
    %v6521 = vpack.c.b16 %v6461, %v6460
    %v6522 = vpack.c.b16 %v6463, %v6462
    %v6523 = vpack.c.b16 %v6465, %v6464
    %v6524 = vpack.c.b16 %v6467, %v6466
    %v6525 = vpack.c.b16 %v6469, %v6468
    %v6526 = vpack.c.b16 %v6471, %v6470
    %v6527 = vpack.c.b16 %v6473, %v6472
    %v6528 = vpack.c.b16 %v6475, %v6474
    %v6529 = vpack.c.b16 %v6477, %v6476
    %v6530 = vpack.c.b16 %v6479, %v6478
    %v6531 = vpack.c.b16 %v6481, %v6480
    %v6532 = vpack.c.b16 %v6483, %v6482
    %v6533 = vpack.c.b16 %v6485, %v6484
    %v6534 = vpack.c.b16 %v6487, %v6486
    %v6535 = vpack.c.b16 %v6489, %v6488
    %v6536 = vpack.c.b16 %v6491, %v6490
    %v6537 = vpack.c.b16 %v6493, %v6492
    %v6538 = vpack.c.b16 %v6495, %v6494
    %v6539 = vpack.c.b16 %v6497, %v6496
    %v6540 = vpack.c.b16 %v6499, %v6498
    %v6541 = vpack.c.b16 %v6501, %v6500
    %v6542 = vpack.c.b16 %v6503, %v6502
    %v6543 = vpack.c.b16 %v6505, %v6504
    %v6544 = vpack.c.b16 %v6507, %v6506
    %v6545 = vpack.c.b16 %v6509, %v6508
    %v6546 = vpack.c.b16 %v6511, %v6510
    %v6547 = vpack.c.b16 %v6513, %v6512
    %v6548 = vpack.c.b16 %v6515, %v6514
    %v6549 = vpack.c.b16 %v6517, %v6516
    %6582 = vmatprep.subr.bf16.mxu0 0
    %6583 = vmatpush1.bf16.msra.mxu0 %v6518
    %6584 = vmatprep.subr.bf16.mxu0 0
    %6585 = vmatpush1.bf16.msra.mxu0 %v6519
    %6586 = vmatprep.subr.bf16.mxu0 0
    %6587 = vmatpush1.bf16.msra.mxu0 %v6520
    %6588 = vmatprep.subr.bf16.mxu0 0
    %6589 = vmatpush1.bf16.msra.mxu0 %v6521
    %6590 = vmatprep.subr.bf16.mxu0 0
    %6591 = vmatpush1.bf16.msra.mxu0 %v6522
    %6592 = vmatprep.subr.bf16.mxu0 0
    %6593 = vmatpush1.bf16.msra.mxu0 %v6523
    %6594 = vmatprep.subr.bf16.mxu0 0
    %6595 = vmatpush1.bf16.msra.mxu0 %v6524
    %6596 = vmatprep.subr.bf16.mxu0 0
    %6597 = vmatpush1.bf16.msra.mxu0 %v6525
    %6598 = vmatprep.subr.bf16.mxu0 0
    %6599 = vmatpush1.bf16.msra.mxu0 %v6526
    %6600 = vmatprep.subr.bf16.mxu0 0
    %6601 = vmatpush1.bf16.msra.mxu0 %v6527
    %6602 = vmatprep.subr.bf16.mxu0 0
    %6603 = vmatpush1.bf16.msra.mxu0 %v6528
    %6604 = vmatprep.subr.bf16.mxu0 0
    %6605 = vmatpush1.bf16.msra.mxu0 %v6529
    %6606 = vmatprep.subr.bf16.mxu0 0
    %6607 = vmatpush1.bf16.msra.mxu0 %v6530
    %6608 = vmatprep.subr.bf16.mxu0 0
    %6609 = vmatpush1.bf16.msra.mxu0 %v6531
    %6610 = vmatprep.subr.bf16.mxu0 0
    %6611 = vmatpush1.bf16.msra.mxu0 %v6532
    %6612 = vmatprep.subr.bf16.mxu0 0
    %6613 = vmatpush1.bf16.msra.mxu0 %v6533
    %6614 = vmatprep.mubr.bf16.mxu0 %v6323
    %6615 = vmatmul.mubr.bf16.gmra.mrb[0].mxu0 %v6322
    %v6616 = vpop.f32.mrb[0].mxu0
    %v6617 = vadd.f32 0.0, %v6616
    %v6618 = vpop.f32.mrb[0].mxu0
    %v6619 = vpop.f32.mrb[0].mxu0
    %v6620 = vpop.f32.mrb[0].mxu0
    %6621 = vdwg.mxu0
    %6622 = vmatprep.subr.bf16.mxu0 0
    %6623 = vmatpush1.bf16.msra.mxu0 %v6534
    %6624 = vmatprep.subr.bf16.mxu0 0
    %6625 = vmatpush1.bf16.msra.mxu0 %v6535
    %6626 = vmatprep.subr.bf16.mxu0 0
    %6627 = vmatpush1.bf16.msra.mxu0 %v6536
    %6628 = vmatprep.subr.bf16.mxu0 0
    %6629 = vmatpush1.bf16.msra.mxu0 %v6537
    %6630 = vmatprep.subr.bf16.mxu0 0
    %6631 = vmatpush1.bf16.msra.mxu0 %v6538
    %6632 = vmatprep.subr.bf16.mxu0 0
    %6633 = vmatpush1.bf16.msra.mxu0 %v6539
    %6634 = vmatprep.subr.bf16.mxu0 0
    %6635 = vmatpush1.bf16.msra.mxu0 %v6540
    %6636 = vmatprep.subr.bf16.mxu0 0
    %6637 = vmatpush1.bf16.msra.mxu0 %v6541
    %6638 = vmatprep.subr.bf16.mxu0 0
    %6639 = vmatpush1.bf16.msra.mxu0 %v6542
    %6640 = vmatprep.subr.bf16.mxu0 0
    %6641 = vmatpush1.bf16.msra.mxu0 %v6543
    %6642 = vmatprep.subr.bf16.mxu0 0
    %6643 = vmatpush1.bf16.msra.mxu0 %v6544
    %6644 = vmatprep.subr.bf16.mxu0 0
    %6645 = vmatpush1.bf16.msra.mxu0 %v6545
    %6646 = vmatprep.subr.bf16.mxu0 0
    %6647 = vmatpush1.bf16.msra.mxu0 %v6546
    %6648 = vmatprep.subr.bf16.mxu0 0
    %6649 = vmatpush1.bf16.msra.mxu0 %v6547
    %6650 = vmatprep.subr.bf16.mxu0 0
    %6651 = vmatpush1.bf16.msra.mxu0 %v6548
    %6652 = vmatprep.subr.bf16.mxu0 0
    %6653 = vmatpush1.bf16.msra.mxu0 %v6549
    %6654 = vmatprep.mubr.bf16.mxu0 %v6325
    %6655 = vmatmul.mubr.bf16.gmra.mrb[0].mxu0 %v6324
    %v6656 = vpop.f32.mrb[0].mxu0
    %v6657 = vadd.f32 %v6617, %v6656
    %v6658 = vpop.f32.mrb[0].mxu0
    %v6659 = vpop.f32.mrb[0].mxu0
    %v6660 = vpop.f32.mrb[0].mxu0
    %6661 = vdwg.mxu0
    %vm6662 = vcmask 8192
    %6663 = vst.msk [vmem:[#allocation2] sm:$0x1] %vm6662, %v6657
    // Predicated region
    $region46: #{two_stream_forward.1} parent=1 // pred_check
      _
    $region47: #{two_stream_forward.1} parent=1 // pred_check_branch
      %6665 = sbr.rel (0) target = $region49
    $region48: #{two_stream_forward.1} parent=1 // pred_region
      %s6667 = ssub.s32 16, 16
      %6668 = vsyncadd [#allocation3], %s6667
      %s6670 = sshll.u32 [#allocation2], 4
      %s6671 = int_to_ptr.vmem [resolvable:$true] %s6670
      %6673 = dma.vmem_to_hbm [thread:$0]  %s6671, 16, %s11, [#allocation3]
    $region49: #{two_stream_forward.1} parent=1 // pred_fallthru
      _
    // Predicated region
    $region50: #{two_stream_forward.1} parent=1 // pred_check
      _
    $region51: #{two_stream_forward.1} parent=1 // pred_check_branch
      %6675 = sbr.rel (0) target = $region53
    $region52: #{two_stream_forward.1} parent=1 // pred_region
      %6676 = dma.done [#allocation3], 16
    $region53: #{two_stream_forward.1} parent=1 // pred_fallthru
      _
    %6677 = vsyncpa [#allocation3], 1

</llo_original>
